<compile_context>
chip_gen: v7x
topology: tpu7x:2x2x1
jax: 0.10.0
libtpu: 0.0.40
codegen_flags: <defaults>
</compile_context>

<pallas_src>
import jax
import jax.numpy as jnp
import numpy as np
from jax.experimental import pallas as pl
from jax.experimental.pallas import tpu as pltpu

H1 = 2096           # logical hidden width of the PyTorch module
H1P = 2176          # lane-aligned (17 * 128); extra cols/rows are zero-padded
H2 = 1024
OUT = 1
TB_MAX = 128        # max batch tile (MXU row block)


def _critic_kernel(x_ref, w1_ref, b1_ref, w2_ref, b2_ref, w3_ref, b3_ref, o_ref):
    # Layer 1: (tb, S)bf16 @ (S, H1P)bf16 -> f32 accum; bias + ReLU in f32.
    h1 = jnp.dot(x_ref[...].astype(jnp.bfloat16), w1_ref[...],
                 preferred_element_type=jnp.float32)
    h1 = jnp.maximum(h1 + b1_ref[...], 0.0)
    # Layer 2: (tb, H1P)bf16 @ (H1P, H2)bf16 -> f32 accum; bias + ReLU in f32.
    h2 = jnp.dot(h1.astype(jnp.bfloat16), w2_ref[...],
                 preferred_element_type=jnp.float32)
    h2 = jnp.maximum(h2 + b2_ref[...], 0.0)
    # Layer 3: N=1 matmul replaced by elementwise multiply + lane reduction.
    o_ref[...] = jnp.sum(h2 * w3_ref[...], axis=-1, keepdims=True) + b3_ref[...]


@jax.jit
def critic_forward(x, params):
    """x: (B, state_dim) float32.  params: dict from init_critic_params."""
    B, S = x.shape
    # Adaptive batch tile: small batches round up to a multiple of 8 (f32
    # sublane granularity), large batches use full 128-row MXU tiles.
    tb = TB_MAX if B > TB_MAX else max(8, pl.cdiv(B, 8) * 8)
    b_pad = pl.cdiv(B, tb) * tb
    if b_pad != B:
        x = jnp.pad(x, ((0, b_pad - B), (0, 0)))
    nb = b_pad // tb

    out = pl.pallas_call(
        _critic_kernel,
        out_shape=jax.ShapeDtypeStruct((b_pad, OUT), jnp.float32),
        grid=(nb,),
        in_specs=[
            pl.BlockSpec((tb, S), lambda i: (i, 0)),    # x: tiled over batch
            pl.BlockSpec((S, H1P), lambda i: (0, 0)),   # w1 (VMEM-resident)
            pl.BlockSpec((1, H1P), lambda i: (0, 0)),   # b1
            pl.BlockSpec((H1P, H2), lambda i: (0, 0)),  # w2 (VMEM-resident)
            pl.BlockSpec((1, H2), lambda i: (0, 0)),    # b2
            pl.BlockSpec((1, H2), lambda i: (0, 0)),    # w3 as a (1, 1024) row
            pl.BlockSpec((1, 1), lambda i: (0, 0)),     # b3
        ],
        out_specs=pl.BlockSpec((tb, OUT), lambda i: (i, 0)),
        compiler_params=pltpu.CompilerParams(
            dimension_semantics=("parallel",),
            vmem_limit_bytes=32 << 20,
        ),
    )(
        x,
        params["w1"], params["b1"],
        params["w2"], params["b2"],
        params["w3"], params["b3"],
    )
    return out[:B]


def init_critic_params(state_dim, key):
    """Mimics PyTorch nn.Linear default init (uniform +-1/sqrt(fan_in)).

    Weights are pre-transposed to (in, out), lane-padded (H1 -> H1P) with
    zeros, and stored in bfloat16; biases stay f32 as (1, out) rows.
    The last layer's weight is stored as a (1, 1024) f32 row for the
    VPU/XLU reduction.
    """
    ks = jax.random.split(key, 6)

    def linear(kw, kb, fan_in, fan_out):
        bound = 1.0 / np.sqrt(fan_in)
        w = jax.random.uniform(kw, (fan_in, fan_out), jnp.float32, -bound, bound)
        b = jax.random.uniform(kb, (1, fan_out), jnp.float32, -bound, bound)
        return w, b

    w1, b1 = linear(ks[0], ks[1], state_dim, H1)
    w2, b2 = linear(ks[2], ks[3], H1, H2)
    w3, b3 = linear(ks[4], ks[5], H2, OUT)

    # Lane-align H1: pad w1/b1 columns and w2 rows with zeros (math unchanged).
    w1 = jnp.pad(w1, ((0, 0), (0, H1P - H1)))
    b1 = jnp.pad(b1, ((0, 0), (0, H1P - H1)))
    w2 = jnp.pad(w2, ((0, H1P - H1), (0, 0)))

    return {
        "w1": w1.astype(jnp.bfloat16),
        "b1": b1,
        "w2": w2.astype(jnp.bfloat16),
        "b2": b2,
        "w3": w3.reshape(1, H2),       # (1024, 1) -> (1, 1024) row, f32
        "b3": b3.reshape(1, 1),
    }


def critic_reference(x, p):
    """Pure-jnp reference with identical bf16-weight / f32-accumulate math."""
    h1 = jnp.dot(x.astype(jnp.bfloat16), p["w1"], preferred_element_type=jnp.float32)
    h1 = jnp.maximum(h1 + p["b1"], 0.0)
    h2 = jnp.dot(h1.astype(jnp.bfloat16), p["w2"], preferred_element_type=jnp.float32)
    h2 = jnp.maximum(h2 + p["b2"], 0.0)
    return jnp.sum(h2 * p["w3"], axis=-1, keepdims=True) + p["b3"]


if __name__ == "__main__":
    key = jax.random.PRNGKey(0)
    k_param, k_x = jax.random.split(key)

    batch = 2
    state_dim = 32  # small synthetic state dimension
    params = init_critic_params(state_dim, k_param)
    x = jax.random.normal(k_x, (batch, state_dim), jnp.float32)

    out = jax.block_until_ready(critic_forward(x, params))
    ref = jax.block_until_ready(critic_reference(x, params))

    assert out.shape == (batch, OUT), out.shape
    np.testing.assert_allclose(np.asarray(out), np.asarray(ref), rtol=1e-3, atol=1e-3)
    print("KERNEL_OK")
</pallas_src>

<mosaic_0001>
module attributes {stable_mosaic.version = 11 : i64} {
  func.func @_critic_kernel(%arg0: i32, %arg1: memref<8x32xf32, #tpu.memory_space<vmem>>, %arg2: memref<32x2176xbf16, #tpu.memory_space<vmem>>, %arg3: memref<1x2176xf32, #tpu.memory_space<vmem>>, %arg4: memref<2176x1024xbf16, #tpu.memory_space<vmem>>, %arg5: memref<1x1024xf32, #tpu.memory_space<vmem>>, %arg6: memref<1x1024xf32, #tpu.memory_space<vmem>>, %arg7: memref<1x1xf32, #tpu.memory_space<vmem>>, %arg8: memref<8x1xf32, #tpu.memory_space<vmem>>) attributes {dimension_semantics = [#tpu.dimension_semantics<parallel>], iteration_bounds = array<i64: 1>, scalar_prefetch = 0 : i64, scratch_operands = 0 : i64, tpu.core_type = #tpu.core_type<tc>, window_params = [{transform_indices = @transform_0, window_bounds = array<i64: 8, 32>}, {pipeline_mode = #tpu.pipeline_mode<synchronous>, transform_indices = @transform_1, window_bounds = array<i64: 32, 2176>}, {pipeline_mode = #tpu.pipeline_mode<synchronous>, transform_indices = @transform_2, window_bounds = array<i64: 1, 2176>}, {pipeline_mode = #tpu.pipeline_mode<synchronous>, transform_indices = @transform_3, window_bounds = array<i64: 2176, 1024>}, {pipeline_mode = #tpu.pipeline_mode<synchronous>, transform_indices = @transform_4, window_bounds = array<i64: 1, 1024>}, {pipeline_mode = #tpu.pipeline_mode<synchronous>, transform_indices = @transform_5, window_bounds = array<i64: 1, 1024>}, {pipeline_mode = #tpu.pipeline_mode<synchronous>, transform_indices = @transform_6, window_bounds = array<i64: 1, 1>}, {transform_indices = @transform_7, window_bounds = array<i64: 8, 1>}]} {
    %c0 = arith.constant 0 : index
    %c0_0 = arith.constant 0 : index
    %0 = vector.load %arg1[%c0, %c0_0] : memref<8x32xf32, #tpu.memory_space<vmem>>, vector<8x32xf32>
    %1 = arith.truncf %0 : vector<8x32xf32> to vector<8x32xbf16>
    %c0_1 = arith.constant 0 : index
    %c0_2 = arith.constant 0 : index
    %2 = vector.load %arg2[%c0_1, %c0_2] : memref<32x2176xbf16, #tpu.memory_space<vmem>>, vector<32x2176xbf16>
    %cst = arith.constant dense<0.000000e+00> : vector<8x2176xf32>
    %3 = tpu.matmul %1, %2, %cst {dimension_numbers = #tpu.dot_dimension_numbers<[1], [0], [0], [1], [0, 0, 1, 1], [], []>} : vector<8x32xbf16>, vector<32x2176xbf16>, vector<8x2176xf32> -> vector<8x2176xf32>
    %c0_3 = arith.constant 0 : index
    %c0_4 = arith.constant 0 : index
    %4 = vector.load %arg3[%c0_3, %c0_4] : memref<1x2176xf32, #tpu.memory_space<vmem>>, vector<1x2176xf32>
    %5 = vector.broadcast %4 : vector<1x2176xf32> to vector<8x2176xf32>
    %6 = arith.addf %3, %5 : vector<8x2176xf32>
    %cst_5 = arith.constant 0.000000e+00 : f32
    %7 = vector.broadcast %cst_5 : f32 to vector<8x2176xf32>
    %8 = arith.maximumf %6, %7 : vector<8x2176xf32>
    %9 = arith.truncf %8 : vector<8x2176xf32> to vector<8x2176xbf16>
    %c0_6 = arith.constant 0 : index
    %c0_7 = arith.constant 0 : index
    %10 = vector.load %arg4[%c0_6, %c0_7] : memref<2176x1024xbf16, #tpu.memory_space<vmem>>, vector<2176x1024xbf16>
    %cst_8 = arith.constant dense<0.000000e+00> : vector<8x1024xf32>
    %11 = tpu.matmul %9, %10, %cst_8 {dimension_numbers = #tpu.dot_dimension_numbers<[1], [0], [0], [1], [0, 0, 1, 1], [], []>} : vector<8x2176xbf16>, vector<2176x1024xbf16>, vector<8x1024xf32> -> vector<8x1024xf32>
    %c0_9 = arith.constant 0 : index
    %c0_10 = arith.constant 0 : index
    %12 = vector.load %arg5[%c0_9, %c0_10] : memref<1x1024xf32, #tpu.memory_space<vmem>>, vector<1x1024xf32>
    %13 = vector.broadcast %12 : vector<1x1024xf32> to vector<8x1024xf32>
    %14 = arith.addf %11, %13 : vector<8x1024xf32>
    %cst_11 = arith.constant 0.000000e+00 : f32
    %15 = vector.broadcast %cst_11 : f32 to vector<8x1024xf32>
    %16 = arith.maximumf %14, %15 : vector<8x1024xf32>
    %c0_12 = arith.constant 0 : index
    %c0_13 = arith.constant 0 : index
    %17 = vector.load %arg6[%c0_12, %c0_13] : memref<1x1024xf32, #tpu.memory_space<vmem>>, vector<1x1024xf32>
    %18 = vector.broadcast %17 : vector<1x1024xf32> to vector<8x1024xf32>
    %19 = arith.mulf %16, %18 : vector<8x1024xf32>
    %cst_14 = arith.constant dense<0.000000e+00> : vector<8xf32>
    %20 = vector.multi_reduction <add>, %19, %cst_14 [1] : vector<8x1024xf32> to vector<8xf32>
    %21 = vector.shape_cast %20 : vector<8xf32> to vector<8x1xf32>
    %c0_15 = arith.constant 0 : index
    %c0_16 = arith.constant 0 : index
    %22 = vector.load %arg7[%c0_15, %c0_16] : memref<1x1xf32, #tpu.memory_space<vmem>>, vector<1x1xf32>
    %23 = vector.broadcast %22 : vector<1x1xf32> to vector<8x1xf32>
    %24 = arith.addf %21, %23 : vector<8x1xf32>
    %c0_17 = arith.constant 0 : index
    %c0_18 = arith.constant 0 : index
    %25 = vector.load %arg8[%c0_17, %c0_18] : memref<8x1xf32, #tpu.memory_space<vmem>>, vector<8x1xf32>
    tpu.vector_store %arg8[%c0_17, %c0_18], %24 {strides = array<i32>} : memref<8x1xf32, #tpu.memory_space<vmem>>, vector<8x1xf32>,
    return
  }
  func.func @transform_0(%arg0: i32) -> (i32, i32) {
    %c0_i32 = arith.constant 0 : i32
    %c0_i32_0 = arith.constant 0 : i32
    return %arg0, %c0_i32 : i32, i32
  }
  func.func @transform_1(%arg0: i32) -> (i32, i32) {
    %c0_i32 = arith.constant 0 : i32
    %c0_i32_0 = arith.constant 0 : i32
    %c0_i32_1 = arith.constant 0 : i32
    return %c0_i32, %c0_i32_0 : i32, i32
  }
  func.func @transform_2(%arg0: i32) -> (i32, i32) {
    %c0_i32 = arith.constant 0 : i32
    %c0_i32_0 = arith.constant 0 : i32
    %c0_i32_1 = arith.constant 0 : i32
    return %c0_i32, %c0_i32_0 : i32, i32
  }
  func.func @transform_3(%arg0: i32) -> (i32, i32) {
    %c0_i32 = arith.constant 0 : i32
    %c0_i32_0 = arith.constant 0 : i32
    %c0_i32_1 = arith.constant 0 : i32
    return %c0_i32, %c0_i32_0 : i32, i32
  }
  func.func @transform_4(%arg0: i32) -> (i32, i32) {
    %c0_i32 = arith.constant 0 : i32
    %c0_i32_0 = arith.constant 0 : i32
    %c0_i32_1 = arith.constant 0 : i32
    return %c0_i32, %c0_i32_0 : i32, i32
  }
  func.func @transform_5(%arg0: i32) -> (i32, i32) {
    %c0_i32 = arith.constant 0 : i32
    %c0_i32_0 = arith.constant 0 : i32
    %c0_i32_1 = arith.constant 0 : i32
    return %c0_i32, %c0_i32_0 : i32, i32
  }
  func.func @transform_6(%arg0: i32) -> (i32, i32) {
    %c0_i32 = arith.constant 0 : i32
    %c0_i32_0 = arith.constant 0 : i32
    %c0_i32_1 = arith.constant 0 : i32
    return %c0_i32, %c0_i32_0 : i32, i32
  }
  func.func @transform_7(%arg0: i32) -> (i32, i32) {
    %c0_i32 = arith.constant 0 : i32
    %c0_i32_0 = arith.constant 0 : i32
    return %arg0, %c0_i32 : i32, i32
  }
}

</mosaic_0001>

<llo_original>
// kernel: critic_forward.1
$region0: #{critic_forward.1}
  #allocation0 [shape = 'u32[]', space=smem, size = 0x4, offset = 0x4, fixed_abs, tag = 'smem constant byte address 0x4 - core index']
  #allocation1 [shape = 'u32[144,128]{1,0:T(1,128)}', space=vmem, size = 0x12000, scoped, tag = 'internal scratch']
  #allocation2 [shape = 'f32[1,1]{1,0:T(1,128)S(1)}', space=vmem, size = 0x200, scoped, tag = 'scoped memory for critic_forward.1']
  %s0 = inlined_call_operand.vmem [shape: f32[8,32], index: 0, kind: input, shape index: {}]
  %s1 = inlined_call_operand.hbm [shape: bf16[32,2176], index: 1, kind: input, shape index: {}]
  %s2 = inlined_call_operand.hbm [shape: f32[1,2176], index: 2, kind: input, shape index: {}]
  %s3 = inlined_call_operand.hbm [shape: bf16[2176,1024], index: 3, kind: input, shape index: {}]
  %s4 = inlined_call_operand.hbm [shape: f32[1,1024], index: 4, kind: input, shape index: {}]
  %s5 = inlined_call_operand.hbm [shape: f32[1,1024], index: 5, kind: input, shape index: {}]
  %s6 = inlined_call_operand.<no memory space> [shape: f32[1,1], index: 6, kind: input, shape index: {}]
  %s7 = inlined_call_operand.vmem [shape: f32[8,1], index: 7, kind: output, shape index: {}]
  %s8 = sld [smem:[#allocation0]]
  $region58: #{critic_forward.1} parent=0
    _
  %s10 = ssub.s32 1, %s8
  %s11 = scalar_select 0, %s10, %s8
  %v12 = vstv %s6
  %13 = vst [vmem:[#allocation2] sm:$0x1] %v12
  $region1: #{critic_forward.1} parent=0
    #allocation3 [shape = 'u8[139264]{0}', space=vmem, size = 0x22000, scoped, tag = 'input window, operand 1, single buffered']
    #allocation4 [shape = 's32[1]{0}', space=sflag, size = 0x4, scoped, tag = 'scoped memory for critic_forward.1']
    #allocation5 [shape = 'u8[8704]{0}', space=vmem, size = 0x2400, scoped, tag = 'input window, operand 2, single buffered']
    #allocation6 [shape = 's32[1]{0}', space=sflag, size = 0x4, scoped, tag = 'scoped memory for critic_forward.1']
    #allocation7 [shape = 'u8[4456448]{0}', space=vmem, size = 0x440000, scoped, tag = 'input window, operand 3, single buffered']
    #allocation8 [shape = 'u8[4096]{0}', space=vmem, size = 0x1000, scoped, tag = 'input window, operand 4, single buffered']
    #allocation9 [shape = 's32[1]{0}', space=sflag, size = 0x4, scoped, tag = 'scoped memory for critic_forward.1']
    #allocation10 [shape = 'u8[4096]{0}', space=vmem, size = 0x1000, scoped, tag = 'input window, operand 5, single buffered']
    %14 = vsyncpa [#allocation4], 0
    %15 = vsyncpa [#allocation6], 0
    %16 = vsyncpa [#allocation9], 0
    // Predicated region
    $region2: #{critic_forward.1} parent=1 // pred_check
      _
    $region3: #{critic_forward.1} parent=1 // pred_check_branch
      %18 = sbr.rel (0) target = $region5
    $region4: #{critic_forward.1} parent=1 // pred_region
      _
    $region5: #{critic_forward.1} parent=1 // pred_fallthru
      _
    // Predicated region
    $region6: #{critic_forward.1} parent=1 // pred_check
      _
    $region7: #{critic_forward.1} parent=1 // pred_check_branch
      %20 = sbr.rel (0) target = $region9
    $region8: #{critic_forward.1} parent=1 // pred_region
      %s22 = ssub.s32 4352, 4352
      %23 = vsyncadd [#allocation4], %s22
      %s24 = sshll.u32 [#allocation3], 4
      %s25 = int_to_ptr.vmem [resolvable:$true] %s24
      %30 = dma.hbm_to_vmem [thread:$0]  %s1, 4352, %s25, [#allocation4], 1088, 1088, 68
    $region9: #{critic_forward.1} parent=1 // pred_fallthru
      _
    // Predicated region
    $region10: #{critic_forward.1} parent=1 // pred_check
      _
    $region11: #{critic_forward.1} parent=1 // pred_check_branch
      %32 = sbr.rel (0) target = $region13
    $region12: #{critic_forward.1} parent=1 // pred_region
      %s34 = ssub.s32 272, 272
      %35 = vsyncadd [#allocation6], %s34
      %s37 = sshll.u32 [#allocation5], 4
      %s38 = int_to_ptr.vmem [resolvable:$true] %s37
      %40 = dma.hbm_to_vmem [thread:$0]  %s2, 272, %s38, [#allocation6]
    $region13: #{critic_forward.1} parent=1 // pred_fallthru
      _
    // Predicated region
    $region14: #{critic_forward.1} parent=1 // pred_check
      _
    $region15: #{critic_forward.1} parent=1 // pred_check_branch
      %42 = sbr.rel (0) target = $region17
    $region16: #{critic_forward.1} parent=1 // pred_region
      %s44 = ssub.s32 139264, 139264
      %45 = vsyncadd [#allocation6], %s44
      %s46 = sshll.u32 [#allocation7], 4
      %s47 = int_to_ptr.vmem [resolvable:$true] %s46
      %52 = dma.hbm_to_vmem [thread:$0]  %s3, 139264, %s47, [#allocation6], 512, 512, 32
    $region17: #{critic_forward.1} parent=1 // pred_fallthru
      _
    // Predicated region
    $region18: #{critic_forward.1} parent=1 // pred_check
      _
    $region19: #{critic_forward.1} parent=1 // pred_check_branch
      %54 = sbr.rel (0) target = $region21
    $region20: #{critic_forward.1} parent=1 // pred_region
      %s56 = ssub.s32 128, 128
      %57 = vsyncadd [#allocation9], %s56
      %s59 = sshll.u32 [#allocation8], 4
      %s60 = int_to_ptr.vmem [resolvable:$true] %s59
      %62 = dma.hbm_to_vmem [thread:$0]  %s4, 128, %s60, [#allocation9]
    $region21: #{critic_forward.1} parent=1 // pred_fallthru
      _
    // Predicated region
    $region22: #{critic_forward.1} parent=1 // pred_check
      _
    $region23: #{critic_forward.1} parent=1 // pred_check_branch
      %64 = sbr.rel (0) target = $region25
    $region24: #{critic_forward.1} parent=1 // pred_region
      %s66 = ssub.s32 128, 128
      %67 = vsyncadd [#allocation9], %s66
      %s69 = sshll.u32 [#allocation10], 4
      %s70 = int_to_ptr.vmem [resolvable:$true] %s69
      %72 = dma.hbm_to_vmem [thread:$0]  %s5, 128, %s70, [#allocation9]
    $region25: #{critic_forward.1} parent=1 // pred_fallthru
      _
    // Predicated region
    $region26: #{critic_forward.1} parent=1 // pred_check
      _
    $region27: #{critic_forward.1} parent=1 // pred_check_branch
      %74 = sbr.rel (0) target = $region29
    $region28: #{critic_forward.1} parent=1 // pred_region
      _
    $region29: #{critic_forward.1} parent=1 // pred_fallthru
      _
    // Predicated region
    $region30: #{critic_forward.1} parent=1 // pred_check
      _
    $region31: #{critic_forward.1} parent=1 // pred_check_branch
      %76 = sbr.rel (0) target = $region33
    $region32: #{critic_forward.1} parent=1 // pred_region
      %77 = dma.done [#allocation4], 4352
    $region33: #{critic_forward.1} parent=1 // pred_fallthru
      _
    // Predicated region
    $region34: #{critic_forward.1} parent=1 // pred_check
      _
    $region35: #{critic_forward.1} parent=1 // pred_check_branch
      %79 = sbr.rel (0) target = $region37
    $region36: #{critic_forward.1} parent=1 // pred_region
      %80 = dma.done [#allocation6], 272
    $region37: #{critic_forward.1} parent=1 // pred_fallthru
      _
    // Predicated region
    $region38: #{critic_forward.1} parent=1 // pred_check
      _
    $region39: #{critic_forward.1} parent=1 // pred_check_branch
      %82 = sbr.rel (0) target = $region41
    $region40: #{critic_forward.1} parent=1 // pred_region
      %83 = dma.done [#allocation6], 139264
    $region41: #{critic_forward.1} parent=1 // pred_fallthru
      _
    // Predicated region
    $region42: #{critic_forward.1} parent=1 // pred_check
      _
    $region43: #{critic_forward.1} parent=1 // pred_check_branch
      %85 = sbr.rel (0) target = $region45
    $region44: #{critic_forward.1} parent=1 // pred_region
      %86 = dma.done [#allocation9], 128
    $region45: #{critic_forward.1} parent=1 // pred_fallthru
      _
    // Predicated region
    $region46: #{critic_forward.1} parent=1 // pred_check
      _
    $region47: #{critic_forward.1} parent=1 // pred_check_branch
      %88 = sbr.rel (0) target = $region49
    $region48: #{critic_forward.1} parent=1 // pred_region
      %89 = dma.done [#allocation9], 128
    $region49: #{critic_forward.1} parent=1 // pred_fallthru
      _
    %v91 = vld [vmem:[%s0] sm:$0xff]
    %v92 = vpack.c.bf16 %v91, %v91
    %v93 = vld [vmem:[#allocation3] sm:$0xff]
    %v94 = vld [vmem:[#allocation3 + $0x8] sm:$0xff]
    %v95 = vld [vmem:[#allocation3 + $0x10] sm:$0xff]
    %v96 = vld [vmem:[#allocation3 + $0x18] sm:$0xff]
    %v97 = vld [vmem:[#allocation3 + $0x20] sm:$0xff]
    %v98 = vld [vmem:[#allocation3 + $0x28] sm:$0xff]
    %v99 = vld [vmem:[#allocation3 + $0x30] sm:$0xff]
    %v100 = vld [vmem:[#allocation3 + $0x38] sm:$0xff]
    %v101 = vld [vmem:[#allocation3 + $0x40] sm:$0xf]
    %v102 = vld [vmem:[#allocation3 + $0x44] sm:$0xff]
    %v103 = vld [vmem:[#allocation3 + $0x4c] sm:$0xff]
    %v104 = vld [vmem:[#allocation3 + $0x54] sm:$0xff]
    %v105 = vld [vmem:[#allocation3 + $0x5c] sm:$0xff]
    %v106 = vld [vmem:[#allocation3 + $0x64] sm:$0xff]
    %v107 = vld [vmem:[#allocation3 + $0x6c] sm:$0xff]
    %v108 = vld [vmem:[#allocation3 + $0x74] sm:$0xff]
    %v109 = vld [vmem:[#allocation3 + $0x7c] sm:$0xff]
    %v110 = vld [vmem:[#allocation3 + $0x84] sm:$0xf]
    %v111 = vld [vmem:[#allocation3 + $0x88] sm:$0xff]
    %v112 = vld [vmem:[#allocation3 + $0x90] sm:$0xff]
    %v113 = vld [vmem:[#allocation3 + $0x98] sm:$0xff]
    %v114 = vld [vmem:[#allocation3 + $0xa0] sm:$0xff]
    %v115 = vld [vmem:[#allocation3 + $0xa8] sm:$0xff]
    %v116 = vld [vmem:[#allocation3 + $0xb0] sm:$0xff]
    %v117 = vld [vmem:[#allocation3 + $0xb8] sm:$0xff]
    %v118 = vld [vmem:[#allocation3 + $0xc0] sm:$0xff]
    %v119 = vld [vmem:[#allocation3 + $0xc8] sm:$0xf]
    %v120 = vld [vmem:[#allocation3 + $0xcc] sm:$0xff]
    %v121 = vld [vmem:[#allocation3 + $0xd4] sm:$0xff]
    %v122 = vld [vmem:[#allocation3 + $0xdc] sm:$0xff]
    %v123 = vld [vmem:[#allocation3 + $0xe4] sm:$0xff]
    %v124 = vld [vmem:[#allocation3 + $0xec] sm:$0xff]
    %v125 = vld [vmem:[#allocation3 + $0xf4] sm:$0xff]
    %v126 = vld [vmem:[#allocation3 + $0xfc] sm:$0xff]
    %v127 = vld [vmem:[#allocation3 + $0x104] sm:$0xff]
    %v128 = vld [vmem:[#allocation3 + $0x10c] sm:$0xf]
    %v129 = vld [vmem:[#allocation5] sm:$0xff]
    %v130 = vld [vmem:[#allocation5 + $0x8] sm:$0xff]
    %v131 = vld [vmem:[#allocation5 + $0x10] sm:$0x1]
    %v135 = vlaneseq
    %v136 = vshrl.u32 %v135, 7
    %v137 = vsub.s32 0, %v136
    %v138 = vrot.slane %v129, %v137
    %v139 = vlaneseq
    %v140 = vshrl.u32 %v139, 7
    %v141 = vsub.s32 1, %v140
    %v142 = vrot.slane %v129, %v141
    %v143 = vlaneseq
    %v144 = vshrl.u32 %v143, 7
    %v145 = vsub.s32 2, %v144
    %v146 = vrot.slane %v129, %v145
    %v147 = vlaneseq
    %v148 = vshrl.u32 %v147, 7
    %v149 = vsub.s32 3, %v148
    %v150 = vrot.slane %v129, %v149
    %v151 = vlaneseq
    %v152 = vshrl.u32 %v151, 7
    %v153 = vsub.s32 4, %v152
    %v154 = vrot.slane %v129, %v153
    %v155 = vlaneseq
    %v156 = vshrl.u32 %v155, 7
    %v157 = vsub.s32 5, %v156
    %v158 = vrot.slane %v129, %v157
    %v159 = vlaneseq
    %v160 = vshrl.u32 %v159, 7
    %v161 = vsub.s32 6, %v160
    %v162 = vrot.slane %v129, %v161
    %v163 = vlaneseq
    %v164 = vshrl.u32 %v163, 7
    %v165 = vsub.s32 7, %v164
    %v166 = vrot.slane %v129, %v165
    %v167 = vlaneseq
    %v168 = vshrl.u32 %v167, 7
    %v169 = vsub.s32 0, %v168
    %v170 = vrot.slane %v130, %v169
    %v171 = vlaneseq
    %v172 = vshrl.u32 %v171, 7
    %v173 = vsub.s32 1, %v172
    %v174 = vrot.slane %v130, %v173
    %v175 = vlaneseq
    %v176 = vshrl.u32 %v175, 7
    %v177 = vsub.s32 2, %v176
    %v178 = vrot.slane %v130, %v177
    %v179 = vlaneseq
    %v180 = vshrl.u32 %v179, 7
    %v181 = vsub.s32 3, %v180
    %v182 = vrot.slane %v130, %v181
    %v183 = vlaneseq
    %v184 = vshrl.u32 %v183, 7
    %v185 = vsub.s32 4, %v184
    %v186 = vrot.slane %v130, %v185
    %v187 = vlaneseq
    %v188 = vshrl.u32 %v187, 7
    %v189 = vsub.s32 5, %v188
    %v190 = vrot.slane %v130, %v189
    %v191 = vlaneseq
    %v192 = vshrl.u32 %v191, 7
    %v193 = vsub.s32 6, %v192
    %v194 = vrot.slane %v130, %v193
    %v195 = vlaneseq
    %v196 = vshrl.u32 %v195, 7
    %v197 = vsub.s32 7, %v196
    %v198 = vrot.slane %v130, %v197
    %v199 = vlaneseq
    %v200 = vshrl.u32 %v199, 7
    %v201 = vsub.s32 0, %v200
    %v202 = vrot.slane %v131, %v201
    %v256 = vunpack.c.l.b16 %v93
    %v257 = vunpack.c.h.b16 %v93
    %v258 = vunpack.c.l.b16 %v94
    %v259 = vunpack.c.h.b16 %v94
    %v260 = vunpack.c.l.b16 %v95
    %v261 = vunpack.c.h.b16 %v95
    %v262 = vunpack.c.l.b16 %v96
    %v263 = vunpack.c.h.b16 %v96
    %v264 = vunpack.c.l.b16 %v97
    %v265 = vunpack.c.h.b16 %v97
    %v266 = vunpack.c.l.b16 %v98
    %v267 = vunpack.c.h.b16 %v98
    %v268 = vunpack.c.l.b16 %v99
    %v269 = vunpack.c.h.b16 %v99
    %v270 = vunpack.c.l.b16 %v100
    %v271 = vunpack.c.h.b16 %v100
    %v272 = vunpack.c.l.b16 %v101
    %v273 = vunpack.c.l.b16 %v102
    %v274 = vunpack.c.h.b16 %v102
    %v275 = vunpack.c.l.b16 %v103
    %v276 = vunpack.c.h.b16 %v103
    %v277 = vunpack.c.l.b16 %v104
    %v278 = vunpack.c.h.b16 %v104
    %v279 = vunpack.c.l.b16 %v105
    %v280 = vunpack.c.h.b16 %v105
    %v281 = vunpack.c.l.b16 %v106
    %v282 = vunpack.c.h.b16 %v106
    %v283 = vunpack.c.l.b16 %v107
    %v284 = vunpack.c.h.b16 %v107
    %v285 = vunpack.c.l.b16 %v108
    %v286 = vunpack.c.h.b16 %v108
    %v287 = vunpack.c.l.b16 %v109
    %v288 = vunpack.c.h.b16 %v109
    %v289 = vunpack.c.l.b16 %v110
    %v290 = vunpack.c.l.b16 %v111
    %v291 = vunpack.c.h.b16 %v111
    %v292 = vunpack.c.l.b16 %v112
    %v293 = vunpack.c.h.b16 %v112
    %v294 = vunpack.c.l.b16 %v113
    %v295 = vunpack.c.h.b16 %v113
    %v296 = vunpack.c.l.b16 %v114
    %v297 = vunpack.c.h.b16 %v114
    %v298 = vunpack.c.l.b16 %v115
    %v299 = vunpack.c.h.b16 %v115
    %v300 = vunpack.c.l.b16 %v116
    %v301 = vunpack.c.h.b16 %v116
    %v302 = vunpack.c.l.b16 %v117
    %v303 = vunpack.c.h.b16 %v117
    %v304 = vunpack.c.l.b16 %v118
    %v305 = vunpack.c.h.b16 %v118
    %v306 = vunpack.c.l.b16 %v119
    %v307 = vunpack.c.l.b16 %v120
    %v308 = vunpack.c.h.b16 %v120
    %v309 = vunpack.c.l.b16 %v121
    %v310 = vunpack.c.h.b16 %v121
    %v311 = vunpack.c.l.b16 %v122
    %v312 = vunpack.c.h.b16 %v122
    %v313 = vunpack.c.l.b16 %v123
    %v314 = vunpack.c.h.b16 %v123
    %v315 = vunpack.c.l.b16 %v124
    %v316 = vunpack.c.h.b16 %v124
    %v317 = vunpack.c.l.b16 %v125
    %v318 = vunpack.c.h.b16 %v125
    %v319 = vunpack.c.l.b16 %v126
    %v320 = vunpack.c.h.b16 %v126
    %v321 = vunpack.c.l.b16 %v127
    %v322 = vunpack.c.h.b16 %v127
    %v323 = vunpack.c.l.b16 %v128
    %v324 = vpack.c.b16 %v273, %v256
    %v325 = vpack.c.b16 %v274, %v257
    %v326 = vpack.c.b16 %v275, %v258
    %v327 = vpack.c.b16 %v276, %v259
    %v328 = vpack.c.b16 %v277, %v260
    %v329 = vpack.c.b16 %v278, %v261
    %v330 = vpack.c.b16 %v279, %v262
    %v331 = vpack.c.b16 %v280, %v263
    %v332 = vpack.c.b16 %v281, %v264
    %v333 = vpack.c.b16 %v282, %v265
    %v334 = vpack.c.b16 %v283, %v266
    %v335 = vpack.c.b16 %v284, %v267
    %v336 = vpack.c.b16 %v285, %v268
    %v337 = vpack.c.b16 %v286, %v269
    %v338 = vpack.c.b16 %v287, %v270
    %v339 = vpack.c.b16 %v288, %v271
    %v340 = vpack.c.b16 %v289, %v272
    %v341 = vpack.c.b16 %v307, %v290
    %v342 = vpack.c.b16 %v308, %v291
    %v343 = vpack.c.b16 %v309, %v292
    %v344 = vpack.c.b16 %v310, %v293
    %v345 = vpack.c.b16 %v311, %v294
    %v346 = vpack.c.b16 %v312, %v295
    %v347 = vpack.c.b16 %v313, %v296
    %v348 = vpack.c.b16 %v314, %v297
    %v349 = vpack.c.b16 %v315, %v298
    %v350 = vpack.c.b16 %v316, %v299
    %v351 = vpack.c.b16 %v317, %v300
    %v352 = vpack.c.b16 %v318, %v301
    %v353 = vpack.c.b16 %v319, %v302
    %v354 = vpack.c.b16 %v320, %v303
    %v355 = vpack.c.b16 %v321, %v304
    %v356 = vpack.c.b16 %v322, %v305
    %v357 = vpack.c.b16 %v323, %v306
    %vm392 = vcmask 261120
    %v394 = vsel %vm392, %v92, 0
    %396 = vmatprep.subr.bf16.mxu0 %v325
    %397 = vmatpush1.bf16.msra.mxu0 %v324
    %398 = vmatprep.subr.bf16.mxu0 %v342
    %399 = vmatpush1.bf16.msra.mxu0 %v341
    %400 = vmatprep.subr.bf16.mxu0 0
    %401 = vmatpush1.bf16.msra.mxu0 0
    %402 = vmatprep.subr.bf16.mxu0 0
    %403 = vmatpush1.bf16.msra.mxu0 0
    %404 = vmatprep.subr.bf16.mxu0 0
    %405 = vmatpush1.bf16.msra.mxu0 0
    %406 = vmatprep.subr.bf16.mxu0 0
    %407 = vmatpush1.bf16.msra.mxu0 0
    %408 = vmatprep.subr.bf16.mxu0 0
    %409 = vmatpush1.bf16.msra.mxu0 0
    %410 = vmatprep.subr.bf16.mxu0 0
    %411 = vmatpush1.bf16.msra.mxu0 0
    %412 = vmatprep.subr.bf16.mxu0 0
    %413 = vmatpush1.bf16.msra.mxu0 0
    %414 = vmatprep.subr.bf16.mxu0 0
    %415 = vmatpush1.bf16.msra.mxu0 0
    %416 = vmatprep.subr.bf16.mxu0 0
    %417 = vmatpush1.bf16.msra.mxu0 0
    %418 = vmatprep.subr.bf16.mxu0 0
    %419 = vmatpush1.bf16.msra.mxu0 0
    %420 = vmatprep.subr.bf16.mxu0 0
    %421 = vmatpush1.bf16.msra.mxu0 0
    %422 = vmatprep.subr.bf16.mxu0 0
    %423 = vmatpush1.bf16.msra.mxu0 0
    %424 = vmatprep.subr.bf16.mxu0 0
    %425 = vmatpush1.bf16.msra.mxu0 0
    %426 = vmatprep.subr.bf16.mxu0 0
    %427 = vmatpush1.bf16.msra.mxu0 0
    %428 = vmatprep.mubr.bf16.mxu0 0
    %429 = vmatmul.mubr.bf16.gmra.mrb[0].mxu0 %v394
    %v430 = vpop.f32.mrb[0].mxu0
    %v431 = vadd.f32 %v138, %v430
    %v432 = vpop.f32.mrb[0].mxu0
    %v433 = vadd.f32 %v142, %v432
    %v434 = vpop.f32.mrb[0].mxu0
    %v435 = vpop.f32.mrb[0].mxu0
    %436 = vdwg.mxu0
    %437 = vmatprep.subr.bf16.mxu0 %v327
    %438 = vmatpush1.bf16.msra.mxu0 %v326
    %439 = vmatprep.subr.bf16.mxu0 %v344
    %440 = vmatpush1.bf16.msra.mxu0 %v343
    %441 = vmatprep.subr.bf16.mxu0 0
    %442 = vmatpush1.bf16.msra.mxu0 0
    %443 = vmatprep.subr.bf16.mxu0 0
    %444 = vmatpush1.bf16.msra.mxu0 0
    %445 = vmatprep.subr.bf16.mxu0 0
    %446 = vmatpush1.bf16.msra.mxu0 0
    %447 = vmatprep.subr.bf16.mxu0 0
    %448 = vmatpush1.bf16.msra.mxu0 0
    %449 = vmatprep.subr.bf16.mxu0 0
    %450 = vmatpush1.bf16.msra.mxu0 0
    %451 = vmatprep.subr.bf16.mxu0 0
    %452 = vmatpush1.bf16.msra.mxu0 0
    %453 = vmatprep.subr.bf16.mxu0 0
    %454 = vmatpush1.bf16.msra.mxu0 0
    %455 = vmatprep.subr.bf16.mxu0 0
    %456 = vmatpush1.bf16.msra.mxu0 0
    %457 = vmatprep.subr.bf16.mxu0 0
    %458 = vmatpush1.bf16.msra.mxu0 0
    %459 = vmatprep.subr.bf16.mxu0 0
    %460 = vmatpush1.bf16.msra.mxu0 0
    %461 = vmatprep.subr.bf16.mxu0 0
    %462 = vmatpush1.bf16.msra.mxu0 0
    %463 = vmatprep.subr.bf16.mxu0 0
    %464 = vmatpush1.bf16.msra.mxu0 0
    %465 = vmatprep.subr.bf16.mxu0 0
    %466 = vmatpush1.bf16.msra.mxu0 0
    %467 = vmatprep.subr.bf16.mxu0 0
    %468 = vmatpush1.bf16.msra.mxu0 0
    %469 = vmatprep.mubr.bf16.mxu0 0
    %470 = vmatmul.mubr.bf16.gmra.mrb[0].mxu0 %v394
    %v471 = vpop.f32.mrb[0].mxu0
    %v472 = vadd.f32 %v146, %v471
    %v473 = vpop.f32.mrb[0].mxu0
    %v474 = vadd.f32 %v150, %v473
    %v475 = vpop.f32.mrb[0].mxu0
    %v476 = vpop.f32.mrb[0].mxu0
    %477 = vdwg.mxu0
    %478 = vmatprep.subr.bf16.mxu0 %v329
    %479 = vmatpush1.bf16.msra.mxu0 %v328
    %480 = vmatprep.subr.bf16.mxu0 %v346
    %481 = vmatpush1.bf16.msra.mxu0 %v345
    %482 = vmatprep.subr.bf16.mxu0 0
    %483 = vmatpush1.bf16.msra.mxu0 0
    %484 = vmatprep.subr.bf16.mxu0 0
    %485 = vmatpush1.bf16.msra.mxu0 0
    %486 = vmatprep.subr.bf16.mxu0 0
    %487 = vmatpush1.bf16.msra.mxu0 0
    %488 = vmatprep.subr.bf16.mxu0 0
    %489 = vmatpush1.bf16.msra.mxu0 0
    %490 = vmatprep.subr.bf16.mxu0 0
    %491 = vmatpush1.bf16.msra.mxu0 0
    %492 = vmatprep.subr.bf16.mxu0 0
    %493 = vmatpush1.bf16.msra.mxu0 0
    %494 = vmatprep.subr.bf16.mxu0 0
    %495 = vmatpush1.bf16.msra.mxu0 0
    %496 = vmatprep.subr.bf16.mxu0 0
    %497 = vmatpush1.bf16.msra.mxu0 0
    %498 = vmatprep.subr.bf16.mxu0 0
    %499 = vmatpush1.bf16.msra.mxu0 0
    %500 = vmatprep.subr.bf16.mxu0 0
    %501 = vmatpush1.bf16.msra.mxu0 0
    %502 = vmatprep.subr.bf16.mxu0 0
    %503 = vmatpush1.bf16.msra.mxu0 0
    %504 = vmatprep.subr.bf16.mxu0 0
    %505 = vmatpush1.bf16.msra.mxu0 0
    %506 = vmatprep.subr.bf16.mxu0 0
    %507 = vmatpush1.bf16.msra.mxu0 0
    %508 = vmatprep.subr.bf16.mxu0 0
    %509 = vmatpush1.bf16.msra.mxu0 0
    %510 = vmatprep.mubr.bf16.mxu0 0
    %511 = vmatmul.mubr.bf16.gmra.mrb[0].mxu0 %v394
    %v512 = vpop.f32.mrb[0].mxu0
    %v513 = vadd.f32 %v154, %v512
    %v514 = vpop.f32.mrb[0].mxu0
    %v515 = vadd.f32 %v158, %v514
    %v516 = vpop.f32.mrb[0].mxu0
    %v517 = vpop.f32.mrb[0].mxu0
    %518 = vdwg.mxu0
    %519 = vmatprep.subr.bf16.mxu0 %v331
    %520 = vmatpush1.bf16.msra.mxu0 %v330
    %521 = vmatprep.subr.bf16.mxu0 %v348
    %522 = vmatpush1.bf16.msra.mxu0 %v347
    %523 = vmatprep.subr.bf16.mxu0 0
    %524 = vmatpush1.bf16.msra.mxu0 0
    %525 = vmatprep.subr.bf16.mxu0 0
    %526 = vmatpush1.bf16.msra.mxu0 0
    %527 = vmatprep.subr.bf16.mxu0 0
    %528 = vmatpush1.bf16.msra.mxu0 0
    %529 = vmatprep.subr.bf16.mxu0 0
    %530 = vmatpush1.bf16.msra.mxu0 0
    %531 = vmatprep.subr.bf16.mxu0 0
    %532 = vmatpush1.bf16.msra.mxu0 0
    %533 = vmatprep.subr.bf16.mxu0 0
    %534 = vmatpush1.bf16.msra.mxu0 0
    %535 = vmatprep.subr.bf16.mxu0 0
    %536 = vmatpush1.bf16.msra.mxu0 0
    %537 = vmatprep.subr.bf16.mxu0 0
    %538 = vmatpush1.bf16.msra.mxu0 0
    %539 = vmatprep.subr.bf16.mxu0 0
    %540 = vmatpush1.bf16.msra.mxu0 0
    %541 = vmatprep.subr.bf16.mxu0 0
    %542 = vmatpush1.bf16.msra.mxu0 0
    %543 = vmatprep.subr.bf16.mxu0 0
    %544 = vmatpush1.bf16.msra.mxu0 0
    %545 = vmatprep.subr.bf16.mxu0 0
    %546 = vmatpush1.bf16.msra.mxu0 0
    %547 = vmatprep.subr.bf16.mxu0 0
    %548 = vmatpush1.bf16.msra.mxu0 0
    %549 = vmatprep.subr.bf16.mxu0 0
    %550 = vmatpush1.bf16.msra.mxu0 0
    %551 = vmatprep.mubr.bf16.mxu0 0
    %552 = vmatmul.mubr.bf16.gmra.mrb[0].mxu0 %v394
    %v553 = vpop.f32.mrb[0].mxu0
    %v554 = vadd.f32 %v162, %v553
    %v555 = vpop.f32.mrb[0].mxu0
    %v556 = vadd.f32 %v166, %v555
    %v557 = vpop.f32.mrb[0].mxu0
    %v558 = vpop.f32.mrb[0].mxu0
    %559 = vdwg.mxu0
    %560 = vmatprep.subr.bf16.mxu0 %v333
    %561 = vmatpush1.bf16.msra.mxu0 %v332
    %562 = vmatprep.subr.bf16.mxu0 %v350
    %563 = vmatpush1.bf16.msra.mxu0 %v349
    %564 = vmatprep.subr.bf16.mxu0 0
    %565 = vmatpush1.bf16.msra.mxu0 0
    %566 = vmatprep.subr.bf16.mxu0 0
    %567 = vmatpush1.bf16.msra.mxu0 0
    %568 = vmatprep.subr.bf16.mxu0 0
    %569 = vmatpush1.bf16.msra.mxu0 0
    %570 = vmatprep.subr.bf16.mxu0 0
    %571 = vmatpush1.bf16.msra.mxu0 0
    %572 = vmatprep.subr.bf16.mxu0 0
    %573 = vmatpush1.bf16.msra.mxu0 0
    %574 = vmatprep.subr.bf16.mxu0 0
    %575 = vmatpush1.bf16.msra.mxu0 0
    %576 = vmatprep.subr.bf16.mxu0 0
    %577 = vmatpush1.bf16.msra.mxu0 0
    %578 = vmatprep.subr.bf16.mxu0 0
    %579 = vmatpush1.bf16.msra.mxu0 0
    %580 = vmatprep.subr.bf16.mxu0 0
    %581 = vmatpush1.bf16.msra.mxu0 0
    %582 = vmatprep.subr.bf16.mxu0 0
    %583 = vmatpush1.bf16.msra.mxu0 0
    %584 = vmatprep.subr.bf16.mxu0 0
    %585 = vmatpush1.bf16.msra.mxu0 0
    %586 = vmatprep.subr.bf16.mxu0 0
    %587 = vmatpush1.bf16.msra.mxu0 0
    %588 = vmatprep.subr.bf16.mxu0 0
    %589 = vmatpush1.bf16.msra.mxu0 0
    %590 = vmatprep.subr.bf16.mxu0 0
    %591 = vmatpush1.bf16.msra.mxu0 0
    %592 = vmatprep.mubr.bf16.mxu0 0
    %593 = vmatmul.mubr.bf16.gmra.mrb[0].mxu0 %v394
    %v594 = vpop.f32.mrb[0].mxu0
    %v595 = vadd.f32 %v170, %v594
    %v596 = vpop.f32.mrb[0].mxu0
    %v597 = vadd.f32 %v174, %v596
    %v598 = vpop.f32.mrb[0].mxu0
    %v599 = vpop.f32.mrb[0].mxu0
    %600 = vdwg.mxu0
    %601 = vmatprep.subr.bf16.mxu0 %v335
    %602 = vmatpush1.bf16.msra.mxu0 %v334
    %603 = vmatprep.subr.bf16.mxu0 %v352
    %604 = vmatpush1.bf16.msra.mxu0 %v351
    %605 = vmatprep.subr.bf16.mxu0 0
    %606 = vmatpush1.bf16.msra.mxu0 0
    %607 = vmatprep.subr.bf16.mxu0 0
    %608 = vmatpush1.bf16.msra.mxu0 0
    %609 = vmatprep.subr.bf16.mxu0 0
    %610 = vmatpush1.bf16.msra.mxu0 0
    %611 = vmatprep.subr.bf16.mxu0 0
    %612 = vmatpush1.bf16.msra.mxu0 0
    %613 = vmatprep.subr.bf16.mxu0 0
    %614 = vmatpush1.bf16.msra.mxu0 0
    %615 = vmatprep.subr.bf16.mxu0 0
    %616 = vmatpush1.bf16.msra.mxu0 0
    %617 = vmatprep.subr.bf16.mxu0 0
    %618 = vmatpush1.bf16.msra.mxu0 0
    %619 = vmatprep.subr.bf16.mxu0 0
    %620 = vmatpush1.bf16.msra.mxu0 0
    %621 = vmatprep.subr.bf16.mxu0 0
    %622 = vmatpush1.bf16.msra.mxu0 0
    %623 = vmatprep.subr.bf16.mxu0 0
    %624 = vmatpush1.bf16.msra.mxu0 0
    %625 = vmatprep.subr.bf16.mxu0 0
    %626 = vmatpush1.bf16.msra.mxu0 0
    %627 = vmatprep.subr.bf16.mxu0 0
    %628 = vmatpush1.bf16.msra.mxu0 0
    %629 = vmatprep.subr.bf16.mxu0 0
    %630 = vmatpush1.bf16.msra.mxu0 0
    %631 = vmatprep.subr.bf16.mxu0 0
    %632 = vmatpush1.bf16.msra.mxu0 0
    %633 = vmatprep.mubr.bf16.mxu0 0
    %634 = vmatmul.mubr.bf16.gmra.mrb[0].mxu0 %v394
    %v635 = vpop.f32.mrb[0].mxu0
    %v636 = vadd.f32 %v178, %v635
    %v637 = vpop.f32.mrb[0].mxu0
    %v638 = vadd.f32 %v182, %v637
    %v639 = vpop.f32.mrb[0].mxu0
    %v640 = vpop.f32.mrb[0].mxu0
    %641 = vdwg.mxu0
    %642 = vmatprep.subr.bf16.mxu0 %v337
    %643 = vmatpush1.bf16.msra.mxu0 %v336
    %644 = vmatprep.subr.bf16.mxu0 %v354
    %645 = vmatpush1.bf16.msra.mxu0 %v353
    %646 = vmatprep.subr.bf16.mxu0 0
    %647 = vmatpush1.bf16.msra.mxu0 0
    %648 = vmatprep.subr.bf16.mxu0 0
    %649 = vmatpush1.bf16.msra.mxu0 0
    %650 = vmatprep.subr.bf16.mxu0 0
    %651 = vmatpush1.bf16.msra.mxu0 0
    %652 = vmatprep.subr.bf16.mxu0 0
    %653 = vmatpush1.bf16.msra.mxu0 0
    %654 = vmatprep.subr.bf16.mxu0 0
    %655 = vmatpush1.bf16.msra.mxu0 0
    %656 = vmatprep.subr.bf16.mxu0 0
    %657 = vmatpush1.bf16.msra.mxu0 0
    %658 = vmatprep.subr.bf16.mxu0 0
    %659 = vmatpush1.bf16.msra.mxu0 0
    %660 = vmatprep.subr.bf16.mxu0 0
    %661 = vmatpush1.bf16.msra.mxu0 0
    %662 = vmatprep.subr.bf16.mxu0 0
    %663 = vmatpush1.bf16.msra.mxu0 0
    %664 = vmatprep.subr.bf16.mxu0 0
    %665 = vmatpush1.bf16.msra.mxu0 0
    %666 = vmatprep.subr.bf16.mxu0 0
    %667 = vmatpush1.bf16.msra.mxu0 0
    %668 = vmatprep.subr.bf16.mxu0 0
    %669 = vmatpush1.bf16.msra.mxu0 0
    %670 = vmatprep.subr.bf16.mxu0 0
    %671 = vmatpush1.bf16.msra.mxu0 0
    %672 = vmatprep.subr.bf16.mxu0 0
    %673 = vmatpush1.bf16.msra.mxu0 0
    %674 = vmatprep.mubr.bf16.mxu0 0
    %675 = vmatmul.mubr.bf16.gmra.mrb[0].mxu0 %v394
    %v676 = vpop.f32.mrb[0].mxu0
    %v677 = vadd.f32 %v186, %v676
    %v678 = vpop.f32.mrb[0].mxu0
    %v679 = vadd.f32 %v190, %v678
    %v680 = vpop.f32.mrb[0].mxu0
    %v681 = vpop.f32.mrb[0].mxu0
    %682 = vdwg.mxu0
    %683 = vmatprep.subr.bf16.mxu0 %v339
    %684 = vmatpush1.bf16.msra.mxu0 %v338
    %685 = vmatprep.subr.bf16.mxu0 %v356
    %686 = vmatpush1.bf16.msra.mxu0 %v355
    %687 = vmatprep.subr.bf16.mxu0 0
    %688 = vmatpush1.bf16.msra.mxu0 0
    %689 = vmatprep.subr.bf16.mxu0 0
    %690 = vmatpush1.bf16.msra.mxu0 0
    %691 = vmatprep.subr.bf16.mxu0 0
    %692 = vmatpush1.bf16.msra.mxu0 0
    %693 = vmatprep.subr.bf16.mxu0 0
    %694 = vmatpush1.bf16.msra.mxu0 0
    %695 = vmatprep.subr.bf16.mxu0 0
    %696 = vmatpush1.bf16.msra.mxu0 0
    %697 = vmatprep.subr.bf16.mxu0 0
    %698 = vmatpush1.bf16.msra.mxu0 0
    %699 = vmatprep.subr.bf16.mxu0 0
    %700 = vmatpush1.bf16.msra.mxu0 0
    %701 = vmatprep.subr.bf16.mxu0 0
    %702 = vmatpush1.bf16.msra.mxu0 0
    %703 = vmatprep.subr.bf16.mxu0 0
    %704 = vmatpush1.bf16.msra.mxu0 0
    %705 = vmatprep.subr.bf16.mxu0 0
    %706 = vmatpush1.bf16.msra.mxu0 0
    %707 = vmatprep.subr.bf16.mxu0 0
    %708 = vmatpush1.bf16.msra.mxu0 0
    %709 = vmatprep.subr.bf16.mxu0 0
    %710 = vmatpush1.bf16.msra.mxu0 0
    %711 = vmatprep.subr.bf16.mxu0 0
    %712 = vmatpush1.bf16.msra.mxu0 0
    %713 = vmatprep.subr.bf16.mxu0 0
    %714 = vmatpush1.bf16.msra.mxu0 0
    %715 = vmatprep.mubr.bf16.mxu0 0
    %716 = vmatmul.mubr.bf16.gmra.mrb[0].mxu0 %v394
    %v717 = vpop.f32.mrb[0].mxu0
    %v718 = vadd.f32 %v194, %v717
    %v719 = vpop.f32.mrb[0].mxu0
    %v720 = vadd.f32 %v198, %v719
    %v721 = vpop.f32.mrb[0].mxu0
    %v722 = vpop.f32.mrb[0].mxu0
    %723 = vdwg.mxu0
    %724 = vmatprep.subr.bf16.mxu0 0
    %725 = vmatpush1.bf16.msra.mxu0 %v340
    %726 = vmatprep.subr.bf16.mxu0 0
    %727 = vmatpush1.bf16.msra.mxu0 %v357
    %728 = vmatprep.subr.bf16.mxu0 0
    %729 = vmatpush1.bf16.msra.mxu0 0
    %730 = vmatprep.subr.bf16.mxu0 0
    %731 = vmatpush1.bf16.msra.mxu0 0
    %732 = vmatprep.subr.bf16.mxu0 0
    %733 = vmatpush1.bf16.msra.mxu0 0
    %734 = vmatprep.subr.bf16.mxu0 0
    %735 = vmatpush1.bf16.msra.mxu0 0
    %736 = vmatprep.subr.bf16.mxu0 0
    %737 = vmatpush1.bf16.msra.mxu0 0
    %738 = vmatprep.subr.bf16.mxu0 0
    %739 = vmatpush1.bf16.msra.mxu0 0
    %740 = vmatprep.subr.bf16.mxu0 0
    %741 = vmatpush1.bf16.msra.mxu0 0
    %742 = vmatprep.subr.bf16.mxu0 0
    %743 = vmatpush1.bf16.msra.mxu0 0
    %744 = vmatprep.subr.bf16.mxu0 0
    %745 = vmatpush1.bf16.msra.mxu0 0
    %746 = vmatprep.subr.bf16.mxu0 0
    %747 = vmatpush1.bf16.msra.mxu0 0
    %748 = vmatprep.subr.bf16.mxu0 0
    %749 = vmatpush1.bf16.msra.mxu0 0
    %750 = vmatprep.subr.bf16.mxu0 0
    %751 = vmatpush1.bf16.msra.mxu0 0
    %752 = vmatprep.subr.bf16.mxu0 0
    %753 = vmatpush1.bf16.msra.mxu0 0
    %754 = vmatprep.subr.bf16.mxu0 0
    %755 = vmatpush1.bf16.msra.mxu0 0
    %756 = vmatprep.mubr.bf16.mxu0 0
    %757 = vmatmul.mubr.bf16.gmra.mrb[0].mxu0 %v394
    %v758 = vpop.f32.mrb[0].mxu0
    %v759 = vadd.f32 %v202, %v758
    %v760 = vpop.f32.mrb[0].mxu0
    %v761 = vpop.f32.mrb[0].mxu0
    %v762 = vpop.f32.mrb[0].mxu0
    %763 = vdwg.mxu0
    %v764 = vmax.f32 %v431, 0.0
    %v765 = vmax.f32 %v433, 0.0
    %v766 = vmax.f32 %v472, 0.0
    %v767 = vmax.f32 %v474, 0.0
    %v768 = vmax.f32 %v513, 0.0
    %v769 = vmax.f32 %v515, 0.0
    %v770 = vmax.f32 %v554, 0.0
    %v771 = vmax.f32 %v556, 0.0
    %v772 = vmax.f32 %v595, 0.0
    %v773 = vmax.f32 %v597, 0.0
    %v774 = vmax.f32 %v636, 0.0
    %v775 = vmax.f32 %v638, 0.0
    %v776 = vmax.f32 %v677, 0.0
    %v777 = vmax.f32 %v679, 0.0
    %v778 = vmax.f32 %v718, 0.0
    %v779 = vmax.f32 %v720, 0.0
    %v780 = vmax.f32 %v759, 0.0
    %v781 = vpack.c.bf16 %v764, %v764
    %v782 = vpack.c.bf16 %v765, %v765
    %v783 = vpack.c.bf16 %v766, %v766
    %v784 = vpack.c.bf16 %v767, %v767
    %v785 = vpack.c.bf16 %v768, %v768
    %v786 = vpack.c.bf16 %v769, %v769
    %v787 = vpack.c.bf16 %v770, %v770
    %v788 = vpack.c.bf16 %v771, %v771
    %v789 = vpack.c.bf16 %v772, %v772
    %v790 = vpack.c.bf16 %v773, %v773
    %v791 = vpack.c.bf16 %v774, %v774
    %v792 = vpack.c.bf16 %v775, %v775
    %v793 = vpack.c.bf16 %v776, %v776
    %v794 = vpack.c.bf16 %v777, %v777
    %v795 = vpack.c.bf16 %v778, %v778
    %v796 = vpack.c.bf16 %v779, %v779
    %v797 = vpack.c.bf16 %v780, %v780
    %v798 = vld [vmem:[#allocation7] sm:$0xff]
    %v799 = vld [vmem:[#allocation7 + $0x8] sm:$0xff]
    %v800 = vld [vmem:[#allocation7 + $0x10] sm:$0xff]
    %v801 = vld [vmem:[#allocation7 + $0x18] sm:$0xff]
    %v802 = vld [vmem:[#allocation7 + $0x20] sm:$0xff]
    %v803 = vld [vmem:[#allocation7 + $0x28] sm:$0xff]
    %v804 = vld [vmem:[#allocation7 + $0x30] sm:$0xff]
    %v805 = vld [vmem:[#allocation7 + $0x38] sm:$0xff]
    %v806 = vld [vmem:[#allocation7 + $0x40] sm:$0xff]
    %v807 = vld [vmem:[#allocation7 + $0x48] sm:$0xff]
    %v808 = vld [vmem:[#allocation7 + $0x50] sm:$0xff]
    %v809 = vld [vmem:[#allocation7 + $0x58] sm:$0xff]
    %v810 = vld [vmem:[#allocation7 + $0x60] sm:$0xff]
    %v811 = vld [vmem:[#allocation7 + $0x68] sm:$0xff]
    %v812 = vld [vmem:[#allocation7 + $0x70] sm:$0xff]
    %v813 = vld [vmem:[#allocation7 + $0x78] sm:$0xff]
    %v814 = vld [vmem:[#allocation7 + $0x80] sm:$0xff]
    %v815 = vld [vmem:[#allocation7 + $0x88] sm:$0xff]
    %v816 = vld [vmem:[#allocation7 + $0x90] sm:$0xff]
    %v817 = vld [vmem:[#allocation7 + $0x98] sm:$0xff]
    %v818 = vld [vmem:[#allocation7 + $0xa0] sm:$0xff]
    %v819 = vld [vmem:[#allocation7 + $0xa8] sm:$0xff]
    %v820 = vld [vmem:[#allocation7 + $0xb0] sm:$0xff]
    %v821 = vld [vmem:[#allocation7 + $0xb8] sm:$0xff]
    %v822 = vld [vmem:[#allocation7 + $0xc0] sm:$0xff]
    %v823 = vld [vmem:[#allocation7 + $0xc8] sm:$0xff]
    %v824 = vld [vmem:[#allocation7 + $0xd0] sm:$0xff]
    %v825 = vld [vmem:[#allocation7 + $0xd8] sm:$0xff]
    %v826 = vld [vmem:[#allocation7 + $0xe0] sm:$0xff]
    %v827 = vld [vmem:[#allocation7 + $0xe8] sm:$0xff]
    %v828 = vld [vmem:[#allocation7 + $0xf0] sm:$0xff]
    %v829 = vld [vmem:[#allocation7 + $0xf8] sm:$0xff]
    %v830 = vld [vmem:[#allocation7 + $0x100] sm:$0xff]
    %v831 = vld [vmem:[#allocation7 + $0x108] sm:$0xff]
    %v832 = vld [vmem:[#allocation7 + $0x110] sm:$0xff]
    %v833 = vld [vmem:[#allocation7 + $0x118] sm:$0xff]
    %v834 = vld [vmem:[#allocation7 + $0x120] sm:$0xff]
    %v835 = vld [vmem:[#allocation7 + $0x128] sm:$0xff]
    %v836 = vld [vmem:[#allocation7 + $0x130] sm:$0xff]
    %v837 = vld [vmem:[#allocation7 + $0x138] sm:$0xff]
    %v838 = vld [vmem:[#allocation7 + $0x140] sm:$0xff]
    %v839 = vld [vmem:[#allocation7 + $0x148] sm:$0xff]
    %v840 = vld [vmem:[#allocation7 + $0x150] sm:$0xff]
    %v841 = vld [vmem:[#allocation7 + $0x158] sm:$0xff]
    %v842 = vld [vmem:[#allocation7 + $0x160] sm:$0xff]
    %v843 = vld [vmem:[#allocation7 + $0x168] sm:$0xff]
    %v844 = vld [vmem:[#allocation7 + $0x170] sm:$0xff]
    %v845 = vld [vmem:[#allocation7 + $0x178] sm:$0xff]
    %v846 = vld [vmem:[#allocation7 + $0x180] sm:$0xff]
    %v847 = vld [vmem:[#allocation7 + $0x188] sm:$0xff]
    %v848 = vld [vmem:[#allocation7 + $0x190] sm:$0xff]
    %v849 = vld [vmem:[#allocation7 + $0x198] sm:$0xff]
    %v850 = vld [vmem:[#allocation7 + $0x1a0] sm:$0xff]
    %v851 = vld [vmem:[#allocation7 + $0x1a8] sm:$0xff]
    %v852 = vld [vmem:[#allocation7 + $0x1b0] sm:$0xff]
    %v853 = vld [vmem:[#allocation7 + $0x1b8] sm:$0xff]
    %v854 = vld [vmem:[#allocation7 + $0x1c0] sm:$0xff]
    %v855 = vld [vmem:[#allocation7 + $0x1c8] sm:$0xff]
    %v856 = vld [vmem:[#allocation7 + $0x1d0] sm:$0xff]
    %v857 = vld [vmem:[#allocation7 + $0x1d8] sm:$0xff]
    %v858 = vld [vmem:[#allocation7 + $0x1e0] sm:$0xff]
    %v859 = vld [vmem:[#allocation7 + $0x1e8] sm:$0xff]
    %v860 = vld [vmem:[#allocation7 + $0x1f0] sm:$0xff]
    %v861 = vld [vmem:[#allocation7 + $0x1f8] sm:$0xff]
    %v862 = vld [vmem:[#allocation7 + $0x200] sm:$0xff]
    %v863 = vld [vmem:[#allocation7 + $0x208] sm:$0xff]
    %v864 = vld [vmem:[#allocation7 + $0x210] sm:$0xff]
    %v865 = vld [vmem:[#allocation7 + $0x218] sm:$0xff]
    %v866 = vld [vmem:[#allocation7 + $0x220] sm:$0xff]
    %v867 = vld [vmem:[#allocation7 + $0x228] sm:$0xff]
    %v868 = vld [vmem:[#allocation7 + $0x230] sm:$0xff]
    %v869 = vld [vmem:[#allocation7 + $0x238] sm:$0xff]
    %v870 = vld [vmem:[#allocation7 + $0x240] sm:$0xff]
    %v871 = vld [vmem:[#allocation7 + $0x248] sm:$0xff]
    %v872 = vld [vmem:[#allocation7 + $0x250] sm:$0xff]
    %v873 = vld [vmem:[#allocation7 + $0x258] sm:$0xff]
    %v874 = vld [vmem:[#allocation7 + $0x260] sm:$0xff]
    %v875 = vld [vmem:[#allocation7 + $0x268] sm:$0xff]
    %v876 = vld [vmem:[#allocation7 + $0x270] sm:$0xff]
    %v877 = vld [vmem:[#allocation7 + $0x278] sm:$0xff]
    %v878 = vld [vmem:[#allocation7 + $0x280] sm:$0xff]
    %v879 = vld [vmem:[#allocation7 + $0x288] sm:$0xff]
    %v880 = vld [vmem:[#allocation7 + $0x290] sm:$0xff]
    %v881 = vld [vmem:[#allocation7 + $0x298] sm:$0xff]
    %v882 = vld [vmem:[#allocation7 + $0x2a0] sm:$0xff]
    %v883 = vld [vmem:[#allocation7 + $0x2a8] sm:$0xff]
    %v884 = vld [vmem:[#allocation7 + $0x2b0] sm:$0xff]
    %v885 = vld [vmem:[#allocation7 + $0x2b8] sm:$0xff]
    %v886 = vld [vmem:[#allocation7 + $0x2c0] sm:$0xff]
    %v887 = vld [vmem:[#allocation7 + $0x2c8] sm:$0xff]
    %v888 = vld [vmem:[#allocation7 + $0x2d0] sm:$0xff]
    %v889 = vld [vmem:[#allocation7 + $0x2d8] sm:$0xff]
    %v890 = vld [vmem:[#allocation7 + $0x2e0] sm:$0xff]
    %v891 = vld [vmem:[#allocation7 + $0x2e8] sm:$0xff]
    %v892 = vld [vmem:[#allocation7 + $0x2f0] sm:$0xff]
    %v893 = vld [vmem:[#allocation7 + $0x2f8] sm:$0xff]
    %v894 = vld [vmem:[#allocation7 + $0x300] sm:$0xff]
    %v895 = vld [vmem:[#allocation7 + $0x308] sm:$0xff]
    %v896 = vld [vmem:[#allocation7 + $0x310] sm:$0xff]
    %v897 = vld [vmem:[#allocation7 + $0x318] sm:$0xff]
    %v898 = vld [vmem:[#allocation7 + $0x320] sm:$0xff]
    %v899 = vld [vmem:[#allocation7 + $0x328] sm:$0xff]
    %v900 = vld [vmem:[#allocation7 + $0x330] sm:$0xff]
    %v901 = vld [vmem:[#allocation7 + $0x338] sm:$0xff]
    %v902 = vld [vmem:[#allocation7 + $0x340] sm:$0xff]
    %v903 = vld [vmem:[#allocation7 + $0x348] sm:$0xff]
    %v904 = vld [vmem:[#allocation7 + $0x350] sm:$0xff]
    %v905 = vld [vmem:[#allocation7 + $0x358] sm:$0xff]
    %v906 = vld [vmem:[#allocation7 + $0x360] sm:$0xff]
    %v907 = vld [vmem:[#allocation7 + $0x368] sm:$0xff]
    %v908 = vld [vmem:[#allocation7 + $0x370] sm:$0xff]
    %v909 = vld [vmem:[#allocation7 + $0x378] sm:$0xff]
    %v910 = vld [vmem:[#allocation7 + $0x380] sm:$0xff]
    %v911 = vld [vmem:[#allocation7 + $0x388] sm:$0xff]
    %v912 = vld [vmem:[#allocation7 + $0x390] sm:$0xff]
    %v913 = vld [vmem:[#allocation7 + $0x398] sm:$0xff]
    %v914 = vld [vmem:[#allocation7 + $0x3a0] sm:$0xff]
    %v915 = vld [vmem:[#allocation7 + $0x3a8] sm:$0xff]
    %v916 = vld [vmem:[#allocation7 + $0x3b0] sm:$0xff]
    %v917 = vld [vmem:[#allocation7 + $0x3b8] sm:$0xff]
    %v918 = vld [vmem:[#allocation7 + $0x3c0] sm:$0xff]
    %v919 = vld [vmem:[#allocation7 + $0x3c8] sm:$0xff]
    %v920 = vld [vmem:[#allocation7 + $0x3d0] sm:$0xff]
    %v921 = vld [vmem:[#allocation7 + $0x3d8] sm:$0xff]
    %v922 = vld [vmem:[#allocation7 + $0x3e0] sm:$0xff]
    %v923 = vld [vmem:[#allocation7 + $0x3e8] sm:$0xff]
    %v924 = vld [vmem:[#allocation7 + $0x3f0] sm:$0xff]
    %v925 = vld [vmem:[#allocation7 + $0x3f8] sm:$0xff]
    %v926 = vld [vmem:[#allocation7 + $0x400] sm:$0xff]
    %v927 = vld [vmem:[#allocation7 + $0x408] sm:$0xff]
    %v928 = vld [vmem:[#allocation7 + $0x410] sm:$0xff]
    %v929 = vld [vmem:[#allocation7 + $0x418] sm:$0xff]
    %v930 = vld [vmem:[#allocation7 + $0x420] sm:$0xff]
    %v931 = vld [vmem:[#allocation7 + $0x428] sm:$0xff]
    %v932 = vld [vmem:[#allocation7 + $0x430] sm:$0xff]
    %v933 = vld [vmem:[#allocation7 + $0x438] sm:$0xff]
    %v934 = vld [vmem:[#allocation7 + $0x440] sm:$0xff]
    %v935 = vld [vmem:[#allocation7 + $0x448] sm:$0xff]
    %v936 = vld [vmem:[#allocation7 + $0x450] sm:$0xff]
    %v937 = vld [vmem:[#allocation7 + $0x458] sm:$0xff]
    %v938 = vld [vmem:[#allocation7 + $0x460] sm:$0xff]
    %v939 = vld [vmem:[#allocation7 + $0x468] sm:$0xff]
    %v940 = vld [vmem:[#allocation7 + $0x470] sm:$0xff]
    %v941 = vld [vmem:[#allocation7 + $0x478] sm:$0xff]
    %v942 = vld [vmem:[#allocation7 + $0x480] sm:$0xff]
    %v943 = vld [vmem:[#allocation7 + $0x488] sm:$0xff]
    %v944 = vld [vmem:[#allocation7 + $0x490] sm:$0xff]
    %v945 = vld [vmem:[#allocation7 + $0x498] sm:$0xff]
    %v946 = vld [vmem:[#allocation7 + $0x4a0] sm:$0xff]
    %v947 = vld [vmem:[#allocation7 + $0x4a8] sm:$0xff]
    %v948 = vld [vmem:[#allocation7 + $0x4b0] sm:$0xff]
    %v949 = vld [vmem:[#allocation7 + $0x4b8] sm:$0xff]
    %v950 = vld [vmem:[#allocation7 + $0x4c0] sm:$0xff]
    %v951 = vld [vmem:[#allocation7 + $0x4c8] sm:$0xff]
    %v952 = vld [vmem:[#allocation7 + $0x4d0] sm:$0xff]
    %v953 = vld [vmem:[#allocation7 + $0x4d8] sm:$0xff]
    %v954 = vld [vmem:[#allocation7 + $0x4e0] sm:$0xff]
    %v955 = vld [vmem:[#allocation7 + $0x4e8] sm:$0xff]
    %v956 = vld [vmem:[#allocation7 + $0x4f0] sm:$0xff]
    %v957 = vld [vmem:[#allocation7 + $0x4f8] sm:$0xff]
    %v958 = vld [vmem:[#allocation7 + $0x500] sm:$0xff]
    %v959 = vld [vmem:[#allocation7 + $0x508] sm:$0xff]
    %v960 = vld [vmem:[#allocation7 + $0x510] sm:$0xff]
    %v961 = vld [vmem:[#allocation7 + $0x518] sm:$0xff]
    %v962 = vld [vmem:[#allocation7 + $0x520] sm:$0xff]
    %v963 = vld [vmem:[#allocation7 + $0x528] sm:$0xff]
    %v964 = vld [vmem:[#allocation7 + $0x530] sm:$0xff]
    %v965 = vld [vmem:[#allocation7 + $0x538] sm:$0xff]
    %v966 = vld [vmem:[#allocation7 + $0x540] sm:$0xff]
    %v967 = vld [vmem:[#allocation7 + $0x548] sm:$0xff]
    %v968 = vld [vmem:[#allocation7 + $0x550] sm:$0xff]
    %v969 = vld [vmem:[#allocation7 + $0x558] sm:$0xff]
    %v970 = vld [vmem:[#allocation7 + $0x560] sm:$0xff]
    %v971 = vld [vmem:[#allocation7 + $0x568] sm:$0xff]
    %v972 = vld [vmem:[#allocation7 + $0x570] sm:$0xff]
    %v973 = vld [vmem:[#allocation7 + $0x578] sm:$0xff]
    %v974 = vld [vmem:[#allocation7 + $0x580] sm:$0xff]
    %v975 = vld [vmem:[#allocation7 + $0x588] sm:$0xff]
    %v976 = vld [vmem:[#allocation7 + $0x590] sm:$0xff]
    %v977 = vld [vmem:[#allocation7 + $0x598] sm:$0xff]
    %v978 = vld [vmem:[#allocation7 + $0x5a0] sm:$0xff]
    %v979 = vld [vmem:[#allocation7 + $0x5a8] sm:$0xff]
    %v980 = vld [vmem:[#allocation7 + $0x5b0] sm:$0xff]
    %v981 = vld [vmem:[#allocation7 + $0x5b8] sm:$0xff]
    %v982 = vld [vmem:[#allocation7 + $0x5c0] sm:$0xff]
    %v983 = vld [vmem:[#allocation7 + $0x5c8] sm:$0xff]
    %v984 = vld [vmem:[#allocation7 + $0x5d0] sm:$0xff]
    %v985 = vld [vmem:[#allocation7 + $0x5d8] sm:$0xff]
    %v986 = vld [vmem:[#allocation7 + $0x5e0] sm:$0xff]
    %v987 = vld [vmem:[#allocation7 + $0x5e8] sm:$0xff]
    %v988 = vld [vmem:[#allocation7 + $0x5f0] sm:$0xff]
    %v989 = vld [vmem:[#allocation7 + $0x5f8] sm:$0xff]
    %v990 = vld [vmem:[#allocation7 + $0x600] sm:$0xff]
    %v991 = vld [vmem:[#allocation7 + $0x608] sm:$0xff]
    %v992 = vld [vmem:[#allocation7 + $0x610] sm:$0xff]
    %v993 = vld [vmem:[#allocation7 + $0x618] sm:$0xff]
    %v994 = vld [vmem:[#allocation7 + $0x620] sm:$0xff]
    %v995 = vld [vmem:[#allocation7 + $0x628] sm:$0xff]
    %v996 = vld [vmem:[#allocation7 + $0x630] sm:$0xff]
    %v997 = vld [vmem:[#allocation7 + $0x638] sm:$0xff]
    %v998 = vld [vmem:[#allocation7 + $0x640] sm:$0xff]
    %v999 = vld [vmem:[#allocation7 + $0x648] sm:$0xff]
    %v1000 = vld [vmem:[#allocation7 + $0x650] sm:$0xff]
    %v1001 = vld [vmem:[#allocation7 + $0x658] sm:$0xff]
    %v1002 = vld [vmem:[#allocation7 + $0x660] sm:$0xff]
    %v1003 = vld [vmem:[#allocation7 + $0x668] sm:$0xff]
    %v1004 = vld [vmem:[#allocation7 + $0x670] sm:$0xff]
    %v1005 = vld [vmem:[#allocation7 + $0x678] sm:$0xff]
    %v1006 = vld [vmem:[#allocation7 + $0x680] sm:$0xff]
    %v1007 = vld [vmem:[#allocation7 + $0x688] sm:$0xff]
    %v1008 = vld [vmem:[#allocation7 + $0x690] sm:$0xff]
    %v1009 = vld [vmem:[#allocation7 + $0x698] sm:$0xff]
    %v1010 = vld [vmem:[#allocation7 + $0x6a0] sm:$0xff]
    %v1011 = vld [vmem:[#allocation7 + $0x6a8] sm:$0xff]
    %v1012 = vld [vmem:[#allocation7 + $0x6b0] sm:$0xff]
    %v1013 = vld [vmem:[#allocation7 + $0x6b8] sm:$0xff]
    %v1014 = vld [vmem:[#allocation7 + $0x6c0] sm:$0xff]
    %v1015 = vld [vmem:[#allocation7 + $0x6c8] sm:$0xff]
    %v1016 = vld [vmem:[#allocation7 + $0x6d0] sm:$0xff]
    %v1017 = vld [vmem:[#allocation7 + $0x6d8] sm:$0xff]
    %v1018 = vld [vmem:[#allocation7 + $0x6e0] sm:$0xff]
    %v1019 = vld [vmem:[#allocation7 + $0x6e8] sm:$0xff]
    %v1020 = vld [vmem:[#allocation7 + $0x6f0] sm:$0xff]
    %v1021 = vld [vmem:[#allocation7 + $0x6f8] sm:$0xff]
    %v1022 = vld [vmem:[#allocation7 + $0x700] sm:$0xff]
    %v1023 = vld [vmem:[#allocation7 + $0x708] sm:$0xff]
    %v1024 = vld [vmem:[#allocation7 + $0x710] sm:$0xff]
    %v1025 = vld [vmem:[#allocation7 + $0x718] sm:$0xff]
    %v1026 = vld [vmem:[#allocation7 + $0x720] sm:$0xff]
    %v1027 = vld [vmem:[#allocation7 + $0x728] sm:$0xff]
    %v1028 = vld [vmem:[#allocation7 + $0x730] sm:$0xff]
    %v1029 = vld [vmem:[#allocation7 + $0x738] sm:$0xff]
    %v1030 = vld [vmem:[#allocation7 + $0x740] sm:$0xff]
    %v1031 = vld [vmem:[#allocation7 + $0x748] sm:$0xff]
    %v1032 = vld [vmem:[#allocation7 + $0x750] sm:$0xff]
    %v1033 = vld [vmem:[#allocation7 + $0x758] sm:$0xff]
    %v1034 = vld [vmem:[#allocation7 + $0x760] sm:$0xff]
    %v1035 = vld [vmem:[#allocation7 + $0x768] sm:$0xff]
    %v1036 = vld [vmem:[#allocation7 + $0x770] sm:$0xff]
    %v1037 = vld [vmem:[#allocation7 + $0x778] sm:$0xff]
    %v1038 = vld [vmem:[#allocation7 + $0x780] sm:$0xff]
    %v1039 = vld [vmem:[#allocation7 + $0x788] sm:$0xff]
    %v1040 = vld [vmem:[#allocation7 + $0x790] sm:$0xff]
    %v1041 = vld [vmem:[#allocation7 + $0x798] sm:$0xff]
    %v1042 = vld [vmem:[#allocation7 + $0x7a0] sm:$0xff]
    %v1043 = vld [vmem:[#allocation7 + $0x7a8] sm:$0xff]
    %v1044 = vld [vmem:[#allocation7 + $0x7b0] sm:$0xff]
    %v1045 = vld [vmem:[#allocation7 + $0x7b8] sm:$0xff]
    %v1046 = vld [vmem:[#allocation7 + $0x7c0] sm:$0xff]
    %v1047 = vld [vmem:[#allocation7 + $0x7c8] sm:$0xff]
    %v1048 = vld [vmem:[#allocation7 + $0x7d0] sm:$0xff]
    %v1049 = vld [vmem:[#allocation7 + $0x7d8] sm:$0xff]
    %v1050 = vld [vmem:[#allocation7 + $0x7e0] sm:$0xff]
    %v1051 = vld [vmem:[#allocation7 + $0x7e8] sm:$0xff]
    %v1052 = vld [vmem:[#allocation7 + $0x7f0] sm:$0xff]
    %v1053 = vld [vmem:[#allocation7 + $0x7f8] sm:$0xff]
    %v1054 = vld [vmem:[#allocation7 + $0x800] sm:$0xff]
    %v1055 = vld [vmem:[#allocation7 + $0x808] sm:$0xff]
    %v1056 = vld [vmem:[#allocation7 + $0x810] sm:$0xff]
    %v1057 = vld [vmem:[#allocation7 + $0x818] sm:$0xff]
    %v1058 = vld [vmem:[#allocation7 + $0x820] sm:$0xff]
    %v1059 = vld [vmem:[#allocation7 + $0x828] sm:$0xff]
    %v1060 = vld [vmem:[#allocation7 + $0x830] sm:$0xff]
    %v1061 = vld [vmem:[#allocation7 + $0x838] sm:$0xff]
    %v1062 = vld [vmem:[#allocation7 + $0x840] sm:$0xff]
    %v1063 = vld [vmem:[#allocation7 + $0x848] sm:$0xff]
    %v1064 = vld [vmem:[#allocation7 + $0x850] sm:$0xff]
    %v1065 = vld [vmem:[#allocation7 + $0x858] sm:$0xff]
    %v1066 = vld [vmem:[#allocation7 + $0x860] sm:$0xff]
    %v1067 = vld [vmem:[#allocation7 + $0x868] sm:$0xff]
    %v1068 = vld [vmem:[#allocation7 + $0x870] sm:$0xff]
    %v1069 = vld [vmem:[#allocation7 + $0x878] sm:$0xff]
    %v1070 = vld [vmem:[#allocation7 + $0x880] sm:$0xff]
    %v1071 = vld [vmem:[#allocation7 + $0x888] sm:$0xff]
    %v1072 = vld [vmem:[#allocation7 + $0x890] sm:$0xff]
    %v1073 = vld [vmem:[#allocation7 + $0x898] sm:$0xff]
    %v1074 = vld [vmem:[#allocation7 + $0x8a0] sm:$0xff]
    %v1075 = vld [vmem:[#allocation7 + $0x8a8] sm:$0xff]
    %v1076 = vld [vmem:[#allocation7 + $0x8b0] sm:$0xff]
    %v1077 = vld [vmem:[#allocation7 + $0x8b8] sm:$0xff]
    %v1078 = vld [vmem:[#allocation7 + $0x8c0] sm:$0xff]
    %v1079 = vld [vmem:[#allocation7 + $0x8c8] sm:$0xff]
    %v1080 = vld [vmem:[#allocation7 + $0x8d0] sm:$0xff]
    %v1081 = vld [vmem:[#allocation7 + $0x8d8] sm:$0xff]
    %v1082 = vld [vmem:[#allocation7 + $0x8e0] sm:$0xff]
    %v1083 = vld [vmem:[#allocation7 + $0x8e8] sm:$0xff]
    %v1084 = vld [vmem:[#allocation7 + $0x8f0] sm:$0xff]
    %v1085 = vld [vmem:[#allocation7 + $0x8f8] sm:$0xff]
    %v1086 = vld [vmem:[#allocation7 + $0x900] sm:$0xff]
    %v1087 = vld [vmem:[#allocation7 + $0x908] sm:$0xff]
    %v1088 = vld [vmem:[#allocation7 + $0x910] sm:$0xff]
    %v1089 = vld [vmem:[#allocation7 + $0x918] sm:$0xff]
    %v1090 = vld [vmem:[#allocation7 + $0x920] sm:$0xff]
    %v1091 = vld [vmem:[#allocation7 + $0x928] sm:$0xff]
    %v1092 = vld [vmem:[#allocation7 + $0x930] sm:$0xff]
    %v1093 = vld [vmem:[#allocation7 + $0x938] sm:$0xff]
    %v1094 = vld [vmem:[#allocation7 + $0x940] sm:$0xff]
    %v1095 = vld [vmem:[#allocation7 + $0x948] sm:$0xff]
    %v1096 = vld [vmem:[#allocation7 + $0x950] sm:$0xff]
    %v1097 = vld [vmem:[#allocation7 + $0x958] sm:$0xff]
    %v1098 = vld [vmem:[#allocation7 + $0x960] sm:$0xff]
    %v1099 = vld [vmem:[#allocation7 + $0x968] sm:$0xff]
    %v1100 = vld [vmem:[#allocation7 + $0x970] sm:$0xff]
    %v1101 = vld [vmem:[#allocation7 + $0x978] sm:$0xff]
    %v1102 = vld [vmem:[#allocation7 + $0x980] sm:$0xff]
    %v1103 = vld [vmem:[#allocation7 + $0x988] sm:$0xff]
    %v1104 = vld [vmem:[#allocation7 + $0x990] sm:$0xff]
    %v1105 = vld [vmem:[#allocation7 + $0x998] sm:$0xff]
    %v1106 = vld [vmem:[#allocation7 + $0x9a0] sm:$0xff]
    %v1107 = vld [vmem:[#allocation7 + $0x9a8] sm:$0xff]
    %v1108 = vld [vmem:[#allocation7 + $0x9b0] sm:$0xff]
    %v1109 = vld [vmem:[#allocation7 + $0x9b8] sm:$0xff]
    %v1110 = vld [vmem:[#allocation7 + $0x9c0] sm:$0xff]
    %v1111 = vld [vmem:[#allocation7 + $0x9c8] sm:$0xff]
    %v1112 = vld [vmem:[#allocation7 + $0x9d0] sm:$0xff]
    %v1113 = vld [vmem:[#allocation7 + $0x9d8] sm:$0xff]
    %v1114 = vld [vmem:[#allocation7 + $0x9e0] sm:$0xff]
    %v1115 = vld [vmem:[#allocation7 + $0x9e8] sm:$0xff]
    %v1116 = vld [vmem:[#allocation7 + $0x9f0] sm:$0xff]
    %v1117 = vld [vmem:[#allocation7 + $0x9f8] sm:$0xff]
    %v1118 = vld [vmem:[#allocation7 + $0xa00] sm:$0xff]
    %v1119 = vld [vmem:[#allocation7 + $0xa08] sm:$0xff]
    %v1120 = vld [vmem:[#allocation7 + $0xa10] sm:$0xff]
    %v1121 = vld [vmem:[#allocation7 + $0xa18] sm:$0xff]
    %v1122 = vld [vmem:[#allocation7 + $0xa20] sm:$0xff]
    %v1123 = vld [vmem:[#allocation7 + $0xa28] sm:$0xff]
    %v1124 = vld [vmem:[#allocation7 + $0xa30] sm:$0xff]
    %v1125 = vld [vmem:[#allocation7 + $0xa38] sm:$0xff]
    %v1126 = vld [vmem:[#allocation7 + $0xa40] sm:$0xff]
    %v1127 = vld [vmem:[#allocation7 + $0xa48] sm:$0xff]
    %v1128 = vld [vmem:[#allocation7 + $0xa50] sm:$0xff]
    %v1129 = vld [vmem:[#allocation7 + $0xa58] sm:$0xff]
    %v1130 = vld [vmem:[#allocation7 + $0xa60] sm:$0xff]
    %v1131 = vld [vmem:[#allocation7 + $0xa68] sm:$0xff]
    %v1132 = vld [vmem:[#allocation7 + $0xa70] sm:$0xff]
    %v1133 = vld [vmem:[#allocation7 + $0xa78] sm:$0xff]
    %v1134 = vld [vmem:[#allocation7 + $0xa80] sm:$0xff]
    %v1135 = vld [vmem:[#allocation7 + $0xa88] sm:$0xff]
    %v1136 = vld [vmem:[#allocation7 + $0xa90] sm:$0xff]
    %v1137 = vld [vmem:[#allocation7 + $0xa98] sm:$0xff]
    %v1138 = vld [vmem:[#allocation7 + $0xaa0] sm:$0xff]
    %v1139 = vld [vmem:[#allocation7 + $0xaa8] sm:$0xff]
    %v1140 = vld [vmem:[#allocation7 + $0xab0] sm:$0xff]
    %v1141 = vld [vmem:[#allocation7 + $0xab8] sm:$0xff]
    %v1142 = vld [vmem:[#allocation7 + $0xac0] sm:$0xff]
    %v1143 = vld [vmem:[#allocation7 + $0xac8] sm:$0xff]
    %v1144 = vld [vmem:[#allocation7 + $0xad0] sm:$0xff]
    %v1145 = vld [vmem:[#allocation7 + $0xad8] sm:$0xff]
    %v1146 = vld [vmem:[#allocation7 + $0xae0] sm:$0xff]
    %v1147 = vld [vmem:[#allocation7 + $0xae8] sm:$0xff]
    %v1148 = vld [vmem:[#allocation7 + $0xaf0] sm:$0xff]
    %v1149 = vld [vmem:[#allocation7 + $0xaf8] sm:$0xff]
    %v1150 = vld [vmem:[#allocation7 + $0xb00] sm:$0xff]
    %v1151 = vld [vmem:[#allocation7 + $0xb08] sm:$0xff]
    %v1152 = vld [vmem:[#allocation7 + $0xb10] sm:$0xff]
    %v1153 = vld [vmem:[#allocation7 + $0xb18] sm:$0xff]
    %v1154 = vld [vmem:[#allocation7 + $0xb20] sm:$0xff]
    %v1155 = vld [vmem:[#allocation7 + $0xb28] sm:$0xff]
    %v1156 = vld [vmem:[#allocation7 + $0xb30] sm:$0xff]
    %v1157 = vld [vmem:[#allocation7 + $0xb38] sm:$0xff]
    %v1158 = vld [vmem:[#allocation7 + $0xb40] sm:$0xff]
    %v1159 = vld [vmem:[#allocation7 + $0xb48] sm:$0xff]
    %v1160 = vld [vmem:[#allocation7 + $0xb50] sm:$0xff]
    %v1161 = vld [vmem:[#allocation7 + $0xb58] sm:$0xff]
    %v1162 = vld [vmem:[#allocation7 + $0xb60] sm:$0xff]
    %v1163 = vld [vmem:[#allocation7 + $0xb68] sm:$0xff]
    %v1164 = vld [vmem:[#allocation7 + $0xb70] sm:$0xff]
    %v1165 = vld [vmem:[#allocation7 + $0xb78] sm:$0xff]
    %v1166 = vld [vmem:[#allocation7 + $0xb80] sm:$0xff]
    %v1167 = vld [vmem:[#allocation7 + $0xb88] sm:$0xff]
    %v1168 = vld [vmem:[#allocation7 + $0xb90] sm:$0xff]
    %v1169 = vld [vmem:[#allocation7 + $0xb98] sm:$0xff]
    %v1170 = vld [vmem:[#allocation7 + $0xba0] sm:$0xff]
    %v1171 = vld [vmem:[#allocation7 + $0xba8] sm:$0xff]
    %v1172 = vld [vmem:[#allocation7 + $0xbb0] sm:$0xff]
    %v1173 = vld [vmem:[#allocation7 + $0xbb8] sm:$0xff]
    %v1174 = vld [vmem:[#allocation7 + $0xbc0] sm:$0xff]
    %v1175 = vld [vmem:[#allocation7 + $0xbc8] sm:$0xff]
    %v1176 = vld [vmem:[#allocation7 + $0xbd0] sm:$0xff]
    %v1177 = vld [vmem:[#allocation7 + $0xbd8] sm:$0xff]
    %v1178 = vld [vmem:[#allocation7 + $0xbe0] sm:$0xff]
    %v1179 = vld [vmem:[#allocation7 + $0xbe8] sm:$0xff]
    %v1180 = vld [vmem:[#allocation7 + $0xbf0] sm:$0xff]
    %v1181 = vld [vmem:[#allocation7 + $0xbf8] sm:$0xff]
    %v1182 = vld [vmem:[#allocation7 + $0xc00] sm:$0xff]
    %v1183 = vld [vmem:[#allocation7 + $0xc08] sm:$0xff]
    %v1184 = vld [vmem:[#allocation7 + $0xc10] sm:$0xff]
    %v1185 = vld [vmem:[#allocation7 + $0xc18] sm:$0xff]
    %v1186 = vld [vmem:[#allocation7 + $0xc20] sm:$0xff]
    %v1187 = vld [vmem:[#allocation7 + $0xc28] sm:$0xff]
    %v1188 = vld [vmem:[#allocation7 + $0xc30] sm:$0xff]
    %v1189 = vld [vmem:[#allocation7 + $0xc38] sm:$0xff]
    %v1190 = vld [vmem:[#allocation7 + $0xc40] sm:$0xff]
    %v1191 = vld [vmem:[#allocation7 + $0xc48] sm:$0xff]
    %v1192 = vld [vmem:[#allocation7 + $0xc50] sm:$0xff]
    %v1193 = vld [vmem:[#allocation7 + $0xc58] sm:$0xff]
    %v1194 = vld [vmem:[#allocation7 + $0xc60] sm:$0xff]
    %v1195 = vld [vmem:[#allocation7 + $0xc68] sm:$0xff]
    %v1196 = vld [vmem:[#allocation7 + $0xc70] sm:$0xff]
    %v1197 = vld [vmem:[#allocation7 + $0xc78] sm:$0xff]
    %v1198 = vld [vmem:[#allocation7 + $0xc80] sm:$0xff]
    %v1199 = vld [vmem:[#allocation7 + $0xc88] sm:$0xff]
    %v1200 = vld [vmem:[#allocation7 + $0xc90] sm:$0xff]
    %v1201 = vld [vmem:[#allocation7 + $0xc98] sm:$0xff]
    %v1202 = vld [vmem:[#allocation7 + $0xca0] sm:$0xff]
    %v1203 = vld [vmem:[#allocation7 + $0xca8] sm:$0xff]
    %v1204 = vld [vmem:[#allocation7 + $0xcb0] sm:$0xff]
    %v1205 = vld [vmem:[#allocation7 + $0xcb8] sm:$0xff]
    %v1206 = vld [vmem:[#allocation7 + $0xcc0] sm:$0xff]
    %v1207 = vld [vmem:[#allocation7 + $0xcc8] sm:$0xff]
    %v1208 = vld [vmem:[#allocation7 + $0xcd0] sm:$0xff]
    %v1209 = vld [vmem:[#allocation7 + $0xcd8] sm:$0xff]
    %v1210 = vld [vmem:[#allocation7 + $0xce0] sm:$0xff]
    %v1211 = vld [vmem:[#allocation7 + $0xce8] sm:$0xff]
    %v1212 = vld [vmem:[#allocation7 + $0xcf0] sm:$0xff]
    %v1213 = vld [vmem:[#allocation7 + $0xcf8] sm:$0xff]
    %v1214 = vld [vmem:[#allocation7 + $0xd00] sm:$0xff]
    %v1215 = vld [vmem:[#allocation7 + $0xd08] sm:$0xff]
    %v1216 = vld [vmem:[#allocation7 + $0xd10] sm:$0xff]
    %v1217 = vld [vmem:[#allocation7 + $0xd18] sm:$0xff]
    %v1218 = vld [vmem:[#allocation7 + $0xd20] sm:$0xff]
    %v1219 = vld [vmem:[#allocation7 + $0xd28] sm:$0xff]
    %v1220 = vld [vmem:[#allocation7 + $0xd30] sm:$0xff]
    %v1221 = vld [vmem:[#allocation7 + $0xd38] sm:$0xff]
    %v1222 = vld [vmem:[#allocation7 + $0xd40] sm:$0xff]
    %v1223 = vld [vmem:[#allocation7 + $0xd48] sm:$0xff]
    %v1224 = vld [vmem:[#allocation7 + $0xd50] sm:$0xff]
    %v1225 = vld [vmem:[#allocation7 + $0xd58] sm:$0xff]
    %v1226 = vld [vmem:[#allocation7 + $0xd60] sm:$0xff]
    %v1227 = vld [vmem:[#allocation7 + $0xd68] sm:$0xff]
    %v1228 = vld [vmem:[#allocation7 + $0xd70] sm:$0xff]
    %v1229 = vld [vmem:[#allocation7 + $0xd78] sm:$0xff]
    %v1230 = vld [vmem:[#allocation7 + $0xd80] sm:$0xff]
    %v1231 = vld [vmem:[#allocation7 + $0xd88] sm:$0xff]
    %v1232 = vld [vmem:[#allocation7 + $0xd90] sm:$0xff]
    %v1233 = vld [vmem:[#allocation7 + $0xd98] sm:$0xff]
    %v1234 = vld [vmem:[#allocation7 + $0xda0] sm:$0xff]
    %v1235 = vld [vmem:[#allocation7 + $0xda8] sm:$0xff]
    %v1236 = vld [vmem:[#allocation7 + $0xdb0] sm:$0xff]
    %v1237 = vld [vmem:[#allocation7 + $0xdb8] sm:$0xff]
    %v1238 = vld [vmem:[#allocation7 + $0xdc0] sm:$0xff]
    %v1239 = vld [vmem:[#allocation7 + $0xdc8] sm:$0xff]
    %v1240 = vld [vmem:[#allocation7 + $0xdd0] sm:$0xff]
    %v1241 = vld [vmem:[#allocation7 + $0xdd8] sm:$0xff]
    %v1242 = vld [vmem:[#allocation7 + $0xde0] sm:$0xff]
    %v1243 = vld [vmem:[#allocation7 + $0xde8] sm:$0xff]
    %v1244 = vld [vmem:[#allocation7 + $0xdf0] sm:$0xff]
    %v1245 = vld [vmem:[#allocation7 + $0xdf8] sm:$0xff]
    %v1246 = vld [vmem:[#allocation7 + $0xe00] sm:$0xff]
    %v1247 = vld [vmem:[#allocation7 + $0xe08] sm:$0xff]
    %v1248 = vld [vmem:[#allocation7 + $0xe10] sm:$0xff]
    %v1249 = vld [vmem:[#allocation7 + $0xe18] sm:$0xff]
    %v1250 = vld [vmem:[#allocation7 + $0xe20] sm:$0xff]
    %v1251 = vld [vmem:[#allocation7 + $0xe28] sm:$0xff]
    %v1252 = vld [vmem:[#allocation7 + $0xe30] sm:$0xff]
    %v1253 = vld [vmem:[#allocation7 + $0xe38] sm:$0xff]
    %v1254 = vld [vmem:[#allocation7 + $0xe40] sm:$0xff]
    %v1255 = vld [vmem:[#allocation7 + $0xe48] sm:$0xff]
    %v1256 = vld [vmem:[#allocation7 + $0xe50] sm:$0xff]
    %v1257 = vld [vmem:[#allocation7 + $0xe58] sm:$0xff]
    %v1258 = vld [vmem:[#allocation7 + $0xe60] sm:$0xff]
    %v1259 = vld [vmem:[#allocation7 + $0xe68] sm:$0xff]
    %v1260 = vld [vmem:[#allocation7 + $0xe70] sm:$0xff]
    %v1261 = vld [vmem:[#allocation7 + $0xe78] sm:$0xff]
    %v1262 = vld [vmem:[#allocation7 + $0xe80] sm:$0xff]
    %v1263 = vld [vmem:[#allocation7 + $0xe88] sm:$0xff]
    %v1264 = vld [vmem:[#allocation7 + $0xe90] sm:$0xff]
    %v1265 = vld [vmem:[#allocation7 + $0xe98] sm:$0xff]
    %v1266 = vld [vmem:[#allocation7 + $0xea0] sm:$0xff]
    %v1267 = vld [vmem:[#allocation7 + $0xea8] sm:$0xff]
    %v1268 = vld [vmem:[#allocation7 + $0xeb0] sm:$0xff]
    %v1269 = vld [vmem:[#allocation7 + $0xeb8] sm:$0xff]
    %v1270 = vld [vmem:[#allocation7 + $0xec0] sm:$0xff]
    %v1271 = vld [vmem:[#allocation7 + $0xec8] sm:$0xff]
    %v1272 = vld [vmem:[#allocation7 + $0xed0] sm:$0xff]
    %v1273 = vld [vmem:[#allocation7 + $0xed8] sm:$0xff]
    %v1274 = vld [vmem:[#allocation7 + $0xee0] sm:$0xff]
    %v1275 = vld [vmem:[#allocation7 + $0xee8] sm:$0xff]
    %v1276 = vld [vmem:[#allocation7 + $0xef0] sm:$0xff]
    %v1277 = vld [vmem:[#allocation7 + $0xef8] sm:$0xff]
    %v1278 = vld [vmem:[#allocation7 + $0xf00] sm:$0xff]
    %v1279 = vld [vmem:[#allocation7 + $0xf08] sm:$0xff]
    %v1280 = vld [vmem:[#allocation7 + $0xf10] sm:$0xff]
    %v1281 = vld [vmem:[#allocation7 + $0xf18] sm:$0xff]
    %v1282 = vld [vmem:[#allocation7 + $0xf20] sm:$0xff]
    %v1283 = vld [vmem:[#allocation7 + $0xf28] sm:$0xff]
    %v1284 = vld [vmem:[#allocation7 + $0xf30] sm:$0xff]
    %v1285 = vld [vmem:[#allocation7 + $0xf38] sm:$0xff]
    %v1286 = vld [vmem:[#allocation7 + $0xf40] sm:$0xff]
    %v1287 = vld [vmem:[#allocation7 + $0xf48] sm:$0xff]
    %v1288 = vld [vmem:[#allocation7 + $0xf50] sm:$0xff]
    %v1289 = vld [vmem:[#allocation7 + $0xf58] sm:$0xff]
    %v1290 = vld [vmem:[#allocation7 + $0xf60] sm:$0xff]
    %v1291 = vld [vmem:[#allocation7 + $0xf68] sm:$0xff]
    %v1292 = vld [vmem:[#allocation7 + $0xf70] sm:$0xff]
    %v1293 = vld [vmem:[#allocation7 + $0xf78] sm:$0xff]
    %v1294 = vld [vmem:[#allocation7 + $0xf80] sm:$0xff]
    %v1295 = vld [vmem:[#allocation7 + $0xf88] sm:$0xff]
    %v1296 = vld [vmem:[#allocation7 + $0xf90] sm:$0xff]
    %v1297 = vld [vmem:[#allocation7 + $0xf98] sm:$0xff]
    %v1298 = vld [vmem:[#allocation7 + $0xfa0] sm:$0xff]
    %v1299 = vld [vmem:[#allocation7 + $0xfa8] sm:$0xff]
    %v1300 = vld [vmem:[#allocation7 + $0xfb0] sm:$0xff]
    %v1301 = vld [vmem:[#allocation7 + $0xfb8] sm:$0xff]
    %v1302 = vld [vmem:[#allocation7 + $0xfc0] sm:$0xff]
    %v1303 = vld [vmem:[#allocation7 + $0xfc8] sm:$0xff]
    %v1304 = vld [vmem:[#allocation7 + $0xfd0] sm:$0xff]
    %v1305 = vld [vmem:[#allocation7 + $0xfd8] sm:$0xff]
    %v1306 = vld [vmem:[#allocation7 + $0xfe0] sm:$0xff]
    %v1307 = vld [vmem:[#allocation7 + $0xfe8] sm:$0xff]
    %v1308 = vld [vmem:[#allocation7 + $0xff0] sm:$0xff]
    %v1309 = vld [vmem:[#allocation7 + $0xff8] sm:$0xff]
    %v1310 = vld [vmem:[#allocation7 + $0x1000] sm:$0xff]
    %v1311 = vld [vmem:[#allocation7 + $0x1008] sm:$0xff]
    %v1312 = vld [vmem:[#allocation7 + $0x1010] sm:$0xff]
    %v1313 = vld [vmem:[#allocation7 + $0x1018] sm:$0xff]
    %v1314 = vld [vmem:[#allocation7 + $0x1020] sm:$0xff]
    %v1315 = vld [vmem:[#allocation7 + $0x1028] sm:$0xff]
    %v1316 = vld [vmem:[#allocation7 + $0x1030] sm:$0xff]
    %v1317 = vld [vmem:[#allocation7 + $0x1038] sm:$0xff]
    %v1318 = vld [vmem:[#allocation7 + $0x1040] sm:$0xff]
    %v1319 = vld [vmem:[#allocation7 + $0x1048] sm:$0xff]
    %v1320 = vld [vmem:[#allocation7 + $0x1050] sm:$0xff]
    %v1321 = vld [vmem:[#allocation7 + $0x1058] sm:$0xff]
    %v1322 = vld [vmem:[#allocation7 + $0x1060] sm:$0xff]
    %v1323 = vld [vmem:[#allocation7 + $0x1068] sm:$0xff]
    %v1324 = vld [vmem:[#allocation7 + $0x1070] sm:$0xff]
    %v1325 = vld [vmem:[#allocation7 + $0x1078] sm:$0xff]
    %v1326 = vld [vmem:[#allocation7 + $0x1080] sm:$0xff]
    %v1327 = vld [vmem:[#allocation7 + $0x1088] sm:$0xff]
    %v1328 = vld [vmem:[#allocation7 + $0x1090] sm:$0xff]
    %v1329 = vld [vmem:[#allocation7 + $0x1098] sm:$0xff]
    %v1330 = vld [vmem:[#allocation7 + $0x10a0] sm:$0xff]
    %v1331 = vld [vmem:[#allocation7 + $0x10a8] sm:$0xff]
    %v1332 = vld [vmem:[#allocation7 + $0x10b0] sm:$0xff]
    %v1333 = vld [vmem:[#allocation7 + $0x10b8] sm:$0xff]
    %v1334 = vld [vmem:[#allocation7 + $0x10c0] sm:$0xff]
    %v1335 = vld [vmem:[#allocation7 + $0x10c8] sm:$0xff]
    %v1336 = vld [vmem:[#allocation7 + $0x10d0] sm:$0xff]
    %v1337 = vld [vmem:[#allocation7 + $0x10d8] sm:$0xff]
    %v1338 = vld [vmem:[#allocation7 + $0x10e0] sm:$0xff]
    %v1339 = vld [vmem:[#allocation7 + $0x10e8] sm:$0xff]
    %v1340 = vld [vmem:[#allocation7 + $0x10f0] sm:$0xff]
    %v1341 = vld [vmem:[#allocation7 + $0x10f8] sm:$0xff]
    %v1342 = vld [vmem:[#allocation7 + $0x1100] sm:$0xff]
    %v1343 = vld [vmem:[#allocation7 + $0x1108] sm:$0xff]
    %v1344 = vld [vmem:[#allocation7 + $0x1110] sm:$0xff]
    %v1345 = vld [vmem:[#allocation7 + $0x1118] sm:$0xff]
    %v1346 = vld [vmem:[#allocation7 + $0x1120] sm:$0xff]
    %v1347 = vld [vmem:[#allocation7 + $0x1128] sm:$0xff]
    %v1348 = vld [vmem:[#allocation7 + $0x1130] sm:$0xff]
    %v1349 = vld [vmem:[#allocation7 + $0x1138] sm:$0xff]
    %v1350 = vld [vmem:[#allocation7 + $0x1140] sm:$0xff]
    %v1351 = vld [vmem:[#allocation7 + $0x1148] sm:$0xff]
    %v1352 = vld [vmem:[#allocation7 + $0x1150] sm:$0xff]
    %v1353 = vld [vmem:[#allocation7 + $0x1158] sm:$0xff]
    %v1354 = vld [vmem:[#allocation7 + $0x1160] sm:$0xff]
    %v1355 = vld [vmem:[#allocation7 + $0x1168] sm:$0xff]
    %v1356 = vld [vmem:[#allocation7 + $0x1170] sm:$0xff]
    %v1357 = vld [vmem:[#allocation7 + $0x1178] sm:$0xff]
    %v1358 = vld [vmem:[#allocation7 + $0x1180] sm:$0xff]
    %v1359 = vld [vmem:[#allocation7 + $0x1188] sm:$0xff]
    %v1360 = vld [vmem:[#allocation7 + $0x1190] sm:$0xff]
    %v1361 = vld [vmem:[#allocation7 + $0x1198] sm:$0xff]
    %v1362 = vld [vmem:[#allocation7 + $0x11a0] sm:$0xff]
    %v1363 = vld [vmem:[#allocation7 + $0x11a8] sm:$0xff]
    %v1364 = vld [vmem:[#allocation7 + $0x11b0] sm:$0xff]
    %v1365 = vld [vmem:[#allocation7 + $0x11b8] sm:$0xff]
    %v1366 = vld [vmem:[#allocation7 + $0x11c0] sm:$0xff]
    %v1367 = vld [vmem:[#allocation7 + $0x11c8] sm:$0xff]
    %v1368 = vld [vmem:[#allocation7 + $0x11d0] sm:$0xff]
    %v1369 = vld [vmem:[#allocation7 + $0x11d8] sm:$0xff]
    %v1370 = vld [vmem:[#allocation7 + $0x11e0] sm:$0xff]
    %v1371 = vld [vmem:[#allocation7 + $0x11e8] sm:$0xff]
    %v1372 = vld [vmem:[#allocation7 + $0x11f0] sm:$0xff]
    %v1373 = vld [vmem:[#allocation7 + $0x11f8] sm:$0xff]
    %v1374 = vld [vmem:[#allocation7 + $0x1200] sm:$0xff]
    %v1375 = vld [vmem:[#allocation7 + $0x1208] sm:$0xff]
    %v1376 = vld [vmem:[#allocation7 + $0x1210] sm:$0xff]
    %v1377 = vld [vmem:[#allocation7 + $0x1218] sm:$0xff]
    %v1378 = vld [vmem:[#allocation7 + $0x1220] sm:$0xff]
    %v1379 = vld [vmem:[#allocation7 + $0x1228] sm:$0xff]
    %v1380 = vld [vmem:[#allocation7 + $0x1230] sm:$0xff]
    %v1381 = vld [vmem:[#allocation7 + $0x1238] sm:$0xff]
    %v1382 = vld [vmem:[#allocation7 + $0x1240] sm:$0xff]
    %v1383 = vld [vmem:[#allocation7 + $0x1248] sm:$0xff]
    %v1384 = vld [vmem:[#allocation7 + $0x1250] sm:$0xff]
    %v1385 = vld [vmem:[#allocation7 + $0x1258] sm:$0xff]
    %v1386 = vld [vmem:[#allocation7 + $0x1260] sm:$0xff]
    %v1387 = vld [vmem:[#allocation7 + $0x1268] sm:$0xff]
    %v1388 = vld [vmem:[#allocation7 + $0x1270] sm:$0xff]
    %v1389 = vld [vmem:[#allocation7 + $0x1278] sm:$0xff]
    %v1390 = vld [vmem:[#allocation7 + $0x1280] sm:$0xff]
    %v1391 = vld [vmem:[#allocation7 + $0x1288] sm:$0xff]
    %v1392 = vld [vmem:[#allocation7 + $0x1290] sm:$0xff]
    %v1393 = vld [vmem:[#allocation7 + $0x1298] sm:$0xff]
    %v1394 = vld [vmem:[#allocation7 + $0x12a0] sm:$0xff]
    %v1395 = vld [vmem:[#allocation7 + $0x12a8] sm:$0xff]
    %v1396 = vld [vmem:[#allocation7 + $0x12b0] sm:$0xff]
    %v1397 = vld [vmem:[#allocation7 + $0x12b8] sm:$0xff]
    %v1398 = vld [vmem:[#allocation7 + $0x12c0] sm:$0xff]
    %v1399 = vld [vmem:[#allocation7 + $0x12c8] sm:$0xff]
    %v1400 = vld [vmem:[#allocation7 + $0x12d0] sm:$0xff]
    %v1401 = vld [vmem:[#allocation7 + $0x12d8] sm:$0xff]
    %v1402 = vld [vmem:[#allocation7 + $0x12e0] sm:$0xff]
    %v1403 = vld [vmem:[#allocation7 + $0x12e8] sm:$0xff]
    %v1404 = vld [vmem:[#allocation7 + $0x12f0] sm:$0xff]
    %v1405 = vld [vmem:[#allocation7 + $0x12f8] sm:$0xff]
    %v1406 = vld [vmem:[#allocation7 + $0x1300] sm:$0xff]
    %v1407 = vld [vmem:[#allocation7 + $0x1308] sm:$0xff]
    %v1408 = vld [vmem:[#allocation7 + $0x1310] sm:$0xff]
    %v1409 = vld [vmem:[#allocation7 + $0x1318] sm:$0xff]
    %v1410 = vld [vmem:[#allocation7 + $0x1320] sm:$0xff]
    %v1411 = vld [vmem:[#allocation7 + $0x1328] sm:$0xff]
    %v1412 = vld [vmem:[#allocation7 + $0x1330] sm:$0xff]
    %v1413 = vld [vmem:[#allocation7 + $0x1338] sm:$0xff]
    %v1414 = vld [vmem:[#allocation7 + $0x1340] sm:$0xff]
    %v1415 = vld [vmem:[#allocation7 + $0x1348] sm:$0xff]
    %v1416 = vld [vmem:[#allocation7 + $0x1350] sm:$0xff]
    %v1417 = vld [vmem:[#allocation7 + $0x1358] sm:$0xff]
    %v1418 = vld [vmem:[#allocation7 + $0x1360] sm:$0xff]
    %v1419 = vld [vmem:[#allocation7 + $0x1368] sm:$0xff]
    %v1420 = vld [vmem:[#allocation7 + $0x1370] sm:$0xff]
    %v1421 = vld [vmem:[#allocation7 + $0x1378] sm:$0xff]
    %v1422 = vld [vmem:[#allocation7 + $0x1380] sm:$0xff]
    %v1423 = vld [vmem:[#allocation7 + $0x1388] sm:$0xff]
    %v1424 = vld [vmem:[#allocation7 + $0x1390] sm:$0xff]
    %v1425 = vld [vmem:[#allocation7 + $0x1398] sm:$0xff]
    %v1426 = vld [vmem:[#allocation7 + $0x13a0] sm:$0xff]
    %v1427 = vld [vmem:[#allocation7 + $0x13a8] sm:$0xff]
    %v1428 = vld [vmem:[#allocation7 + $0x13b0] sm:$0xff]
    %v1429 = vld [vmem:[#allocation7 + $0x13b8] sm:$0xff]
    %v1430 = vld [vmem:[#allocation7 + $0x13c0] sm:$0xff]
    %v1431 = vld [vmem:[#allocation7 + $0x13c8] sm:$0xff]
    %v1432 = vld [vmem:[#allocation7 + $0x13d0] sm:$0xff]
    %v1433 = vld [vmem:[#allocation7 + $0x13d8] sm:$0xff]
    %v1434 = vld [vmem:[#allocation7 + $0x13e0] sm:$0xff]
    %v1435 = vld [vmem:[#allocation7 + $0x13e8] sm:$0xff]
    %v1436 = vld [vmem:[#allocation7 + $0x13f0] sm:$0xff]
    %v1437 = vld [vmem:[#allocation7 + $0x13f8] sm:$0xff]
    %v1438 = vld [vmem:[#allocation7 + $0x1400] sm:$0xff]
    %v1439 = vld [vmem:[#allocation7 + $0x1408] sm:$0xff]
    %v1440 = vld [vmem:[#allocation7 + $0x1410] sm:$0xff]
    %v1441 = vld [vmem:[#allocation7 + $0x1418] sm:$0xff]
    %v1442 = vld [vmem:[#allocation7 + $0x1420] sm:$0xff]
    %v1443 = vld [vmem:[#allocation7 + $0x1428] sm:$0xff]
    %v1444 = vld [vmem:[#allocation7 + $0x1430] sm:$0xff]
    %v1445 = vld [vmem:[#allocation7 + $0x1438] sm:$0xff]
    %v1446 = vld [vmem:[#allocation7 + $0x1440] sm:$0xff]
    %v1447 = vld [vmem:[#allocation7 + $0x1448] sm:$0xff]
    %v1448 = vld [vmem:[#allocation7 + $0x1450] sm:$0xff]
    %v1449 = vld [vmem:[#allocation7 + $0x1458] sm:$0xff]
    %v1450 = vld [vmem:[#allocation7 + $0x1460] sm:$0xff]
    %v1451 = vld [vmem:[#allocation7 + $0x1468] sm:$0xff]
    %v1452 = vld [vmem:[#allocation7 + $0x1470] sm:$0xff]
    %v1453 = vld [vmem:[#allocation7 + $0x1478] sm:$0xff]
    %v1454 = vld [vmem:[#allocation7 + $0x1480] sm:$0xff]
    %v1455 = vld [vmem:[#allocation7 + $0x1488] sm:$0xff]
    %v1456 = vld [vmem:[#allocation7 + $0x1490] sm:$0xff]
    %v1457 = vld [vmem:[#allocation7 + $0x1498] sm:$0xff]
    %v1458 = vld [vmem:[#allocation7 + $0x14a0] sm:$0xff]
    %v1459 = vld [vmem:[#allocation7 + $0x14a8] sm:$0xff]
    %v1460 = vld [vmem:[#allocation7 + $0x14b0] sm:$0xff]
    %v1461 = vld [vmem:[#allocation7 + $0x14b8] sm:$0xff]
    %v1462 = vld [vmem:[#allocation7 + $0x14c0] sm:$0xff]
    %v1463 = vld [vmem:[#allocation7 + $0x14c8] sm:$0xff]
    %v1464 = vld [vmem:[#allocation7 + $0x14d0] sm:$0xff]
    %v1465 = vld [vmem:[#allocation7 + $0x14d8] sm:$0xff]
    %v1466 = vld [vmem:[#allocation7 + $0x14e0] sm:$0xff]
    %v1467 = vld [vmem:[#allocation7 + $0x14e8] sm:$0xff]
    %v1468 = vld [vmem:[#allocation7 + $0x14f0] sm:$0xff]
    %v1469 = vld [vmem:[#allocation7 + $0x14f8] sm:$0xff]
    %v1470 = vld [vmem:[#allocation7 + $0x1500] sm:$0xff]
    %v1471 = vld [vmem:[#allocation7 + $0x1508] sm:$0xff]
    %v1472 = vld [vmem:[#allocation7 + $0x1510] sm:$0xff]
    %v1473 = vld [vmem:[#allocation7 + $0x1518] sm:$0xff]
    %v1474 = vld [vmem:[#allocation7 + $0x1520] sm:$0xff]
    %v1475 = vld [vmem:[#allocation7 + $0x1528] sm:$0xff]
    %v1476 = vld [vmem:[#allocation7 + $0x1530] sm:$0xff]
    %v1477 = vld [vmem:[#allocation7 + $0x1538] sm:$0xff]
    %v1478 = vld [vmem:[#allocation7 + $0x1540] sm:$0xff]
    %v1479 = vld [vmem:[#allocation7 + $0x1548] sm:$0xff]
    %v1480 = vld [vmem:[#allocation7 + $0x1550] sm:$0xff]
    %v1481 = vld [vmem:[#allocation7 + $0x1558] sm:$0xff]
    %v1482 = vld [vmem:[#allocation7 + $0x1560] sm:$0xff]
    %v1483 = vld [vmem:[#allocation7 + $0x1568] sm:$0xff]
    %v1484 = vld [vmem:[#allocation7 + $0x1570] sm:$0xff]
    %v1485 = vld [vmem:[#allocation7 + $0x1578] sm:$0xff]
    %v1486 = vld [vmem:[#allocation7 + $0x1580] sm:$0xff]
    %v1487 = vld [vmem:[#allocation7 + $0x1588] sm:$0xff]
    %v1488 = vld [vmem:[#allocation7 + $0x1590] sm:$0xff]
    %v1489 = vld [vmem:[#allocation7 + $0x1598] sm:$0xff]
    %v1490 = vld [vmem:[#allocation7 + $0x15a0] sm:$0xff]
    %v1491 = vld [vmem:[#allocation7 + $0x15a8] sm:$0xff]
    %v1492 = vld [vmem:[#allocation7 + $0x15b0] sm:$0xff]
    %v1493 = vld [vmem:[#allocation7 + $0x15b8] sm:$0xff]
    %v1494 = vld [vmem:[#allocation7 + $0x15c0] sm:$0xff]
    %v1495 = vld [vmem:[#allocation7 + $0x15c8] sm:$0xff]
    %v1496 = vld [vmem:[#allocation7 + $0x15d0] sm:$0xff]
    %v1497 = vld [vmem:[#allocation7 + $0x15d8] sm:$0xff]
    %v1498 = vld [vmem:[#allocation7 + $0x15e0] sm:$0xff]
    %v1499 = vld [vmem:[#allocation7 + $0x15e8] sm:$0xff]
    %v1500 = vld [vmem:[#allocation7 + $0x15f0] sm:$0xff]
    %v1501 = vld [vmem:[#allocation7 + $0x15f8] sm:$0xff]
    %v1502 = vld [vmem:[#allocation7 + $0x1600] sm:$0xff]
    %v1503 = vld [vmem:[#allocation7 + $0x1608] sm:$0xff]
    %v1504 = vld [vmem:[#allocation7 + $0x1610] sm:$0xff]
    %v1505 = vld [vmem:[#allocation7 + $0x1618] sm:$0xff]
    %v1506 = vld [vmem:[#allocation7 + $0x1620] sm:$0xff]
    %v1507 = vld [vmem:[#allocation7 + $0x1628] sm:$0xff]
    %v1508 = vld [vmem:[#allocation7 + $0x1630] sm:$0xff]
    %v1509 = vld [vmem:[#allocation7 + $0x1638] sm:$0xff]
    %v1510 = vld [vmem:[#allocation7 + $0x1640] sm:$0xff]
    %v1511 = vld [vmem:[#allocation7 + $0x1648] sm:$0xff]
    %v1512 = vld [vmem:[#allocation7 + $0x1650] sm:$0xff]
    %v1513 = vld [vmem:[#allocation7 + $0x1658] sm:$0xff]
    %v1514 = vld [vmem:[#allocation7 + $0x1660] sm:$0xff]
    %v1515 = vld [vmem:[#allocation7 + $0x1668] sm:$0xff]
    %v1516 = vld [vmem:[#allocation7 + $0x1670] sm:$0xff]
    %v1517 = vld [vmem:[#allocation7 + $0x1678] sm:$0xff]
    %v1518 = vld [vmem:[#allocation7 + $0x1680] sm:$0xff]
    %v1519 = vld [vmem:[#allocation7 + $0x1688] sm:$0xff]
    %v1520 = vld [vmem:[#allocation7 + $0x1690] sm:$0xff]
    %v1521 = vld [vmem:[#allocation7 + $0x1698] sm:$0xff]
    %v1522 = vld [vmem:[#allocation7 + $0x16a0] sm:$0xff]
    %v1523 = vld [vmem:[#allocation7 + $0x16a8] sm:$0xff]
    %v1524 = vld [vmem:[#allocation7 + $0x16b0] sm:$0xff]
    %v1525 = vld [vmem:[#allocation7 + $0x16b8] sm:$0xff]
    %v1526 = vld [vmem:[#allocation7 + $0x16c0] sm:$0xff]
    %v1527 = vld [vmem:[#allocation7 + $0x16c8] sm:$0xff]
    %v1528 = vld [vmem:[#allocation7 + $0x16d0] sm:$0xff]
    %v1529 = vld [vmem:[#allocation7 + $0x16d8] sm:$0xff]
    %v1530 = vld [vmem:[#allocation7 + $0x16e0] sm:$0xff]
    %v1531 = vld [vmem:[#allocation7 + $0x16e8] sm:$0xff]
    %v1532 = vld [vmem:[#allocation7 + $0x16f0] sm:$0xff]
    %v1533 = vld [vmem:[#allocation7 + $0x16f8] sm:$0xff]
    %v1534 = vld [vmem:[#allocation7 + $0x1700] sm:$0xff]
    %v1535 = vld [vmem:[#allocation7 + $0x1708] sm:$0xff]
    %v1536 = vld [vmem:[#allocation7 + $0x1710] sm:$0xff]
    %v1537 = vld [vmem:[#allocation7 + $0x1718] sm:$0xff]
    %v1538 = vld [vmem:[#allocation7 + $0x1720] sm:$0xff]
    %v1539 = vld [vmem:[#allocation7 + $0x1728] sm:$0xff]
    %v1540 = vld [vmem:[#allocation7 + $0x1730] sm:$0xff]
    %v1541 = vld [vmem:[#allocation7 + $0x1738] sm:$0xff]
    %v1542 = vld [vmem:[#allocation7 + $0x1740] sm:$0xff]
    %v1543 = vld [vmem:[#allocation7 + $0x1748] sm:$0xff]
    %v1544 = vld [vmem:[#allocation7 + $0x1750] sm:$0xff]
    %v1545 = vld [vmem:[#allocation7 + $0x1758] sm:$0xff]
    %v1546 = vld [vmem:[#allocation7 + $0x1760] sm:$0xff]
    %v1547 = vld [vmem:[#allocation7 + $0x1768] sm:$0xff]
    %v1548 = vld [vmem:[#allocation7 + $0x1770] sm:$0xff]
    %v1549 = vld [vmem:[#allocation7 + $0x1778] sm:$0xff]
    %v1550 = vld [vmem:[#allocation7 + $0x1780] sm:$0xff]
    %v1551 = vld [vmem:[#allocation7 + $0x1788] sm:$0xff]
    %v1552 = vld [vmem:[#allocation7 + $0x1790] sm:$0xff]
    %v1553 = vld [vmem:[#allocation7 + $0x1798] sm:$0xff]
    %v1554 = vld [vmem:[#allocation7 + $0x17a0] sm:$0xff]
    %v1555 = vld [vmem:[#allocation7 + $0x17a8] sm:$0xff]
    %v1556 = vld [vmem:[#allocation7 + $0x17b0] sm:$0xff]
    %v1557 = vld [vmem:[#allocation7 + $0x17b8] sm:$0xff]
    %v1558 = vld [vmem:[#allocation7 + $0x17c0] sm:$0xff]
    %v1559 = vld [vmem:[#allocation7 + $0x17c8] sm:$0xff]
    %v1560 = vld [vmem:[#allocation7 + $0x17d0] sm:$0xff]
    %v1561 = vld [vmem:[#allocation7 + $0x17d8] sm:$0xff]
    %v1562 = vld [vmem:[#allocation7 + $0x17e0] sm:$0xff]
    %v1563 = vld [vmem:[#allocation7 + $0x17e8] sm:$0xff]
    %v1564 = vld [vmem:[#allocation7 + $0x17f0] sm:$0xff]
    %v1565 = vld [vmem:[#allocation7 + $0x17f8] sm:$0xff]
    %v1566 = vld [vmem:[#allocation7 + $0x1800] sm:$0xff]
    %v1567 = vld [vmem:[#allocation7 + $0x1808] sm:$0xff]
    %v1568 = vld [vmem:[#allocation7 + $0x1810] sm:$0xff]
    %v1569 = vld [vmem:[#allocation7 + $0x1818] sm:$0xff]
    %v1570 = vld [vmem:[#allocation7 + $0x1820] sm:$0xff]
    %v1571 = vld [vmem:[#allocation7 + $0x1828] sm:$0xff]
    %v1572 = vld [vmem:[#allocation7 + $0x1830] sm:$0xff]
    %v1573 = vld [vmem:[#allocation7 + $0x1838] sm:$0xff]
    %v1574 = vld [vmem:[#allocation7 + $0x1840] sm:$0xff]
    %v1575 = vld [vmem:[#allocation7 + $0x1848] sm:$0xff]
    %v1576 = vld [vmem:[#allocation7 + $0x1850] sm:$0xff]
    %v1577 = vld [vmem:[#allocation7 + $0x1858] sm:$0xff]
    %v1578 = vld [vmem:[#allocation7 + $0x1860] sm:$0xff]
    %v1579 = vld [vmem:[#allocation7 + $0x1868] sm:$0xff]
    %v1580 = vld [vmem:[#allocation7 + $0x1870] sm:$0xff]
    %v1581 = vld [vmem:[#allocation7 + $0x1878] sm:$0xff]
    %v1582 = vld [vmem:[#allocation7 + $0x1880] sm:$0xff]
    %v1583 = vld [vmem:[#allocation7 + $0x1888] sm:$0xff]
    %v1584 = vld [vmem:[#allocation7 + $0x1890] sm:$0xff]
    %v1585 = vld [vmem:[#allocation7 + $0x1898] sm:$0xff]
    %v1586 = vld [vmem:[#allocation7 + $0x18a0] sm:$0xff]
    %v1587 = vld [vmem:[#allocation7 + $0x18a8] sm:$0xff]
    %v1588 = vld [vmem:[#allocation7 + $0x18b0] sm:$0xff]
    %v1589 = vld [vmem:[#allocation7 + $0x18b8] sm:$0xff]
    %v1590 = vld [vmem:[#allocation7 + $0x18c0] sm:$0xff]
    %v1591 = vld [vmem:[#allocation7 + $0x18c8] sm:$0xff]
    %v1592 = vld [vmem:[#allocation7 + $0x18d0] sm:$0xff]
    %v1593 = vld [vmem:[#allocation7 + $0x18d8] sm:$0xff]
    %v1594 = vld [vmem:[#allocation7 + $0x18e0] sm:$0xff]
    %v1595 = vld [vmem:[#allocation7 + $0x18e8] sm:$0xff]
    %v1596 = vld [vmem:[#allocation7 + $0x18f0] sm:$0xff]
    %v1597 = vld [vmem:[#allocation7 + $0x18f8] sm:$0xff]
    %v1598 = vld [vmem:[#allocation7 + $0x1900] sm:$0xff]
    %v1599 = vld [vmem:[#allocation7 + $0x1908] sm:$0xff]
    %v1600 = vld [vmem:[#allocation7 + $0x1910] sm:$0xff]
    %v1601 = vld [vmem:[#allocation7 + $0x1918] sm:$0xff]
    %v1602 = vld [vmem:[#allocation7 + $0x1920] sm:$0xff]
    %v1603 = vld [vmem:[#allocation7 + $0x1928] sm:$0xff]
    %v1604 = vld [vmem:[#allocation7 + $0x1930] sm:$0xff]
    %v1605 = vld [vmem:[#allocation7 + $0x1938] sm:$0xff]
    %v1606 = vld [vmem:[#allocation7 + $0x1940] sm:$0xff]
    %v1607 = vld [vmem:[#allocation7 + $0x1948] sm:$0xff]
    %v1608 = vld [vmem:[#allocation7 + $0x1950] sm:$0xff]
    %v1609 = vld [vmem:[#allocation7 + $0x1958] sm:$0xff]
    %v1610 = vld [vmem:[#allocation7 + $0x1960] sm:$0xff]
    %v1611 = vld [vmem:[#allocation7 + $0x1968] sm:$0xff]
    %v1612 = vld [vmem:[#allocation7 + $0x1970] sm:$0xff]
    %v1613 = vld [vmem:[#allocation7 + $0x1978] sm:$0xff]
    %v1614 = vld [vmem:[#allocation7 + $0x1980] sm:$0xff]
    %v1615 = vld [vmem:[#allocation7 + $0x1988] sm:$0xff]
    %v1616 = vld [vmem:[#allocation7 + $0x1990] sm:$0xff]
    %v1617 = vld [vmem:[#allocation7 + $0x1998] sm:$0xff]
    %v1618 = vld [vmem:[#allocation7 + $0x19a0] sm:$0xff]
    %v1619 = vld [vmem:[#allocation7 + $0x19a8] sm:$0xff]
    %v1620 = vld [vmem:[#allocation7 + $0x19b0] sm:$0xff]
    %v1621 = vld [vmem:[#allocation7 + $0x19b8] sm:$0xff]
    %v1622 = vld [vmem:[#allocation7 + $0x19c0] sm:$0xff]
    %v1623 = vld [vmem:[#allocation7 + $0x19c8] sm:$0xff]
    %v1624 = vld [vmem:[#allocation7 + $0x19d0] sm:$0xff]
    %v1625 = vld [vmem:[#allocation7 + $0x19d8] sm:$0xff]
    %v1626 = vld [vmem:[#allocation7 + $0x19e0] sm:$0xff]
    %v1627 = vld [vmem:[#allocation7 + $0x19e8] sm:$0xff]
    %v1628 = vld [vmem:[#allocation7 + $0x19f0] sm:$0xff]
    %v1629 = vld [vmem:[#allocation7 + $0x19f8] sm:$0xff]
    %v1630 = vld [vmem:[#allocation7 + $0x1a00] sm:$0xff]
    %v1631 = vld [vmem:[#allocation7 + $0x1a08] sm:$0xff]
    %v1632 = vld [vmem:[#allocation7 + $0x1a10] sm:$0xff]
    %v1633 = vld [vmem:[#allocation7 + $0x1a18] sm:$0xff]
    %v1634 = vld [vmem:[#allocation7 + $0x1a20] sm:$0xff]
    %v1635 = vld [vmem:[#allocation7 + $0x1a28] sm:$0xff]
    %v1636 = vld [vmem:[#allocation7 + $0x1a30] sm:$0xff]
    %v1637 = vld [vmem:[#allocation7 + $0x1a38] sm:$0xff]
    %v1638 = vld [vmem:[#allocation7 + $0x1a40] sm:$0xff]
    %v1639 = vld [vmem:[#allocation7 + $0x1a48] sm:$0xff]
    %v1640 = vld [vmem:[#allocation7 + $0x1a50] sm:$0xff]
    %v1641 = vld [vmem:[#allocation7 + $0x1a58] sm:$0xff]
    %v1642 = vld [vmem:[#allocation7 + $0x1a60] sm:$0xff]
    %v1643 = vld [vmem:[#allocation7 + $0x1a68] sm:$0xff]
    %v1644 = vld [vmem:[#allocation7 + $0x1a70] sm:$0xff]
    %v1645 = vld [vmem:[#allocation7 + $0x1a78] sm:$0xff]
    %v1646 = vld [vmem:[#allocation7 + $0x1a80] sm:$0xff]
    %v1647 = vld [vmem:[#allocation7 + $0x1a88] sm:$0xff]
    %v1648 = vld [vmem:[#allocation7 + $0x1a90] sm:$0xff]
    %v1649 = vld [vmem:[#allocation7 + $0x1a98] sm:$0xff]
    %v1650 = vld [vmem:[#allocation7 + $0x1aa0] sm:$0xff]
    %v1651 = vld [vmem:[#allocation7 + $0x1aa8] sm:$0xff]
    %v1652 = vld [vmem:[#allocation7 + $0x1ab0] sm:$0xff]
    %v1653 = vld [vmem:[#allocation7 + $0x1ab8] sm:$0xff]
    %v1654 = vld [vmem:[#allocation7 + $0x1ac0] sm:$0xff]
    %v1655 = vld [vmem:[#allocation7 + $0x1ac8] sm:$0xff]
    %v1656 = vld [vmem:[#allocation7 + $0x1ad0] sm:$0xff]
    %v1657 = vld [vmem:[#allocation7 + $0x1ad8] sm:$0xff]
    %v1658 = vld [vmem:[#allocation7 + $0x1ae0] sm:$0xff]
    %v1659 = vld [vmem:[#allocation7 + $0x1ae8] sm:$0xff]
    %v1660 = vld [vmem:[#allocation7 + $0x1af0] sm:$0xff]
    %v1661 = vld [vmem:[#allocation7 + $0x1af8] sm:$0xff]
    %v1662 = vld [vmem:[#allocation7 + $0x1b00] sm:$0xff]
    %v1663 = vld [vmem:[#allocation7 + $0x1b08] sm:$0xff]
    %v1664 = vld [vmem:[#allocation7 + $0x1b10] sm:$0xff]
    %v1665 = vld [vmem:[#allocation7 + $0x1b18] sm:$0xff]
    %v1666 = vld [vmem:[#allocation7 + $0x1b20] sm:$0xff]
    %v1667 = vld [vmem:[#allocation7 + $0x1b28] sm:$0xff]
    %v1668 = vld [vmem:[#allocation7 + $0x1b30] sm:$0xff]
    %v1669 = vld [vmem:[#allocation7 + $0x1b38] sm:$0xff]
    %v1670 = vld [vmem:[#allocation7 + $0x1b40] sm:$0xff]
    %v1671 = vld [vmem:[#allocation7 + $0x1b48] sm:$0xff]
    %v1672 = vld [vmem:[#allocation7 + $0x1b50] sm:$0xff]
    %v1673 = vld [vmem:[#allocation7 + $0x1b58] sm:$0xff]
    %v1674 = vld [vmem:[#allocation7 + $0x1b60] sm:$0xff]
    %v1675 = vld [vmem:[#allocation7 + $0x1b68] sm:$0xff]
    %v1676 = vld [vmem:[#allocation7 + $0x1b70] sm:$0xff]
    %v1677 = vld [vmem:[#allocation7 + $0x1b78] sm:$0xff]
    %v1678 = vld [vmem:[#allocation7 + $0x1b80] sm:$0xff]
    %v1679 = vld [vmem:[#allocation7 + $0x1b88] sm:$0xff]
    %v1680 = vld [vmem:[#allocation7 + $0x1b90] sm:$0xff]
    %v1681 = vld [vmem:[#allocation7 + $0x1b98] sm:$0xff]
    %v1682 = vld [vmem:[#allocation7 + $0x1ba0] sm:$0xff]
    %v1683 = vld [vmem:[#allocation7 + $0x1ba8] sm:$0xff]
    %v1684 = vld [vmem:[#allocation7 + $0x1bb0] sm:$0xff]
    %v1685 = vld [vmem:[#allocation7 + $0x1bb8] sm:$0xff]
    %v1686 = vld [vmem:[#allocation7 + $0x1bc0] sm:$0xff]
    %v1687 = vld [vmem:[#allocation7 + $0x1bc8] sm:$0xff]
    %v1688 = vld [vmem:[#allocation7 + $0x1bd0] sm:$0xff]
    %v1689 = vld [vmem:[#allocation7 + $0x1bd8] sm:$0xff]
    %v1690 = vld [vmem:[#allocation7 + $0x1be0] sm:$0xff]
    %v1691 = vld [vmem:[#allocation7 + $0x1be8] sm:$0xff]
    %v1692 = vld [vmem:[#allocation7 + $0x1bf0] sm:$0xff]
    %v1693 = vld [vmem:[#allocation7 + $0x1bf8] sm:$0xff]
    %v1694 = vld [vmem:[#allocation7 + $0x1c00] sm:$0xff]
    %v1695 = vld [vmem:[#allocation7 + $0x1c08] sm:$0xff]
    %v1696 = vld [vmem:[#allocation7 + $0x1c10] sm:$0xff]
    %v1697 = vld [vmem:[#allocation7 + $0x1c18] sm:$0xff]
    %v1698 = vld [vmem:[#allocation7 + $0x1c20] sm:$0xff]
    %v1699 = vld [vmem:[#allocation7 + $0x1c28] sm:$0xff]
    %v1700 = vld [vmem:[#allocation7 + $0x1c30] sm:$0xff]
    %v1701 = vld [vmem:[#allocation7 + $0x1c38] sm:$0xff]
    %v1702 = vld [vmem:[#allocation7 + $0x1c40] sm:$0xff]
    %v1703 = vld [vmem:[#allocation7 + $0x1c48] sm:$0xff]
    %v1704 = vld [vmem:[#allocation7 + $0x1c50] sm:$0xff]
    %v1705 = vld [vmem:[#allocation7 + $0x1c58] sm:$0xff]
    %v1706 = vld [vmem:[#allocation7 + $0x1c60] sm:$0xff]
    %v1707 = vld [vmem:[#allocation7 + $0x1c68] sm:$0xff]
    %v1708 = vld [vmem:[#allocation7 + $0x1c70] sm:$0xff]
    %v1709 = vld [vmem:[#allocation7 + $0x1c78] sm:$0xff]
    %v1710 = vld [vmem:[#allocation7 + $0x1c80] sm:$0xff]
    %v1711 = vld [vmem:[#allocation7 + $0x1c88] sm:$0xff]
    %v1712 = vld [vmem:[#allocation7 + $0x1c90] sm:$0xff]
    %v1713 = vld [vmem:[#allocation7 + $0x1c98] sm:$0xff]
    %v1714 = vld [vmem:[#allocation7 + $0x1ca0] sm:$0xff]
    %v1715 = vld [vmem:[#allocation7 + $0x1ca8] sm:$0xff]
    %v1716 = vld [vmem:[#allocation7 + $0x1cb0] sm:$0xff]
    %v1717 = vld [vmem:[#allocation7 + $0x1cb8] sm:$0xff]
    %v1718 = vld [vmem:[#allocation7 + $0x1cc0] sm:$0xff]
    %v1719 = vld [vmem:[#allocation7 + $0x1cc8] sm:$0xff]
    %v1720 = vld [vmem:[#allocation7 + $0x1cd0] sm:$0xff]
    %v1721 = vld [vmem:[#allocation7 + $0x1cd8] sm:$0xff]
    %v1722 = vld [vmem:[#allocation7 + $0x1ce0] sm:$0xff]
    %v1723 = vld [vmem:[#allocation7 + $0x1ce8] sm:$0xff]
    %v1724 = vld [vmem:[#allocation7 + $0x1cf0] sm:$0xff]
    %v1725 = vld [vmem:[#allocation7 + $0x1cf8] sm:$0xff]
    %v1726 = vld [vmem:[#allocation7 + $0x1d00] sm:$0xff]
    %v1727 = vld [vmem:[#allocation7 + $0x1d08] sm:$0xff]
    %v1728 = vld [vmem:[#allocation7 + $0x1d10] sm:$0xff]
    %v1729 = vld [vmem:[#allocation7 + $0x1d18] sm:$0xff]
    %v1730 = vld [vmem:[#allocation7 + $0x1d20] sm:$0xff]
    %v1731 = vld [vmem:[#allocation7 + $0x1d28] sm:$0xff]
    %v1732 = vld [vmem:[#allocation7 + $0x1d30] sm:$0xff]
    %v1733 = vld [vmem:[#allocation7 + $0x1d38] sm:$0xff]
    %v1734 = vld [vmem:[#allocation7 + $0x1d40] sm:$0xff]
    %v1735 = vld [vmem:[#allocation7 + $0x1d48] sm:$0xff]
    %v1736 = vld [vmem:[#allocation7 + $0x1d50] sm:$0xff]
    %v1737 = vld [vmem:[#allocation7 + $0x1d58] sm:$0xff]
    %v1738 = vld [vmem:[#allocation7 + $0x1d60] sm:$0xff]
    %v1739 = vld [vmem:[#allocation7 + $0x1d68] sm:$0xff]
    %v1740 = vld [vmem:[#allocation7 + $0x1d70] sm:$0xff]
    %v1741 = vld [vmem:[#allocation7 + $0x1d78] sm:$0xff]
    %v1742 = vld [vmem:[#allocation7 + $0x1d80] sm:$0xff]
    %v1743 = vld [vmem:[#allocation7 + $0x1d88] sm:$0xff]
    %v1744 = vld [vmem:[#allocation7 + $0x1d90] sm:$0xff]
    %v1745 = vld [vmem:[#allocation7 + $0x1d98] sm:$0xff]
    %v1746 = vld [vmem:[#allocation7 + $0x1da0] sm:$0xff]
    %v1747 = vld [vmem:[#allocation7 + $0x1da8] sm:$0xff]
    %v1748 = vld [vmem:[#allocation7 + $0x1db0] sm:$0xff]
    %v1749 = vld [vmem:[#allocation7 + $0x1db8] sm:$0xff]
    %v1750 = vld [vmem:[#allocation7 + $0x1dc0] sm:$0xff]
    %v1751 = vld [vmem:[#allocation7 + $0x1dc8] sm:$0xff]
    %v1752 = vld [vmem:[#allocation7 + $0x1dd0] sm:$0xff]
    %v1753 = vld [vmem:[#allocation7 + $0x1dd8] sm:$0xff]
    %v1754 = vld [vmem:[#allocation7 + $0x1de0] sm:$0xff]
    %v1755 = vld [vmem:[#allocation7 + $0x1de8] sm:$0xff]
    %v1756 = vld [vmem:[#allocation7 + $0x1df0] sm:$0xff]
    %v1757 = vld [vmem:[#allocation7 + $0x1df8] sm:$0xff]
    %v1758 = vld [vmem:[#allocation7 + $0x1e00] sm:$0xff]
    %v1759 = vld [vmem:[#allocation7 + $0x1e08] sm:$0xff]
    %v1760 = vld [vmem:[#allocation7 + $0x1e10] sm:$0xff]
    %v1761 = vld [vmem:[#allocation7 + $0x1e18] sm:$0xff]
    %v1762 = vld [vmem:[#allocation7 + $0x1e20] sm:$0xff]
    %v1763 = vld [vmem:[#allocation7 + $0x1e28] sm:$0xff]
    %v1764 = vld [vmem:[#allocation7 + $0x1e30] sm:$0xff]
    %v1765 = vld [vmem:[#allocation7 + $0x1e38] sm:$0xff]
    %v1766 = vld [vmem:[#allocation7 + $0x1e40] sm:$0xff]
    %v1767 = vld [vmem:[#allocation7 + $0x1e48] sm:$0xff]
    %v1768 = vld [vmem:[#allocation7 + $0x1e50] sm:$0xff]
    %v1769 = vld [vmem:[#allocation7 + $0x1e58] sm:$0xff]
    %v1770 = vld [vmem:[#allocation7 + $0x1e60] sm:$0xff]
    %v1771 = vld [vmem:[#allocation7 + $0x1e68] sm:$0xff]
    %v1772 = vld [vmem:[#allocation7 + $0x1e70] sm:$0xff]
    %v1773 = vld [vmem:[#allocation7 + $0x1e78] sm:$0xff]
    %v1774 = vld [vmem:[#allocation7 + $0x1e80] sm:$0xff]
    %v1775 = vld [vmem:[#allocation7 + $0x1e88] sm:$0xff]
    %v1776 = vld [vmem:[#allocation7 + $0x1e90] sm:$0xff]
    %v1777 = vld [vmem:[#allocation7 + $0x1e98] sm:$0xff]
    %v1778 = vld [vmem:[#allocation7 + $0x1ea0] sm:$0xff]
    %v1779 = vld [vmem:[#allocation7 + $0x1ea8] sm:$0xff]
    %v1780 = vld [vmem:[#allocation7 + $0x1eb0] sm:$0xff]
    %v1781 = vld [vmem:[#allocation7 + $0x1eb8] sm:$0xff]
    %v1782 = vld [vmem:[#allocation7 + $0x1ec0] sm:$0xff]
    %v1783 = vld [vmem:[#allocation7 + $0x1ec8] sm:$0xff]
    %v1784 = vld [vmem:[#allocation7 + $0x1ed0] sm:$0xff]
    %v1785 = vld [vmem:[#allocation7 + $0x1ed8] sm:$0xff]
    %v1786 = vld [vmem:[#allocation7 + $0x1ee0] sm:$0xff]
    %v1787 = vld [vmem:[#allocation7 + $0x1ee8] sm:$0xff]
    %v1788 = vld [vmem:[#allocation7 + $0x1ef0] sm:$0xff]
    %v1789 = vld [vmem:[#allocation7 + $0x1ef8] sm:$0xff]
    %v1790 = vld [vmem:[#allocation7 + $0x1f00] sm:$0xff]
    %v1791 = vld [vmem:[#allocation7 + $0x1f08] sm:$0xff]
    %v1792 = vld [vmem:[#allocation7 + $0x1f10] sm:$0xff]
    %v1793 = vld [vmem:[#allocation7 + $0x1f18] sm:$0xff]
    %v1794 = vld [vmem:[#allocation7 + $0x1f20] sm:$0xff]
    %v1795 = vld [vmem:[#allocation7 + $0x1f28] sm:$0xff]
    %v1796 = vld [vmem:[#allocation7 + $0x1f30] sm:$0xff]
    %v1797 = vld [vmem:[#allocation7 + $0x1f38] sm:$0xff]
    %v1798 = vld [vmem:[#allocation7 + $0x1f40] sm:$0xff]
    %v1799 = vld [vmem:[#allocation7 + $0x1f48] sm:$0xff]
    %v1800 = vld [vmem:[#allocation7 + $0x1f50] sm:$0xff]
    %v1801 = vld [vmem:[#allocation7 + $0x1f58] sm:$0xff]
    %v1802 = vld [vmem:[#allocation7 + $0x1f60] sm:$0xff]
    %v1803 = vld [vmem:[#allocation7 + $0x1f68] sm:$0xff]
    %v1804 = vld [vmem:[#allocation7 + $0x1f70] sm:$0xff]
    %v1805 = vld [vmem:[#allocation7 + $0x1f78] sm:$0xff]
    %v1806 = vld [vmem:[#allocation7 + $0x1f80] sm:$0xff]
    %v1807 = vld [vmem:[#allocation7 + $0x1f88] sm:$0xff]
    %v1808 = vld [vmem:[#allocation7 + $0x1f90] sm:$0xff]
    %v1809 = vld [vmem:[#allocation7 + $0x1f98] sm:$0xff]
    %v1810 = vld [vmem:[#allocation7 + $0x1fa0] sm:$0xff]
    %v1811 = vld [vmem:[#allocation7 + $0x1fa8] sm:$0xff]
    %v1812 = vld [vmem:[#allocation7 + $0x1fb0] sm:$0xff]
    %v1813 = vld [vmem:[#allocation7 + $0x1fb8] sm:$0xff]
    %v1814 = vld [vmem:[#allocation7 + $0x1fc0] sm:$0xff]
    %v1815 = vld [vmem:[#allocation7 + $0x1fc8] sm:$0xff]
    %v1816 = vld [vmem:[#allocation7 + $0x1fd0] sm:$0xff]
    %v1817 = vld [vmem:[#allocation7 + $0x1fd8] sm:$0xff]
    %v1818 = vld [vmem:[#allocation7 + $0x1fe0] sm:$0xff]
    %v1819 = vld [vmem:[#allocation7 + $0x1fe8] sm:$0xff]
    %v1820 = vld [vmem:[#allocation7 + $0x1ff0] sm:$0xff]
    %v1821 = vld [vmem:[#allocation7 + $0x1ff8] sm:$0xff]
    %v1822 = vld [vmem:[#allocation7 + $0x2000] sm:$0xff]
    %v1823 = vld [vmem:[#allocation7 + $0x2008] sm:$0xff]
    %v1824 = vld [vmem:[#allocation7 + $0x2010] sm:$0xff]
    %v1825 = vld [vmem:[#allocation7 + $0x2018] sm:$0xff]
    %v1826 = vld [vmem:[#allocation7 + $0x2020] sm:$0xff]
    %v1827 = vld [vmem:[#allocation7 + $0x2028] sm:$0xff]
    %v1828 = vld [vmem:[#allocation7 + $0x2030] sm:$0xff]
    %v1829 = vld [vmem:[#allocation7 + $0x2038] sm:$0xff]
    %v1830 = vld [vmem:[#allocation7 + $0x2040] sm:$0xff]
    %v1831 = vld [vmem:[#allocation7 + $0x2048] sm:$0xff]
    %v1832 = vld [vmem:[#allocation7 + $0x2050] sm:$0xff]
    %v1833 = vld [vmem:[#allocation7 + $0x2058] sm:$0xff]
    %v1834 = vld [vmem:[#allocation7 + $0x2060] sm:$0xff]
    %v1835 = vld [vmem:[#allocation7 + $0x2068] sm:$0xff]
    %v1836 = vld [vmem:[#allocation7 + $0x2070] sm:$0xff]
    %v1837 = vld [vmem:[#allocation7 + $0x2078] sm:$0xff]
    %v1838 = vld [vmem:[#allocation7 + $0x2080] sm:$0xff]
    %v1839 = vld [vmem:[#allocation7 + $0x2088] sm:$0xff]
    %v1840 = vld [vmem:[#allocation7 + $0x2090] sm:$0xff]
    %v1841 = vld [vmem:[#allocation7 + $0x2098] sm:$0xff]
    %v1842 = vld [vmem:[#allocation7 + $0x20a0] sm:$0xff]
    %v1843 = vld [vmem:[#allocation7 + $0x20a8] sm:$0xff]
    %v1844 = vld [vmem:[#allocation7 + $0x20b0] sm:$0xff]
    %v1845 = vld [vmem:[#allocation7 + $0x20b8] sm:$0xff]
    %v1846 = vld [vmem:[#allocation7 + $0x20c0] sm:$0xff]
    %v1847 = vld [vmem:[#allocation7 + $0x20c8] sm:$0xff]
    %v1848 = vld [vmem:[#allocation7 + $0x20d0] sm:$0xff]
    %v1849 = vld [vmem:[#allocation7 + $0x20d8] sm:$0xff]
    %v1850 = vld [vmem:[#allocation7 + $0x20e0] sm:$0xff]
    %v1851 = vld [vmem:[#allocation7 + $0x20e8] sm:$0xff]
    %v1852 = vld [vmem:[#allocation7 + $0x20f0] sm:$0xff]
    %v1853 = vld [vmem:[#allocation7 + $0x20f8] sm:$0xff]
    %v1854 = vld [vmem:[#allocation7 + $0x2100] sm:$0xff]
    %v1855 = vld [vmem:[#allocation7 + $0x2108] sm:$0xff]
    %v1856 = vld [vmem:[#allocation7 + $0x2110] sm:$0xff]
    %v1857 = vld [vmem:[#allocation7 + $0x2118] sm:$0xff]
    %v1858 = vld [vmem:[#allocation7 + $0x2120] sm:$0xff]
    %v1859 = vld [vmem:[#allocation7 + $0x2128] sm:$0xff]
    %v1860 = vld [vmem:[#allocation7 + $0x2130] sm:$0xff]
    %v1861 = vld [vmem:[#allocation7 + $0x2138] sm:$0xff]
    %v1862 = vld [vmem:[#allocation7 + $0x2140] sm:$0xff]
    %v1863 = vld [vmem:[#allocation7 + $0x2148] sm:$0xff]
    %v1864 = vld [vmem:[#allocation7 + $0x2150] sm:$0xff]
    %v1865 = vld [vmem:[#allocation7 + $0x2158] sm:$0xff]
    %v1866 = vld [vmem:[#allocation7 + $0x2160] sm:$0xff]
    %v1867 = vld [vmem:[#allocation7 + $0x2168] sm:$0xff]
    %v1868 = vld [vmem:[#allocation7 + $0x2170] sm:$0xff]
    %v1869 = vld [vmem:[#allocation7 + $0x2178] sm:$0xff]
    %v1870 = vld [vmem:[#allocation7 + $0x2180] sm:$0xff]
    %v1871 = vld [vmem:[#allocation7 + $0x2188] sm:$0xff]
    %v1872 = vld [vmem:[#allocation7 + $0x2190] sm:$0xff]
    %v1873 = vld [vmem:[#allocation7 + $0x2198] sm:$0xff]
    %v1874 = vld [vmem:[#allocation7 + $0x21a0] sm:$0xff]
    %v1875 = vld [vmem:[#allocation7 + $0x21a8] sm:$0xff]
    %v1876 = vld [vmem:[#allocation7 + $0x21b0] sm:$0xff]
    %v1877 = vld [vmem:[#allocation7 + $0x21b8] sm:$0xff]
    %v1878 = vld [vmem:[#allocation7 + $0x21c0] sm:$0xff]
    %v1879 = vld [vmem:[#allocation7 + $0x21c8] sm:$0xff]
    %v1880 = vld [vmem:[#allocation7 + $0x21d0] sm:$0xff]
    %v1881 = vld [vmem:[#allocation7 + $0x21d8] sm:$0xff]
    %v1882 = vld [vmem:[#allocation7 + $0x21e0] sm:$0xff]
    %v1883 = vld [vmem:[#allocation7 + $0x21e8] sm:$0xff]
    %v1884 = vld [vmem:[#allocation7 + $0x21f0] sm:$0xff]
    %v1885 = vld [vmem:[#allocation7 + $0x21f8] sm:$0xff]
    %v1886 = vld [vmem:[#allocation8] sm:$0xff]
    %v1888 = vlaneseq
    %v1889 = vshrl.u32 %v1888, 7
    %v1890 = vsub.s32 0, %v1889
    %v1891 = vrot.slane %v1886, %v1890
    %v1892 = vlaneseq
    %v1893 = vshrl.u32 %v1892, 7
    %v1894 = vsub.s32 1, %v1893
    %v1895 = vrot.slane %v1886, %v1894
    %v1896 = vlaneseq
    %v1897 = vshrl.u32 %v1896, 7
    %v1898 = vsub.s32 2, %v1897
    %v1899 = vrot.slane %v1886, %v1898
    %v1900 = vlaneseq
    %v1901 = vshrl.u32 %v1900, 7
    %v1902 = vsub.s32 3, %v1901
    %v1903 = vrot.slane %v1886, %v1902
    %v1904 = vlaneseq
    %v1905 = vshrl.u32 %v1904, 7
    %v1906 = vsub.s32 4, %v1905
    %v1907 = vrot.slane %v1886, %v1906
    %v1908 = vlaneseq
    %v1909 = vshrl.u32 %v1908, 7
    %v1910 = vsub.s32 5, %v1909
    %v1911 = vrot.slane %v1886, %v1910
    %v1912 = vlaneseq
    %v1913 = vshrl.u32 %v1912, 7
    %v1914 = vsub.s32 6, %v1913
    %v1915 = vrot.slane %v1886, %v1914
    %v1916 = vlaneseq
    %v1917 = vshrl.u32 %v1916, 7
    %v1918 = vsub.s32 7, %v1917
    %v1919 = vrot.slane %v1886, %v1918
    %v3016 = vunpack.c.l.b16 %v798
    %v3017 = vunpack.c.h.b16 %v798
    %v3018 = vunpack.c.l.b16 %v799
    %v3019 = vunpack.c.h.b16 %v799
    %v3020 = vunpack.c.l.b16 %v800
    %v3021 = vunpack.c.h.b16 %v800
    %v3022 = vunpack.c.l.b16 %v801
    %v3023 = vunpack.c.h.b16 %v801
    %v3024 = vunpack.c.l.b16 %v802
    %v3025 = vunpack.c.h.b16 %v802
    %v3026 = vunpack.c.l.b16 %v803
    %v3027 = vunpack.c.h.b16 %v803
    %v3028 = vunpack.c.l.b16 %v804
    %v3029 = vunpack.c.h.b16 %v804
    %v3030 = vunpack.c.l.b16 %v805
    %v3031 = vunpack.c.h.b16 %v805
    %v3032 = vunpack.c.l.b16 %v806
    %v3033 = vunpack.c.h.b16 %v806
    %v3034 = vunpack.c.l.b16 %v807
    %v3035 = vunpack.c.h.b16 %v807
    %v3036 = vunpack.c.l.b16 %v808
    %v3037 = vunpack.c.h.b16 %v808
    %v3038 = vunpack.c.l.b16 %v809
    %v3039 = vunpack.c.h.b16 %v809
    %v3040 = vunpack.c.l.b16 %v810
    %v3041 = vunpack.c.h.b16 %v810
    %v3042 = vunpack.c.l.b16 %v811
    %v3043 = vunpack.c.h.b16 %v811
    %v3044 = vunpack.c.l.b16 %v812
    %v3045 = vunpack.c.h.b16 %v812
    %v3046 = vunpack.c.l.b16 %v813
    %v3047 = vunpack.c.h.b16 %v813
    %v3048 = vunpack.c.l.b16 %v814
    %v3049 = vunpack.c.h.b16 %v814
    %v3050 = vunpack.c.l.b16 %v815
    %v3051 = vunpack.c.h.b16 %v815
    %v3052 = vunpack.c.l.b16 %v816
    %v3053 = vunpack.c.h.b16 %v816
    %v3054 = vunpack.c.l.b16 %v817
    %v3055 = vunpack.c.h.b16 %v817
    %v3056 = vunpack.c.l.b16 %v818
    %v3057 = vunpack.c.h.b16 %v818
    %v3058 = vunpack.c.l.b16 %v819
    %v3059 = vunpack.c.h.b16 %v819
    %v3060 = vunpack.c.l.b16 %v820
    %v3061 = vunpack.c.h.b16 %v820
    %v3062 = vunpack.c.l.b16 %v821
    %v3063 = vunpack.c.h.b16 %v821
    %v3064 = vunpack.c.l.b16 %v822
    %v3065 = vunpack.c.h.b16 %v822
    %v3066 = vunpack.c.l.b16 %v823
    %v3067 = vunpack.c.h.b16 %v823
    %v3068 = vunpack.c.l.b16 %v824
    %v3069 = vunpack.c.h.b16 %v824
    %v3070 = vunpack.c.l.b16 %v825
    %v3071 = vunpack.c.h.b16 %v825
    %v3072 = vunpack.c.l.b16 %v826
    %v3073 = vunpack.c.h.b16 %v826
    %v3074 = vunpack.c.l.b16 %v827
    %v3075 = vunpack.c.h.b16 %v827
    %v3076 = vunpack.c.l.b16 %v828
    %v3077 = vunpack.c.h.b16 %v828
    %v3078 = vunpack.c.l.b16 %v829
    %v3079 = vunpack.c.h.b16 %v829
    %v3080 = vunpack.c.l.b16 %v830
    %v3081 = vunpack.c.h.b16 %v830
    %v3082 = vunpack.c.l.b16 %v831
    %v3083 = vunpack.c.h.b16 %v831
    %v3084 = vunpack.c.l.b16 %v832
    %v3085 = vunpack.c.h.b16 %v832
    %v3086 = vunpack.c.l.b16 %v833
    %v3087 = vunpack.c.h.b16 %v833
    %v3088 = vunpack.c.l.b16 %v834
    %v3089 = vunpack.c.h.b16 %v834
    %v3090 = vunpack.c.l.b16 %v835
    %v3091 = vunpack.c.h.b16 %v835
    %v3092 = vunpack.c.l.b16 %v836
    %v3093 = vunpack.c.h.b16 %v836
    %v3094 = vunpack.c.l.b16 %v837
    %v3095 = vunpack.c.h.b16 %v837
    %v3096 = vunpack.c.l.b16 %v838
    %v3097 = vunpack.c.h.b16 %v838
    %v3098 = vunpack.c.l.b16 %v839
    %v3099 = vunpack.c.h.b16 %v839
    %v3100 = vunpack.c.l.b16 %v840
    %v3101 = vunpack.c.h.b16 %v840
    %v3102 = vunpack.c.l.b16 %v841
    %v3103 = vunpack.c.h.b16 %v841
    %v3104 = vunpack.c.l.b16 %v842
    %v3105 = vunpack.c.h.b16 %v842
    %v3106 = vunpack.c.l.b16 %v843
    %v3107 = vunpack.c.h.b16 %v843
    %v3108 = vunpack.c.l.b16 %v844
    %v3109 = vunpack.c.h.b16 %v844
    %v3110 = vunpack.c.l.b16 %v845
    %v3111 = vunpack.c.h.b16 %v845
    %v3112 = vunpack.c.l.b16 %v846
    %v3113 = vunpack.c.h.b16 %v846
    %v3114 = vunpack.c.l.b16 %v847
    %v3115 = vunpack.c.h.b16 %v847
    %v3116 = vunpack.c.l.b16 %v848
    %v3117 = vunpack.c.h.b16 %v848
    %v3118 = vunpack.c.l.b16 %v849
    %v3119 = vunpack.c.h.b16 %v849
    %v3120 = vunpack.c.l.b16 %v850
    %v3121 = vunpack.c.h.b16 %v850
    %v3122 = vunpack.c.l.b16 %v851
    %v3123 = vunpack.c.h.b16 %v851
    %v3124 = vunpack.c.l.b16 %v852
    %v3125 = vunpack.c.h.b16 %v852
    %v3126 = vunpack.c.l.b16 %v853
    %v3127 = vunpack.c.h.b16 %v853
    %v3128 = vunpack.c.l.b16 %v854
    %v3129 = vunpack.c.h.b16 %v854
    %v3130 = vunpack.c.l.b16 %v855
    %v3131 = vunpack.c.h.b16 %v855
    %v3132 = vunpack.c.l.b16 %v856
    %v3133 = vunpack.c.h.b16 %v856
    %v3134 = vunpack.c.l.b16 %v857
    %v3135 = vunpack.c.h.b16 %v857
    %v3136 = vunpack.c.l.b16 %v858
    %v3137 = vunpack.c.h.b16 %v858
    %v3138 = vunpack.c.l.b16 %v859
    %v3139 = vunpack.c.h.b16 %v859
    %v3140 = vunpack.c.l.b16 %v860
    %v3141 = vunpack.c.h.b16 %v860
    %v3142 = vunpack.c.l.b16 %v861
    %v3143 = vunpack.c.h.b16 %v861
    %v3144 = vunpack.c.l.b16 %v862
    %v3145 = vunpack.c.h.b16 %v862
    %v3146 = vunpack.c.l.b16 %v863
    %v3147 = vunpack.c.h.b16 %v863
    %v3148 = vunpack.c.l.b16 %v864
    %v3149 = vunpack.c.h.b16 %v864
    %v3150 = vunpack.c.l.b16 %v865
    %v3151 = vunpack.c.h.b16 %v865
    %v3152 = vunpack.c.l.b16 %v866
    %v3153 = vunpack.c.h.b16 %v866
    %v3154 = vunpack.c.l.b16 %v867
    %v3155 = vunpack.c.h.b16 %v867
    %v3156 = vunpack.c.l.b16 %v868
    %v3157 = vunpack.c.h.b16 %v868
    %v3158 = vunpack.c.l.b16 %v869
    %v3159 = vunpack.c.h.b16 %v869
    %v3160 = vunpack.c.l.b16 %v870
    %v3161 = vunpack.c.h.b16 %v870
    %v3162 = vunpack.c.l.b16 %v871
    %v3163 = vunpack.c.h.b16 %v871
    %v3164 = vunpack.c.l.b16 %v872
    %v3165 = vunpack.c.h.b16 %v872
    %v3166 = vunpack.c.l.b16 %v873
    %v3167 = vunpack.c.h.b16 %v873
    %v3168 = vunpack.c.l.b16 %v874
    %v3169 = vunpack.c.h.b16 %v874
    %v3170 = vunpack.c.l.b16 %v875
    %v3171 = vunpack.c.h.b16 %v875
    %v3172 = vunpack.c.l.b16 %v876
    %v3173 = vunpack.c.h.b16 %v876
    %v3174 = vunpack.c.l.b16 %v877
    %v3175 = vunpack.c.h.b16 %v877
    %v3176 = vunpack.c.l.b16 %v878
    %v3177 = vunpack.c.h.b16 %v878
    %v3178 = vunpack.c.l.b16 %v879
    %v3179 = vunpack.c.h.b16 %v879
    %v3180 = vunpack.c.l.b16 %v880
    %v3181 = vunpack.c.h.b16 %v880
    %v3182 = vunpack.c.l.b16 %v881
    %v3183 = vunpack.c.h.b16 %v881
    %v3184 = vunpack.c.l.b16 %v882
    %v3185 = vunpack.c.h.b16 %v882
    %v3186 = vunpack.c.l.b16 %v883
    %v3187 = vunpack.c.h.b16 %v883
    %v3188 = vunpack.c.l.b16 %v884
    %v3189 = vunpack.c.h.b16 %v884
    %v3190 = vunpack.c.l.b16 %v885
    %v3191 = vunpack.c.h.b16 %v885
    %v3192 = vunpack.c.l.b16 %v886
    %v3193 = vunpack.c.h.b16 %v886
    %v3194 = vunpack.c.l.b16 %v887
    %v3195 = vunpack.c.h.b16 %v887
    %v3196 = vunpack.c.l.b16 %v888
    %v3197 = vunpack.c.h.b16 %v888
    %v3198 = vunpack.c.l.b16 %v889
    %v3199 = vunpack.c.h.b16 %v889
    %v3200 = vunpack.c.l.b16 %v890
    %v3201 = vunpack.c.h.b16 %v890
    %v3202 = vunpack.c.l.b16 %v891
    %v3203 = vunpack.c.h.b16 %v891
    %v3204 = vunpack.c.l.b16 %v892
    %v3205 = vunpack.c.h.b16 %v892
    %v3206 = vunpack.c.l.b16 %v893
    %v3207 = vunpack.c.h.b16 %v893
    %v3208 = vunpack.c.l.b16 %v894
    %v3209 = vunpack.c.h.b16 %v894
    %v3210 = vunpack.c.l.b16 %v895
    %v3211 = vunpack.c.h.b16 %v895
    %v3212 = vunpack.c.l.b16 %v896
    %v3213 = vunpack.c.h.b16 %v896
    %v3214 = vunpack.c.l.b16 %v897
    %v3215 = vunpack.c.h.b16 %v897
    %v3216 = vunpack.c.l.b16 %v898
    %v3217 = vunpack.c.h.b16 %v898
    %v3218 = vunpack.c.l.b16 %v899
    %v3219 = vunpack.c.h.b16 %v899
    %v3220 = vunpack.c.l.b16 %v900
    %v3221 = vunpack.c.h.b16 %v900
    %v3222 = vunpack.c.l.b16 %v901
    %v3223 = vunpack.c.h.b16 %v901
    %v3224 = vunpack.c.l.b16 %v902
    %v3225 = vunpack.c.h.b16 %v902
    %v3226 = vunpack.c.l.b16 %v903
    %v3227 = vunpack.c.h.b16 %v903
    %v3228 = vunpack.c.l.b16 %v904
    %v3229 = vunpack.c.h.b16 %v904
    %v3230 = vunpack.c.l.b16 %v905
    %v3231 = vunpack.c.h.b16 %v905
    %v3232 = vunpack.c.l.b16 %v906
    %v3233 = vunpack.c.h.b16 %v906
    %v3234 = vunpack.c.l.b16 %v907
    %v3235 = vunpack.c.h.b16 %v907
    %v3236 = vunpack.c.l.b16 %v908
    %v3237 = vunpack.c.h.b16 %v908
    %v3238 = vunpack.c.l.b16 %v909
    %v3239 = vunpack.c.h.b16 %v909
    %v3240 = vunpack.c.l.b16 %v910
    %v3241 = vunpack.c.h.b16 %v910
    %v3242 = vunpack.c.l.b16 %v911
    %v3243 = vunpack.c.h.b16 %v911
    %v3244 = vunpack.c.l.b16 %v912
    %v3245 = vunpack.c.h.b16 %v912
    %v3246 = vunpack.c.l.b16 %v913
    %v3247 = vunpack.c.h.b16 %v913
    %v3248 = vunpack.c.l.b16 %v914
    %v3249 = vunpack.c.h.b16 %v914
    %v3250 = vunpack.c.l.b16 %v915
    %v3251 = vunpack.c.h.b16 %v915
    %v3252 = vunpack.c.l.b16 %v916
    %v3253 = vunpack.c.h.b16 %v916
    %v3254 = vunpack.c.l.b16 %v917
    %v3255 = vunpack.c.h.b16 %v917
    %v3256 = vunpack.c.l.b16 %v918
    %v3257 = vunpack.c.h.b16 %v918
    %v3258 = vunpack.c.l.b16 %v919
    %v3259 = vunpack.c.h.b16 %v919
    %v3260 = vunpack.c.l.b16 %v920
    %v3261 = vunpack.c.h.b16 %v920
    %v3262 = vunpack.c.l.b16 %v921
    %v3263 = vunpack.c.h.b16 %v921
    %v3264 = vunpack.c.l.b16 %v922
    %v3265 = vunpack.c.h.b16 %v922
    %v3266 = vunpack.c.l.b16 %v923
    %v3267 = vunpack.c.h.b16 %v923
    %v3268 = vunpack.c.l.b16 %v924
    %v3269 = vunpack.c.h.b16 %v924
    %v3270 = vunpack.c.l.b16 %v925
    %v3271 = vunpack.c.h.b16 %v925
    %v3272 = vunpack.c.l.b16 %v926
    %v3273 = vunpack.c.h.b16 %v926
    %v3274 = vunpack.c.l.b16 %v927
    %v3275 = vunpack.c.h.b16 %v927
    %v3276 = vunpack.c.l.b16 %v928
    %v3277 = vunpack.c.h.b16 %v928
    %v3278 = vunpack.c.l.b16 %v929
    %v3279 = vunpack.c.h.b16 %v929
    %v3280 = vunpack.c.l.b16 %v930
    %v3281 = vunpack.c.h.b16 %v930
    %v3282 = vunpack.c.l.b16 %v931
    %v3283 = vunpack.c.h.b16 %v931
    %v3284 = vunpack.c.l.b16 %v932
    %v3285 = vunpack.c.h.b16 %v932
    %v3286 = vunpack.c.l.b16 %v933
    %v3287 = vunpack.c.h.b16 %v933
    %v3288 = vunpack.c.l.b16 %v934
    %v3289 = vunpack.c.h.b16 %v934
    %v3290 = vunpack.c.l.b16 %v935
    %v3291 = vunpack.c.h.b16 %v935
    %v3292 = vunpack.c.l.b16 %v936
    %v3293 = vunpack.c.h.b16 %v936
    %v3294 = vunpack.c.l.b16 %v937
    %v3295 = vunpack.c.h.b16 %v937
    %v3296 = vunpack.c.l.b16 %v938
    %v3297 = vunpack.c.h.b16 %v938
    %v3298 = vunpack.c.l.b16 %v939
    %v3299 = vunpack.c.h.b16 %v939
    %v3300 = vunpack.c.l.b16 %v940
    %v3301 = vunpack.c.h.b16 %v940
    %v3302 = vunpack.c.l.b16 %v941
    %v3303 = vunpack.c.h.b16 %v941
    %v3304 = vunpack.c.l.b16 %v942
    %v3305 = vunpack.c.h.b16 %v942
    %v3306 = vunpack.c.l.b16 %v943
    %v3307 = vunpack.c.h.b16 %v943
    %v3308 = vunpack.c.l.b16 %v944
    %v3309 = vunpack.c.h.b16 %v944
    %v3310 = vunpack.c.l.b16 %v945
    %v3311 = vunpack.c.h.b16 %v945
    %v3312 = vunpack.c.l.b16 %v946
    %v3313 = vunpack.c.h.b16 %v946
    %v3314 = vunpack.c.l.b16 %v947
    %v3315 = vunpack.c.h.b16 %v947
    %v3316 = vunpack.c.l.b16 %v948
    %v3317 = vunpack.c.h.b16 %v948
    %v3318 = vunpack.c.l.b16 %v949
    %v3319 = vunpack.c.h.b16 %v949
    %v3320 = vunpack.c.l.b16 %v950
    %v3321 = vunpack.c.h.b16 %v950
    %v3322 = vunpack.c.l.b16 %v951
    %v3323 = vunpack.c.h.b16 %v951
    %v3324 = vunpack.c.l.b16 %v952
    %v3325 = vunpack.c.h.b16 %v952
    %v3326 = vunpack.c.l.b16 %v953
    %v3327 = vunpack.c.h.b16 %v953
    %v3328 = vunpack.c.l.b16 %v954
    %v3329 = vunpack.c.h.b16 %v954
    %v3330 = vunpack.c.l.b16 %v955
    %v3331 = vunpack.c.h.b16 %v955
    %v3332 = vunpack.c.l.b16 %v956
    %v3333 = vunpack.c.h.b16 %v956
    %v3334 = vunpack.c.l.b16 %v957
    %v3335 = vunpack.c.h.b16 %v957
    %v3336 = vunpack.c.l.b16 %v958
    %v3337 = vunpack.c.h.b16 %v958
    %v3338 = vunpack.c.l.b16 %v959
    %v3339 = vunpack.c.h.b16 %v959
    %v3340 = vunpack.c.l.b16 %v960
    %v3341 = vunpack.c.h.b16 %v960
    %v3342 = vunpack.c.l.b16 %v961
    %v3343 = vunpack.c.h.b16 %v961
    %v3344 = vunpack.c.l.b16 %v962
    %v3345 = vunpack.c.h.b16 %v962
    %v3346 = vunpack.c.l.b16 %v963
    %v3347 = vunpack.c.h.b16 %v963
    %v3348 = vunpack.c.l.b16 %v964
    %v3349 = vunpack.c.h.b16 %v964
    %v3350 = vunpack.c.l.b16 %v965
    %v3351 = vunpack.c.h.b16 %v965
    %v3352 = vunpack.c.l.b16 %v966
    %v3353 = vunpack.c.h.b16 %v966
    %v3354 = vunpack.c.l.b16 %v967
    %v3355 = vunpack.c.h.b16 %v967
    %v3356 = vunpack.c.l.b16 %v968
    %v3357 = vunpack.c.h.b16 %v968
    %v3358 = vunpack.c.l.b16 %v969
    %v3359 = vunpack.c.h.b16 %v969
    %v3360 = vunpack.c.l.b16 %v970
    %v3361 = vunpack.c.h.b16 %v970
    %v3362 = vunpack.c.l.b16 %v971
    %v3363 = vunpack.c.h.b16 %v971
    %v3364 = vunpack.c.l.b16 %v972
    %v3365 = vunpack.c.h.b16 %v972
    %v3366 = vunpack.c.l.b16 %v973
    %v3367 = vunpack.c.h.b16 %v973
    %v3368 = vunpack.c.l.b16 %v974
    %v3369 = vunpack.c.h.b16 %v974
    %v3370 = vunpack.c.l.b16 %v975
    %v3371 = vunpack.c.h.b16 %v975
    %v3372 = vunpack.c.l.b16 %v976
    %v3373 = vunpack.c.h.b16 %v976
    %v3374 = vunpack.c.l.b16 %v977
    %v3375 = vunpack.c.h.b16 %v977
    %v3376 = vunpack.c.l.b16 %v978
    %v3377 = vunpack.c.h.b16 %v978
    %v3378 = vunpack.c.l.b16 %v979
    %v3379 = vunpack.c.h.b16 %v979
    %v3380 = vunpack.c.l.b16 %v980
    %v3381 = vunpack.c.h.b16 %v980
    %v3382 = vunpack.c.l.b16 %v981
    %v3383 = vunpack.c.h.b16 %v981
    %v3384 = vunpack.c.l.b16 %v982
    %v3385 = vunpack.c.h.b16 %v982
    %v3386 = vunpack.c.l.b16 %v983
    %v3387 = vunpack.c.h.b16 %v983
    %v3388 = vunpack.c.l.b16 %v984
    %v3389 = vunpack.c.h.b16 %v984
    %v3390 = vunpack.c.l.b16 %v985
    %v3391 = vunpack.c.h.b16 %v985
    %v3392 = vunpack.c.l.b16 %v986
    %v3393 = vunpack.c.h.b16 %v986
    %v3394 = vunpack.c.l.b16 %v987
    %v3395 = vunpack.c.h.b16 %v987
    %v3396 = vunpack.c.l.b16 %v988
    %v3397 = vunpack.c.h.b16 %v988
    %v3398 = vunpack.c.l.b16 %v989
    %v3399 = vunpack.c.h.b16 %v989
    %v3400 = vunpack.c.l.b16 %v990
    %v3401 = vunpack.c.h.b16 %v990
    %v3402 = vunpack.c.l.b16 %v991
    %v3403 = vunpack.c.h.b16 %v991
    %v3404 = vunpack.c.l.b16 %v992
    %v3405 = vunpack.c.h.b16 %v992
    %v3406 = vunpack.c.l.b16 %v993
    %v3407 = vunpack.c.h.b16 %v993
    %v3408 = vunpack.c.l.b16 %v994
    %v3409 = vunpack.c.h.b16 %v994
    %v3410 = vunpack.c.l.b16 %v995
    %v3411 = vunpack.c.h.b16 %v995
    %v3412 = vunpack.c.l.b16 %v996
    %v3413 = vunpack.c.h.b16 %v996
    %v3414 = vunpack.c.l.b16 %v997
    %v3415 = vunpack.c.h.b16 %v997
    %v3416 = vunpack.c.l.b16 %v998
    %v3417 = vunpack.c.h.b16 %v998
    %v3418 = vunpack.c.l.b16 %v999
    %v3419 = vunpack.c.h.b16 %v999
    %v3420 = vunpack.c.l.b16 %v1000
    %v3421 = vunpack.c.h.b16 %v1000
    %v3422 = vunpack.c.l.b16 %v1001
    %v3423 = vunpack.c.h.b16 %v1001
    %v3424 = vunpack.c.l.b16 %v1002
    %v3425 = vunpack.c.h.b16 %v1002
    %v3426 = vunpack.c.l.b16 %v1003
    %v3427 = vunpack.c.h.b16 %v1003
    %v3428 = vunpack.c.l.b16 %v1004
    %v3429 = vunpack.c.h.b16 %v1004
    %v3430 = vunpack.c.l.b16 %v1005
    %v3431 = vunpack.c.h.b16 %v1005
    %v3432 = vunpack.c.l.b16 %v1006
    %v3433 = vunpack.c.h.b16 %v1006
    %v3434 = vunpack.c.l.b16 %v1007
    %v3435 = vunpack.c.h.b16 %v1007
    %v3436 = vunpack.c.l.b16 %v1008
    %v3437 = vunpack.c.h.b16 %v1008
    %v3438 = vunpack.c.l.b16 %v1009
    %v3439 = vunpack.c.h.b16 %v1009
    %v3440 = vunpack.c.l.b16 %v1010
    %v3441 = vunpack.c.h.b16 %v1010
    %v3442 = vunpack.c.l.b16 %v1011
    %v3443 = vunpack.c.h.b16 %v1011
    %v3444 = vunpack.c.l.b16 %v1012
    %v3445 = vunpack.c.h.b16 %v1012
    %v3446 = vunpack.c.l.b16 %v1013
    %v3447 = vunpack.c.h.b16 %v1013
    %v3448 = vunpack.c.l.b16 %v1014
    %v3449 = vunpack.c.h.b16 %v1014
    %v3450 = vunpack.c.l.b16 %v1015
    %v3451 = vunpack.c.h.b16 %v1015
    %v3452 = vunpack.c.l.b16 %v1016
    %v3453 = vunpack.c.h.b16 %v1016
    %v3454 = vunpack.c.l.b16 %v1017
    %v3455 = vunpack.c.h.b16 %v1017
    %v3456 = vunpack.c.l.b16 %v1018
    %v3457 = vunpack.c.h.b16 %v1018
    %v3458 = vunpack.c.l.b16 %v1019
    %v3459 = vunpack.c.h.b16 %v1019
    %v3460 = vunpack.c.l.b16 %v1020
    %v3461 = vunpack.c.h.b16 %v1020
    %v3462 = vunpack.c.l.b16 %v1021
    %v3463 = vunpack.c.h.b16 %v1021
    %v3464 = vunpack.c.l.b16 %v1022
    %v3465 = vunpack.c.h.b16 %v1022
    %v3466 = vunpack.c.l.b16 %v1023
    %v3467 = vunpack.c.h.b16 %v1023
    %v3468 = vunpack.c.l.b16 %v1024
    %v3469 = vunpack.c.h.b16 %v1024
    %v3470 = vunpack.c.l.b16 %v1025
    %v3471 = vunpack.c.h.b16 %v1025
    %v3472 = vunpack.c.l.b16 %v1026
    %v3473 = vunpack.c.h.b16 %v1026
    %v3474 = vunpack.c.l.b16 %v1027
    %v3475 = vunpack.c.h.b16 %v1027
    %v3476 = vunpack.c.l.b16 %v1028
    %v3477 = vunpack.c.h.b16 %v1028
    %v3478 = vunpack.c.l.b16 %v1029
    %v3479 = vunpack.c.h.b16 %v1029
    %v3480 = vunpack.c.l.b16 %v1030
    %v3481 = vunpack.c.h.b16 %v1030
    %v3482 = vunpack.c.l.b16 %v1031
    %v3483 = vunpack.c.h.b16 %v1031
    %v3484 = vunpack.c.l.b16 %v1032
    %v3485 = vunpack.c.h.b16 %v1032
    %v3486 = vunpack.c.l.b16 %v1033
    %v3487 = vunpack.c.h.b16 %v1033
    %v3488 = vunpack.c.l.b16 %v1034
    %v3489 = vunpack.c.h.b16 %v1034
    %v3490 = vunpack.c.l.b16 %v1035
    %v3491 = vunpack.c.h.b16 %v1035
    %v3492 = vunpack.c.l.b16 %v1036
    %v3493 = vunpack.c.h.b16 %v1036
    %v3494 = vunpack.c.l.b16 %v1037
    %v3495 = vunpack.c.h.b16 %v1037
    %v3496 = vunpack.c.l.b16 %v1038
    %v3497 = vunpack.c.h.b16 %v1038
    %v3498 = vunpack.c.l.b16 %v1039
    %v3499 = vunpack.c.h.b16 %v1039
    %v3500 = vunpack.c.l.b16 %v1040
    %v3501 = vunpack.c.h.b16 %v1040
    %v3502 = vunpack.c.l.b16 %v1041
    %v3503 = vunpack.c.h.b16 %v1041
    %v3504 = vunpack.c.l.b16 %v1042
    %v3505 = vunpack.c.h.b16 %v1042
    %v3506 = vunpack.c.l.b16 %v1043
    %v3507 = vunpack.c.h.b16 %v1043
    %v3508 = vunpack.c.l.b16 %v1044
    %v3509 = vunpack.c.h.b16 %v1044
    %v3510 = vunpack.c.l.b16 %v1045
    %v3511 = vunpack.c.h.b16 %v1045
    %v3512 = vunpack.c.l.b16 %v1046
    %v3513 = vunpack.c.h.b16 %v1046
    %v3514 = vunpack.c.l.b16 %v1047
    %v3515 = vunpack.c.h.b16 %v1047
    %v3516 = vunpack.c.l.b16 %v1048
    %v3517 = vunpack.c.h.b16 %v1048
    %v3518 = vunpack.c.l.b16 %v1049
    %v3519 = vunpack.c.h.b16 %v1049
    %v3520 = vunpack.c.l.b16 %v1050
    %v3521 = vunpack.c.h.b16 %v1050
    %v3522 = vunpack.c.l.b16 %v1051
    %v3523 = vunpack.c.h.b16 %v1051
    %v3524 = vunpack.c.l.b16 %v1052
    %v3525 = vunpack.c.h.b16 %v1052
    %v3526 = vunpack.c.l.b16 %v1053
    %v3527 = vunpack.c.h.b16 %v1053
    %v3528 = vunpack.c.l.b16 %v1054
    %v3529 = vunpack.c.h.b16 %v1054
    %v3530 = vunpack.c.l.b16 %v1055
    %v3531 = vunpack.c.h.b16 %v1055
    %v3532 = vunpack.c.l.b16 %v1056
    %v3533 = vunpack.c.h.b16 %v1056
    %v3534 = vunpack.c.l.b16 %v1057
    %v3535 = vunpack.c.h.b16 %v1057
    %v3536 = vunpack.c.l.b16 %v1058
    %v3537 = vunpack.c.h.b16 %v1058
    %v3538 = vunpack.c.l.b16 %v1059
    %v3539 = vunpack.c.h.b16 %v1059
    %v3540 = vunpack.c.l.b16 %v1060
    %v3541 = vunpack.c.h.b16 %v1060
    %v3542 = vunpack.c.l.b16 %v1061
    %v3543 = vunpack.c.h.b16 %v1061
    %v3544 = vunpack.c.l.b16 %v1062
    %v3545 = vunpack.c.h.b16 %v1062
    %v3546 = vunpack.c.l.b16 %v1063
    %v3547 = vunpack.c.h.b16 %v1063
    %v3548 = vunpack.c.l.b16 %v1064
    %v3549 = vunpack.c.h.b16 %v1064
    %v3550 = vunpack.c.l.b16 %v1065
    %v3551 = vunpack.c.h.b16 %v1065
    %v3552 = vunpack.c.l.b16 %v1066
    %v3553 = vunpack.c.h.b16 %v1066
    %v3554 = vunpack.c.l.b16 %v1067
    %v3555 = vunpack.c.h.b16 %v1067
    %v3556 = vunpack.c.l.b16 %v1068
    %v3557 = vunpack.c.h.b16 %v1068
    %v3558 = vunpack.c.l.b16 %v1069
    %v3559 = vunpack.c.h.b16 %v1069
    %v3560 = vunpack.c.l.b16 %v1070
    %v3561 = vunpack.c.h.b16 %v1070
    %v3562 = vunpack.c.l.b16 %v1071
    %v3563 = vunpack.c.h.b16 %v1071
    %v3564 = vunpack.c.l.b16 %v1072
    %v3565 = vunpack.c.h.b16 %v1072
    %v3566 = vunpack.c.l.b16 %v1073
    %v3567 = vunpack.c.h.b16 %v1073
    %v3568 = vunpack.c.l.b16 %v1074
    %v3569 = vunpack.c.h.b16 %v1074
    %v3570 = vunpack.c.l.b16 %v1075
    %v3571 = vunpack.c.h.b16 %v1075
    %v3572 = vunpack.c.l.b16 %v1076
    %v3573 = vunpack.c.h.b16 %v1076
    %v3574 = vunpack.c.l.b16 %v1077
    %v3575 = vunpack.c.h.b16 %v1077
    %v3576 = vunpack.c.l.b16 %v1078
    %v3577 = vunpack.c.h.b16 %v1078
    %v3578 = vunpack.c.l.b16 %v1079
    %v3579 = vunpack.c.h.b16 %v1079
    %v3580 = vunpack.c.l.b16 %v1080
    %v3581 = vunpack.c.h.b16 %v1080
    %v3582 = vunpack.c.l.b16 %v1081
    %v3583 = vunpack.c.h.b16 %v1081
    %v3584 = vunpack.c.l.b16 %v1082
    %v3585 = vunpack.c.h.b16 %v1082
    %v3586 = vunpack.c.l.b16 %v1083
    %v3587 = vunpack.c.h.b16 %v1083
    %v3588 = vunpack.c.l.b16 %v1084
    %v3589 = vunpack.c.h.b16 %v1084
    %v3590 = vunpack.c.l.b16 %v1085
    %v3591 = vunpack.c.h.b16 %v1085
    %v3592 = vunpack.c.l.b16 %v1086
    %v3593 = vunpack.c.h.b16 %v1086
    %v3594 = vunpack.c.l.b16 %v1087
    %v3595 = vunpack.c.h.b16 %v1087
    %v3596 = vunpack.c.l.b16 %v1088
    %v3597 = vunpack.c.h.b16 %v1088
    %v3598 = vunpack.c.l.b16 %v1089
    %v3599 = vunpack.c.h.b16 %v1089
    %v3600 = vunpack.c.l.b16 %v1090
    %v3601 = vunpack.c.h.b16 %v1090
    %v3602 = vunpack.c.l.b16 %v1091
    %v3603 = vunpack.c.h.b16 %v1091
    %v3604 = vunpack.c.l.b16 %v1092
    %v3605 = vunpack.c.h.b16 %v1092
    %v3606 = vunpack.c.l.b16 %v1093
    %v3607 = vunpack.c.h.b16 %v1093
    %v3608 = vunpack.c.l.b16 %v1094
    %v3609 = vunpack.c.h.b16 %v1094
    %v3610 = vunpack.c.l.b16 %v1095
    %v3611 = vunpack.c.h.b16 %v1095
    %v3612 = vunpack.c.l.b16 %v1096
    %v3613 = vunpack.c.h.b16 %v1096
    %v3614 = vunpack.c.l.b16 %v1097
    %v3615 = vunpack.c.h.b16 %v1097
    %v3616 = vunpack.c.l.b16 %v1098
    %v3617 = vunpack.c.h.b16 %v1098
    %v3618 = vunpack.c.l.b16 %v1099
    %v3619 = vunpack.c.h.b16 %v1099
    %v3620 = vunpack.c.l.b16 %v1100
    %v3621 = vunpack.c.h.b16 %v1100
    %v3622 = vunpack.c.l.b16 %v1101
    %v3623 = vunpack.c.h.b16 %v1101
    %v3624 = vunpack.c.l.b16 %v1102
    %v3625 = vunpack.c.h.b16 %v1102
    %v3626 = vunpack.c.l.b16 %v1103
    %v3627 = vunpack.c.h.b16 %v1103
    %v3628 = vunpack.c.l.b16 %v1104
    %v3629 = vunpack.c.h.b16 %v1104
    %v3630 = vunpack.c.l.b16 %v1105
    %v3631 = vunpack.c.h.b16 %v1105
    %v3632 = vunpack.c.l.b16 %v1106
    %v3633 = vunpack.c.h.b16 %v1106
    %v3634 = vunpack.c.l.b16 %v1107
    %v3635 = vunpack.c.h.b16 %v1107
    %v3636 = vunpack.c.l.b16 %v1108
    %v3637 = vunpack.c.h.b16 %v1108
    %v3638 = vunpack.c.l.b16 %v1109
    %v3639 = vunpack.c.h.b16 %v1109
    %v3640 = vunpack.c.l.b16 %v1110
    %v3641 = vunpack.c.h.b16 %v1110
    %v3642 = vunpack.c.l.b16 %v1111
    %v3643 = vunpack.c.h.b16 %v1111
    %v3644 = vunpack.c.l.b16 %v1112
    %v3645 = vunpack.c.h.b16 %v1112
    %v3646 = vunpack.c.l.b16 %v1113
    %v3647 = vunpack.c.h.b16 %v1113
    %v3648 = vunpack.c.l.b16 %v1114
    %v3649 = vunpack.c.h.b16 %v1114
    %v3650 = vunpack.c.l.b16 %v1115
    %v3651 = vunpack.c.h.b16 %v1115
    %v3652 = vunpack.c.l.b16 %v1116
    %v3653 = vunpack.c.h.b16 %v1116
    %v3654 = vunpack.c.l.b16 %v1117
    %v3655 = vunpack.c.h.b16 %v1117
    %v3656 = vunpack.c.l.b16 %v1118
    %v3657 = vunpack.c.h.b16 %v1118
    %v3658 = vunpack.c.l.b16 %v1119
    %v3659 = vunpack.c.h.b16 %v1119
    %v3660 = vunpack.c.l.b16 %v1120
    %v3661 = vunpack.c.h.b16 %v1120
    %v3662 = vunpack.c.l.b16 %v1121
    %v3663 = vunpack.c.h.b16 %v1121
    %v3664 = vunpack.c.l.b16 %v1122
    %v3665 = vunpack.c.h.b16 %v1122
    %v3666 = vunpack.c.l.b16 %v1123
    %v3667 = vunpack.c.h.b16 %v1123
    %v3668 = vunpack.c.l.b16 %v1124
    %v3669 = vunpack.c.h.b16 %v1124
    %v3670 = vunpack.c.l.b16 %v1125
    %v3671 = vunpack.c.h.b16 %v1125
    %v3672 = vunpack.c.l.b16 %v1126
    %v3673 = vunpack.c.h.b16 %v1126
    %v3674 = vunpack.c.l.b16 %v1127
    %v3675 = vunpack.c.h.b16 %v1127
    %v3676 = vunpack.c.l.b16 %v1128
    %v3677 = vunpack.c.h.b16 %v1128
    %v3678 = vunpack.c.l.b16 %v1129
    %v3679 = vunpack.c.h.b16 %v1129
    %v3680 = vunpack.c.l.b16 %v1130
    %v3681 = vunpack.c.h.b16 %v1130
    %v3682 = vunpack.c.l.b16 %v1131
    %v3683 = vunpack.c.h.b16 %v1131
    %v3684 = vunpack.c.l.b16 %v1132
    %v3685 = vunpack.c.h.b16 %v1132
    %v3686 = vunpack.c.l.b16 %v1133
    %v3687 = vunpack.c.h.b16 %v1133
    %v3688 = vunpack.c.l.b16 %v1134
    %v3689 = vunpack.c.h.b16 %v1134
    %v3690 = vunpack.c.l.b16 %v1135
    %v3691 = vunpack.c.h.b16 %v1135
    %v3692 = vunpack.c.l.b16 %v1136
    %v3693 = vunpack.c.h.b16 %v1136
    %v3694 = vunpack.c.l.b16 %v1137
    %v3695 = vunpack.c.h.b16 %v1137
    %v3696 = vunpack.c.l.b16 %v1138
    %v3697 = vunpack.c.h.b16 %v1138
    %v3698 = vunpack.c.l.b16 %v1139
    %v3699 = vunpack.c.h.b16 %v1139
    %v3700 = vunpack.c.l.b16 %v1140
    %v3701 = vunpack.c.h.b16 %v1140
    %v3702 = vunpack.c.l.b16 %v1141
    %v3703 = vunpack.c.h.b16 %v1141
    %v3704 = vunpack.c.l.b16 %v1142
    %v3705 = vunpack.c.h.b16 %v1142
    %v3706 = vunpack.c.l.b16 %v1143
    %v3707 = vunpack.c.h.b16 %v1143
    %v3708 = vunpack.c.l.b16 %v1144
    %v3709 = vunpack.c.h.b16 %v1144
    %v3710 = vunpack.c.l.b16 %v1145
    %v3711 = vunpack.c.h.b16 %v1145
    %v3712 = vunpack.c.l.b16 %v1146
    %v3713 = vunpack.c.h.b16 %v1146
    %v3714 = vunpack.c.l.b16 %v1147
    %v3715 = vunpack.c.h.b16 %v1147
    %v3716 = vunpack.c.l.b16 %v1148
    %v3717 = vunpack.c.h.b16 %v1148
    %v3718 = vunpack.c.l.b16 %v1149
    %v3719 = vunpack.c.h.b16 %v1149
    %v3720 = vunpack.c.l.b16 %v1150
    %v3721 = vunpack.c.h.b16 %v1150
    %v3722 = vunpack.c.l.b16 %v1151
    %v3723 = vunpack.c.h.b16 %v1151
    %v3724 = vunpack.c.l.b16 %v1152
    %v3725 = vunpack.c.h.b16 %v1152
    %v3726 = vunpack.c.l.b16 %v1153
    %v3727 = vunpack.c.h.b16 %v1153
    %v3728 = vunpack.c.l.b16 %v1154
    %v3729 = vunpack.c.h.b16 %v1154
    %v3730 = vunpack.c.l.b16 %v1155
    %v3731 = vunpack.c.h.b16 %v1155
    %v3732 = vunpack.c.l.b16 %v1156
    %v3733 = vunpack.c.h.b16 %v1156
    %v3734 = vunpack.c.l.b16 %v1157
    %v3735 = vunpack.c.h.b16 %v1157
    %v3736 = vunpack.c.l.b16 %v1158
    %v3737 = vunpack.c.h.b16 %v1158
    %v3738 = vunpack.c.l.b16 %v1159
    %v3739 = vunpack.c.h.b16 %v1159
    %v3740 = vunpack.c.l.b16 %v1160
    %v3741 = vunpack.c.h.b16 %v1160
    %v3742 = vunpack.c.l.b16 %v1161
    %v3743 = vunpack.c.h.b16 %v1161
    %v3744 = vunpack.c.l.b16 %v1162
    %v3745 = vunpack.c.h.b16 %v1162
    %v3746 = vunpack.c.l.b16 %v1163
    %v3747 = vunpack.c.h.b16 %v1163
    %v3748 = vunpack.c.l.b16 %v1164
    %v3749 = vunpack.c.h.b16 %v1164
    %v3750 = vunpack.c.l.b16 %v1165
    %v3751 = vunpack.c.h.b16 %v1165
    %v3752 = vunpack.c.l.b16 %v1166
    %v3753 = vunpack.c.h.b16 %v1166
    %v3754 = vunpack.c.l.b16 %v1167
    %v3755 = vunpack.c.h.b16 %v1167
    %v3756 = vunpack.c.l.b16 %v1168
    %v3757 = vunpack.c.h.b16 %v1168
    %v3758 = vunpack.c.l.b16 %v1169
    %v3759 = vunpack.c.h.b16 %v1169
    %v3760 = vunpack.c.l.b16 %v1170
    %v3761 = vunpack.c.h.b16 %v1170
    %v3762 = vunpack.c.l.b16 %v1171
    %v3763 = vunpack.c.h.b16 %v1171
    %v3764 = vunpack.c.l.b16 %v1172
    %v3765 = vunpack.c.h.b16 %v1172
    %v3766 = vunpack.c.l.b16 %v1173
    %v3767 = vunpack.c.h.b16 %v1173
    %v3768 = vunpack.c.l.b16 %v1174
    %v3769 = vunpack.c.h.b16 %v1174
    %v3770 = vunpack.c.l.b16 %v1175
    %v3771 = vunpack.c.h.b16 %v1175
    %v3772 = vunpack.c.l.b16 %v1176
    %v3773 = vunpack.c.h.b16 %v1176
    %v3774 = vunpack.c.l.b16 %v1177
    %v3775 = vunpack.c.h.b16 %v1177
    %v3776 = vunpack.c.l.b16 %v1178
    %v3777 = vunpack.c.h.b16 %v1178
    %v3778 = vunpack.c.l.b16 %v1179
    %v3779 = vunpack.c.h.b16 %v1179
    %v3780 = vunpack.c.l.b16 %v1180
    %v3781 = vunpack.c.h.b16 %v1180
    %v3782 = vunpack.c.l.b16 %v1181
    %v3783 = vunpack.c.h.b16 %v1181
    %v3784 = vunpack.c.l.b16 %v1182
    %v3785 = vunpack.c.h.b16 %v1182
    %v3786 = vunpack.c.l.b16 %v1183
    %v3787 = vunpack.c.h.b16 %v1183
    %v3788 = vunpack.c.l.b16 %v1184
    %v3789 = vunpack.c.h.b16 %v1184
    %v3790 = vunpack.c.l.b16 %v1185
    %v3791 = vunpack.c.h.b16 %v1185
    %v3792 = vunpack.c.l.b16 %v1186
    %v3793 = vunpack.c.h.b16 %v1186
    %v3794 = vunpack.c.l.b16 %v1187
    %v3795 = vunpack.c.h.b16 %v1187
    %v3796 = vunpack.c.l.b16 %v1188
    %v3797 = vunpack.c.h.b16 %v1188
    %v3798 = vunpack.c.l.b16 %v1189
    %v3799 = vunpack.c.h.b16 %v1189
    %v3800 = vunpack.c.l.b16 %v1190
    %v3801 = vunpack.c.h.b16 %v1190
    %v3802 = vunpack.c.l.b16 %v1191
    %v3803 = vunpack.c.h.b16 %v1191
    %v3804 = vunpack.c.l.b16 %v1192
    %v3805 = vunpack.c.h.b16 %v1192
    %v3806 = vunpack.c.l.b16 %v1193
    %v3807 = vunpack.c.h.b16 %v1193
    %v3808 = vunpack.c.l.b16 %v1194
    %v3809 = vunpack.c.h.b16 %v1194
    %v3810 = vunpack.c.l.b16 %v1195
    %v3811 = vunpack.c.h.b16 %v1195
    %v3812 = vunpack.c.l.b16 %v1196
    %v3813 = vunpack.c.h.b16 %v1196
    %v3814 = vunpack.c.l.b16 %v1197
    %v3815 = vunpack.c.h.b16 %v1197
    %v3816 = vunpack.c.l.b16 %v1198
    %v3817 = vunpack.c.h.b16 %v1198
    %v3818 = vunpack.c.l.b16 %v1199
    %v3819 = vunpack.c.h.b16 %v1199
    %v3820 = vunpack.c.l.b16 %v1200
    %v3821 = vunpack.c.h.b16 %v1200
    %v3822 = vunpack.c.l.b16 %v1201
    %v3823 = vunpack.c.h.b16 %v1201
    %v3824 = vunpack.c.l.b16 %v1202
    %v3825 = vunpack.c.h.b16 %v1202
    %v3826 = vunpack.c.l.b16 %v1203
    %v3827 = vunpack.c.h.b16 %v1203
    %v3828 = vunpack.c.l.b16 %v1204
    %v3829 = vunpack.c.h.b16 %v1204
    %v3830 = vunpack.c.l.b16 %v1205
    %v3831 = vunpack.c.h.b16 %v1205
    %v3832 = vunpack.c.l.b16 %v1206
    %v3833 = vunpack.c.h.b16 %v1206
    %v3834 = vunpack.c.l.b16 %v1207
    %v3835 = vunpack.c.h.b16 %v1207
    %v3836 = vunpack.c.l.b16 %v1208
    %v3837 = vunpack.c.h.b16 %v1208
    %v3838 = vunpack.c.l.b16 %v1209
    %v3839 = vunpack.c.h.b16 %v1209
    %v3840 = vunpack.c.l.b16 %v1210
    %v3841 = vunpack.c.h.b16 %v1210
    %v3842 = vunpack.c.l.b16 %v1211
    %v3843 = vunpack.c.h.b16 %v1211
    %v3844 = vunpack.c.l.b16 %v1212
    %v3845 = vunpack.c.h.b16 %v1212
    %v3846 = vunpack.c.l.b16 %v1213
    %v3847 = vunpack.c.h.b16 %v1213
    %v3848 = vunpack.c.l.b16 %v1214
    %v3849 = vunpack.c.h.b16 %v1214
    %v3850 = vunpack.c.l.b16 %v1215
    %v3851 = vunpack.c.h.b16 %v1215
    %v3852 = vunpack.c.l.b16 %v1216
    %v3853 = vunpack.c.h.b16 %v1216
    %v3854 = vunpack.c.l.b16 %v1217
    %v3855 = vunpack.c.h.b16 %v1217
    %v3856 = vunpack.c.l.b16 %v1218
    %v3857 = vunpack.c.h.b16 %v1218
    %v3858 = vunpack.c.l.b16 %v1219
    %v3859 = vunpack.c.h.b16 %v1219
    %v3860 = vunpack.c.l.b16 %v1220
    %v3861 = vunpack.c.h.b16 %v1220
    %v3862 = vunpack.c.l.b16 %v1221
    %v3863 = vunpack.c.h.b16 %v1221
    %v3864 = vunpack.c.l.b16 %v1222
    %v3865 = vunpack.c.h.b16 %v1222
    %v3866 = vunpack.c.l.b16 %v1223
    %v3867 = vunpack.c.h.b16 %v1223
    %v3868 = vunpack.c.l.b16 %v1224
    %v3869 = vunpack.c.h.b16 %v1224
    %v3870 = vunpack.c.l.b16 %v1225
    %v3871 = vunpack.c.h.b16 %v1225
    %v3872 = vunpack.c.l.b16 %v1226
    %v3873 = vunpack.c.h.b16 %v1226
    %v3874 = vunpack.c.l.b16 %v1227
    %v3875 = vunpack.c.h.b16 %v1227
    %v3876 = vunpack.c.l.b16 %v1228
    %v3877 = vunpack.c.h.b16 %v1228
    %v3878 = vunpack.c.l.b16 %v1229
    %v3879 = vunpack.c.h.b16 %v1229
    %v3880 = vunpack.c.l.b16 %v1230
    %v3881 = vunpack.c.h.b16 %v1230
    %v3882 = vunpack.c.l.b16 %v1231
    %v3883 = vunpack.c.h.b16 %v1231
    %v3884 = vunpack.c.l.b16 %v1232
    %v3885 = vunpack.c.h.b16 %v1232
    %v3886 = vunpack.c.l.b16 %v1233
    %v3887 = vunpack.c.h.b16 %v1233
    %v3888 = vunpack.c.l.b16 %v1234
    %v3889 = vunpack.c.h.b16 %v1234
    %v3890 = vunpack.c.l.b16 %v1235
    %v3891 = vunpack.c.h.b16 %v1235
    %v3892 = vunpack.c.l.b16 %v1236
    %v3893 = vunpack.c.h.b16 %v1236
    %v3894 = vunpack.c.l.b16 %v1237
    %v3895 = vunpack.c.h.b16 %v1237
    %v3896 = vunpack.c.l.b16 %v1238
    %v3897 = vunpack.c.h.b16 %v1238
    %v3898 = vunpack.c.l.b16 %v1239
    %v3899 = vunpack.c.h.b16 %v1239
    %v3900 = vunpack.c.l.b16 %v1240
    %v3901 = vunpack.c.h.b16 %v1240
    %v3902 = vunpack.c.l.b16 %v1241
    %v3903 = vunpack.c.h.b16 %v1241
    %v3904 = vunpack.c.l.b16 %v1242
    %v3905 = vunpack.c.h.b16 %v1242
    %v3906 = vunpack.c.l.b16 %v1243
    %v3907 = vunpack.c.h.b16 %v1243
    %v3908 = vunpack.c.l.b16 %v1244
    %v3909 = vunpack.c.h.b16 %v1244
    %v3910 = vunpack.c.l.b16 %v1245
    %v3911 = vunpack.c.h.b16 %v1245
    %v3912 = vunpack.c.l.b16 %v1246
    %v3913 = vunpack.c.h.b16 %v1246
    %v3914 = vunpack.c.l.b16 %v1247
    %v3915 = vunpack.c.h.b16 %v1247
    %v3916 = vunpack.c.l.b16 %v1248
    %v3917 = vunpack.c.h.b16 %v1248
    %v3918 = vunpack.c.l.b16 %v1249
    %v3919 = vunpack.c.h.b16 %v1249
    %v3920 = vunpack.c.l.b16 %v1250
    %v3921 = vunpack.c.h.b16 %v1250
    %v3922 = vunpack.c.l.b16 %v1251
    %v3923 = vunpack.c.h.b16 %v1251
    %v3924 = vunpack.c.l.b16 %v1252
    %v3925 = vunpack.c.h.b16 %v1252
    %v3926 = vunpack.c.l.b16 %v1253
    %v3927 = vunpack.c.h.b16 %v1253
    %v3928 = vunpack.c.l.b16 %v1254
    %v3929 = vunpack.c.h.b16 %v1254
    %v3930 = vunpack.c.l.b16 %v1255
    %v3931 = vunpack.c.h.b16 %v1255
    %v3932 = vunpack.c.l.b16 %v1256
    %v3933 = vunpack.c.h.b16 %v1256
    %v3934 = vunpack.c.l.b16 %v1257
    %v3935 = vunpack.c.h.b16 %v1257
    %v3936 = vunpack.c.l.b16 %v1258
    %v3937 = vunpack.c.h.b16 %v1258
    %v3938 = vunpack.c.l.b16 %v1259
    %v3939 = vunpack.c.h.b16 %v1259
    %v3940 = vunpack.c.l.b16 %v1260
    %v3941 = vunpack.c.h.b16 %v1260
    %v3942 = vunpack.c.l.b16 %v1261
    %v3943 = vunpack.c.h.b16 %v1261
    %v3944 = vunpack.c.l.b16 %v1262
    %v3945 = vunpack.c.h.b16 %v1262
    %v3946 = vunpack.c.l.b16 %v1263
    %v3947 = vunpack.c.h.b16 %v1263
    %v3948 = vunpack.c.l.b16 %v1264
    %v3949 = vunpack.c.h.b16 %v1264
    %v3950 = vunpack.c.l.b16 %v1265
    %v3951 = vunpack.c.h.b16 %v1265
    %v3952 = vunpack.c.l.b16 %v1266
    %v3953 = vunpack.c.h.b16 %v1266
    %v3954 = vunpack.c.l.b16 %v1267
    %v3955 = vunpack.c.h.b16 %v1267
    %v3956 = vunpack.c.l.b16 %v1268
    %v3957 = vunpack.c.h.b16 %v1268
    %v3958 = vunpack.c.l.b16 %v1269
    %v3959 = vunpack.c.h.b16 %v1269
    %v3960 = vunpack.c.l.b16 %v1270
    %v3961 = vunpack.c.h.b16 %v1270
    %v3962 = vunpack.c.l.b16 %v1271
    %v3963 = vunpack.c.h.b16 %v1271
    %v3964 = vunpack.c.l.b16 %v1272
    %v3965 = vunpack.c.h.b16 %v1272
    %v3966 = vunpack.c.l.b16 %v1273
    %v3967 = vunpack.c.h.b16 %v1273
    %v3968 = vunpack.c.l.b16 %v1274
    %v3969 = vunpack.c.h.b16 %v1274
    %v3970 = vunpack.c.l.b16 %v1275
    %v3971 = vunpack.c.h.b16 %v1275
    %v3972 = vunpack.c.l.b16 %v1276
    %v3973 = vunpack.c.h.b16 %v1276
    %v3974 = vunpack.c.l.b16 %v1277
    %v3975 = vunpack.c.h.b16 %v1277
    %v3976 = vunpack.c.l.b16 %v1278
    %v3977 = vunpack.c.h.b16 %v1278
    %v3978 = vunpack.c.l.b16 %v1279
    %v3979 = vunpack.c.h.b16 %v1279
    %v3980 = vunpack.c.l.b16 %v1280
    %v3981 = vunpack.c.h.b16 %v1280
    %v3982 = vunpack.c.l.b16 %v1281
    %v3983 = vunpack.c.h.b16 %v1281
    %v3984 = vunpack.c.l.b16 %v1282
    %v3985 = vunpack.c.h.b16 %v1282
    %v3986 = vunpack.c.l.b16 %v1283
    %v3987 = vunpack.c.h.b16 %v1283
    %v3988 = vunpack.c.l.b16 %v1284
    %v3989 = vunpack.c.h.b16 %v1284
    %v3990 = vunpack.c.l.b16 %v1285
    %v3991 = vunpack.c.h.b16 %v1285
    %v3992 = vunpack.c.l.b16 %v1286
    %v3993 = vunpack.c.h.b16 %v1286
    %v3994 = vunpack.c.l.b16 %v1287
    %v3995 = vunpack.c.h.b16 %v1287
    %v3996 = vunpack.c.l.b16 %v1288
    %v3997 = vunpack.c.h.b16 %v1288
    %v3998 = vunpack.c.l.b16 %v1289
    %v3999 = vunpack.c.h.b16 %v1289
    %v4000 = vunpack.c.l.b16 %v1290
    %v4001 = vunpack.c.h.b16 %v1290
    %v4002 = vunpack.c.l.b16 %v1291
    %v4003 = vunpack.c.h.b16 %v1291
    %v4004 = vunpack.c.l.b16 %v1292
    %v4005 = vunpack.c.h.b16 %v1292
    %v4006 = vunpack.c.l.b16 %v1293
    %v4007 = vunpack.c.h.b16 %v1293
    %v4008 = vunpack.c.l.b16 %v1294
    %v4009 = vunpack.c.h.b16 %v1294
    %v4010 = vunpack.c.l.b16 %v1295
    %v4011 = vunpack.c.h.b16 %v1295
    %v4012 = vunpack.c.l.b16 %v1296
    %v4013 = vunpack.c.h.b16 %v1296
    %v4014 = vunpack.c.l.b16 %v1297
    %v4015 = vunpack.c.h.b16 %v1297
    %v4016 = vunpack.c.l.b16 %v1298
    %v4017 = vunpack.c.h.b16 %v1298
    %v4018 = vunpack.c.l.b16 %v1299
    %v4019 = vunpack.c.h.b16 %v1299
    %v4020 = vunpack.c.l.b16 %v1300
    %v4021 = vunpack.c.h.b16 %v1300
    %v4022 = vunpack.c.l.b16 %v1301
    %v4023 = vunpack.c.h.b16 %v1301
    %v4024 = vunpack.c.l.b16 %v1302
    %v4025 = vunpack.c.h.b16 %v1302
    %v4026 = vunpack.c.l.b16 %v1303
    %v4027 = vunpack.c.h.b16 %v1303
    %v4028 = vunpack.c.l.b16 %v1304
    %v4029 = vunpack.c.h.b16 %v1304
    %v4030 = vunpack.c.l.b16 %v1305
    %v4031 = vunpack.c.h.b16 %v1305
    %v4032 = vunpack.c.l.b16 %v1306
    %v4033 = vunpack.c.h.b16 %v1306
    %v4034 = vunpack.c.l.b16 %v1307
    %v4035 = vunpack.c.h.b16 %v1307
    %v4036 = vunpack.c.l.b16 %v1308
    %v4037 = vunpack.c.h.b16 %v1308
    %v4038 = vunpack.c.l.b16 %v1309
    %v4039 = vunpack.c.h.b16 %v1309
    %v4040 = vunpack.c.l.b16 %v1310
    %v4041 = vunpack.c.h.b16 %v1310
    %v4042 = vunpack.c.l.b16 %v1311
    %v4043 = vunpack.c.h.b16 %v1311
    %v4044 = vunpack.c.l.b16 %v1312
    %v4045 = vunpack.c.h.b16 %v1312
    %v4046 = vunpack.c.l.b16 %v1313
    %v4047 = vunpack.c.h.b16 %v1313
    %v4048 = vunpack.c.l.b16 %v1314
    %v4049 = vunpack.c.h.b16 %v1314
    %v4050 = vunpack.c.l.b16 %v1315
    %v4051 = vunpack.c.h.b16 %v1315
    %v4052 = vunpack.c.l.b16 %v1316
    %v4053 = vunpack.c.h.b16 %v1316
    %v4054 = vunpack.c.l.b16 %v1317
    %v4055 = vunpack.c.h.b16 %v1317
    %v4056 = vunpack.c.l.b16 %v1318
    %v4057 = vunpack.c.h.b16 %v1318
    %v4058 = vunpack.c.l.b16 %v1319
    %v4059 = vunpack.c.h.b16 %v1319
    %v4060 = vunpack.c.l.b16 %v1320
    %v4061 = vunpack.c.h.b16 %v1320
    %v4062 = vunpack.c.l.b16 %v1321
    %v4063 = vunpack.c.h.b16 %v1321
    %v4064 = vunpack.c.l.b16 %v1322
    %v4065 = vunpack.c.h.b16 %v1322
    %v4066 = vunpack.c.l.b16 %v1323
    %v4067 = vunpack.c.h.b16 %v1323
    %v4068 = vunpack.c.l.b16 %v1324
    %v4069 = vunpack.c.h.b16 %v1324
    %v4070 = vunpack.c.l.b16 %v1325
    %v4071 = vunpack.c.h.b16 %v1325
    %v4072 = vunpack.c.l.b16 %v1326
    %v4073 = vunpack.c.h.b16 %v1326
    %v4074 = vunpack.c.l.b16 %v1327
    %v4075 = vunpack.c.h.b16 %v1327
    %v4076 = vunpack.c.l.b16 %v1328
    %v4077 = vunpack.c.h.b16 %v1328
    %v4078 = vunpack.c.l.b16 %v1329
    %v4079 = vunpack.c.h.b16 %v1329
    %v4080 = vunpack.c.l.b16 %v1330
    %v4081 = vunpack.c.h.b16 %v1330
    %v4082 = vunpack.c.l.b16 %v1331
    %v4083 = vunpack.c.h.b16 %v1331
    %v4084 = vunpack.c.l.b16 %v1332
    %v4085 = vunpack.c.h.b16 %v1332
    %v4086 = vunpack.c.l.b16 %v1333
    %v4087 = vunpack.c.h.b16 %v1333
    %v4088 = vunpack.c.l.b16 %v1334
    %v4089 = vunpack.c.h.b16 %v1334
    %v4090 = vunpack.c.l.b16 %v1335
    %v4091 = vunpack.c.h.b16 %v1335
    %v4092 = vunpack.c.l.b16 %v1336
    %v4093 = vunpack.c.h.b16 %v1336
    %v4094 = vunpack.c.l.b16 %v1337
    %v4095 = vunpack.c.h.b16 %v1337
    %v4096 = vunpack.c.l.b16 %v1338
    %v4097 = vunpack.c.h.b16 %v1338
    %v4098 = vunpack.c.l.b16 %v1339
    %v4099 = vunpack.c.h.b16 %v1339
    %v4100 = vunpack.c.l.b16 %v1340
    %v4101 = vunpack.c.h.b16 %v1340
    %v4102 = vunpack.c.l.b16 %v1341
    %v4103 = vunpack.c.h.b16 %v1341
    %v4104 = vunpack.c.l.b16 %v1342
    %v4105 = vunpack.c.h.b16 %v1342
    %v4106 = vunpack.c.l.b16 %v1343
    %v4107 = vunpack.c.h.b16 %v1343
    %v4108 = vunpack.c.l.b16 %v1344
    %v4109 = vunpack.c.h.b16 %v1344
    %v4110 = vunpack.c.l.b16 %v1345
    %v4111 = vunpack.c.h.b16 %v1345
    %v4112 = vunpack.c.l.b16 %v1346
    %v4113 = vunpack.c.h.b16 %v1346
    %v4114 = vunpack.c.l.b16 %v1347
    %v4115 = vunpack.c.h.b16 %v1347
    %v4116 = vunpack.c.l.b16 %v1348
    %v4117 = vunpack.c.h.b16 %v1348
    %v4118 = vunpack.c.l.b16 %v1349
    %v4119 = vunpack.c.h.b16 %v1349
    %v4120 = vunpack.c.l.b16 %v1350
    %v4121 = vunpack.c.h.b16 %v1350
    %v4122 = vunpack.c.l.b16 %v1351
    %v4123 = vunpack.c.h.b16 %v1351
    %v4124 = vunpack.c.l.b16 %v1352
    %v4125 = vunpack.c.h.b16 %v1352
    %v4126 = vunpack.c.l.b16 %v1353
    %v4127 = vunpack.c.h.b16 %v1353
    %v4128 = vunpack.c.l.b16 %v1354
    %v4129 = vunpack.c.h.b16 %v1354
    %v4130 = vunpack.c.l.b16 %v1355
    %v4131 = vunpack.c.h.b16 %v1355
    %v4132 = vunpack.c.l.b16 %v1356
    %v4133 = vunpack.c.h.b16 %v1356
    %v4134 = vunpack.c.l.b16 %v1357
    %v4135 = vunpack.c.h.b16 %v1357
    %v4136 = vunpack.c.l.b16 %v1358
    %v4137 = vunpack.c.h.b16 %v1358
    %v4138 = vunpack.c.l.b16 %v1359
    %v4139 = vunpack.c.h.b16 %v1359
    %v4140 = vunpack.c.l.b16 %v1360
    %v4141 = vunpack.c.h.b16 %v1360
    %v4142 = vunpack.c.l.b16 %v1361
    %v4143 = vunpack.c.h.b16 %v1361
    %v4144 = vunpack.c.l.b16 %v1362
    %v4145 = vunpack.c.h.b16 %v1362
    %v4146 = vunpack.c.l.b16 %v1363
    %v4147 = vunpack.c.h.b16 %v1363
    %v4148 = vunpack.c.l.b16 %v1364
    %v4149 = vunpack.c.h.b16 %v1364
    %v4150 = vunpack.c.l.b16 %v1365
    %v4151 = vunpack.c.h.b16 %v1365
    %v4152 = vunpack.c.l.b16 %v1366
    %v4153 = vunpack.c.h.b16 %v1366
    %v4154 = vunpack.c.l.b16 %v1367
    %v4155 = vunpack.c.h.b16 %v1367
    %v4156 = vunpack.c.l.b16 %v1368
    %v4157 = vunpack.c.h.b16 %v1368
    %v4158 = vunpack.c.l.b16 %v1369
    %v4159 = vunpack.c.h.b16 %v1369
    %v4160 = vunpack.c.l.b16 %v1370
    %v4161 = vunpack.c.h.b16 %v1370
    %v4162 = vunpack.c.l.b16 %v1371
    %v4163 = vunpack.c.h.b16 %v1371
    %v4164 = vunpack.c.l.b16 %v1372
    %v4165 = vunpack.c.h.b16 %v1372
    %v4166 = vunpack.c.l.b16 %v1373
    %v4167 = vunpack.c.h.b16 %v1373
    %v4168 = vunpack.c.l.b16 %v1374
    %v4169 = vunpack.c.h.b16 %v1374
    %v4170 = vunpack.c.l.b16 %v1375
    %v4171 = vunpack.c.h.b16 %v1375
    %v4172 = vunpack.c.l.b16 %v1376
    %v4173 = vunpack.c.h.b16 %v1376
    %v4174 = vunpack.c.l.b16 %v1377
    %v4175 = vunpack.c.h.b16 %v1377
    %v4176 = vunpack.c.l.b16 %v1378
    %v4177 = vunpack.c.h.b16 %v1378
    %v4178 = vunpack.c.l.b16 %v1379
    %v4179 = vunpack.c.h.b16 %v1379
    %v4180 = vunpack.c.l.b16 %v1380
    %v4181 = vunpack.c.h.b16 %v1380
    %v4182 = vunpack.c.l.b16 %v1381
    %v4183 = vunpack.c.h.b16 %v1381
    %v4184 = vunpack.c.l.b16 %v1382
    %v4185 = vunpack.c.h.b16 %v1382
    %v4186 = vunpack.c.l.b16 %v1383
    %v4187 = vunpack.c.h.b16 %v1383
    %v4188 = vunpack.c.l.b16 %v1384
    %v4189 = vunpack.c.h.b16 %v1384
    %v4190 = vunpack.c.l.b16 %v1385
    %v4191 = vunpack.c.h.b16 %v1385
    %v4192 = vunpack.c.l.b16 %v1386
    %v4193 = vunpack.c.h.b16 %v1386
    %v4194 = vunpack.c.l.b16 %v1387
    %v4195 = vunpack.c.h.b16 %v1387
    %v4196 = vunpack.c.l.b16 %v1388
    %v4197 = vunpack.c.h.b16 %v1388
    %v4198 = vunpack.c.l.b16 %v1389
    %v4199 = vunpack.c.h.b16 %v1389
    %v4200 = vunpack.c.l.b16 %v1390
    %v4201 = vunpack.c.h.b16 %v1390
    %v4202 = vunpack.c.l.b16 %v1391
    %v4203 = vunpack.c.h.b16 %v1391
    %v4204 = vunpack.c.l.b16 %v1392
    %v4205 = vunpack.c.h.b16 %v1392
    %v4206 = vunpack.c.l.b16 %v1393
    %v4207 = vunpack.c.h.b16 %v1393
    %v4208 = vunpack.c.l.b16 %v1394
    %v4209 = vunpack.c.h.b16 %v1394
    %v4210 = vunpack.c.l.b16 %v1395
    %v4211 = vunpack.c.h.b16 %v1395
    %v4212 = vunpack.c.l.b16 %v1396
    %v4213 = vunpack.c.h.b16 %v1396
    %v4214 = vunpack.c.l.b16 %v1397
    %v4215 = vunpack.c.h.b16 %v1397
    %v4216 = vunpack.c.l.b16 %v1398
    %v4217 = vunpack.c.h.b16 %v1398
    %v4218 = vunpack.c.l.b16 %v1399
    %v4219 = vunpack.c.h.b16 %v1399
    %v4220 = vunpack.c.l.b16 %v1400
    %v4221 = vunpack.c.h.b16 %v1400
    %v4222 = vunpack.c.l.b16 %v1401
    %v4223 = vunpack.c.h.b16 %v1401
    %v4224 = vunpack.c.l.b16 %v1402
    %v4225 = vunpack.c.h.b16 %v1402
    %v4226 = vunpack.c.l.b16 %v1403
    %v4227 = vunpack.c.h.b16 %v1403
    %v4228 = vunpack.c.l.b16 %v1404
    %v4229 = vunpack.c.h.b16 %v1404
    %v4230 = vunpack.c.l.b16 %v1405
    %v4231 = vunpack.c.h.b16 %v1405
    %v4232 = vunpack.c.l.b16 %v1406
    %v4233 = vunpack.c.h.b16 %v1406
    %v4234 = vunpack.c.l.b16 %v1407
    %v4235 = vunpack.c.h.b16 %v1407
    %v4236 = vunpack.c.l.b16 %v1408
    %v4237 = vunpack.c.h.b16 %v1408
    %v4238 = vunpack.c.l.b16 %v1409
    %v4239 = vunpack.c.h.b16 %v1409
    %v4240 = vunpack.c.l.b16 %v1410
    %v4241 = vunpack.c.h.b16 %v1410
    %v4242 = vunpack.c.l.b16 %v1411
    %v4243 = vunpack.c.h.b16 %v1411
    %v4244 = vunpack.c.l.b16 %v1412
    %v4245 = vunpack.c.h.b16 %v1412
    %v4246 = vunpack.c.l.b16 %v1413
    %v4247 = vunpack.c.h.b16 %v1413
    %v4248 = vunpack.c.l.b16 %v1414
    %v4249 = vunpack.c.h.b16 %v1414
    %v4250 = vunpack.c.l.b16 %v1415
    %v4251 = vunpack.c.h.b16 %v1415
    %v4252 = vunpack.c.l.b16 %v1416
    %v4253 = vunpack.c.h.b16 %v1416
    %v4254 = vunpack.c.l.b16 %v1417
    %v4255 = vunpack.c.h.b16 %v1417
    %v4256 = vunpack.c.l.b16 %v1418
    %v4257 = vunpack.c.h.b16 %v1418
    %v4258 = vunpack.c.l.b16 %v1419
    %v4259 = vunpack.c.h.b16 %v1419
    %v4260 = vunpack.c.l.b16 %v1420
    %v4261 = vunpack.c.h.b16 %v1420
    %v4262 = vunpack.c.l.b16 %v1421
    %v4263 = vunpack.c.h.b16 %v1421
    %v4264 = vunpack.c.l.b16 %v1422
    %v4265 = vunpack.c.h.b16 %v1422
    %v4266 = vunpack.c.l.b16 %v1423
    %v4267 = vunpack.c.h.b16 %v1423
    %v4268 = vunpack.c.l.b16 %v1424
    %v4269 = vunpack.c.h.b16 %v1424
    %v4270 = vunpack.c.l.b16 %v1425
    %v4271 = vunpack.c.h.b16 %v1425
    %v4272 = vunpack.c.l.b16 %v1426
    %v4273 = vunpack.c.h.b16 %v1426
    %v4274 = vunpack.c.l.b16 %v1427
    %v4275 = vunpack.c.h.b16 %v1427
    %v4276 = vunpack.c.l.b16 %v1428
    %v4277 = vunpack.c.h.b16 %v1428
    %v4278 = vunpack.c.l.b16 %v1429
    %v4279 = vunpack.c.h.b16 %v1429
    %v4280 = vunpack.c.l.b16 %v1430
    %v4281 = vunpack.c.h.b16 %v1430
    %v4282 = vunpack.c.l.b16 %v1431
    %v4283 = vunpack.c.h.b16 %v1431
    %v4284 = vunpack.c.l.b16 %v1432
    %v4285 = vunpack.c.h.b16 %v1432
    %v4286 = vunpack.c.l.b16 %v1433
    %v4287 = vunpack.c.h.b16 %v1433
    %v4288 = vunpack.c.l.b16 %v1434
    %v4289 = vunpack.c.h.b16 %v1434
    %v4290 = vunpack.c.l.b16 %v1435
    %v4291 = vunpack.c.h.b16 %v1435
    %v4292 = vunpack.c.l.b16 %v1436
    %v4293 = vunpack.c.h.b16 %v1436
    %v4294 = vunpack.c.l.b16 %v1437
    %v4295 = vunpack.c.h.b16 %v1437
    %v4296 = vunpack.c.l.b16 %v1438
    %v4297 = vunpack.c.h.b16 %v1438
    %v4298 = vunpack.c.l.b16 %v1439
    %v4299 = vunpack.c.h.b16 %v1439
    %v4300 = vunpack.c.l.b16 %v1440
    %v4301 = vunpack.c.h.b16 %v1440
    %v4302 = vunpack.c.l.b16 %v1441
    %v4303 = vunpack.c.h.b16 %v1441
    %v4304 = vunpack.c.l.b16 %v1442
    %v4305 = vunpack.c.h.b16 %v1442
    %v4306 = vunpack.c.l.b16 %v1443
    %v4307 = vunpack.c.h.b16 %v1443
    %v4308 = vunpack.c.l.b16 %v1444
    %v4309 = vunpack.c.h.b16 %v1444
    %v4310 = vunpack.c.l.b16 %v1445
    %v4311 = vunpack.c.h.b16 %v1445
    %v4312 = vunpack.c.l.b16 %v1446
    %v4313 = vunpack.c.h.b16 %v1446
    %v4314 = vunpack.c.l.b16 %v1447
    %v4315 = vunpack.c.h.b16 %v1447
    %v4316 = vunpack.c.l.b16 %v1448
    %v4317 = vunpack.c.h.b16 %v1448
    %v4318 = vunpack.c.l.b16 %v1449
    %v4319 = vunpack.c.h.b16 %v1449
    %v4320 = vunpack.c.l.b16 %v1450
    %v4321 = vunpack.c.h.b16 %v1450
    %v4322 = vunpack.c.l.b16 %v1451
    %v4323 = vunpack.c.h.b16 %v1451
    %v4324 = vunpack.c.l.b16 %v1452
    %v4325 = vunpack.c.h.b16 %v1452
    %v4326 = vunpack.c.l.b16 %v1453
    %v4327 = vunpack.c.h.b16 %v1453
    %v4328 = vunpack.c.l.b16 %v1454
    %v4329 = vunpack.c.h.b16 %v1454
    %v4330 = vunpack.c.l.b16 %v1455
    %v4331 = vunpack.c.h.b16 %v1455
    %v4332 = vunpack.c.l.b16 %v1456
    %v4333 = vunpack.c.h.b16 %v1456
    %v4334 = vunpack.c.l.b16 %v1457
    %v4335 = vunpack.c.h.b16 %v1457
    %v4336 = vunpack.c.l.b16 %v1458
    %v4337 = vunpack.c.h.b16 %v1458
    %v4338 = vunpack.c.l.b16 %v1459
    %v4339 = vunpack.c.h.b16 %v1459
    %v4340 = vunpack.c.l.b16 %v1460
    %v4341 = vunpack.c.h.b16 %v1460
    %v4342 = vunpack.c.l.b16 %v1461
    %v4343 = vunpack.c.h.b16 %v1461
    %v4344 = vunpack.c.l.b16 %v1462
    %v4345 = vunpack.c.h.b16 %v1462
    %v4346 = vunpack.c.l.b16 %v1463
    %v4347 = vunpack.c.h.b16 %v1463
    %v4348 = vunpack.c.l.b16 %v1464
    %v4349 = vunpack.c.h.b16 %v1464
    %v4350 = vunpack.c.l.b16 %v1465
    %v4351 = vunpack.c.h.b16 %v1465
    %v4352 = vunpack.c.l.b16 %v1466
    %v4353 = vunpack.c.h.b16 %v1466
    %v4354 = vunpack.c.l.b16 %v1467
    %v4355 = vunpack.c.h.b16 %v1467
    %v4356 = vunpack.c.l.b16 %v1468
    %v4357 = vunpack.c.h.b16 %v1468
    %v4358 = vunpack.c.l.b16 %v1469
    %v4359 = vunpack.c.h.b16 %v1469
    %v4360 = vunpack.c.l.b16 %v1470
    %v4361 = vunpack.c.h.b16 %v1470
    %v4362 = vunpack.c.l.b16 %v1471
    %v4363 = vunpack.c.h.b16 %v1471
    %v4364 = vunpack.c.l.b16 %v1472
    %v4365 = vunpack.c.h.b16 %v1472
    %v4366 = vunpack.c.l.b16 %v1473
    %v4367 = vunpack.c.h.b16 %v1473
    %v4368 = vunpack.c.l.b16 %v1474
    %v4369 = vunpack.c.h.b16 %v1474
    %v4370 = vunpack.c.l.b16 %v1475
    %v4371 = vunpack.c.h.b16 %v1475
    %v4372 = vunpack.c.l.b16 %v1476
    %v4373 = vunpack.c.h.b16 %v1476
    %v4374 = vunpack.c.l.b16 %v1477
    %v4375 = vunpack.c.h.b16 %v1477
    %v4376 = vunpack.c.l.b16 %v1478
    %v4377 = vunpack.c.h.b16 %v1478
    %v4378 = vunpack.c.l.b16 %v1479
    %v4379 = vunpack.c.h.b16 %v1479
    %v4380 = vunpack.c.l.b16 %v1480
    %v4381 = vunpack.c.h.b16 %v1480
    %v4382 = vunpack.c.l.b16 %v1481
    %v4383 = vunpack.c.h.b16 %v1481
    %v4384 = vunpack.c.l.b16 %v1482
    %v4385 = vunpack.c.h.b16 %v1482
    %v4386 = vunpack.c.l.b16 %v1483
    %v4387 = vunpack.c.h.b16 %v1483
    %v4388 = vunpack.c.l.b16 %v1484
    %v4389 = vunpack.c.h.b16 %v1484
    %v4390 = vunpack.c.l.b16 %v1485
    %v4391 = vunpack.c.h.b16 %v1485
    %v4392 = vunpack.c.l.b16 %v1486
    %v4393 = vunpack.c.h.b16 %v1486
    %v4394 = vunpack.c.l.b16 %v1487
    %v4395 = vunpack.c.h.b16 %v1487
    %v4396 = vunpack.c.l.b16 %v1488
    %v4397 = vunpack.c.h.b16 %v1488
    %v4398 = vunpack.c.l.b16 %v1489
    %v4399 = vunpack.c.h.b16 %v1489
    %v4400 = vunpack.c.l.b16 %v1490
    %v4401 = vunpack.c.h.b16 %v1490
    %v4402 = vunpack.c.l.b16 %v1491
    %v4403 = vunpack.c.h.b16 %v1491
    %v4404 = vunpack.c.l.b16 %v1492
    %v4405 = vunpack.c.h.b16 %v1492
    %v4406 = vunpack.c.l.b16 %v1493
    %v4407 = vunpack.c.h.b16 %v1493
    %v4408 = vunpack.c.l.b16 %v1494
    %v4409 = vunpack.c.h.b16 %v1494
    %v4410 = vunpack.c.l.b16 %v1495
    %v4411 = vunpack.c.h.b16 %v1495
    %v4412 = vunpack.c.l.b16 %v1496
    %v4413 = vunpack.c.h.b16 %v1496
    %v4414 = vunpack.c.l.b16 %v1497
    %v4415 = vunpack.c.h.b16 %v1497
    %v4416 = vunpack.c.l.b16 %v1498
    %v4417 = vunpack.c.h.b16 %v1498
    %v4418 = vunpack.c.l.b16 %v1499
    %v4419 = vunpack.c.h.b16 %v1499
    %v4420 = vunpack.c.l.b16 %v1500
    %v4421 = vunpack.c.h.b16 %v1500
    %v4422 = vunpack.c.l.b16 %v1501
    %v4423 = vunpack.c.h.b16 %v1501
    %v4424 = vunpack.c.l.b16 %v1502
    %v4425 = vunpack.c.h.b16 %v1502
    %v4426 = vunpack.c.l.b16 %v1503
    %v4427 = vunpack.c.h.b16 %v1503
    %v4428 = vunpack.c.l.b16 %v1504
    %v4429 = vunpack.c.h.b16 %v1504
    %v4430 = vunpack.c.l.b16 %v1505
    %v4431 = vunpack.c.h.b16 %v1505
    %v4432 = vunpack.c.l.b16 %v1506
    %v4433 = vunpack.c.h.b16 %v1506
    %v4434 = vunpack.c.l.b16 %v1507
    %v4435 = vunpack.c.h.b16 %v1507
    %v4436 = vunpack.c.l.b16 %v1508
    %v4437 = vunpack.c.h.b16 %v1508
    %v4438 = vunpack.c.l.b16 %v1509
    %v4439 = vunpack.c.h.b16 %v1509
    %v4440 = vunpack.c.l.b16 %v1510
    %v4441 = vunpack.c.h.b16 %v1510
    %v4442 = vunpack.c.l.b16 %v1511
    %v4443 = vunpack.c.h.b16 %v1511
    %v4444 = vunpack.c.l.b16 %v1512
    %v4445 = vunpack.c.h.b16 %v1512
    %v4446 = vunpack.c.l.b16 %v1513
    %v4447 = vunpack.c.h.b16 %v1513
    %v4448 = vunpack.c.l.b16 %v1514
    %v4449 = vunpack.c.h.b16 %v1514
    %v4450 = vunpack.c.l.b16 %v1515
    %v4451 = vunpack.c.h.b16 %v1515
    %v4452 = vunpack.c.l.b16 %v1516
    %v4453 = vunpack.c.h.b16 %v1516
    %v4454 = vunpack.c.l.b16 %v1517
    %v4455 = vunpack.c.h.b16 %v1517
    %v4456 = vunpack.c.l.b16 %v1518
    %v4457 = vunpack.c.h.b16 %v1518
    %v4458 = vunpack.c.l.b16 %v1519
    %v4459 = vunpack.c.h.b16 %v1519
    %v4460 = vunpack.c.l.b16 %v1520
    %v4461 = vunpack.c.h.b16 %v1520
    %v4462 = vunpack.c.l.b16 %v1521
    %v4463 = vunpack.c.h.b16 %v1521
    %v4464 = vunpack.c.l.b16 %v1522
    %v4465 = vunpack.c.h.b16 %v1522
    %v4466 = vunpack.c.l.b16 %v1523
    %v4467 = vunpack.c.h.b16 %v1523
    %v4468 = vunpack.c.l.b16 %v1524
    %v4469 = vunpack.c.h.b16 %v1524
    %v4470 = vunpack.c.l.b16 %v1525
    %v4471 = vunpack.c.h.b16 %v1525
    %v4472 = vunpack.c.l.b16 %v1526
    %v4473 = vunpack.c.h.b16 %v1526
    %v4474 = vunpack.c.l.b16 %v1527
    %v4475 = vunpack.c.h.b16 %v1527
    %v4476 = vunpack.c.l.b16 %v1528
    %v4477 = vunpack.c.h.b16 %v1528
    %v4478 = vunpack.c.l.b16 %v1529
    %v4479 = vunpack.c.h.b16 %v1529
    %v4480 = vunpack.c.l.b16 %v1530
    %v4481 = vunpack.c.h.b16 %v1530
    %v4482 = vunpack.c.l.b16 %v1531
    %v4483 = vunpack.c.h.b16 %v1531
    %v4484 = vunpack.c.l.b16 %v1532
    %v4485 = vunpack.c.h.b16 %v1532
    %v4486 = vunpack.c.l.b16 %v1533
    %v4487 = vunpack.c.h.b16 %v1533
    %v4488 = vunpack.c.l.b16 %v1534
    %v4489 = vunpack.c.h.b16 %v1534
    %v4490 = vunpack.c.l.b16 %v1535
    %v4491 = vunpack.c.h.b16 %v1535
    %v4492 = vunpack.c.l.b16 %v1536
    %v4493 = vunpack.c.h.b16 %v1536
    %v4494 = vunpack.c.l.b16 %v1537
    %v4495 = vunpack.c.h.b16 %v1537
    %v4496 = vunpack.c.l.b16 %v1538
    %v4497 = vunpack.c.h.b16 %v1538
    %v4498 = vunpack.c.l.b16 %v1539
    %v4499 = vunpack.c.h.b16 %v1539
    %v4500 = vunpack.c.l.b16 %v1540
    %v4501 = vunpack.c.h.b16 %v1540
    %v4502 = vunpack.c.l.b16 %v1541
    %v4503 = vunpack.c.h.b16 %v1541
    %v4504 = vunpack.c.l.b16 %v1542
    %v4505 = vunpack.c.h.b16 %v1542
    %v4506 = vunpack.c.l.b16 %v1543
    %v4507 = vunpack.c.h.b16 %v1543
    %v4508 = vunpack.c.l.b16 %v1544
    %v4509 = vunpack.c.h.b16 %v1544
    %v4510 = vunpack.c.l.b16 %v1545
    %v4511 = vunpack.c.h.b16 %v1545
    %v4512 = vunpack.c.l.b16 %v1546
    %v4513 = vunpack.c.h.b16 %v1546
    %v4514 = vunpack.c.l.b16 %v1547
    %v4515 = vunpack.c.h.b16 %v1547
    %v4516 = vunpack.c.l.b16 %v1548
    %v4517 = vunpack.c.h.b16 %v1548
    %v4518 = vunpack.c.l.b16 %v1549
    %v4519 = vunpack.c.h.b16 %v1549
    %v4520 = vunpack.c.l.b16 %v1550
    %v4521 = vunpack.c.h.b16 %v1550
    %v4522 = vunpack.c.l.b16 %v1551
    %v4523 = vunpack.c.h.b16 %v1551
    %v4524 = vunpack.c.l.b16 %v1552
    %v4525 = vunpack.c.h.b16 %v1552
    %v4526 = vunpack.c.l.b16 %v1553
    %v4527 = vunpack.c.h.b16 %v1553
    %v4528 = vunpack.c.l.b16 %v1554
    %v4529 = vunpack.c.h.b16 %v1554
    %v4530 = vunpack.c.l.b16 %v1555
    %v4531 = vunpack.c.h.b16 %v1555
    %v4532 = vunpack.c.l.b16 %v1556
    %v4533 = vunpack.c.h.b16 %v1556
    %v4534 = vunpack.c.l.b16 %v1557
    %v4535 = vunpack.c.h.b16 %v1557
    %v4536 = vunpack.c.l.b16 %v1558
    %v4537 = vunpack.c.h.b16 %v1558
    %v4538 = vunpack.c.l.b16 %v1559
    %v4539 = vunpack.c.h.b16 %v1559
    %v4540 = vunpack.c.l.b16 %v1560
    %v4541 = vunpack.c.h.b16 %v1560
    %v4542 = vunpack.c.l.b16 %v1561
    %v4543 = vunpack.c.h.b16 %v1561
    %v4544 = vunpack.c.l.b16 %v1562
    %v4545 = vunpack.c.h.b16 %v1562
    %v4546 = vunpack.c.l.b16 %v1563
    %v4547 = vunpack.c.h.b16 %v1563
    %v4548 = vunpack.c.l.b16 %v1564
    %v4549 = vunpack.c.h.b16 %v1564
    %v4550 = vunpack.c.l.b16 %v1565
    %v4551 = vunpack.c.h.b16 %v1565
    %v4552 = vunpack.c.l.b16 %v1566
    %v4553 = vunpack.c.h.b16 %v1566
    %v4554 = vunpack.c.l.b16 %v1567
    %v4555 = vunpack.c.h.b16 %v1567
    %v4556 = vunpack.c.l.b16 %v1568
    %v4557 = vunpack.c.h.b16 %v1568
    %v4558 = vunpack.c.l.b16 %v1569
    %v4559 = vunpack.c.h.b16 %v1569
    %v4560 = vunpack.c.l.b16 %v1570
    %v4561 = vunpack.c.h.b16 %v1570
    %v4562 = vunpack.c.l.b16 %v1571
    %v4563 = vunpack.c.h.b16 %v1571
    %v4564 = vunpack.c.l.b16 %v1572
    %v4565 = vunpack.c.h.b16 %v1572
    %v4566 = vunpack.c.l.b16 %v1573
    %v4567 = vunpack.c.h.b16 %v1573
    %v4568 = vunpack.c.l.b16 %v1574
    %v4569 = vunpack.c.h.b16 %v1574
    %v4570 = vunpack.c.l.b16 %v1575
    %v4571 = vunpack.c.h.b16 %v1575
    %v4572 = vunpack.c.l.b16 %v1576
    %v4573 = vunpack.c.h.b16 %v1576
    %v4574 = vunpack.c.l.b16 %v1577
    %v4575 = vunpack.c.h.b16 %v1577
    %v4576 = vunpack.c.l.b16 %v1578
    %v4577 = vunpack.c.h.b16 %v1578
    %v4578 = vunpack.c.l.b16 %v1579
    %v4579 = vunpack.c.h.b16 %v1579
    %v4580 = vunpack.c.l.b16 %v1580
    %v4581 = vunpack.c.h.b16 %v1580
    %v4582 = vunpack.c.l.b16 %v1581
    %v4583 = vunpack.c.h.b16 %v1581
    %v4584 = vunpack.c.l.b16 %v1582
    %v4585 = vunpack.c.h.b16 %v1582
    %v4586 = vunpack.c.l.b16 %v1583
    %v4587 = vunpack.c.h.b16 %v1583
    %v4588 = vunpack.c.l.b16 %v1584
    %v4589 = vunpack.c.h.b16 %v1584
    %v4590 = vunpack.c.l.b16 %v1585
    %v4591 = vunpack.c.h.b16 %v1585
    %v4592 = vunpack.c.l.b16 %v1586
    %v4593 = vunpack.c.h.b16 %v1586
    %v4594 = vunpack.c.l.b16 %v1587
    %v4595 = vunpack.c.h.b16 %v1587
    %v4596 = vunpack.c.l.b16 %v1588
    %v4597 = vunpack.c.h.b16 %v1588
    %v4598 = vunpack.c.l.b16 %v1589
    %v4599 = vunpack.c.h.b16 %v1589
    %v4600 = vunpack.c.l.b16 %v1590
    %v4601 = vunpack.c.h.b16 %v1590
    %v4602 = vunpack.c.l.b16 %v1591
    %v4603 = vunpack.c.h.b16 %v1591
    %v4604 = vunpack.c.l.b16 %v1592
    %v4605 = vunpack.c.h.b16 %v1592
    %v4606 = vunpack.c.l.b16 %v1593
    %v4607 = vunpack.c.h.b16 %v1593
    %v4608 = vunpack.c.l.b16 %v1594
    %v4609 = vunpack.c.h.b16 %v1594
    %v4610 = vunpack.c.l.b16 %v1595
    %v4611 = vunpack.c.h.b16 %v1595
    %v4612 = vunpack.c.l.b16 %v1596
    %v4613 = vunpack.c.h.b16 %v1596
    %v4614 = vunpack.c.l.b16 %v1597
    %v4615 = vunpack.c.h.b16 %v1597
    %v4616 = vunpack.c.l.b16 %v1598
    %v4617 = vunpack.c.h.b16 %v1598
    %v4618 = vunpack.c.l.b16 %v1599
    %v4619 = vunpack.c.h.b16 %v1599
    %v4620 = vunpack.c.l.b16 %v1600
    %v4621 = vunpack.c.h.b16 %v1600
    %v4622 = vunpack.c.l.b16 %v1601
    %v4623 = vunpack.c.h.b16 %v1601
    %v4624 = vunpack.c.l.b16 %v1602
    %v4625 = vunpack.c.h.b16 %v1602
    %v4626 = vunpack.c.l.b16 %v1603
    %v4627 = vunpack.c.h.b16 %v1603
    %v4628 = vunpack.c.l.b16 %v1604
    %v4629 = vunpack.c.h.b16 %v1604
    %v4630 = vunpack.c.l.b16 %v1605
    %v4631 = vunpack.c.h.b16 %v1605
    %v4632 = vunpack.c.l.b16 %v1606
    %v4633 = vunpack.c.h.b16 %v1606
    %v4634 = vunpack.c.l.b16 %v1607
    %v4635 = vunpack.c.h.b16 %v1607
    %v4636 = vunpack.c.l.b16 %v1608
    %v4637 = vunpack.c.h.b16 %v1608
    %v4638 = vunpack.c.l.b16 %v1609
    %v4639 = vunpack.c.h.b16 %v1609
    %v4640 = vunpack.c.l.b16 %v1610
    %v4641 = vunpack.c.h.b16 %v1610
    %v4642 = vunpack.c.l.b16 %v1611
    %v4643 = vunpack.c.h.b16 %v1611
    %v4644 = vunpack.c.l.b16 %v1612
    %v4645 = vunpack.c.h.b16 %v1612
    %v4646 = vunpack.c.l.b16 %v1613
    %v4647 = vunpack.c.h.b16 %v1613
    %v4648 = vunpack.c.l.b16 %v1614
    %v4649 = vunpack.c.h.b16 %v1614
    %v4650 = vunpack.c.l.b16 %v1615
    %v4651 = vunpack.c.h.b16 %v1615
    %v4652 = vunpack.c.l.b16 %v1616
    %v4653 = vunpack.c.h.b16 %v1616
    %v4654 = vunpack.c.l.b16 %v1617
    %v4655 = vunpack.c.h.b16 %v1617
    %v4656 = vunpack.c.l.b16 %v1618
    %v4657 = vunpack.c.h.b16 %v1618
    %v4658 = vunpack.c.l.b16 %v1619
    %v4659 = vunpack.c.h.b16 %v1619
    %v4660 = vunpack.c.l.b16 %v1620
    %v4661 = vunpack.c.h.b16 %v1620
    %v4662 = vunpack.c.l.b16 %v1621
    %v4663 = vunpack.c.h.b16 %v1621
    %v4664 = vunpack.c.l.b16 %v1622
    %v4665 = vunpack.c.h.b16 %v1622
    %v4666 = vunpack.c.l.b16 %v1623
    %v4667 = vunpack.c.h.b16 %v1623
    %v4668 = vunpack.c.l.b16 %v1624
    %v4669 = vunpack.c.h.b16 %v1624
    %v4670 = vunpack.c.l.b16 %v1625
    %v4671 = vunpack.c.h.b16 %v1625
    %v4672 = vunpack.c.l.b16 %v1626
    %v4673 = vunpack.c.h.b16 %v1626
    %v4674 = vunpack.c.l.b16 %v1627
    %v4675 = vunpack.c.h.b16 %v1627
    %v4676 = vunpack.c.l.b16 %v1628
    %v4677 = vunpack.c.h.b16 %v1628
    %v4678 = vunpack.c.l.b16 %v1629
    %v4679 = vunpack.c.h.b16 %v1629
    %v4680 = vunpack.c.l.b16 %v1630
    %v4681 = vunpack.c.h.b16 %v1630
    %v4682 = vunpack.c.l.b16 %v1631
    %v4683 = vunpack.c.h.b16 %v1631
    %v4684 = vunpack.c.l.b16 %v1632
    %v4685 = vunpack.c.h.b16 %v1632
    %v4686 = vunpack.c.l.b16 %v1633
    %v4687 = vunpack.c.h.b16 %v1633
    %v4688 = vunpack.c.l.b16 %v1634
    %v4689 = vunpack.c.h.b16 %v1634
    %v4690 = vunpack.c.l.b16 %v1635
    %v4691 = vunpack.c.h.b16 %v1635
    %v4692 = vunpack.c.l.b16 %v1636
    %v4693 = vunpack.c.h.b16 %v1636
    %v4694 = vunpack.c.l.b16 %v1637
    %v4695 = vunpack.c.h.b16 %v1637
    %v4696 = vunpack.c.l.b16 %v1638
    %v4697 = vunpack.c.h.b16 %v1638
    %v4698 = vunpack.c.l.b16 %v1639
    %v4699 = vunpack.c.h.b16 %v1639
    %v4700 = vunpack.c.l.b16 %v1640
    %v4701 = vunpack.c.h.b16 %v1640
    %v4702 = vunpack.c.l.b16 %v1641
    %v4703 = vunpack.c.h.b16 %v1641
    %v4704 = vunpack.c.l.b16 %v1642
    %v4705 = vunpack.c.h.b16 %v1642
    %v4706 = vunpack.c.l.b16 %v1643
    %v4707 = vunpack.c.h.b16 %v1643
    %v4708 = vunpack.c.l.b16 %v1644
    %v4709 = vunpack.c.h.b16 %v1644
    %v4710 = vunpack.c.l.b16 %v1645
    %v4711 = vunpack.c.h.b16 %v1645
    %v4712 = vunpack.c.l.b16 %v1646
    %v4713 = vunpack.c.h.b16 %v1646
    %v4714 = vunpack.c.l.b16 %v1647
    %v4715 = vunpack.c.h.b16 %v1647
    %v4716 = vunpack.c.l.b16 %v1648
    %v4717 = vunpack.c.h.b16 %v1648
    %v4718 = vunpack.c.l.b16 %v1649
    %v4719 = vunpack.c.h.b16 %v1649
    %v4720 = vunpack.c.l.b16 %v1650
    %v4721 = vunpack.c.h.b16 %v1650
    %v4722 = vunpack.c.l.b16 %v1651
    %v4723 = vunpack.c.h.b16 %v1651
    %v4724 = vunpack.c.l.b16 %v1652
    %v4725 = vunpack.c.h.b16 %v1652
    %v4726 = vunpack.c.l.b16 %v1653
    %v4727 = vunpack.c.h.b16 %v1653
    %v4728 = vunpack.c.l.b16 %v1654
    %v4729 = vunpack.c.h.b16 %v1654
    %v4730 = vunpack.c.l.b16 %v1655
    %v4731 = vunpack.c.h.b16 %v1655
    %v4732 = vunpack.c.l.b16 %v1656
    %v4733 = vunpack.c.h.b16 %v1656
    %v4734 = vunpack.c.l.b16 %v1657
    %v4735 = vunpack.c.h.b16 %v1657
    %v4736 = vunpack.c.l.b16 %v1658
    %v4737 = vunpack.c.h.b16 %v1658
    %v4738 = vunpack.c.l.b16 %v1659
    %v4739 = vunpack.c.h.b16 %v1659
    %v4740 = vunpack.c.l.b16 %v1660
    %v4741 = vunpack.c.h.b16 %v1660
    %v4742 = vunpack.c.l.b16 %v1661
    %v4743 = vunpack.c.h.b16 %v1661
    %v4744 = vunpack.c.l.b16 %v1662
    %v4745 = vunpack.c.h.b16 %v1662
    %v4746 = vunpack.c.l.b16 %v1663
    %v4747 = vunpack.c.h.b16 %v1663
    %v4748 = vunpack.c.l.b16 %v1664
    %v4749 = vunpack.c.h.b16 %v1664
    %v4750 = vunpack.c.l.b16 %v1665
    %v4751 = vunpack.c.h.b16 %v1665
    %v4752 = vunpack.c.l.b16 %v1666
    %v4753 = vunpack.c.h.b16 %v1666
    %v4754 = vunpack.c.l.b16 %v1667
    %v4755 = vunpack.c.h.b16 %v1667
    %v4756 = vunpack.c.l.b16 %v1668
    %v4757 = vunpack.c.h.b16 %v1668
    %v4758 = vunpack.c.l.b16 %v1669
    %v4759 = vunpack.c.h.b16 %v1669
    %v4760 = vunpack.c.l.b16 %v1670
    %v4761 = vunpack.c.h.b16 %v1670
    %v4762 = vunpack.c.l.b16 %v1671
    %v4763 = vunpack.c.h.b16 %v1671
    %v4764 = vunpack.c.l.b16 %v1672
    %v4765 = vunpack.c.h.b16 %v1672
    %v4766 = vunpack.c.l.b16 %v1673
    %v4767 = vunpack.c.h.b16 %v1673
    %v4768 = vunpack.c.l.b16 %v1674
    %v4769 = vunpack.c.h.b16 %v1674
    %v4770 = vunpack.c.l.b16 %v1675
    %v4771 = vunpack.c.h.b16 %v1675
    %v4772 = vunpack.c.l.b16 %v1676
    %v4773 = vunpack.c.h.b16 %v1676
    %v4774 = vunpack.c.l.b16 %v1677
    %v4775 = vunpack.c.h.b16 %v1677
    %v4776 = vunpack.c.l.b16 %v1678
    %v4777 = vunpack.c.h.b16 %v1678
    %v4778 = vunpack.c.l.b16 %v1679
    %v4779 = vunpack.c.h.b16 %v1679
    %v4780 = vunpack.c.l.b16 %v1680
    %v4781 = vunpack.c.h.b16 %v1680
    %v4782 = vunpack.c.l.b16 %v1681
    %v4783 = vunpack.c.h.b16 %v1681
    %v4784 = vunpack.c.l.b16 %v1682
    %v4785 = vunpack.c.h.b16 %v1682
    %v4786 = vunpack.c.l.b16 %v1683
    %v4787 = vunpack.c.h.b16 %v1683
    %v4788 = vunpack.c.l.b16 %v1684
    %v4789 = vunpack.c.h.b16 %v1684
    %v4790 = vunpack.c.l.b16 %v1685
    %v4791 = vunpack.c.h.b16 %v1685
    %v4792 = vunpack.c.l.b16 %v1686
    %v4793 = vunpack.c.h.b16 %v1686
    %v4794 = vunpack.c.l.b16 %v1687
    %v4795 = vunpack.c.h.b16 %v1687
    %v4796 = vunpack.c.l.b16 %v1688
    %v4797 = vunpack.c.h.b16 %v1688
    %v4798 = vunpack.c.l.b16 %v1689
    %v4799 = vunpack.c.h.b16 %v1689
    %v4800 = vunpack.c.l.b16 %v1690
    %v4801 = vunpack.c.h.b16 %v1690
    %v4802 = vunpack.c.l.b16 %v1691
    %v4803 = vunpack.c.h.b16 %v1691
    %v4804 = vunpack.c.l.b16 %v1692
    %v4805 = vunpack.c.h.b16 %v1692
    %v4806 = vunpack.c.l.b16 %v1693
    %v4807 = vunpack.c.h.b16 %v1693
    %v4808 = vunpack.c.l.b16 %v1694
    %v4809 = vunpack.c.h.b16 %v1694
    %v4810 = vunpack.c.l.b16 %v1695
    %v4811 = vunpack.c.h.b16 %v1695
    %v4812 = vunpack.c.l.b16 %v1696
    %v4813 = vunpack.c.h.b16 %v1696
    %v4814 = vunpack.c.l.b16 %v1697
    %v4815 = vunpack.c.h.b16 %v1697
    %v4816 = vunpack.c.l.b16 %v1698
    %v4817 = vunpack.c.h.b16 %v1698
    %v4818 = vunpack.c.l.b16 %v1699
    %v4819 = vunpack.c.h.b16 %v1699
    %v4820 = vunpack.c.l.b16 %v1700
    %v4821 = vunpack.c.h.b16 %v1700
    %v4822 = vunpack.c.l.b16 %v1701
    %v4823 = vunpack.c.h.b16 %v1701
    %v4824 = vunpack.c.l.b16 %v1702
    %v4825 = vunpack.c.h.b16 %v1702
    %v4826 = vunpack.c.l.b16 %v1703
    %v4827 = vunpack.c.h.b16 %v1703
    %v4828 = vunpack.c.l.b16 %v1704
    %v4829 = vunpack.c.h.b16 %v1704
    %v4830 = vunpack.c.l.b16 %v1705
    %v4831 = vunpack.c.h.b16 %v1705
    %v4832 = vunpack.c.l.b16 %v1706
    %v4833 = vunpack.c.h.b16 %v1706
    %v4834 = vunpack.c.l.b16 %v1707
    %v4835 = vunpack.c.h.b16 %v1707
    %v4836 = vunpack.c.l.b16 %v1708
    %v4837 = vunpack.c.h.b16 %v1708
    %v4838 = vunpack.c.l.b16 %v1709
    %v4839 = vunpack.c.h.b16 %v1709
    %v4840 = vunpack.c.l.b16 %v1710
    %v4841 = vunpack.c.h.b16 %v1710
    %v4842 = vunpack.c.l.b16 %v1711
    %v4843 = vunpack.c.h.b16 %v1711
    %v4844 = vunpack.c.l.b16 %v1712
    %v4845 = vunpack.c.h.b16 %v1712
    %v4846 = vunpack.c.l.b16 %v1713
    %v4847 = vunpack.c.h.b16 %v1713
    %v4848 = vunpack.c.l.b16 %v1714
    %v4849 = vunpack.c.h.b16 %v1714
    %v4850 = vunpack.c.l.b16 %v1715
    %v4851 = vunpack.c.h.b16 %v1715
    %v4852 = vunpack.c.l.b16 %v1716
    %v4853 = vunpack.c.h.b16 %v1716
    %v4854 = vunpack.c.l.b16 %v1717
    %v4855 = vunpack.c.h.b16 %v1717
    %v4856 = vunpack.c.l.b16 %v1718
    %v4857 = vunpack.c.h.b16 %v1718
    %v4858 = vunpack.c.l.b16 %v1719
    %v4859 = vunpack.c.h.b16 %v1719
    %v4860 = vunpack.c.l.b16 %v1720
    %v4861 = vunpack.c.h.b16 %v1720
    %v4862 = vunpack.c.l.b16 %v1721
    %v4863 = vunpack.c.h.b16 %v1721
    %v4864 = vunpack.c.l.b16 %v1722
    %v4865 = vunpack.c.h.b16 %v1722
    %v4866 = vunpack.c.l.b16 %v1723
    %v4867 = vunpack.c.h.b16 %v1723
    %v4868 = vunpack.c.l.b16 %v1724
    %v4869 = vunpack.c.h.b16 %v1724
    %v4870 = vunpack.c.l.b16 %v1725
    %v4871 = vunpack.c.h.b16 %v1725
    %v4872 = vunpack.c.l.b16 %v1726
    %v4873 = vunpack.c.h.b16 %v1726
    %v4874 = vunpack.c.l.b16 %v1727
    %v4875 = vunpack.c.h.b16 %v1727
    %v4876 = vunpack.c.l.b16 %v1728
    %v4877 = vunpack.c.h.b16 %v1728
    %v4878 = vunpack.c.l.b16 %v1729
    %v4879 = vunpack.c.h.b16 %v1729
    %v4880 = vunpack.c.l.b16 %v1730
    %v4881 = vunpack.c.h.b16 %v1730
    %v4882 = vunpack.c.l.b16 %v1731
    %v4883 = vunpack.c.h.b16 %v1731
    %v4884 = vunpack.c.l.b16 %v1732
    %v4885 = vunpack.c.h.b16 %v1732
    %v4886 = vunpack.c.l.b16 %v1733
    %v4887 = vunpack.c.h.b16 %v1733
    %v4888 = vunpack.c.l.b16 %v1734
    %v4889 = vunpack.c.h.b16 %v1734
    %v4890 = vunpack.c.l.b16 %v1735
    %v4891 = vunpack.c.h.b16 %v1735
    %v4892 = vunpack.c.l.b16 %v1736
    %v4893 = vunpack.c.h.b16 %v1736
    %v4894 = vunpack.c.l.b16 %v1737
    %v4895 = vunpack.c.h.b16 %v1737
    %v4896 = vunpack.c.l.b16 %v1738
    %v4897 = vunpack.c.h.b16 %v1738
    %v4898 = vunpack.c.l.b16 %v1739
    %v4899 = vunpack.c.h.b16 %v1739
    %v4900 = vunpack.c.l.b16 %v1740
    %v4901 = vunpack.c.h.b16 %v1740
    %v4902 = vunpack.c.l.b16 %v1741
    %v4903 = vunpack.c.h.b16 %v1741
    %v4904 = vunpack.c.l.b16 %v1742
    %v4905 = vunpack.c.h.b16 %v1742
    %v4906 = vunpack.c.l.b16 %v1743
    %v4907 = vunpack.c.h.b16 %v1743
    %v4908 = vunpack.c.l.b16 %v1744
    %v4909 = vunpack.c.h.b16 %v1744
    %v4910 = vunpack.c.l.b16 %v1745
    %v4911 = vunpack.c.h.b16 %v1745
    %v4912 = vunpack.c.l.b16 %v1746
    %v4913 = vunpack.c.h.b16 %v1746
    %v4914 = vunpack.c.l.b16 %v1747
    %v4915 = vunpack.c.h.b16 %v1747
    %v4916 = vunpack.c.l.b16 %v1748
    %v4917 = vunpack.c.h.b16 %v1748
    %v4918 = vunpack.c.l.b16 %v1749
    %v4919 = vunpack.c.h.b16 %v1749
    %v4920 = vunpack.c.l.b16 %v1750
    %v4921 = vunpack.c.h.b16 %v1750
    %v4922 = vunpack.c.l.b16 %v1751
    %v4923 = vunpack.c.h.b16 %v1751
    %v4924 = vunpack.c.l.b16 %v1752
    %v4925 = vunpack.c.h.b16 %v1752
    %v4926 = vunpack.c.l.b16 %v1753
    %v4927 = vunpack.c.h.b16 %v1753
    %v4928 = vunpack.c.l.b16 %v1754
    %v4929 = vunpack.c.h.b16 %v1754
    %v4930 = vunpack.c.l.b16 %v1755
    %v4931 = vunpack.c.h.b16 %v1755
    %v4932 = vunpack.c.l.b16 %v1756
    %v4933 = vunpack.c.h.b16 %v1756
    %v4934 = vunpack.c.l.b16 %v1757
    %v4935 = vunpack.c.h.b16 %v1757
    %v4936 = vunpack.c.l.b16 %v1758
    %v4937 = vunpack.c.h.b16 %v1758
    %v4938 = vunpack.c.l.b16 %v1759
    %v4939 = vunpack.c.h.b16 %v1759
    %v4940 = vunpack.c.l.b16 %v1760
    %v4941 = vunpack.c.h.b16 %v1760
    %v4942 = vunpack.c.l.b16 %v1761
    %v4943 = vunpack.c.h.b16 %v1761
    %v4944 = vunpack.c.l.b16 %v1762
    %v4945 = vunpack.c.h.b16 %v1762
    %v4946 = vunpack.c.l.b16 %v1763
    %v4947 = vunpack.c.h.b16 %v1763
    %v4948 = vunpack.c.l.b16 %v1764
    %v4949 = vunpack.c.h.b16 %v1764
    %v4950 = vunpack.c.l.b16 %v1765
    %v4951 = vunpack.c.h.b16 %v1765
    %v4952 = vunpack.c.l.b16 %v1766
    %v4953 = vunpack.c.h.b16 %v1766
    %v4954 = vunpack.c.l.b16 %v1767
    %v4955 = vunpack.c.h.b16 %v1767
    %v4956 = vunpack.c.l.b16 %v1768
    %v4957 = vunpack.c.h.b16 %v1768
    %v4958 = vunpack.c.l.b16 %v1769
    %v4959 = vunpack.c.h.b16 %v1769
    %v4960 = vunpack.c.l.b16 %v1770
    %v4961 = vunpack.c.h.b16 %v1770
    %v4962 = vunpack.c.l.b16 %v1771
    %v4963 = vunpack.c.h.b16 %v1771
    %v4964 = vunpack.c.l.b16 %v1772
    %v4965 = vunpack.c.h.b16 %v1772
    %v4966 = vunpack.c.l.b16 %v1773
    %v4967 = vunpack.c.h.b16 %v1773
    %v4968 = vunpack.c.l.b16 %v1774
    %v4969 = vunpack.c.h.b16 %v1774
    %v4970 = vunpack.c.l.b16 %v1775
    %v4971 = vunpack.c.h.b16 %v1775
    %v4972 = vunpack.c.l.b16 %v1776
    %v4973 = vunpack.c.h.b16 %v1776
    %v4974 = vunpack.c.l.b16 %v1777
    %v4975 = vunpack.c.h.b16 %v1777
    %v4976 = vunpack.c.l.b16 %v1778
    %v4977 = vunpack.c.h.b16 %v1778
    %v4978 = vunpack.c.l.b16 %v1779
    %v4979 = vunpack.c.h.b16 %v1779
    %v4980 = vunpack.c.l.b16 %v1780
    %v4981 = vunpack.c.h.b16 %v1780
    %v4982 = vunpack.c.l.b16 %v1781
    %v4983 = vunpack.c.h.b16 %v1781
    %v4984 = vunpack.c.l.b16 %v1782
    %v4985 = vunpack.c.h.b16 %v1782
    %v4986 = vunpack.c.l.b16 %v1783
    %v4987 = vunpack.c.h.b16 %v1783
    %v4988 = vunpack.c.l.b16 %v1784
    %v4989 = vunpack.c.h.b16 %v1784
    %v4990 = vunpack.c.l.b16 %v1785
    %v4991 = vunpack.c.h.b16 %v1785
    %v4992 = vunpack.c.l.b16 %v1786
    %v4993 = vunpack.c.h.b16 %v1786
    %v4994 = vunpack.c.l.b16 %v1787
    %v4995 = vunpack.c.h.b16 %v1787
    %v4996 = vunpack.c.l.b16 %v1788
    %v4997 = vunpack.c.h.b16 %v1788
    %v4998 = vunpack.c.l.b16 %v1789
    %v4999 = vunpack.c.h.b16 %v1789
    %v5000 = vunpack.c.l.b16 %v1790
    %v5001 = vunpack.c.h.b16 %v1790
    %v5002 = vunpack.c.l.b16 %v1791
    %v5003 = vunpack.c.h.b16 %v1791
    %v5004 = vunpack.c.l.b16 %v1792
    %v5005 = vunpack.c.h.b16 %v1792
    %v5006 = vunpack.c.l.b16 %v1793
    %v5007 = vunpack.c.h.b16 %v1793
    %v5008 = vunpack.c.l.b16 %v1794
    %v5009 = vunpack.c.h.b16 %v1794
    %v5010 = vunpack.c.l.b16 %v1795
    %v5011 = vunpack.c.h.b16 %v1795
    %v5012 = vunpack.c.l.b16 %v1796
    %v5013 = vunpack.c.h.b16 %v1796
    %v5014 = vunpack.c.l.b16 %v1797
    %v5015 = vunpack.c.h.b16 %v1797
    %v5016 = vunpack.c.l.b16 %v1798
    %v5017 = vunpack.c.h.b16 %v1798
    %v5018 = vunpack.c.l.b16 %v1799
    %v5019 = vunpack.c.h.b16 %v1799
    %v5020 = vunpack.c.l.b16 %v1800
    %v5021 = vunpack.c.h.b16 %v1800
    %v5022 = vunpack.c.l.b16 %v1801
    %v5023 = vunpack.c.h.b16 %v1801
    %v5024 = vunpack.c.l.b16 %v1802
    %v5025 = vunpack.c.h.b16 %v1802
    %v5026 = vunpack.c.l.b16 %v1803
    %v5027 = vunpack.c.h.b16 %v1803
    %v5028 = vunpack.c.l.b16 %v1804
    %v5029 = vunpack.c.h.b16 %v1804
    %v5030 = vunpack.c.l.b16 %v1805
    %v5031 = vunpack.c.h.b16 %v1805
    %v5032 = vunpack.c.l.b16 %v1806
    %v5033 = vunpack.c.h.b16 %v1806
    %v5034 = vunpack.c.l.b16 %v1807
    %v5035 = vunpack.c.h.b16 %v1807
    %v5036 = vunpack.c.l.b16 %v1808
    %v5037 = vunpack.c.h.b16 %v1808
    %v5038 = vunpack.c.l.b16 %v1809
    %v5039 = vunpack.c.h.b16 %v1809
    %v5040 = vunpack.c.l.b16 %v1810
    %v5041 = vunpack.c.h.b16 %v1810
    %v5042 = vunpack.c.l.b16 %v1811
    %v5043 = vunpack.c.h.b16 %v1811
    %v5044 = vunpack.c.l.b16 %v1812
    %v5045 = vunpack.c.h.b16 %v1812
    %v5046 = vunpack.c.l.b16 %v1813
    %v5047 = vunpack.c.h.b16 %v1813
    %v5048 = vunpack.c.l.b16 %v1814
    %v5049 = vunpack.c.h.b16 %v1814
    %v5050 = vunpack.c.l.b16 %v1815
    %v5051 = vunpack.c.h.b16 %v1815
    %v5052 = vunpack.c.l.b16 %v1816
    %v5053 = vunpack.c.h.b16 %v1816
    %v5054 = vunpack.c.l.b16 %v1817
    %v5055 = vunpack.c.h.b16 %v1817
    %v5056 = vunpack.c.l.b16 %v1818
    %v5057 = vunpack.c.h.b16 %v1818
    %v5058 = vunpack.c.l.b16 %v1819
    %v5059 = vunpack.c.h.b16 %v1819
    %v5060 = vunpack.c.l.b16 %v1820
    %v5061 = vunpack.c.h.b16 %v1820
    %v5062 = vunpack.c.l.b16 %v1821
    %v5063 = vunpack.c.h.b16 %v1821
    %v5064 = vunpack.c.l.b16 %v1822
    %v5065 = vunpack.c.h.b16 %v1822
    %v5066 = vunpack.c.l.b16 %v1823
    %v5067 = vunpack.c.h.b16 %v1823
    %v5068 = vunpack.c.l.b16 %v1824
    %v5069 = vunpack.c.h.b16 %v1824
    %v5070 = vunpack.c.l.b16 %v1825
    %v5071 = vunpack.c.h.b16 %v1825
    %v5072 = vunpack.c.l.b16 %v1826
    %v5073 = vunpack.c.h.b16 %v1826
    %v5074 = vunpack.c.l.b16 %v1827
    %v5075 = vunpack.c.h.b16 %v1827
    %v5076 = vunpack.c.l.b16 %v1828
    %v5077 = vunpack.c.h.b16 %v1828
    %v5078 = vunpack.c.l.b16 %v1829
    %v5079 = vunpack.c.h.b16 %v1829
    %v5080 = vunpack.c.l.b16 %v1830
    %v5081 = vunpack.c.h.b16 %v1830
    %v5082 = vunpack.c.l.b16 %v1831
    %v5083 = vunpack.c.h.b16 %v1831
    %v5084 = vunpack.c.l.b16 %v1832
    %v5085 = vunpack.c.h.b16 %v1832
    %v5086 = vunpack.c.l.b16 %v1833
    %v5087 = vunpack.c.h.b16 %v1833
    %v5088 = vunpack.c.l.b16 %v1834
    %v5089 = vunpack.c.h.b16 %v1834
    %v5090 = vunpack.c.l.b16 %v1835
    %v5091 = vunpack.c.h.b16 %v1835
    %v5092 = vunpack.c.l.b16 %v1836
    %v5093 = vunpack.c.h.b16 %v1836
    %v5094 = vunpack.c.l.b16 %v1837
    %v5095 = vunpack.c.h.b16 %v1837
    %v5096 = vunpack.c.l.b16 %v1838
    %v5097 = vunpack.c.h.b16 %v1838
    %v5098 = vunpack.c.l.b16 %v1839
    %v5099 = vunpack.c.h.b16 %v1839
    %v5100 = vunpack.c.l.b16 %v1840
    %v5101 = vunpack.c.h.b16 %v1840
    %v5102 = vunpack.c.l.b16 %v1841
    %v5103 = vunpack.c.h.b16 %v1841
    %v5104 = vunpack.c.l.b16 %v1842
    %v5105 = vunpack.c.h.b16 %v1842
    %v5106 = vunpack.c.l.b16 %v1843
    %v5107 = vunpack.c.h.b16 %v1843
    %v5108 = vunpack.c.l.b16 %v1844
    %v5109 = vunpack.c.h.b16 %v1844
    %v5110 = vunpack.c.l.b16 %v1845
    %v5111 = vunpack.c.h.b16 %v1845
    %v5112 = vunpack.c.l.b16 %v1846
    %v5113 = vunpack.c.h.b16 %v1846
    %v5114 = vunpack.c.l.b16 %v1847
    %v5115 = vunpack.c.h.b16 %v1847
    %v5116 = vunpack.c.l.b16 %v1848
    %v5117 = vunpack.c.h.b16 %v1848
    %v5118 = vunpack.c.l.b16 %v1849
    %v5119 = vunpack.c.h.b16 %v1849
    %v5120 = vunpack.c.l.b16 %v1850
    %v5121 = vunpack.c.h.b16 %v1850
    %v5122 = vunpack.c.l.b16 %v1851
    %v5123 = vunpack.c.h.b16 %v1851
    %v5124 = vunpack.c.l.b16 %v1852
    %v5125 = vunpack.c.h.b16 %v1852
    %v5126 = vunpack.c.l.b16 %v1853
    %v5127 = vunpack.c.h.b16 %v1853
    %v5128 = vunpack.c.l.b16 %v1854
    %v5129 = vunpack.c.h.b16 %v1854
    %v5130 = vunpack.c.l.b16 %v1855
    %v5131 = vunpack.c.h.b16 %v1855
    %v5132 = vunpack.c.l.b16 %v1856
    %v5133 = vunpack.c.h.b16 %v1856
    %v5134 = vunpack.c.l.b16 %v1857
    %v5135 = vunpack.c.h.b16 %v1857
    %v5136 = vunpack.c.l.b16 %v1858
    %v5137 = vunpack.c.h.b16 %v1858
    %v5138 = vunpack.c.l.b16 %v1859
    %v5139 = vunpack.c.h.b16 %v1859
    %v5140 = vunpack.c.l.b16 %v1860
    %v5141 = vunpack.c.h.b16 %v1860
    %v5142 = vunpack.c.l.b16 %v1861
    %v5143 = vunpack.c.h.b16 %v1861
    %v5144 = vunpack.c.l.b16 %v1862
    %v5145 = vunpack.c.h.b16 %v1862
    %v5146 = vunpack.c.l.b16 %v1863
    %v5147 = vunpack.c.h.b16 %v1863
    %v5148 = vunpack.c.l.b16 %v1864
    %v5149 = vunpack.c.h.b16 %v1864
    %v5150 = vunpack.c.l.b16 %v1865
    %v5151 = vunpack.c.h.b16 %v1865
    %v5152 = vunpack.c.l.b16 %v1866
    %v5153 = vunpack.c.h.b16 %v1866
    %v5154 = vunpack.c.l.b16 %v1867
    %v5155 = vunpack.c.h.b16 %v1867
    %v5156 = vunpack.c.l.b16 %v1868
    %v5157 = vunpack.c.h.b16 %v1868
    %v5158 = vunpack.c.l.b16 %v1869
    %v5159 = vunpack.c.h.b16 %v1869
    %v5160 = vunpack.c.l.b16 %v1870
    %v5161 = vunpack.c.h.b16 %v1870
    %v5162 = vunpack.c.l.b16 %v1871
    %v5163 = vunpack.c.h.b16 %v1871
    %v5164 = vunpack.c.l.b16 %v1872
    %v5165 = vunpack.c.h.b16 %v1872
    %v5166 = vunpack.c.l.b16 %v1873
    %v5167 = vunpack.c.h.b16 %v1873
    %v5168 = vunpack.c.l.b16 %v1874
    %v5169 = vunpack.c.h.b16 %v1874
    %v5170 = vunpack.c.l.b16 %v1875
    %v5171 = vunpack.c.h.b16 %v1875
    %v5172 = vunpack.c.l.b16 %v1876
    %v5173 = vunpack.c.h.b16 %v1876
    %v5174 = vunpack.c.l.b16 %v1877
    %v5175 = vunpack.c.h.b16 %v1877
    %v5176 = vunpack.c.l.b16 %v1878
    %v5177 = vunpack.c.h.b16 %v1878
    %v5178 = vunpack.c.l.b16 %v1879
    %v5179 = vunpack.c.h.b16 %v1879
    %v5180 = vunpack.c.l.b16 %v1880
    %v5181 = vunpack.c.h.b16 %v1880
    %v5182 = vunpack.c.l.b16 %v1881
    %v5183 = vunpack.c.h.b16 %v1881
    %v5184 = vunpack.c.l.b16 %v1882
    %v5185 = vunpack.c.h.b16 %v1882
    %v5186 = vunpack.c.l.b16 %v1883
    %v5187 = vunpack.c.h.b16 %v1883
    %v5188 = vunpack.c.l.b16 %v1884
    %v5189 = vunpack.c.h.b16 %v1884
    %v5190 = vunpack.c.l.b16 %v1885
    %v5191 = vunpack.c.h.b16 %v1885
    %v5192 = vpack.c.b16 %v3024, %v3016
    %v5193 = vpack.c.b16 %v3025, %v3017
    %v5194 = vpack.c.b16 %v3026, %v3018
    %v5195 = vpack.c.b16 %v3027, %v3019
    %v5196 = vpack.c.b16 %v3028, %v3020
    %v5197 = vpack.c.b16 %v3029, %v3021
    %v5198 = vpack.c.b16 %v3030, %v3022
    %v5199 = vpack.c.b16 %v3031, %v3023
    %v5200 = vpack.c.b16 %v3040, %v3032
    %v5201 = vpack.c.b16 %v3041, %v3033
    %v5202 = vpack.c.b16 %v3042, %v3034
    %v5203 = vpack.c.b16 %v3043, %v3035
    %v5204 = vpack.c.b16 %v3044, %v3036
    %v5205 = vpack.c.b16 %v3045, %v3037
    %v5206 = vpack.c.b16 %v3046, %v3038
    %v5207 = vpack.c.b16 %v3047, %v3039
    %v5208 = vpack.c.b16 %v3056, %v3048
    %v5209 = vpack.c.b16 %v3057, %v3049
    %v5210 = vpack.c.b16 %v3058, %v3050
    %v5211 = vpack.c.b16 %v3059, %v3051
    %v5212 = vpack.c.b16 %v3060, %v3052
    %v5213 = vpack.c.b16 %v3061, %v3053
    %v5214 = vpack.c.b16 %v3062, %v3054
    %v5215 = vpack.c.b16 %v3063, %v3055
    %v5216 = vpack.c.b16 %v3072, %v3064
    %v5217 = vpack.c.b16 %v3073, %v3065
    %v5218 = vpack.c.b16 %v3074, %v3066
    %v5219 = vpack.c.b16 %v3075, %v3067
    %v5220 = vpack.c.b16 %v3076, %v3068
    %v5221 = vpack.c.b16 %v3077, %v3069
    %v5222 = vpack.c.b16 %v3078, %v3070
    %v5223 = vpack.c.b16 %v3079, %v3071
    %v5224 = vpack.c.b16 %v3088, %v3080
    %v5225 = vpack.c.b16 %v3089, %v3081
    %v5226 = vpack.c.b16 %v3090, %v3082
    %v5227 = vpack.c.b16 %v3091, %v3083
    %v5228 = vpack.c.b16 %v3092, %v3084
    %v5229 = vpack.c.b16 %v3093, %v3085
    %v5230 = vpack.c.b16 %v3094, %v3086
    %v5231 = vpack.c.b16 %v3095, %v3087
    %v5232 = vpack.c.b16 %v3104, %v3096
    %v5233 = vpack.c.b16 %v3105, %v3097
    %v5234 = vpack.c.b16 %v3106, %v3098
    %v5235 = vpack.c.b16 %v3107, %v3099
    %v5236 = vpack.c.b16 %v3108, %v3100
    %v5237 = vpack.c.b16 %v3109, %v3101
    %v5238 = vpack.c.b16 %v3110, %v3102
    %v5239 = vpack.c.b16 %v3111, %v3103
    %v5240 = vpack.c.b16 %v3120, %v3112
    %v5241 = vpack.c.b16 %v3121, %v3113
    %v5242 = vpack.c.b16 %v3122, %v3114
    %v5243 = vpack.c.b16 %v3123, %v3115
    %v5244 = vpack.c.b16 %v3124, %v3116
    %v5245 = vpack.c.b16 %v3125, %v3117
    %v5246 = vpack.c.b16 %v3126, %v3118
    %v5247 = vpack.c.b16 %v3127, %v3119
    %v5248 = vpack.c.b16 %v3136, %v3128
    %v5249 = vpack.c.b16 %v3137, %v3129
    %v5250 = vpack.c.b16 %v3138, %v3130
    %v5251 = vpack.c.b16 %v3139, %v3131
    %v5252 = vpack.c.b16 %v3140, %v3132
    %v5253 = vpack.c.b16 %v3141, %v3133
    %v5254 = vpack.c.b16 %v3142, %v3134
    %v5255 = vpack.c.b16 %v3143, %v3135
    %v5256 = vpack.c.b16 %v3152, %v3144
    %v5257 = vpack.c.b16 %v3153, %v3145
    %v5258 = vpack.c.b16 %v3154, %v3146
    %v5259 = vpack.c.b16 %v3155, %v3147
    %v5260 = vpack.c.b16 %v3156, %v3148
    %v5261 = vpack.c.b16 %v3157, %v3149
    %v5262 = vpack.c.b16 %v3158, %v3150
    %v5263 = vpack.c.b16 %v3159, %v3151
    %v5264 = vpack.c.b16 %v3168, %v3160
    %v5265 = vpack.c.b16 %v3169, %v3161
    %v5266 = vpack.c.b16 %v3170, %v3162
    %v5267 = vpack.c.b16 %v3171, %v3163
    %v5268 = vpack.c.b16 %v3172, %v3164
    %v5269 = vpack.c.b16 %v3173, %v3165
    %v5270 = vpack.c.b16 %v3174, %v3166
    %v5271 = vpack.c.b16 %v3175, %v3167
    %v5272 = vpack.c.b16 %v3184, %v3176
    %v5273 = vpack.c.b16 %v3185, %v3177
    %v5274 = vpack.c.b16 %v3186, %v3178
    %v5275 = vpack.c.b16 %v3187, %v3179
    %v5276 = vpack.c.b16 %v3188, %v3180
    %v5277 = vpack.c.b16 %v3189, %v3181
    %v5278 = vpack.c.b16 %v3190, %v3182
    %v5279 = vpack.c.b16 %v3191, %v3183
    %v5280 = vpack.c.b16 %v3200, %v3192
    %v5281 = vpack.c.b16 %v3201, %v3193
    %v5282 = vpack.c.b16 %v3202, %v3194
    %v5283 = vpack.c.b16 %v3203, %v3195
    %v5284 = vpack.c.b16 %v3204, %v3196
    %v5285 = vpack.c.b16 %v3205, %v3197
    %v5286 = vpack.c.b16 %v3206, %v3198
    %v5287 = vpack.c.b16 %v3207, %v3199
    %v5288 = vpack.c.b16 %v3216, %v3208
    %v5289 = vpack.c.b16 %v3217, %v3209
    %v5290 = vpack.c.b16 %v3218, %v3210
    %v5291 = vpack.c.b16 %v3219, %v3211
    %v5292 = vpack.c.b16 %v3220, %v3212
    %v5293 = vpack.c.b16 %v3221, %v3213
    %v5294 = vpack.c.b16 %v3222, %v3214
    %v5295 = vpack.c.b16 %v3223, %v3215
    %v5296 = vpack.c.b16 %v3232, %v3224
    %v5297 = vpack.c.b16 %v3233, %v3225
    %v5298 = vpack.c.b16 %v3234, %v3226
    %v5299 = vpack.c.b16 %v3235, %v3227
    %v5300 = vpack.c.b16 %v3236, %v3228
    %v5301 = vpack.c.b16 %v3237, %v3229
    %v5302 = vpack.c.b16 %v3238, %v3230
    %v5303 = vpack.c.b16 %v3239, %v3231
    %v5304 = vpack.c.b16 %v3248, %v3240
    %v5305 = vpack.c.b16 %v3249, %v3241
    %v5306 = vpack.c.b16 %v3250, %v3242
    %v5307 = vpack.c.b16 %v3251, %v3243
    %v5308 = vpack.c.b16 %v3252, %v3244
    %v5309 = vpack.c.b16 %v3253, %v3245
    %v5310 = vpack.c.b16 %v3254, %v3246
    %v5311 = vpack.c.b16 %v3255, %v3247
    %v5312 = vpack.c.b16 %v3264, %v3256
    %v5313 = vpack.c.b16 %v3265, %v3257
    %v5314 = vpack.c.b16 %v3266, %v3258
    %v5315 = vpack.c.b16 %v3267, %v3259
    %v5316 = vpack.c.b16 %v3268, %v3260
    %v5317 = vpack.c.b16 %v3269, %v3261
    %v5318 = vpack.c.b16 %v3270, %v3262
    %v5319 = vpack.c.b16 %v3271, %v3263
    %v5320 = vpack.c.b16 %v3280, %v3272
    %v5321 = vpack.c.b16 %v3281, %v3273
    %v5322 = vpack.c.b16 %v3282, %v3274
    %v5323 = vpack.c.b16 %v3283, %v3275
    %v5324 = vpack.c.b16 %v3284, %v3276
    %v5325 = vpack.c.b16 %v3285, %v3277
    %v5326 = vpack.c.b16 %v3286, %v3278
    %v5327 = vpack.c.b16 %v3287, %v3279
    %v5328 = vpack.c.b16 %v3296, %v3288
    %v5329 = vpack.c.b16 %v3297, %v3289
    %v5330 = vpack.c.b16 %v3298, %v3290
    %v5331 = vpack.c.b16 %v3299, %v3291
    %v5332 = vpack.c.b16 %v3300, %v3292
    %v5333 = vpack.c.b16 %v3301, %v3293
    %v5334 = vpack.c.b16 %v3302, %v3294
    %v5335 = vpack.c.b16 %v3303, %v3295
    %v5336 = vpack.c.b16 %v3312, %v3304
    %v5337 = vpack.c.b16 %v3313, %v3305
    %v5338 = vpack.c.b16 %v3314, %v3306
    %v5339 = vpack.c.b16 %v3315, %v3307
    %v5340 = vpack.c.b16 %v3316, %v3308
    %v5341 = vpack.c.b16 %v3317, %v3309
    %v5342 = vpack.c.b16 %v3318, %v3310
    %v5343 = vpack.c.b16 %v3319, %v3311
    %v5344 = vpack.c.b16 %v3328, %v3320
    %v5345 = vpack.c.b16 %v3329, %v3321
    %v5346 = vpack.c.b16 %v3330, %v3322
    %v5347 = vpack.c.b16 %v3331, %v3323
    %v5348 = vpack.c.b16 %v3332, %v3324
    %v5349 = vpack.c.b16 %v3333, %v3325
    %v5350 = vpack.c.b16 %v3334, %v3326
    %v5351 = vpack.c.b16 %v3335, %v3327
    %v5352 = vpack.c.b16 %v3344, %v3336
    %v5353 = vpack.c.b16 %v3345, %v3337
    %v5354 = vpack.c.b16 %v3346, %v3338
    %v5355 = vpack.c.b16 %v3347, %v3339
    %v5356 = vpack.c.b16 %v3348, %v3340
    %v5357 = vpack.c.b16 %v3349, %v3341
    %v5358 = vpack.c.b16 %v3350, %v3342
    %v5359 = vpack.c.b16 %v3351, %v3343
    %v5360 = vpack.c.b16 %v3360, %v3352
    %v5361 = vpack.c.b16 %v3361, %v3353
    %v5362 = vpack.c.b16 %v3362, %v3354
    %v5363 = vpack.c.b16 %v3363, %v3355
    %v5364 = vpack.c.b16 %v3364, %v3356
    %v5365 = vpack.c.b16 %v3365, %v3357
    %v5366 = vpack.c.b16 %v3366, %v3358
    %v5367 = vpack.c.b16 %v3367, %v3359
    %v5368 = vpack.c.b16 %v3376, %v3368
    %v5369 = vpack.c.b16 %v3377, %v3369
    %v5370 = vpack.c.b16 %v3378, %v3370
    %v5371 = vpack.c.b16 %v3379, %v3371
    %v5372 = vpack.c.b16 %v3380, %v3372
    %v5373 = vpack.c.b16 %v3381, %v3373
    %v5374 = vpack.c.b16 %v3382, %v3374
    %v5375 = vpack.c.b16 %v3383, %v3375
    %v5376 = vpack.c.b16 %v3392, %v3384
    %v5377 = vpack.c.b16 %v3393, %v3385
    %v5378 = vpack.c.b16 %v3394, %v3386
    %v5379 = vpack.c.b16 %v3395, %v3387
    %v5380 = vpack.c.b16 %v3396, %v3388
    %v5381 = vpack.c.b16 %v3397, %v3389
    %v5382 = vpack.c.b16 %v3398, %v3390
    %v5383 = vpack.c.b16 %v3399, %v3391
    %v5384 = vpack.c.b16 %v3408, %v3400
    %v5385 = vpack.c.b16 %v3409, %v3401
    %v5386 = vpack.c.b16 %v3410, %v3402
    %v5387 = vpack.c.b16 %v3411, %v3403
    %v5388 = vpack.c.b16 %v3412, %v3404
    %v5389 = vpack.c.b16 %v3413, %v3405
    %v5390 = vpack.c.b16 %v3414, %v3406
    %v5391 = vpack.c.b16 %v3415, %v3407
    %v5392 = vpack.c.b16 %v3424, %v3416
    %v5393 = vpack.c.b16 %v3425, %v3417
    %v5394 = vpack.c.b16 %v3426, %v3418
    %v5395 = vpack.c.b16 %v3427, %v3419
    %v5396 = vpack.c.b16 %v3428, %v3420
    %v5397 = vpack.c.b16 %v3429, %v3421
    %v5398 = vpack.c.b16 %v3430, %v3422
    %v5399 = vpack.c.b16 %v3431, %v3423
    %v5400 = vpack.c.b16 %v3440, %v3432
    %v5401 = vpack.c.b16 %v3441, %v3433
    %v5402 = vpack.c.b16 %v3442, %v3434
    %v5403 = vpack.c.b16 %v3443, %v3435
    %v5404 = vpack.c.b16 %v3444, %v3436
    %v5405 = vpack.c.b16 %v3445, %v3437
    %v5406 = vpack.c.b16 %v3446, %v3438
    %v5407 = vpack.c.b16 %v3447, %v3439
    %v5408 = vpack.c.b16 %v3456, %v3448
    %v5409 = vpack.c.b16 %v3457, %v3449
    %v5410 = vpack.c.b16 %v3458, %v3450
    %v5411 = vpack.c.b16 %v3459, %v3451
    %v5412 = vpack.c.b16 %v3460, %v3452
    %v5413 = vpack.c.b16 %v3461, %v3453
    %v5414 = vpack.c.b16 %v3462, %v3454
    %v5415 = vpack.c.b16 %v3463, %v3455
    %v5416 = vpack.c.b16 %v3472, %v3464
    %v5417 = vpack.c.b16 %v3473, %v3465
    %v5418 = vpack.c.b16 %v3474, %v3466
    %v5419 = vpack.c.b16 %v3475, %v3467
    %v5420 = vpack.c.b16 %v3476, %v3468
    %v5421 = vpack.c.b16 %v3477, %v3469
    %v5422 = vpack.c.b16 %v3478, %v3470
    %v5423 = vpack.c.b16 %v3479, %v3471
    %v5424 = vpack.c.b16 %v3488, %v3480
    %v5425 = vpack.c.b16 %v3489, %v3481
    %v5426 = vpack.c.b16 %v3490, %v3482
    %v5427 = vpack.c.b16 %v3491, %v3483
    %v5428 = vpack.c.b16 %v3492, %v3484
    %v5429 = vpack.c.b16 %v3493, %v3485
    %v5430 = vpack.c.b16 %v3494, %v3486
    %v5431 = vpack.c.b16 %v3495, %v3487
    %v5432 = vpack.c.b16 %v3504, %v3496
    %v5433 = vpack.c.b16 %v3505, %v3497
    %v5434 = vpack.c.b16 %v3506, %v3498
    %v5435 = vpack.c.b16 %v3507, %v3499
    %v5436 = vpack.c.b16 %v3508, %v3500
    %v5437 = vpack.c.b16 %v3509, %v3501
    %v5438 = vpack.c.b16 %v3510, %v3502
    %v5439 = vpack.c.b16 %v3511, %v3503
    %v5440 = vpack.c.b16 %v3520, %v3512
    %v5441 = vpack.c.b16 %v3521, %v3513
    %v5442 = vpack.c.b16 %v3522, %v3514
    %v5443 = vpack.c.b16 %v3523, %v3515
    %v5444 = vpack.c.b16 %v3524, %v3516
    %v5445 = vpack.c.b16 %v3525, %v3517
    %v5446 = vpack.c.b16 %v3526, %v3518
    %v5447 = vpack.c.b16 %v3527, %v3519
    %v5448 = vpack.c.b16 %v3536, %v3528
    %v5449 = vpack.c.b16 %v3537, %v3529
    %v5450 = vpack.c.b16 %v3538, %v3530
    %v5451 = vpack.c.b16 %v3539, %v3531
    %v5452 = vpack.c.b16 %v3540, %v3532
    %v5453 = vpack.c.b16 %v3541, %v3533
    %v5454 = vpack.c.b16 %v3542, %v3534
    %v5455 = vpack.c.b16 %v3543, %v3535
    %v5456 = vpack.c.b16 %v3552, %v3544
    %v5457 = vpack.c.b16 %v3553, %v3545
    %v5458 = vpack.c.b16 %v3554, %v3546
    %v5459 = vpack.c.b16 %v3555, %v3547
    %v5460 = vpack.c.b16 %v3556, %v3548
    %v5461 = vpack.c.b16 %v3557, %v3549
    %v5462 = vpack.c.b16 %v3558, %v3550
    %v5463 = vpack.c.b16 %v3559, %v3551
    %v5464 = vpack.c.b16 %v3568, %v3560
    %v5465 = vpack.c.b16 %v3569, %v3561
    %v5466 = vpack.c.b16 %v3570, %v3562
    %v5467 = vpack.c.b16 %v3571, %v3563
    %v5468 = vpack.c.b16 %v3572, %v3564
    %v5469 = vpack.c.b16 %v3573, %v3565
    %v5470 = vpack.c.b16 %v3574, %v3566
    %v5471 = vpack.c.b16 %v3575, %v3567
    %v5472 = vpack.c.b16 %v3584, %v3576
    %v5473 = vpack.c.b16 %v3585, %v3577
    %v5474 = vpack.c.b16 %v3586, %v3578
    %v5475 = vpack.c.b16 %v3587, %v3579
    %v5476 = vpack.c.b16 %v3588, %v3580
    %v5477 = vpack.c.b16 %v3589, %v3581
    %v5478 = vpack.c.b16 %v3590, %v3582
    %v5479 = vpack.c.b16 %v3591, %v3583
    %v5480 = vpack.c.b16 %v3600, %v3592
    %v5481 = vpack.c.b16 %v3601, %v3593
    %v5482 = vpack.c.b16 %v3602, %v3594
    %v5483 = vpack.c.b16 %v3603, %v3595
    %v5484 = vpack.c.b16 %v3604, %v3596
    %v5485 = vpack.c.b16 %v3605, %v3597
    %v5486 = vpack.c.b16 %v3606, %v3598
    %v5487 = vpack.c.b16 %v3607, %v3599
    %v5488 = vpack.c.b16 %v3616, %v3608
    %v5489 = vpack.c.b16 %v3617, %v3609
    %v5490 = vpack.c.b16 %v3618, %v3610
    %v5491 = vpack.c.b16 %v3619, %v3611
    %v5492 = vpack.c.b16 %v3620, %v3612
    %v5493 = vpack.c.b16 %v3621, %v3613
    %v5494 = vpack.c.b16 %v3622, %v3614
    %v5495 = vpack.c.b16 %v3623, %v3615
    %v5496 = vpack.c.b16 %v3632, %v3624
    %v5497 = vpack.c.b16 %v3633, %v3625
    %v5498 = vpack.c.b16 %v3634, %v3626
    %v5499 = vpack.c.b16 %v3635, %v3627
    %v5500 = vpack.c.b16 %v3636, %v3628
    %v5501 = vpack.c.b16 %v3637, %v3629
    %v5502 = vpack.c.b16 %v3638, %v3630
    %v5503 = vpack.c.b16 %v3639, %v3631
    %v5504 = vpack.c.b16 %v3648, %v3640
    %v5505 = vpack.c.b16 %v3649, %v3641
    %v5506 = vpack.c.b16 %v3650, %v3642
    %v5507 = vpack.c.b16 %v3651, %v3643
    %v5508 = vpack.c.b16 %v3652, %v3644
    %v5509 = vpack.c.b16 %v3653, %v3645
    %v5510 = vpack.c.b16 %v3654, %v3646
    %v5511 = vpack.c.b16 %v3655, %v3647
    %v5512 = vpack.c.b16 %v3664, %v3656
    %v5513 = vpack.c.b16 %v3665, %v3657
    %v5514 = vpack.c.b16 %v3666, %v3658
    %v5515 = vpack.c.b16 %v3667, %v3659
    %v5516 = vpack.c.b16 %v3668, %v3660
    %v5517 = vpack.c.b16 %v3669, %v3661
    %v5518 = vpack.c.b16 %v3670, %v3662
    %v5519 = vpack.c.b16 %v3671, %v3663
    %v5520 = vpack.c.b16 %v3680, %v3672
    %v5521 = vpack.c.b16 %v3681, %v3673
    %v5522 = vpack.c.b16 %v3682, %v3674
    %v5523 = vpack.c.b16 %v3683, %v3675
    %v5524 = vpack.c.b16 %v3684, %v3676
    %v5525 = vpack.c.b16 %v3685, %v3677
    %v5526 = vpack.c.b16 %v3686, %v3678
    %v5527 = vpack.c.b16 %v3687, %v3679
    %v5528 = vpack.c.b16 %v3696, %v3688
    %v5529 = vpack.c.b16 %v3697, %v3689
    %v5530 = vpack.c.b16 %v3698, %v3690
    %v5531 = vpack.c.b16 %v3699, %v3691
    %v5532 = vpack.c.b16 %v3700, %v3692
    %v5533 = vpack.c.b16 %v3701, %v3693
    %v5534 = vpack.c.b16 %v3702, %v3694
    %v5535 = vpack.c.b16 %v3703, %v3695
    %v5536 = vpack.c.b16 %v3712, %v3704
    %v5537 = vpack.c.b16 %v3713, %v3705
    %v5538 = vpack.c.b16 %v3714, %v3706
    %v5539 = vpack.c.b16 %v3715, %v3707
    %v5540 = vpack.c.b16 %v3716, %v3708
    %v5541 = vpack.c.b16 %v3717, %v3709
    %v5542 = vpack.c.b16 %v3718, %v3710
    %v5543 = vpack.c.b16 %v3719, %v3711
    %v5544 = vpack.c.b16 %v3728, %v3720
    %v5545 = vpack.c.b16 %v3729, %v3721
    %v5546 = vpack.c.b16 %v3730, %v3722
    %v5547 = vpack.c.b16 %v3731, %v3723
    %v5548 = vpack.c.b16 %v3732, %v3724
    %v5549 = vpack.c.b16 %v3733, %v3725
    %v5550 = vpack.c.b16 %v3734, %v3726
    %v5551 = vpack.c.b16 %v3735, %v3727
    %v5552 = vpack.c.b16 %v3744, %v3736
    %v5553 = vpack.c.b16 %v3745, %v3737
    %v5554 = vpack.c.b16 %v3746, %v3738
    %v5555 = vpack.c.b16 %v3747, %v3739
    %v5556 = vpack.c.b16 %v3748, %v3740
    %v5557 = vpack.c.b16 %v3749, %v3741
    %v5558 = vpack.c.b16 %v3750, %v3742
    %v5559 = vpack.c.b16 %v3751, %v3743
    %v5560 = vpack.c.b16 %v3760, %v3752
    %v5561 = vpack.c.b16 %v3761, %v3753
    %v5562 = vpack.c.b16 %v3762, %v3754
    %v5563 = vpack.c.b16 %v3763, %v3755
    %v5564 = vpack.c.b16 %v3764, %v3756
    %v5565 = vpack.c.b16 %v3765, %v3757
    %v5566 = vpack.c.b16 %v3766, %v3758
    %v5567 = vpack.c.b16 %v3767, %v3759
    %v5568 = vpack.c.b16 %v3776, %v3768
    %v5569 = vpack.c.b16 %v3777, %v3769
    %v5570 = vpack.c.b16 %v3778, %v3770
    %v5571 = vpack.c.b16 %v3779, %v3771
    %v5572 = vpack.c.b16 %v3780, %v3772
    %v5573 = vpack.c.b16 %v3781, %v3773
    %v5574 = vpack.c.b16 %v3782, %v3774
    %v5575 = vpack.c.b16 %v3783, %v3775
    %v5576 = vpack.c.b16 %v3792, %v3784
    %v5577 = vpack.c.b16 %v3793, %v3785
    %v5578 = vpack.c.b16 %v3794, %v3786
    %v5579 = vpack.c.b16 %v3795, %v3787
    %v5580 = vpack.c.b16 %v3796, %v3788
    %v5581 = vpack.c.b16 %v3797, %v3789
    %v5582 = vpack.c.b16 %v3798, %v3790
    %v5583 = vpack.c.b16 %v3799, %v3791
    %v5584 = vpack.c.b16 %v3808, %v3800
    %v5585 = vpack.c.b16 %v3809, %v3801
    %v5586 = vpack.c.b16 %v3810, %v3802
    %v5587 = vpack.c.b16 %v3811, %v3803
    %v5588 = vpack.c.b16 %v3812, %v3804
    %v5589 = vpack.c.b16 %v3813, %v3805
    %v5590 = vpack.c.b16 %v3814, %v3806
    %v5591 = vpack.c.b16 %v3815, %v3807
    %v5592 = vpack.c.b16 %v3824, %v3816
    %v5593 = vpack.c.b16 %v3825, %v3817
    %v5594 = vpack.c.b16 %v3826, %v3818
    %v5595 = vpack.c.b16 %v3827, %v3819
    %v5596 = vpack.c.b16 %v3828, %v3820
    %v5597 = vpack.c.b16 %v3829, %v3821
    %v5598 = vpack.c.b16 %v3830, %v3822
    %v5599 = vpack.c.b16 %v3831, %v3823
    %v5600 = vpack.c.b16 %v3840, %v3832
    %v5601 = vpack.c.b16 %v3841, %v3833
    %v5602 = vpack.c.b16 %v3842, %v3834
    %v5603 = vpack.c.b16 %v3843, %v3835
    %v5604 = vpack.c.b16 %v3844, %v3836
    %v5605 = vpack.c.b16 %v3845, %v3837
    %v5606 = vpack.c.b16 %v3846, %v3838
    %v5607 = vpack.c.b16 %v3847, %v3839
    %v5608 = vpack.c.b16 %v3856, %v3848
    %v5609 = vpack.c.b16 %v3857, %v3849
    %v5610 = vpack.c.b16 %v3858, %v3850
    %v5611 = vpack.c.b16 %v3859, %v3851
    %v5612 = vpack.c.b16 %v3860, %v3852
    %v5613 = vpack.c.b16 %v3861, %v3853
    %v5614 = vpack.c.b16 %v3862, %v3854
    %v5615 = vpack.c.b16 %v3863, %v3855
    %v5616 = vpack.c.b16 %v3872, %v3864
    %v5617 = vpack.c.b16 %v3873, %v3865
    %v5618 = vpack.c.b16 %v3874, %v3866
    %v5619 = vpack.c.b16 %v3875, %v3867
    %v5620 = vpack.c.b16 %v3876, %v3868
    %v5621 = vpack.c.b16 %v3877, %v3869
    %v5622 = vpack.c.b16 %v3878, %v3870
    %v5623 = vpack.c.b16 %v3879, %v3871
    %v5624 = vpack.c.b16 %v3888, %v3880
    %v5625 = vpack.c.b16 %v3889, %v3881
    %v5626 = vpack.c.b16 %v3890, %v3882
    %v5627 = vpack.c.b16 %v3891, %v3883
    %v5628 = vpack.c.b16 %v3892, %v3884
    %v5629 = vpack.c.b16 %v3893, %v3885
    %v5630 = vpack.c.b16 %v3894, %v3886
    %v5631 = vpack.c.b16 %v3895, %v3887
    %v5632 = vpack.c.b16 %v3904, %v3896
    %v5633 = vpack.c.b16 %v3905, %v3897
    %v5634 = vpack.c.b16 %v3906, %v3898
    %v5635 = vpack.c.b16 %v3907, %v3899
    %v5636 = vpack.c.b16 %v3908, %v3900
    %v5637 = vpack.c.b16 %v3909, %v3901
    %v5638 = vpack.c.b16 %v3910, %v3902
    %v5639 = vpack.c.b16 %v3911, %v3903
    %v5640 = vpack.c.b16 %v3920, %v3912
    %v5641 = vpack.c.b16 %v3921, %v3913
    %v5642 = vpack.c.b16 %v3922, %v3914
    %v5643 = vpack.c.b16 %v3923, %v3915
    %v5644 = vpack.c.b16 %v3924, %v3916
    %v5645 = vpack.c.b16 %v3925, %v3917
    %v5646 = vpack.c.b16 %v3926, %v3918
    %v5647 = vpack.c.b16 %v3927, %v3919
    %v5648 = vpack.c.b16 %v3936, %v3928
    %v5649 = vpack.c.b16 %v3937, %v3929
    %v5650 = vpack.c.b16 %v3938, %v3930
    %v5651 = vpack.c.b16 %v3939, %v3931
    %v5652 = vpack.c.b16 %v3940, %v3932
    %v5653 = vpack.c.b16 %v3941, %v3933
    %v5654 = vpack.c.b16 %v3942, %v3934
    %v5655 = vpack.c.b16 %v3943, %v3935
    %v5656 = vpack.c.b16 %v3952, %v3944
    %v5657 = vpack.c.b16 %v3953, %v3945
    %v5658 = vpack.c.b16 %v3954, %v3946
    %v5659 = vpack.c.b16 %v3955, %v3947
    %v5660 = vpack.c.b16 %v3956, %v3948
    %v5661 = vpack.c.b16 %v3957, %v3949
    %v5662 = vpack.c.b16 %v3958, %v3950
    %v5663 = vpack.c.b16 %v3959, %v3951
    %v5664 = vpack.c.b16 %v3968, %v3960
    %v5665 = vpack.c.b16 %v3969, %v3961
    %v5666 = vpack.c.b16 %v3970, %v3962
    %v5667 = vpack.c.b16 %v3971, %v3963
    %v5668 = vpack.c.b16 %v3972, %v3964
    %v5669 = vpack.c.b16 %v3973, %v3965
    %v5670 = vpack.c.b16 %v3974, %v3966
    %v5671 = vpack.c.b16 %v3975, %v3967
    %v5672 = vpack.c.b16 %v3984, %v3976
    %v5673 = vpack.c.b16 %v3985, %v3977
    %v5674 = vpack.c.b16 %v3986, %v3978
    %v5675 = vpack.c.b16 %v3987, %v3979
    %v5676 = vpack.c.b16 %v3988, %v3980
    %v5677 = vpack.c.b16 %v3989, %v3981
    %v5678 = vpack.c.b16 %v3990, %v3982
    %v5679 = vpack.c.b16 %v3991, %v3983
    %v5680 = vpack.c.b16 %v4000, %v3992
    %v5681 = vpack.c.b16 %v4001, %v3993
    %v5682 = vpack.c.b16 %v4002, %v3994
    %v5683 = vpack.c.b16 %v4003, %v3995
    %v5684 = vpack.c.b16 %v4004, %v3996
    %v5685 = vpack.c.b16 %v4005, %v3997
    %v5686 = vpack.c.b16 %v4006, %v3998
    %v5687 = vpack.c.b16 %v4007, %v3999
    %v5688 = vpack.c.b16 %v4016, %v4008
    %v5689 = vpack.c.b16 %v4017, %v4009
    %v5690 = vpack.c.b16 %v4018, %v4010
    %v5691 = vpack.c.b16 %v4019, %v4011
    %v5692 = vpack.c.b16 %v4020, %v4012
    %v5693 = vpack.c.b16 %v4021, %v4013
    %v5694 = vpack.c.b16 %v4022, %v4014
    %v5695 = vpack.c.b16 %v4023, %v4015
    %v5696 = vpack.c.b16 %v4032, %v4024
    %v5697 = vpack.c.b16 %v4033, %v4025
    %v5698 = vpack.c.b16 %v4034, %v4026
    %v5699 = vpack.c.b16 %v4035, %v4027
    %v5700 = vpack.c.b16 %v4036, %v4028
    %v5701 = vpack.c.b16 %v4037, %v4029
    %v5702 = vpack.c.b16 %v4038, %v4030
    %v5703 = vpack.c.b16 %v4039, %v4031
    %v5704 = vpack.c.b16 %v4048, %v4040
    %v5705 = vpack.c.b16 %v4049, %v4041
    %v5706 = vpack.c.b16 %v4050, %v4042
    %v5707 = vpack.c.b16 %v4051, %v4043
    %v5708 = vpack.c.b16 %v4052, %v4044
    %v5709 = vpack.c.b16 %v4053, %v4045
    %v5710 = vpack.c.b16 %v4054, %v4046
    %v5711 = vpack.c.b16 %v4055, %v4047
    %v5712 = vpack.c.b16 %v4064, %v4056
    %v5713 = vpack.c.b16 %v4065, %v4057
    %v5714 = vpack.c.b16 %v4066, %v4058
    %v5715 = vpack.c.b16 %v4067, %v4059
    %v5716 = vpack.c.b16 %v4068, %v4060
    %v5717 = vpack.c.b16 %v4069, %v4061
    %v5718 = vpack.c.b16 %v4070, %v4062
    %v5719 = vpack.c.b16 %v4071, %v4063
    %v5720 = vpack.c.b16 %v4080, %v4072
    %v5721 = vpack.c.b16 %v4081, %v4073
    %v5722 = vpack.c.b16 %v4082, %v4074
    %v5723 = vpack.c.b16 %v4083, %v4075
    %v5724 = vpack.c.b16 %v4084, %v4076
    %v5725 = vpack.c.b16 %v4085, %v4077
    %v5726 = vpack.c.b16 %v4086, %v4078
    %v5727 = vpack.c.b16 %v4087, %v4079
    %v5728 = vpack.c.b16 %v4096, %v4088
    %v5729 = vpack.c.b16 %v4097, %v4089
    %v5730 = vpack.c.b16 %v4098, %v4090
    %v5731 = vpack.c.b16 %v4099, %v4091
    %v5732 = vpack.c.b16 %v4100, %v4092
    %v5733 = vpack.c.b16 %v4101, %v4093
    %v5734 = vpack.c.b16 %v4102, %v4094
    %v5735 = vpack.c.b16 %v4103, %v4095
    %v5736 = vpack.c.b16 %v4112, %v4104
    %v5737 = vpack.c.b16 %v4113, %v4105
    %v5738 = vpack.c.b16 %v4114, %v4106
    %v5739 = vpack.c.b16 %v4115, %v4107
    %v5740 = vpack.c.b16 %v4116, %v4108
    %v5741 = vpack.c.b16 %v4117, %v4109
    %v5742 = vpack.c.b16 %v4118, %v4110
    %v5743 = vpack.c.b16 %v4119, %v4111
    %v5744 = vpack.c.b16 %v4128, %v4120
    %v5745 = vpack.c.b16 %v4129, %v4121
    %v5746 = vpack.c.b16 %v4130, %v4122
    %v5747 = vpack.c.b16 %v4131, %v4123
    %v5748 = vpack.c.b16 %v4132, %v4124
    %v5749 = vpack.c.b16 %v4133, %v4125
    %v5750 = vpack.c.b16 %v4134, %v4126
    %v5751 = vpack.c.b16 %v4135, %v4127
    %v5752 = vpack.c.b16 %v4144, %v4136
    %v5753 = vpack.c.b16 %v4145, %v4137
    %v5754 = vpack.c.b16 %v4146, %v4138
    %v5755 = vpack.c.b16 %v4147, %v4139
    %v5756 = vpack.c.b16 %v4148, %v4140
    %v5757 = vpack.c.b16 %v4149, %v4141
    %v5758 = vpack.c.b16 %v4150, %v4142
    %v5759 = vpack.c.b16 %v4151, %v4143
    %v5760 = vpack.c.b16 %v4160, %v4152
    %v5761 = vpack.c.b16 %v4161, %v4153
    %v5762 = vpack.c.b16 %v4162, %v4154
    %v5763 = vpack.c.b16 %v4163, %v4155
    %v5764 = vpack.c.b16 %v4164, %v4156
    %v5765 = vpack.c.b16 %v4165, %v4157
    %v5766 = vpack.c.b16 %v4166, %v4158
    %v5767 = vpack.c.b16 %v4167, %v4159
    %v5768 = vpack.c.b16 %v4176, %v4168
    %v5769 = vpack.c.b16 %v4177, %v4169
    %v5770 = vpack.c.b16 %v4178, %v4170
    %v5771 = vpack.c.b16 %v4179, %v4171
    %v5772 = vpack.c.b16 %v4180, %v4172
    %v5773 = vpack.c.b16 %v4181, %v4173
    %v5774 = vpack.c.b16 %v4182, %v4174
    %v5775 = vpack.c.b16 %v4183, %v4175
    %v5776 = vpack.c.b16 %v4192, %v4184
    %v5777 = vpack.c.b16 %v4193, %v4185
    %v5778 = vpack.c.b16 %v4194, %v4186
    %v5779 = vpack.c.b16 %v4195, %v4187
    %v5780 = vpack.c.b16 %v4196, %v4188
    %v5781 = vpack.c.b16 %v4197, %v4189
    %v5782 = vpack.c.b16 %v4198, %v4190
    %v5783 = vpack.c.b16 %v4199, %v4191
    %v5784 = vpack.c.b16 %v4208, %v4200
    %v5785 = vpack.c.b16 %v4209, %v4201
    %v5786 = vpack.c.b16 %v4210, %v4202
    %v5787 = vpack.c.b16 %v4211, %v4203
    %v5788 = vpack.c.b16 %v4212, %v4204
    %v5789 = vpack.c.b16 %v4213, %v4205
    %v5790 = vpack.c.b16 %v4214, %v4206
    %v5791 = vpack.c.b16 %v4215, %v4207
    %v5792 = vpack.c.b16 %v4224, %v4216
    %v5793 = vpack.c.b16 %v4225, %v4217
    %v5794 = vpack.c.b16 %v4226, %v4218
    %v5795 = vpack.c.b16 %v4227, %v4219
    %v5796 = vpack.c.b16 %v4228, %v4220
    %v5797 = vpack.c.b16 %v4229, %v4221
    %v5798 = vpack.c.b16 %v4230, %v4222
    %v5799 = vpack.c.b16 %v4231, %v4223
    %v5800 = vpack.c.b16 %v4240, %v4232
    %v5801 = vpack.c.b16 %v4241, %v4233
    %v5802 = vpack.c.b16 %v4242, %v4234
    %v5803 = vpack.c.b16 %v4243, %v4235
    %v5804 = vpack.c.b16 %v4244, %v4236
    %v5805 = vpack.c.b16 %v4245, %v4237
    %v5806 = vpack.c.b16 %v4246, %v4238
    %v5807 = vpack.c.b16 %v4247, %v4239
    %v5808 = vpack.c.b16 %v4256, %v4248
    %v5809 = vpack.c.b16 %v4257, %v4249
    %v5810 = vpack.c.b16 %v4258, %v4250
    %v5811 = vpack.c.b16 %v4259, %v4251
    %v5812 = vpack.c.b16 %v4260, %v4252
    %v5813 = vpack.c.b16 %v4261, %v4253
    %v5814 = vpack.c.b16 %v4262, %v4254
    %v5815 = vpack.c.b16 %v4263, %v4255
    %v5816 = vpack.c.b16 %v4272, %v4264
    %v5817 = vpack.c.b16 %v4273, %v4265
    %v5818 = vpack.c.b16 %v4274, %v4266
    %v5819 = vpack.c.b16 %v4275, %v4267
    %v5820 = vpack.c.b16 %v4276, %v4268
    %v5821 = vpack.c.b16 %v4277, %v4269
    %v5822 = vpack.c.b16 %v4278, %v4270
    %v5823 = vpack.c.b16 %v4279, %v4271
    %v5824 = vpack.c.b16 %v4288, %v4280
    %v5825 = vpack.c.b16 %v4289, %v4281
    %v5826 = vpack.c.b16 %v4290, %v4282
    %v5827 = vpack.c.b16 %v4291, %v4283
    %v5828 = vpack.c.b16 %v4292, %v4284
    %v5829 = vpack.c.b16 %v4293, %v4285
    %v5830 = vpack.c.b16 %v4294, %v4286
    %v5831 = vpack.c.b16 %v4295, %v4287
    %v5832 = vpack.c.b16 %v4304, %v4296
    %v5833 = vpack.c.b16 %v4305, %v4297
    %v5834 = vpack.c.b16 %v4306, %v4298
    %v5835 = vpack.c.b16 %v4307, %v4299
    %v5836 = vpack.c.b16 %v4308, %v4300
    %v5837 = vpack.c.b16 %v4309, %v4301
    %v5838 = vpack.c.b16 %v4310, %v4302
    %v5839 = vpack.c.b16 %v4311, %v4303
    %v5840 = vpack.c.b16 %v4320, %v4312
    %v5841 = vpack.c.b16 %v4321, %v4313
    %v5842 = vpack.c.b16 %v4322, %v4314
    %v5843 = vpack.c.b16 %v4323, %v4315
    %v5844 = vpack.c.b16 %v4324, %v4316
    %v5845 = vpack.c.b16 %v4325, %v4317
    %v5846 = vpack.c.b16 %v4326, %v4318
    %v5847 = vpack.c.b16 %v4327, %v4319
    %v5848 = vpack.c.b16 %v4336, %v4328
    %v5849 = vpack.c.b16 %v4337, %v4329
    %v5850 = vpack.c.b16 %v4338, %v4330
    %v5851 = vpack.c.b16 %v4339, %v4331
    %v5852 = vpack.c.b16 %v4340, %v4332
    %v5853 = vpack.c.b16 %v4341, %v4333
    %v5854 = vpack.c.b16 %v4342, %v4334
    %v5855 = vpack.c.b16 %v4343, %v4335
    %v5856 = vpack.c.b16 %v4352, %v4344
    %v5857 = vpack.c.b16 %v4353, %v4345
    %v5858 = vpack.c.b16 %v4354, %v4346
    %v5859 = vpack.c.b16 %v4355, %v4347
    %v5860 = vpack.c.b16 %v4356, %v4348
    %v5861 = vpack.c.b16 %v4357, %v4349
    %v5862 = vpack.c.b16 %v4358, %v4350
    %v5863 = vpack.c.b16 %v4359, %v4351
    %v5864 = vpack.c.b16 %v4368, %v4360
    %v5865 = vpack.c.b16 %v4369, %v4361
    %v5866 = vpack.c.b16 %v4370, %v4362
    %v5867 = vpack.c.b16 %v4371, %v4363
    %v5868 = vpack.c.b16 %v4372, %v4364
    %v5869 = vpack.c.b16 %v4373, %v4365
    %v5870 = vpack.c.b16 %v4374, %v4366
    %v5871 = vpack.c.b16 %v4375, %v4367
    %v5872 = vpack.c.b16 %v4384, %v4376
    %v5873 = vpack.c.b16 %v4385, %v4377
    %v5874 = vpack.c.b16 %v4386, %v4378
    %v5875 = vpack.c.b16 %v4387, %v4379
    %v5876 = vpack.c.b16 %v4388, %v4380
    %v5877 = vpack.c.b16 %v4389, %v4381
    %v5878 = vpack.c.b16 %v4390, %v4382
    %v5879 = vpack.c.b16 %v4391, %v4383
    %v5880 = vpack.c.b16 %v4400, %v4392
    %v5881 = vpack.c.b16 %v4401, %v4393
    %v5882 = vpack.c.b16 %v4402, %v4394
    %v5883 = vpack.c.b16 %v4403, %v4395
    %v5884 = vpack.c.b16 %v4404, %v4396
    %v5885 = vpack.c.b16 %v4405, %v4397
    %v5886 = vpack.c.b16 %v4406, %v4398
    %v5887 = vpack.c.b16 %v4407, %v4399
    %v5888 = vpack.c.b16 %v4416, %v4408
    %v5889 = vpack.c.b16 %v4417, %v4409
    %v5890 = vpack.c.b16 %v4418, %v4410
    %v5891 = vpack.c.b16 %v4419, %v4411
    %v5892 = vpack.c.b16 %v4420, %v4412
    %v5893 = vpack.c.b16 %v4421, %v4413
    %v5894 = vpack.c.b16 %v4422, %v4414
    %v5895 = vpack.c.b16 %v4423, %v4415
    %v5896 = vpack.c.b16 %v4432, %v4424
    %v5897 = vpack.c.b16 %v4433, %v4425
    %v5898 = vpack.c.b16 %v4434, %v4426
    %v5899 = vpack.c.b16 %v4435, %v4427
    %v5900 = vpack.c.b16 %v4436, %v4428
    %v5901 = vpack.c.b16 %v4437, %v4429
    %v5902 = vpack.c.b16 %v4438, %v4430
    %v5903 = vpack.c.b16 %v4439, %v4431
    %v5904 = vpack.c.b16 %v4448, %v4440
    %v5905 = vpack.c.b16 %v4449, %v4441
    %v5906 = vpack.c.b16 %v4450, %v4442
    %v5907 = vpack.c.b16 %v4451, %v4443
    %v5908 = vpack.c.b16 %v4452, %v4444
    %v5909 = vpack.c.b16 %v4453, %v4445
    %v5910 = vpack.c.b16 %v4454, %v4446
    %v5911 = vpack.c.b16 %v4455, %v4447
    %v5912 = vpack.c.b16 %v4464, %v4456
    %v5913 = vpack.c.b16 %v4465, %v4457
    %v5914 = vpack.c.b16 %v4466, %v4458
    %v5915 = vpack.c.b16 %v4467, %v4459
    %v5916 = vpack.c.b16 %v4468, %v4460
    %v5917 = vpack.c.b16 %v4469, %v4461
    %v5918 = vpack.c.b16 %v4470, %v4462
    %v5919 = vpack.c.b16 %v4471, %v4463
    %v5920 = vpack.c.b16 %v4480, %v4472
    %v5921 = vpack.c.b16 %v4481, %v4473
    %v5922 = vpack.c.b16 %v4482, %v4474
    %v5923 = vpack.c.b16 %v4483, %v4475
    %v5924 = vpack.c.b16 %v4484, %v4476
    %v5925 = vpack.c.b16 %v4485, %v4477
    %v5926 = vpack.c.b16 %v4486, %v4478
    %v5927 = vpack.c.b16 %v4487, %v4479
    %v5928 = vpack.c.b16 %v4496, %v4488
    %v5929 = vpack.c.b16 %v4497, %v4489
    %v5930 = vpack.c.b16 %v4498, %v4490
    %v5931 = vpack.c.b16 %v4499, %v4491
    %v5932 = vpack.c.b16 %v4500, %v4492
    %v5933 = vpack.c.b16 %v4501, %v4493
    %v5934 = vpack.c.b16 %v4502, %v4494
    %v5935 = vpack.c.b16 %v4503, %v4495
    %v5936 = vpack.c.b16 %v4512, %v4504
    %v5937 = vpack.c.b16 %v4513, %v4505
    %v5938 = vpack.c.b16 %v4514, %v4506
    %v5939 = vpack.c.b16 %v4515, %v4507
    %v5940 = vpack.c.b16 %v4516, %v4508
    %v5941 = vpack.c.b16 %v4517, %v4509
    %v5942 = vpack.c.b16 %v4518, %v4510
    %v5943 = vpack.c.b16 %v4519, %v4511
    %v5944 = vpack.c.b16 %v4528, %v4520
    %v5945 = vpack.c.b16 %v4529, %v4521
    %v5946 = vpack.c.b16 %v4530, %v4522
    %v5947 = vpack.c.b16 %v4531, %v4523
    %v5948 = vpack.c.b16 %v4532, %v4524
    %v5949 = vpack.c.b16 %v4533, %v4525
    %v5950 = vpack.c.b16 %v4534, %v4526
    %v5951 = vpack.c.b16 %v4535, %v4527
    %v5952 = vpack.c.b16 %v4544, %v4536
    %v5953 = vpack.c.b16 %v4545, %v4537
    %v5954 = vpack.c.b16 %v4546, %v4538
    %v5955 = vpack.c.b16 %v4547, %v4539
    %v5956 = vpack.c.b16 %v4548, %v4540
    %v5957 = vpack.c.b16 %v4549, %v4541
    %v5958 = vpack.c.b16 %v4550, %v4542
    %v5959 = vpack.c.b16 %v4551, %v4543
    %v5960 = vpack.c.b16 %v4560, %v4552
    %v5961 = vpack.c.b16 %v4561, %v4553
    %v5962 = vpack.c.b16 %v4562, %v4554
    %v5963 = vpack.c.b16 %v4563, %v4555
    %v5964 = vpack.c.b16 %v4564, %v4556
    %v5965 = vpack.c.b16 %v4565, %v4557
    %v5966 = vpack.c.b16 %v4566, %v4558
    %v5967 = vpack.c.b16 %v4567, %v4559
    %v5968 = vpack.c.b16 %v4576, %v4568
    %v5969 = vpack.c.b16 %v4577, %v4569
    %v5970 = vpack.c.b16 %v4578, %v4570
    %v5971 = vpack.c.b16 %v4579, %v4571
    %v5972 = vpack.c.b16 %v4580, %v4572
    %v5973 = vpack.c.b16 %v4581, %v4573
    %v5974 = vpack.c.b16 %v4582, %v4574
    %v5975 = vpack.c.b16 %v4583, %v4575
    %v5976 = vpack.c.b16 %v4592, %v4584
    %v5977 = vpack.c.b16 %v4593, %v4585
    %v5978 = vpack.c.b16 %v4594, %v4586
    %v5979 = vpack.c.b16 %v4595, %v4587
    %v5980 = vpack.c.b16 %v4596, %v4588
    %v5981 = vpack.c.b16 %v4597, %v4589
    %v5982 = vpack.c.b16 %v4598, %v4590
    %v5983 = vpack.c.b16 %v4599, %v4591
    %v5984 = vpack.c.b16 %v4608, %v4600
    %v5985 = vpack.c.b16 %v4609, %v4601
    %v5986 = vpack.c.b16 %v4610, %v4602
    %v5987 = vpack.c.b16 %v4611, %v4603
    %v5988 = vpack.c.b16 %v4612, %v4604
    %v5989 = vpack.c.b16 %v4613, %v4605
    %v5990 = vpack.c.b16 %v4614, %v4606
    %v5991 = vpack.c.b16 %v4615, %v4607
    %v5992 = vpack.c.b16 %v4624, %v4616
    %v5993 = vpack.c.b16 %v4625, %v4617
    %v5994 = vpack.c.b16 %v4626, %v4618
    %v5995 = vpack.c.b16 %v4627, %v4619
    %v5996 = vpack.c.b16 %v4628, %v4620
    %v5997 = vpack.c.b16 %v4629, %v4621
    %v5998 = vpack.c.b16 %v4630, %v4622
    %v5999 = vpack.c.b16 %v4631, %v4623
    %v6000 = vpack.c.b16 %v4640, %v4632
    %v6001 = vpack.c.b16 %v4641, %v4633
    %v6002 = vpack.c.b16 %v4642, %v4634
    %v6003 = vpack.c.b16 %v4643, %v4635
    %v6004 = vpack.c.b16 %v4644, %v4636
    %v6005 = vpack.c.b16 %v4645, %v4637
    %v6006 = vpack.c.b16 %v4646, %v4638
    %v6007 = vpack.c.b16 %v4647, %v4639
    %v6008 = vpack.c.b16 %v4656, %v4648
    %v6009 = vpack.c.b16 %v4657, %v4649
    %v6010 = vpack.c.b16 %v4658, %v4650
    %v6011 = vpack.c.b16 %v4659, %v4651
    %v6012 = vpack.c.b16 %v4660, %v4652
    %v6013 = vpack.c.b16 %v4661, %v4653
    %v6014 = vpack.c.b16 %v4662, %v4654
    %v6015 = vpack.c.b16 %v4663, %v4655
    %v6016 = vpack.c.b16 %v4672, %v4664
    %v6017 = vpack.c.b16 %v4673, %v4665
    %v6018 = vpack.c.b16 %v4674, %v4666
    %v6019 = vpack.c.b16 %v4675, %v4667
    %v6020 = vpack.c.b16 %v4676, %v4668
    %v6021 = vpack.c.b16 %v4677, %v4669
    %v6022 = vpack.c.b16 %v4678, %v4670
    %v6023 = vpack.c.b16 %v4679, %v4671
    %v6024 = vpack.c.b16 %v4688, %v4680
    %v6025 = vpack.c.b16 %v4689, %v4681
    %v6026 = vpack.c.b16 %v4690, %v4682
    %v6027 = vpack.c.b16 %v4691, %v4683
    %v6028 = vpack.c.b16 %v4692, %v4684
    %v6029 = vpack.c.b16 %v4693, %v4685
    %v6030 = vpack.c.b16 %v4694, %v4686
    %v6031 = vpack.c.b16 %v4695, %v4687
    %v6032 = vpack.c.b16 %v4704, %v4696
    %v6033 = vpack.c.b16 %v4705, %v4697
    %v6034 = vpack.c.b16 %v4706, %v4698
    %v6035 = vpack.c.b16 %v4707, %v4699
    %v6036 = vpack.c.b16 %v4708, %v4700
    %v6037 = vpack.c.b16 %v4709, %v4701
    %v6038 = vpack.c.b16 %v4710, %v4702
    %v6039 = vpack.c.b16 %v4711, %v4703
    %v6040 = vpack.c.b16 %v4720, %v4712
    %v6041 = vpack.c.b16 %v4721, %v4713
    %v6042 = vpack.c.b16 %v4722, %v4714
    %v6043 = vpack.c.b16 %v4723, %v4715
    %v6044 = vpack.c.b16 %v4724, %v4716
    %v6045 = vpack.c.b16 %v4725, %v4717
    %v6046 = vpack.c.b16 %v4726, %v4718
    %v6047 = vpack.c.b16 %v4727, %v4719
    %v6048 = vpack.c.b16 %v4736, %v4728
    %v6049 = vpack.c.b16 %v4737, %v4729
    %v6050 = vpack.c.b16 %v4738, %v4730
    %v6051 = vpack.c.b16 %v4739, %v4731
    %v6052 = vpack.c.b16 %v4740, %v4732
    %v6053 = vpack.c.b16 %v4741, %v4733
    %v6054 = vpack.c.b16 %v4742, %v4734
    %v6055 = vpack.c.b16 %v4743, %v4735
    %v6056 = vpack.c.b16 %v4752, %v4744
    %v6057 = vpack.c.b16 %v4753, %v4745
    %v6058 = vpack.c.b16 %v4754, %v4746
    %v6059 = vpack.c.b16 %v4755, %v4747
    %v6060 = vpack.c.b16 %v4756, %v4748
    %v6061 = vpack.c.b16 %v4757, %v4749
    %v6062 = vpack.c.b16 %v4758, %v4750
    %v6063 = vpack.c.b16 %v4759, %v4751
    %v6064 = vpack.c.b16 %v4768, %v4760
    %v6065 = vpack.c.b16 %v4769, %v4761
    %v6066 = vpack.c.b16 %v4770, %v4762
    %v6067 = vpack.c.b16 %v4771, %v4763
    %v6068 = vpack.c.b16 %v4772, %v4764
    %v6069 = vpack.c.b16 %v4773, %v4765
    %v6070 = vpack.c.b16 %v4774, %v4766
    %v6071 = vpack.c.b16 %v4775, %v4767
    %v6072 = vpack.c.b16 %v4784, %v4776
    %v6073 = vpack.c.b16 %v4785, %v4777
    %v6074 = vpack.c.b16 %v4786, %v4778
    %v6075 = vpack.c.b16 %v4787, %v4779
    %v6076 = vpack.c.b16 %v4788, %v4780
    %v6077 = vpack.c.b16 %v4789, %v4781
    %v6078 = vpack.c.b16 %v4790, %v4782
    %v6079 = vpack.c.b16 %v4791, %v4783
    %v6080 = vpack.c.b16 %v4800, %v4792
    %v6081 = vpack.c.b16 %v4801, %v4793
    %v6082 = vpack.c.b16 %v4802, %v4794
    %v6083 = vpack.c.b16 %v4803, %v4795
    %v6084 = vpack.c.b16 %v4804, %v4796
    %v6085 = vpack.c.b16 %v4805, %v4797
    %v6086 = vpack.c.b16 %v4806, %v4798
    %v6087 = vpack.c.b16 %v4807, %v4799
    %v6088 = vpack.c.b16 %v4816, %v4808
    %v6089 = vpack.c.b16 %v4817, %v4809
    %v6090 = vpack.c.b16 %v4818, %v4810
    %v6091 = vpack.c.b16 %v4819, %v4811
    %v6092 = vpack.c.b16 %v4820, %v4812
    %v6093 = vpack.c.b16 %v4821, %v4813
    %v6094 = vpack.c.b16 %v4822, %v4814
    %v6095 = vpack.c.b16 %v4823, %v4815
    %v6096 = vpack.c.b16 %v4832, %v4824
    %v6097 = vpack.c.b16 %v4833, %v4825
    %v6098 = vpack.c.b16 %v4834, %v4826
    %v6099 = vpack.c.b16 %v4835, %v4827
    %v6100 = vpack.c.b16 %v4836, %v4828
    %v6101 = vpack.c.b16 %v4837, %v4829
    %v6102 = vpack.c.b16 %v4838, %v4830
    %v6103 = vpack.c.b16 %v4839, %v4831
    %v6104 = vpack.c.b16 %v4848, %v4840
    %v6105 = vpack.c.b16 %v4849, %v4841
    %v6106 = vpack.c.b16 %v4850, %v4842
    %v6107 = vpack.c.b16 %v4851, %v4843
    %v6108 = vpack.c.b16 %v4852, %v4844
    %v6109 = vpack.c.b16 %v4853, %v4845
    %v6110 = vpack.c.b16 %v4854, %v4846
    %v6111 = vpack.c.b16 %v4855, %v4847
    %v6112 = vpack.c.b16 %v4864, %v4856
    %v6113 = vpack.c.b16 %v4865, %v4857
    %v6114 = vpack.c.b16 %v4866, %v4858
    %v6115 = vpack.c.b16 %v4867, %v4859
    %v6116 = vpack.c.b16 %v4868, %v4860
    %v6117 = vpack.c.b16 %v4869, %v4861
    %v6118 = vpack.c.b16 %v4870, %v4862
    %v6119 = vpack.c.b16 %v4871, %v4863
    %v6120 = vpack.c.b16 %v4880, %v4872
    %v6121 = vpack.c.b16 %v4881, %v4873
    %v6122 = vpack.c.b16 %v4882, %v4874
    %v6123 = vpack.c.b16 %v4883, %v4875
    %v6124 = vpack.c.b16 %v4884, %v4876
    %v6125 = vpack.c.b16 %v4885, %v4877
    %v6126 = vpack.c.b16 %v4886, %v4878
    %v6127 = vpack.c.b16 %v4887, %v4879
    %v6128 = vpack.c.b16 %v4896, %v4888
    %v6129 = vpack.c.b16 %v4897, %v4889
    %v6130 = vpack.c.b16 %v4898, %v4890
    %v6131 = vpack.c.b16 %v4899, %v4891
    %v6132 = vpack.c.b16 %v4900, %v4892
    %v6133 = vpack.c.b16 %v4901, %v4893
    %v6134 = vpack.c.b16 %v4902, %v4894
    %v6135 = vpack.c.b16 %v4903, %v4895
    %v6136 = vpack.c.b16 %v4912, %v4904
    %v6137 = vpack.c.b16 %v4913, %v4905
    %v6138 = vpack.c.b16 %v4914, %v4906
    %v6139 = vpack.c.b16 %v4915, %v4907
    %v6140 = vpack.c.b16 %v4916, %v4908
    %v6141 = vpack.c.b16 %v4917, %v4909
    %v6142 = vpack.c.b16 %v4918, %v4910
    %v6143 = vpack.c.b16 %v4919, %v4911
    %v6144 = vpack.c.b16 %v4928, %v4920
    %v6145 = vpack.c.b16 %v4929, %v4921
    %v6146 = vpack.c.b16 %v4930, %v4922
    %v6147 = vpack.c.b16 %v4931, %v4923
    %v6148 = vpack.c.b16 %v4932, %v4924
    %v6149 = vpack.c.b16 %v4933, %v4925
    %v6150 = vpack.c.b16 %v4934, %v4926
    %v6151 = vpack.c.b16 %v4935, %v4927
    %v6152 = vpack.c.b16 %v4944, %v4936
    %v6153 = vpack.c.b16 %v4945, %v4937
    %v6154 = vpack.c.b16 %v4946, %v4938
    %v6155 = vpack.c.b16 %v4947, %v4939
    %v6156 = vpack.c.b16 %v4948, %v4940
    %v6157 = vpack.c.b16 %v4949, %v4941
    %v6158 = vpack.c.b16 %v4950, %v4942
    %v6159 = vpack.c.b16 %v4951, %v4943
    %v6160 = vpack.c.b16 %v4960, %v4952
    %v6161 = vpack.c.b16 %v4961, %v4953
    %v6162 = vpack.c.b16 %v4962, %v4954
    %v6163 = vpack.c.b16 %v4963, %v4955
    %v6164 = vpack.c.b16 %v4964, %v4956
    %v6165 = vpack.c.b16 %v4965, %v4957
    %v6166 = vpack.c.b16 %v4966, %v4958
    %v6167 = vpack.c.b16 %v4967, %v4959
    %v6168 = vpack.c.b16 %v4976, %v4968
    %v6169 = vpack.c.b16 %v4977, %v4969
    %v6170 = vpack.c.b16 %v4978, %v4970
    %v6171 = vpack.c.b16 %v4979, %v4971
    %v6172 = vpack.c.b16 %v4980, %v4972
    %v6173 = vpack.c.b16 %v4981, %v4973
    %v6174 = vpack.c.b16 %v4982, %v4974
    %v6175 = vpack.c.b16 %v4983, %v4975
    %v6176 = vpack.c.b16 %v4992, %v4984
    %v6177 = vpack.c.b16 %v4993, %v4985
    %v6178 = vpack.c.b16 %v4994, %v4986
    %v6179 = vpack.c.b16 %v4995, %v4987
    %v6180 = vpack.c.b16 %v4996, %v4988
    %v6181 = vpack.c.b16 %v4997, %v4989
    %v6182 = vpack.c.b16 %v4998, %v4990
    %v6183 = vpack.c.b16 %v4999, %v4991
    %v6184 = vpack.c.b16 %v5008, %v5000
    %v6185 = vpack.c.b16 %v5009, %v5001
    %v6186 = vpack.c.b16 %v5010, %v5002
    %v6187 = vpack.c.b16 %v5011, %v5003
    %v6188 = vpack.c.b16 %v5012, %v5004
    %v6189 = vpack.c.b16 %v5013, %v5005
    %v6190 = vpack.c.b16 %v5014, %v5006
    %v6191 = vpack.c.b16 %v5015, %v5007
    %v6192 = vpack.c.b16 %v5024, %v5016
    %v6193 = vpack.c.b16 %v5025, %v5017
    %v6194 = vpack.c.b16 %v5026, %v5018
    %v6195 = vpack.c.b16 %v5027, %v5019
    %v6196 = vpack.c.b16 %v5028, %v5020
    %v6197 = vpack.c.b16 %v5029, %v5021
    %v6198 = vpack.c.b16 %v5030, %v5022
    %v6199 = vpack.c.b16 %v5031, %v5023
    %v6200 = vpack.c.b16 %v5040, %v5032
    %v6201 = vpack.c.b16 %v5041, %v5033
    %v6202 = vpack.c.b16 %v5042, %v5034
    %v6203 = vpack.c.b16 %v5043, %v5035
    %v6204 = vpack.c.b16 %v5044, %v5036
    %v6205 = vpack.c.b16 %v5045, %v5037
    %v6206 = vpack.c.b16 %v5046, %v5038
    %v6207 = vpack.c.b16 %v5047, %v5039
    %v6208 = vpack.c.b16 %v5056, %v5048
    %v6209 = vpack.c.b16 %v5057, %v5049
    %v6210 = vpack.c.b16 %v5058, %v5050
    %v6211 = vpack.c.b16 %v5059, %v5051
    %v6212 = vpack.c.b16 %v5060, %v5052
    %v6213 = vpack.c.b16 %v5061, %v5053
    %v6214 = vpack.c.b16 %v5062, %v5054
    %v6215 = vpack.c.b16 %v5063, %v5055
    %v6216 = vpack.c.b16 %v5072, %v5064
    %v6217 = vpack.c.b16 %v5073, %v5065
    %v6218 = vpack.c.b16 %v5074, %v5066
    %v6219 = vpack.c.b16 %v5075, %v5067
    %v6220 = vpack.c.b16 %v5076, %v5068
    %v6221 = vpack.c.b16 %v5077, %v5069
    %v6222 = vpack.c.b16 %v5078, %v5070
    %v6223 = vpack.c.b16 %v5079, %v5071
    %v6224 = vpack.c.b16 %v5088, %v5080
    %v6225 = vpack.c.b16 %v5089, %v5081
    %v6226 = vpack.c.b16 %v5090, %v5082
    %v6227 = vpack.c.b16 %v5091, %v5083
    %v6228 = vpack.c.b16 %v5092, %v5084
    %v6229 = vpack.c.b16 %v5093, %v5085
    %v6230 = vpack.c.b16 %v5094, %v5086
    %v6231 = vpack.c.b16 %v5095, %v5087
    %v6232 = vpack.c.b16 %v5104, %v5096
    %v6233 = vpack.c.b16 %v5105, %v5097
    %v6234 = vpack.c.b16 %v5106, %v5098
    %v6235 = vpack.c.b16 %v5107, %v5099
    %v6236 = vpack.c.b16 %v5108, %v5100
    %v6237 = vpack.c.b16 %v5109, %v5101
    %v6238 = vpack.c.b16 %v5110, %v5102
    %v6239 = vpack.c.b16 %v5111, %v5103
    %v6240 = vpack.c.b16 %v5120, %v5112
    %v6241 = vpack.c.b16 %v5121, %v5113
    %v6242 = vpack.c.b16 %v5122, %v5114
    %v6243 = vpack.c.b16 %v5123, %v5115
    %v6244 = vpack.c.b16 %v5124, %v5116
    %v6245 = vpack.c.b16 %v5125, %v5117
    %v6246 = vpack.c.b16 %v5126, %v5118
    %v6247 = vpack.c.b16 %v5127, %v5119
    %v6248 = vpack.c.b16 %v5136, %v5128
    %v6249 = vpack.c.b16 %v5137, %v5129
    %v6250 = vpack.c.b16 %v5138, %v5130
    %v6251 = vpack.c.b16 %v5139, %v5131
    %v6252 = vpack.c.b16 %v5140, %v5132
    %v6253 = vpack.c.b16 %v5141, %v5133
    %v6254 = vpack.c.b16 %v5142, %v5134
    %v6255 = vpack.c.b16 %v5143, %v5135
    %v6256 = vpack.c.b16 %v5152, %v5144
    %v6257 = vpack.c.b16 %v5153, %v5145
    %v6258 = vpack.c.b16 %v5154, %v5146
    %v6259 = vpack.c.b16 %v5155, %v5147
    %v6260 = vpack.c.b16 %v5156, %v5148
    %v6261 = vpack.c.b16 %v5157, %v5149
    %v6262 = vpack.c.b16 %v5158, %v5150
    %v6263 = vpack.c.b16 %v5159, %v5151
    %v6264 = vpack.c.b16 %v5168, %v5160
    %v6265 = vpack.c.b16 %v5169, %v5161
    %v6266 = vpack.c.b16 %v5170, %v5162
    %v6267 = vpack.c.b16 %v5171, %v5163
    %v6268 = vpack.c.b16 %v5172, %v5164
    %v6269 = vpack.c.b16 %v5173, %v5165
    %v6270 = vpack.c.b16 %v5174, %v5166
    %v6271 = vpack.c.b16 %v5175, %v5167
    %v6272 = vpack.c.b16 %v5184, %v5176
    %v6273 = vpack.c.b16 %v5185, %v5177
    %v6274 = vpack.c.b16 %v5186, %v5178
    %v6275 = vpack.c.b16 %v5187, %v5179
    %v6276 = vpack.c.b16 %v5188, %v5180
    %v6277 = vpack.c.b16 %v5189, %v5181
    %v6278 = vpack.c.b16 %v5190, %v5182
    %v6279 = vpack.c.b16 %v5191, %v5183
    %7368 = vmatprep.subr.bf16.mxu0 %v5193
    %7369 = vmatpush1.bf16.msra.mxu0 %v5192
    %7370 = vmatprep.subr.bf16.mxu0 %v5201
    %7371 = vmatpush1.bf16.msra.mxu0 %v5200
    %7372 = vmatprep.subr.bf16.mxu0 %v5209
    %7373 = vmatpush1.bf16.msra.mxu0 %v5208
    %7374 = vmatprep.subr.bf16.mxu0 %v5217
    %7375 = vmatpush1.bf16.msra.mxu0 %v5216
    %7376 = vmatprep.subr.bf16.mxu0 %v5225
    %7377 = vmatpush1.bf16.msra.mxu0 %v5224
    %7378 = vmatprep.subr.bf16.mxu0 %v5233
    %7379 = vmatpush1.bf16.msra.mxu0 %v5232
    %7380 = vmatprep.subr.bf16.mxu0 %v5241
    %7381 = vmatpush1.bf16.msra.mxu0 %v5240
    %7382 = vmatprep.subr.bf16.mxu0 %v5249
    %7383 = vmatpush1.bf16.msra.mxu0 %v5248
    %7384 = vmatprep.subr.bf16.mxu0 %v5257
    %7385 = vmatpush1.bf16.msra.mxu0 %v5256
    %7386 = vmatprep.subr.bf16.mxu0 %v5265
    %7387 = vmatpush1.bf16.msra.mxu0 %v5264
    %7388 = vmatprep.subr.bf16.mxu0 %v5273
    %7389 = vmatpush1.bf16.msra.mxu0 %v5272
    %7390 = vmatprep.subr.bf16.mxu0 %v5281
    %7391 = vmatpush1.bf16.msra.mxu0 %v5280
    %7392 = vmatprep.subr.bf16.mxu0 %v5289
    %7393 = vmatpush1.bf16.msra.mxu0 %v5288
    %7394 = vmatprep.subr.bf16.mxu0 %v5297
    %7395 = vmatpush1.bf16.msra.mxu0 %v5296
    %7396 = vmatprep.subr.bf16.mxu0 %v5305
    %7397 = vmatpush1.bf16.msra.mxu0 %v5304
    %7398 = vmatprep.subr.bf16.mxu0 %v5313
    %7399 = vmatpush1.bf16.msra.mxu0 %v5312
    %7400 = vmatprep.mubr.bf16.mxu0 %v782
    %7401 = vmatmul.mubr.bf16.gmra.mrb[0].mxu0 %v781
    %v7402 = vpop.f32.mrb[0].mxu0
    %v7403 = vadd.f32 %v1891, %v7402
    %v7404 = vpop.f32.mrb[0].mxu0
    %v7405 = vadd.f32 %v1895, %v7404
    %v7406 = vpop.f32.mrb[0].mxu0
    %v7407 = vpop.f32.mrb[0].mxu0
    %7408 = vdwg.mxu0
    %7409 = vmatprep.subr.bf16.mxu0 %v5321
    %7410 = vmatpush1.bf16.msra.mxu0 %v5320
    %7411 = vmatprep.subr.bf16.mxu0 %v5329
    %7412 = vmatpush1.bf16.msra.mxu0 %v5328
    %7413 = vmatprep.subr.bf16.mxu0 %v5337
    %7414 = vmatpush1.bf16.msra.mxu0 %v5336
    %7415 = vmatprep.subr.bf16.mxu0 %v5345
    %7416 = vmatpush1.bf16.msra.mxu0 %v5344
    %7417 = vmatprep.subr.bf16.mxu0 %v5353
    %7418 = vmatpush1.bf16.msra.mxu0 %v5352
    %7419 = vmatprep.subr.bf16.mxu0 %v5361
    %7420 = vmatpush1.bf16.msra.mxu0 %v5360
    %7421 = vmatprep.subr.bf16.mxu0 %v5369
    %7422 = vmatpush1.bf16.msra.mxu0 %v5368
    %7423 = vmatprep.subr.bf16.mxu0 %v5377
    %7424 = vmatpush1.bf16.msra.mxu0 %v5376
    %7425 = vmatprep.subr.bf16.mxu0 %v5385
    %7426 = vmatpush1.bf16.msra.mxu0 %v5384
    %7427 = vmatprep.subr.bf16.mxu0 %v5393
    %7428 = vmatpush1.bf16.msra.mxu0 %v5392
    %7429 = vmatprep.subr.bf16.mxu0 %v5401
    %7430 = vmatpush1.bf16.msra.mxu0 %v5400
    %7431 = vmatprep.subr.bf16.mxu0 %v5409
    %7432 = vmatpush1.bf16.msra.mxu0 %v5408
    %7433 = vmatprep.subr.bf16.mxu0 %v5417
    %7434 = vmatpush1.bf16.msra.mxu0 %v5416
    %7435 = vmatprep.subr.bf16.mxu0 %v5425
    %7436 = vmatpush1.bf16.msra.mxu0 %v5424
    %7437 = vmatprep.subr.bf16.mxu0 %v5433
    %7438 = vmatpush1.bf16.msra.mxu0 %v5432
    %7439 = vmatprep.subr.bf16.mxu0 %v5441
    %7440 = vmatpush1.bf16.msra.mxu0 %v5440
    %7441 = vmatprep.mubr.bf16.mxu0 %v784
    %7442 = vmatmul.mubr.bf16.gmra.mrb[0].mxu0 %v783
    %v7443 = vpop.f32.mrb[0].mxu0
    %v7444 = vadd.f32 %v7403, %v7443
    %v7445 = vpop.f32.mrb[0].mxu0
    %v7446 = vadd.f32 %v7405, %v7445
    %v7447 = vpop.f32.mrb[0].mxu0
    %v7448 = vpop.f32.mrb[0].mxu0
    %7449 = vdwg.mxu0
    %7450 = vmatprep.subr.bf16.mxu0 %v5449
    %7451 = vmatpush1.bf16.msra.mxu0 %v5448
    %7452 = vmatprep.subr.bf16.mxu0 %v5457
    %7453 = vmatpush1.bf16.msra.mxu0 %v5456
    %7454 = vmatprep.subr.bf16.mxu0 %v5465
    %7455 = vmatpush1.bf16.msra.mxu0 %v5464
    %7456 = vmatprep.subr.bf16.mxu0 %v5473
    %7457 = vmatpush1.bf16.msra.mxu0 %v5472
    %7458 = vmatprep.subr.bf16.mxu0 %v5481
    %7459 = vmatpush1.bf16.msra.mxu0 %v5480
    %7460 = vmatprep.subr.bf16.mxu0 %v5489
    %7461 = vmatpush1.bf16.msra.mxu0 %v5488
    %7462 = vmatprep.subr.bf16.mxu0 %v5497
    %7463 = vmatpush1.bf16.msra.mxu0 %v5496
    %7464 = vmatprep.subr.bf16.mxu0 %v5505
    %7465 = vmatpush1.bf16.msra.mxu0 %v5504
    %7466 = vmatprep.subr.bf16.mxu0 %v5513
    %7467 = vmatpush1.bf16.msra.mxu0 %v5512
    %7468 = vmatprep.subr.bf16.mxu0 %v5521
    %7469 = vmatpush1.bf16.msra.mxu0 %v5520
    %7470 = vmatprep.subr.bf16.mxu0 %v5529
    %7471 = vmatpush1.bf16.msra.mxu0 %v5528
    %7472 = vmatprep.subr.bf16.mxu0 %v5537
    %7473 = vmatpush1.bf16.msra.mxu0 %v5536
    %7474 = vmatprep.subr.bf16.mxu0 %v5545
    %7475 = vmatpush1.bf16.msra.mxu0 %v5544
    %7476 = vmatprep.subr.bf16.mxu0 %v5553
    %7477 = vmatpush1.bf16.msra.mxu0 %v5552
    %7478 = vmatprep.subr.bf16.mxu0 %v5561
    %7479 = vmatpush1.bf16.msra.mxu0 %v5560
    %7480 = vmatprep.subr.bf16.mxu0 %v5569
    %7481 = vmatpush1.bf16.msra.mxu0 %v5568
    %7482 = vmatprep.mubr.bf16.mxu0 %v786
    %7483 = vmatmul.mubr.bf16.gmra.mrb[0].mxu0 %v785
    %v7484 = vpop.f32.mrb[0].mxu0
    %v7485 = vadd.f32 %v7444, %v7484
    %v7486 = vpop.f32.mrb[0].mxu0
    %v7487 = vadd.f32 %v7446, %v7486
    %v7488 = vpop.f32.mrb[0].mxu0
    %v7489 = vpop.f32.mrb[0].mxu0
    %7490 = vdwg.mxu0
    %7491 = vmatprep.subr.bf16.mxu0 %v5577
    %7492 = vmatpush1.bf16.msra.mxu0 %v5576
    %7493 = vmatprep.subr.bf16.mxu0 %v5585
    %7494 = vmatpush1.bf16.msra.mxu0 %v5584
    %7495 = vmatprep.subr.bf16.mxu0 %v5593
    %7496 = vmatpush1.bf16.msra.mxu0 %v5592
    %7497 = vmatprep.subr.bf16.mxu0 %v5601
    %7498 = vmatpush1.bf16.msra.mxu0 %v5600
    %7499 = vmatprep.subr.bf16.mxu0 %v5609
    %7500 = vmatpush1.bf16.msra.mxu0 %v5608
    %7501 = vmatprep.subr.bf16.mxu0 %v5617
    %7502 = vmatpush1.bf16.msra.mxu0 %v5616
    %7503 = vmatprep.subr.bf16.mxu0 %v5625
    %7504 = vmatpush1.bf16.msra.mxu0 %v5624
    %7505 = vmatprep.subr.bf16.mxu0 %v5633
    %7506 = vmatpush1.bf16.msra.mxu0 %v5632
    %7507 = vmatprep.subr.bf16.mxu0 %v5641
    %7508 = vmatpush1.bf16.msra.mxu0 %v5640
    %7509 = vmatprep.subr.bf16.mxu0 %v5649
    %7510 = vmatpush1.bf16.msra.mxu0 %v5648
    %7511 = vmatprep.subr.bf16.mxu0 %v5657
    %7512 = vmatpush1.bf16.msra.mxu0 %v5656
    %7513 = vmatprep.subr.bf16.mxu0 %v5665
    %7514 = vmatpush1.bf16.msra.mxu0 %v5664
    %7515 = vmatprep.subr.bf16.mxu0 %v5673
    %7516 = vmatpush1.bf16.msra.mxu0 %v5672
    %7517 = vmatprep.subr.bf16.mxu0 %v5681
    %7518 = vmatpush1.bf16.msra.mxu0 %v5680
    %7519 = vmatprep.subr.bf16.mxu0 %v5689
    %7520 = vmatpush1.bf16.msra.mxu0 %v5688
    %7521 = vmatprep.subr.bf16.mxu0 %v5697
    %7522 = vmatpush1.bf16.msra.mxu0 %v5696
    %7523 = vmatprep.mubr.bf16.mxu0 %v788
    %7524 = vmatmul.mubr.bf16.gmra.mrb[0].mxu0 %v787
    %v7525 = vpop.f32.mrb[0].mxu0
    %v7526 = vadd.f32 %v7485, %v7525
    %v7527 = vpop.f32.mrb[0].mxu0
    %v7528 = vadd.f32 %v7487, %v7527
    %v7529 = vpop.f32.mrb[0].mxu0
    %v7530 = vpop.f32.mrb[0].mxu0
    %7531 = vdwg.mxu0
    %7532 = vmatprep.subr.bf16.mxu0 %v5705
    %7533 = vmatpush1.bf16.msra.mxu0 %v5704
    %7534 = vmatprep.subr.bf16.mxu0 %v5713
    %7535 = vmatpush1.bf16.msra.mxu0 %v5712
    %7536 = vmatprep.subr.bf16.mxu0 %v5721
    %7537 = vmatpush1.bf16.msra.mxu0 %v5720
    %7538 = vmatprep.subr.bf16.mxu0 %v5729
    %7539 = vmatpush1.bf16.msra.mxu0 %v5728
    %7540 = vmatprep.subr.bf16.mxu0 %v5737
    %7541 = vmatpush1.bf16.msra.mxu0 %v5736
    %7542 = vmatprep.subr.bf16.mxu0 %v5745
    %7543 = vmatpush1.bf16.msra.mxu0 %v5744
    %7544 = vmatprep.subr.bf16.mxu0 %v5753
    %7545 = vmatpush1.bf16.msra.mxu0 %v5752
    %7546 = vmatprep.subr.bf16.mxu0 %v5761
    %7547 = vmatpush1.bf16.msra.mxu0 %v5760
    %7548 = vmatprep.subr.bf16.mxu0 %v5769
    %7549 = vmatpush1.bf16.msra.mxu0 %v5768
    %7550 = vmatprep.subr.bf16.mxu0 %v5777
    %7551 = vmatpush1.bf16.msra.mxu0 %v5776
    %7552 = vmatprep.subr.bf16.mxu0 %v5785
    %7553 = vmatpush1.bf16.msra.mxu0 %v5784
    %7554 = vmatprep.subr.bf16.mxu0 %v5793
    %7555 = vmatpush1.bf16.msra.mxu0 %v5792
    %7556 = vmatprep.subr.bf16.mxu0 %v5801
    %7557 = vmatpush1.bf16.msra.mxu0 %v5800
    %7558 = vmatprep.subr.bf16.mxu0 %v5809
    %7559 = vmatpush1.bf16.msra.mxu0 %v5808
    %7560 = vmatprep.subr.bf16.mxu0 %v5817
    %7561 = vmatpush1.bf16.msra.mxu0 %v5816
    %7562 = vmatprep.subr.bf16.mxu0 %v5825
    %7563 = vmatpush1.bf16.msra.mxu0 %v5824
    %7564 = vmatprep.mubr.bf16.mxu0 %v790
    %7565 = vmatmul.mubr.bf16.gmra.mrb[0].mxu0 %v789
    %v7566 = vpop.f32.mrb[0].mxu0
    %v7567 = vadd.f32 %v7526, %v7566
    %v7568 = vpop.f32.mrb[0].mxu0
    %v7569 = vadd.f32 %v7528, %v7568
    %v7570 = vpop.f32.mrb[0].mxu0
    %v7571 = vpop.f32.mrb[0].mxu0
    %7572 = vdwg.mxu0
    %7573 = vmatprep.subr.bf16.mxu0 %v5833
    %7574 = vmatpush1.bf16.msra.mxu0 %v5832
    %7575 = vmatprep.subr.bf16.mxu0 %v5841
    %7576 = vmatpush1.bf16.msra.mxu0 %v5840
    %7577 = vmatprep.subr.bf16.mxu0 %v5849
    %7578 = vmatpush1.bf16.msra.mxu0 %v5848
    %7579 = vmatprep.subr.bf16.mxu0 %v5857
    %7580 = vmatpush1.bf16.msra.mxu0 %v5856
    %7581 = vmatprep.subr.bf16.mxu0 %v5865
    %7582 = vmatpush1.bf16.msra.mxu0 %v5864
    %7583 = vmatprep.subr.bf16.mxu0 %v5873
    %7584 = vmatpush1.bf16.msra.mxu0 %v5872
    %7585 = vmatprep.subr.bf16.mxu0 %v5881
    %7586 = vmatpush1.bf16.msra.mxu0 %v5880
    %7587 = vmatprep.subr.bf16.mxu0 %v5889
    %7588 = vmatpush1.bf16.msra.mxu0 %v5888
    %7589 = vmatprep.subr.bf16.mxu0 %v5897
    %7590 = vmatpush1.bf16.msra.mxu0 %v5896
    %7591 = vmatprep.subr.bf16.mxu0 %v5905
    %7592 = vmatpush1.bf16.msra.mxu0 %v5904
    %7593 = vmatprep.subr.bf16.mxu0 %v5913
    %7594 = vmatpush1.bf16.msra.mxu0 %v5912
    %7595 = vmatprep.subr.bf16.mxu0 %v5921
    %7596 = vmatpush1.bf16.msra.mxu0 %v5920
    %7597 = vmatprep.subr.bf16.mxu0 %v5929
    %7598 = vmatpush1.bf16.msra.mxu0 %v5928
    %7599 = vmatprep.subr.bf16.mxu0 %v5937
    %7600 = vmatpush1.bf16.msra.mxu0 %v5936
    %7601 = vmatprep.subr.bf16.mxu0 %v5945
    %7602 = vmatpush1.bf16.msra.mxu0 %v5944
    %7603 = vmatprep.subr.bf16.mxu0 %v5953
    %7604 = vmatpush1.bf16.msra.mxu0 %v5952
    %7605 = vmatprep.mubr.bf16.mxu0 %v792
    %7606 = vmatmul.mubr.bf16.gmra.mrb[0].mxu0 %v791
    %v7607 = vpop.f32.mrb[0].mxu0
    %v7608 = vadd.f32 %v7567, %v7607
    %v7609 = vpop.f32.mrb[0].mxu0
    %v7610 = vadd.f32 %v7569, %v7609
    %v7611 = vpop.f32.mrb[0].mxu0
    %v7612 = vpop.f32.mrb[0].mxu0
    %7613 = vdwg.mxu0
    %7614 = vmatprep.subr.bf16.mxu0 %v5961
    %7615 = vmatpush1.bf16.msra.mxu0 %v5960
    %7616 = vmatprep.subr.bf16.mxu0 %v5969
    %7617 = vmatpush1.bf16.msra.mxu0 %v5968
    %7618 = vmatprep.subr.bf16.mxu0 %v5977
    %7619 = vmatpush1.bf16.msra.mxu0 %v5976
    %7620 = vmatprep.subr.bf16.mxu0 %v5985
    %7621 = vmatpush1.bf16.msra.mxu0 %v5984
    %7622 = vmatprep.subr.bf16.mxu0 %v5993
    %7623 = vmatpush1.bf16.msra.mxu0 %v5992
    %7624 = vmatprep.subr.bf16.mxu0 %v6001
    %7625 = vmatpush1.bf16.msra.mxu0 %v6000
    %7626 = vmatprep.subr.bf16.mxu0 %v6009
    %7627 = vmatpush1.bf16.msra.mxu0 %v6008
    %7628 = vmatprep.subr.bf16.mxu0 %v6017
    %7629 = vmatpush1.bf16.msra.mxu0 %v6016
    %7630 = vmatprep.subr.bf16.mxu0 %v6025
    %7631 = vmatpush1.bf16.msra.mxu0 %v6024
    %7632 = vmatprep.subr.bf16.mxu0 %v6033
    %7633 = vmatpush1.bf16.msra.mxu0 %v6032
    %7634 = vmatprep.subr.bf16.mxu0 %v6041
    %7635 = vmatpush1.bf16.msra.mxu0 %v6040
    %7636 = vmatprep.subr.bf16.mxu0 %v6049
    %7637 = vmatpush1.bf16.msra.mxu0 %v6048
    %7638 = vmatprep.subr.bf16.mxu0 %v6057
    %7639 = vmatpush1.bf16.msra.mxu0 %v6056
    %7640 = vmatprep.subr.bf16.mxu0 %v6065
    %7641 = vmatpush1.bf16.msra.mxu0 %v6064
    %7642 = vmatprep.subr.bf16.mxu0 %v6073
    %7643 = vmatpush1.bf16.msra.mxu0 %v6072
    %7644 = vmatprep.subr.bf16.mxu0 %v6081
    %7645 = vmatpush1.bf16.msra.mxu0 %v6080
    %7646 = vmatprep.mubr.bf16.mxu0 %v794
    %7647 = vmatmul.mubr.bf16.gmra.mrb[0].mxu0 %v793
    %v7648 = vpop.f32.mrb[0].mxu0
    %v7649 = vadd.f32 %v7608, %v7648
    %v7650 = vpop.f32.mrb[0].mxu0
    %v7651 = vadd.f32 %v7610, %v7650
    %v7652 = vpop.f32.mrb[0].mxu0
    %v7653 = vpop.f32.mrb[0].mxu0
    %7654 = vdwg.mxu0
    %7655 = vmatprep.subr.bf16.mxu0 %v6089
    %7656 = vmatpush1.bf16.msra.mxu0 %v6088
    %7657 = vmatprep.subr.bf16.mxu0 %v6097
    %7658 = vmatpush1.bf16.msra.mxu0 %v6096
    %7659 = vmatprep.subr.bf16.mxu0 %v6105
    %7660 = vmatpush1.bf16.msra.mxu0 %v6104
    %7661 = vmatprep.subr.bf16.mxu0 %v6113
    %7662 = vmatpush1.bf16.msra.mxu0 %v6112
    %7663 = vmatprep.subr.bf16.mxu0 %v6121
    %7664 = vmatpush1.bf16.msra.mxu0 %v6120
    %7665 = vmatprep.subr.bf16.mxu0 %v6129
    %7666 = vmatpush1.bf16.msra.mxu0 %v6128
    %7667 = vmatprep.subr.bf16.mxu0 %v6137
    %7668 = vmatpush1.bf16.msra.mxu0 %v6136
    %7669 = vmatprep.subr.bf16.mxu0 %v6145
    %7670 = vmatpush1.bf16.msra.mxu0 %v6144
    %7671 = vmatprep.subr.bf16.mxu0 %v6153
    %7672 = vmatpush1.bf16.msra.mxu0 %v6152
    %7673 = vmatprep.subr.bf16.mxu0 %v6161
    %7674 = vmatpush1.bf16.msra.mxu0 %v6160
    %7675 = vmatprep.subr.bf16.mxu0 %v6169
    %7676 = vmatpush1.bf16.msra.mxu0 %v6168
    %7677 = vmatprep.subr.bf16.mxu0 %v6177
    %7678 = vmatpush1.bf16.msra.mxu0 %v6176
    %7679 = vmatprep.subr.bf16.mxu0 %v6185
    %7680 = vmatpush1.bf16.msra.mxu0 %v6184
    %7681 = vmatprep.subr.bf16.mxu0 %v6193
    %7682 = vmatpush1.bf16.msra.mxu0 %v6192
    %7683 = vmatprep.subr.bf16.mxu0 %v6201
    %7684 = vmatpush1.bf16.msra.mxu0 %v6200
    %7685 = vmatprep.subr.bf16.mxu0 %v6209
    %7686 = vmatpush1.bf16.msra.mxu0 %v6208
    %7687 = vmatprep.mubr.bf16.mxu0 %v796
    %7688 = vmatmul.mubr.bf16.gmra.mrb[0].mxu0 %v795
    %v7689 = vpop.f32.mrb[0].mxu0
    %v7690 = vadd.f32 %v7649, %v7689
    %v7691 = vpop.f32.mrb[0].mxu0
    %v7692 = vadd.f32 %v7651, %v7691
    %v7693 = vpop.f32.mrb[0].mxu0
    %v7694 = vpop.f32.mrb[0].mxu0
    %7695 = vdwg.mxu0
    %7696 = vmatprep.subr.bf16.mxu0 %v6217
    %7697 = vmatpush1.bf16.msra.mxu0 %v6216
    %7698 = vmatprep.subr.bf16.mxu0 %v6225
    %7699 = vmatpush1.bf16.msra.mxu0 %v6224
    %7700 = vmatprep.subr.bf16.mxu0 %v6233
    %7701 = vmatpush1.bf16.msra.mxu0 %v6232
    %7702 = vmatprep.subr.bf16.mxu0 %v6241
    %7703 = vmatpush1.bf16.msra.mxu0 %v6240
    %7704 = vmatprep.subr.bf16.mxu0 %v6249
    %7705 = vmatpush1.bf16.msra.mxu0 %v6248
    %7706 = vmatprep.subr.bf16.mxu0 %v6257
    %7707 = vmatpush1.bf16.msra.mxu0 %v6256
    %7708 = vmatprep.subr.bf16.mxu0 %v6265
    %7709 = vmatpush1.bf16.msra.mxu0 %v6264
    %7710 = vmatprep.subr.bf16.mxu0 %v6273
    %7711 = vmatpush1.bf16.msra.mxu0 %v6272
    %7712 = vmatprep.subr.bf16.mxu0 0
    %7713 = vmatpush1.bf16.msra.mxu0 0
    %7714 = vmatprep.subr.bf16.mxu0 0
    %7715 = vmatpush1.bf16.msra.mxu0 0
    %7716 = vmatprep.subr.bf16.mxu0 0
    %7717 = vmatpush1.bf16.msra.mxu0 0
    %7718 = vmatprep.subr.bf16.mxu0 0
    %7719 = vmatpush1.bf16.msra.mxu0 0
    %7720 = vmatprep.subr.bf16.mxu0 0
    %7721 = vmatpush1.bf16.msra.mxu0 0
    %7722 = vmatprep.subr.bf16.mxu0 0
    %7723 = vmatpush1.bf16.msra.mxu0 0
    %7724 = vmatprep.subr.bf16.mxu0 0
    %7725 = vmatpush1.bf16.msra.mxu0 0
    %7726 = vmatprep.subr.bf16.mxu0 0
    %7727 = vmatpush1.bf16.msra.mxu0 0
    %7728 = vmatprep.mubr.bf16.mxu0 0
    %7729 = vmatmul.mubr.bf16.gmra.mrb[0].mxu0 %v797
    %v7730 = vpop.f32.mrb[0].mxu0
    %v7731 = vadd.f32 %v7690, %v7730
    %v7732 = vpop.f32.mrb[0].mxu0
    %v7733 = vadd.f32 %v7692, %v7732
    %v7734 = vpop.f32.mrb[0].mxu0
    %v7735 = vpop.f32.mrb[0].mxu0
    %7736 = vdwg.mxu0
    %7737 = vmatprep.subr.bf16.mxu0 %v5195
    %7738 = vmatpush1.bf16.msra.mxu0 %v5194
    %7739 = vmatprep.subr.bf16.mxu0 %v5203
    %7740 = vmatpush1.bf16.msra.mxu0 %v5202
    %7741 = vmatprep.subr.bf16.mxu0 %v5211
    %7742 = vmatpush1.bf16.msra.mxu0 %v5210
    %7743 = vmatprep.subr.bf16.mxu0 %v5219
    %7744 = vmatpush1.bf16.msra.mxu0 %v5218
    %7745 = vmatprep.subr.bf16.mxu0 %v5227
    %7746 = vmatpush1.bf16.msra.mxu0 %v5226
    %7747 = vmatprep.subr.bf16.mxu0 %v5235
    %7748 = vmatpush1.bf16.msra.mxu0 %v5234
    %7749 = vmatprep.subr.bf16.mxu0 %v5243
    %7750 = vmatpush1.bf16.msra.mxu0 %v5242
    %7751 = vmatprep.subr.bf16.mxu0 %v5251
    %7752 = vmatpush1.bf16.msra.mxu0 %v5250
    %7753 = vmatprep.subr.bf16.mxu0 %v5259
    %7754 = vmatpush1.bf16.msra.mxu0 %v5258
    %7755 = vmatprep.subr.bf16.mxu0 %v5267
    %7756 = vmatpush1.bf16.msra.mxu0 %v5266
    %7757 = vmatprep.subr.bf16.mxu0 %v5275
    %7758 = vmatpush1.bf16.msra.mxu0 %v5274
    %7759 = vmatprep.subr.bf16.mxu0 %v5283
    %7760 = vmatpush1.bf16.msra.mxu0 %v5282
    %7761 = vmatprep.subr.bf16.mxu0 %v5291
    %7762 = vmatpush1.bf16.msra.mxu0 %v5290
    %7763 = vmatprep.subr.bf16.mxu0 %v5299
    %7764 = vmatpush1.bf16.msra.mxu0 %v5298
    %7765 = vmatprep.subr.bf16.mxu0 %v5307
    %7766 = vmatpush1.bf16.msra.mxu0 %v5306
    %7767 = vmatprep.subr.bf16.mxu0 %v5315
    %7768 = vmatpush1.bf16.msra.mxu0 %v5314
    %7769 = vmatprep.mubr.bf16.mxu0 %v782
    %7770 = vmatmul.mubr.bf16.gmra.mrb[0].mxu0 %v781
    %v7771 = vpop.f32.mrb[0].mxu0
    %v7772 = vadd.f32 %v1899, %v7771
    %v7773 = vpop.f32.mrb[0].mxu0
    %v7774 = vadd.f32 %v1903, %v7773
    %v7775 = vpop.f32.mrb[0].mxu0
    %v7776 = vpop.f32.mrb[0].mxu0
    %7777 = vdwg.mxu0
    %7778 = vmatprep.subr.bf16.mxu0 %v5323
    %7779 = vmatpush1.bf16.msra.mxu0 %v5322
    %7780 = vmatprep.subr.bf16.mxu0 %v5331
    %7781 = vmatpush1.bf16.msra.mxu0 %v5330
    %7782 = vmatprep.subr.bf16.mxu0 %v5339
    %7783 = vmatpush1.bf16.msra.mxu0 %v5338
    %7784 = vmatprep.subr.bf16.mxu0 %v5347
    %7785 = vmatpush1.bf16.msra.mxu0 %v5346
    %7786 = vmatprep.subr.bf16.mxu0 %v5355
    %7787 = vmatpush1.bf16.msra.mxu0 %v5354
    %7788 = vmatprep.subr.bf16.mxu0 %v5363
    %7789 = vmatpush1.bf16.msra.mxu0 %v5362
    %7790 = vmatprep.subr.bf16.mxu0 %v5371
    %7791 = vmatpush1.bf16.msra.mxu0 %v5370
    %7792 = vmatprep.subr.bf16.mxu0 %v5379
    %7793 = vmatpush1.bf16.msra.mxu0 %v5378
    %7794 = vmatprep.subr.bf16.mxu0 %v5387
    %7795 = vmatpush1.bf16.msra.mxu0 %v5386
    %7796 = vmatprep.subr.bf16.mxu0 %v5395
    %7797 = vmatpush1.bf16.msra.mxu0 %v5394
    %7798 = vmatprep.subr.bf16.mxu0 %v5403
    %7799 = vmatpush1.bf16.msra.mxu0 %v5402
    %7800 = vmatprep.subr.bf16.mxu0 %v5411
    %7801 = vmatpush1.bf16.msra.mxu0 %v5410
    %7802 = vmatprep.subr.bf16.mxu0 %v5419
    %7803 = vmatpush1.bf16.msra.mxu0 %v5418
    %7804 = vmatprep.subr.bf16.mxu0 %v5427
    %7805 = vmatpush1.bf16.msra.mxu0 %v5426
    %7806 = vmatprep.subr.bf16.mxu0 %v5435
    %7807 = vmatpush1.bf16.msra.mxu0 %v5434
    %7808 = vmatprep.subr.bf16.mxu0 %v5443
    %7809 = vmatpush1.bf16.msra.mxu0 %v5442
    %7810 = vmatprep.mubr.bf16.mxu0 %v784
    %7811 = vmatmul.mubr.bf16.gmra.mrb[0].mxu0 %v783
    %v7812 = vpop.f32.mrb[0].mxu0
    %v7813 = vadd.f32 %v7772, %v7812
    %v7814 = vpop.f32.mrb[0].mxu0
    %v7815 = vadd.f32 %v7774, %v7814
    %v7816 = vpop.f32.mrb[0].mxu0
    %v7817 = vpop.f32.mrb[0].mxu0
    %7818 = vdwg.mxu0
    %7819 = vmatprep.subr.bf16.mxu0 %v5451
    %7820 = vmatpush1.bf16.msra.mxu0 %v5450
    %7821 = vmatprep.subr.bf16.mxu0 %v5459
    %7822 = vmatpush1.bf16.msra.mxu0 %v5458
    %7823 = vmatprep.subr.bf16.mxu0 %v5467
    %7824 = vmatpush1.bf16.msra.mxu0 %v5466
    %7825 = vmatprep.subr.bf16.mxu0 %v5475
    %7826 = vmatpush1.bf16.msra.mxu0 %v5474
    %7827 = vmatprep.subr.bf16.mxu0 %v5483
    %7828 = vmatpush1.bf16.msra.mxu0 %v5482
    %7829 = vmatprep.subr.bf16.mxu0 %v5491
    %7830 = vmatpush1.bf16.msra.mxu0 %v5490
    %7831 = vmatprep.subr.bf16.mxu0 %v5499
    %7832 = vmatpush1.bf16.msra.mxu0 %v5498
    %7833 = vmatprep.subr.bf16.mxu0 %v5507
    %7834 = vmatpush1.bf16.msra.mxu0 %v5506
    %7835 = vmatprep.subr.bf16.mxu0 %v5515
    %7836 = vmatpush1.bf16.msra.mxu0 %v5514
    %7837 = vmatprep.subr.bf16.mxu0 %v5523
    %7838 = vmatpush1.bf16.msra.mxu0 %v5522
    %7839 = vmatprep.subr.bf16.mxu0 %v5531
    %7840 = vmatpush1.bf16.msra.mxu0 %v5530
    %7841 = vmatprep.subr.bf16.mxu0 %v5539
    %7842 = vmatpush1.bf16.msra.mxu0 %v5538
    %7843 = vmatprep.subr.bf16.mxu0 %v5547
    %7844 = vmatpush1.bf16.msra.mxu0 %v5546
    %7845 = vmatprep.subr.bf16.mxu0 %v5555
    %7846 = vmatpush1.bf16.msra.mxu0 %v5554
    %7847 = vmatprep.subr.bf16.mxu0 %v5563
    %7848 = vmatpush1.bf16.msra.mxu0 %v5562
    %7849 = vmatprep.subr.bf16.mxu0 %v5571
    %7850 = vmatpush1.bf16.msra.mxu0 %v5570
    %7851 = vmatprep.mubr.bf16.mxu0 %v786
    %7852 = vmatmul.mubr.bf16.gmra.mrb[0].mxu0 %v785
    %v7853 = vpop.f32.mrb[0].mxu0
    %v7854 = vadd.f32 %v7813, %v7853
    %v7855 = vpop.f32.mrb[0].mxu0
    %v7856 = vadd.f32 %v7815, %v7855
    %v7857 = vpop.f32.mrb[0].mxu0
    %v7858 = vpop.f32.mrb[0].mxu0
    %7859 = vdwg.mxu0
    %7860 = vmatprep.subr.bf16.mxu0 %v5579
    %7861 = vmatpush1.bf16.msra.mxu0 %v5578
    %7862 = vmatprep.subr.bf16.mxu0 %v5587
    %7863 = vmatpush1.bf16.msra.mxu0 %v5586
    %7864 = vmatprep.subr.bf16.mxu0 %v5595
    %7865 = vmatpush1.bf16.msra.mxu0 %v5594
    %7866 = vmatprep.subr.bf16.mxu0 %v5603
    %7867 = vmatpush1.bf16.msra.mxu0 %v5602
    %7868 = vmatprep.subr.bf16.mxu0 %v5611
    %7869 = vmatpush1.bf16.msra.mxu0 %v5610
    %7870 = vmatprep.subr.bf16.mxu0 %v5619
    %7871 = vmatpush1.bf16.msra.mxu0 %v5618
    %7872 = vmatprep.subr.bf16.mxu0 %v5627
    %7873 = vmatpush1.bf16.msra.mxu0 %v5626
    %7874 = vmatprep.subr.bf16.mxu0 %v5635
    %7875 = vmatpush1.bf16.msra.mxu0 %v5634
    %7876 = vmatprep.subr.bf16.mxu0 %v5643
    %7877 = vmatpush1.bf16.msra.mxu0 %v5642
    %7878 = vmatprep.subr.bf16.mxu0 %v5651
    %7879 = vmatpush1.bf16.msra.mxu0 %v5650
    %7880 = vmatprep.subr.bf16.mxu0 %v5659
    %7881 = vmatpush1.bf16.msra.mxu0 %v5658
    %7882 = vmatprep.subr.bf16.mxu0 %v5667
    %7883 = vmatpush1.bf16.msra.mxu0 %v5666
    %7884 = vmatprep.subr.bf16.mxu0 %v5675
    %7885 = vmatpush1.bf16.msra.mxu0 %v5674
    %7886 = vmatprep.subr.bf16.mxu0 %v5683
    %7887 = vmatpush1.bf16.msra.mxu0 %v5682
    %7888 = vmatprep.subr.bf16.mxu0 %v5691
    %7889 = vmatpush1.bf16.msra.mxu0 %v5690
    %7890 = vmatprep.subr.bf16.mxu0 %v5699
    %7891 = vmatpush1.bf16.msra.mxu0 %v5698
    %7892 = vmatprep.mubr.bf16.mxu0 %v788
    %7893 = vmatmul.mubr.bf16.gmra.mrb[0].mxu0 %v787
    %v7894 = vpop.f32.mrb[0].mxu0
    %v7895 = vadd.f32 %v7854, %v7894
    %v7896 = vpop.f32.mrb[0].mxu0
    %v7897 = vadd.f32 %v7856, %v7896
    %v7898 = vpop.f32.mrb[0].mxu0
    %v7899 = vpop.f32.mrb[0].mxu0
    %7900 = vdwg.mxu0
    %7901 = vmatprep.subr.bf16.mxu0 %v5707
    %7902 = vmatpush1.bf16.msra.mxu0 %v5706
    %7903 = vmatprep.subr.bf16.mxu0 %v5715
    %7904 = vmatpush1.bf16.msra.mxu0 %v5714
    %7905 = vmatprep.subr.bf16.mxu0 %v5723
    %7906 = vmatpush1.bf16.msra.mxu0 %v5722
    %7907 = vmatprep.subr.bf16.mxu0 %v5731
    %7908 = vmatpush1.bf16.msra.mxu0 %v5730
    %7909 = vmatprep.subr.bf16.mxu0 %v5739
    %7910 = vmatpush1.bf16.msra.mxu0 %v5738
    %7911 = vmatprep.subr.bf16.mxu0 %v5747
    %7912 = vmatpush1.bf16.msra.mxu0 %v5746
    %7913 = vmatprep.subr.bf16.mxu0 %v5755
    %7914 = vmatpush1.bf16.msra.mxu0 %v5754
    %7915 = vmatprep.subr.bf16.mxu0 %v5763
    %7916 = vmatpush1.bf16.msra.mxu0 %v5762
    %7917 = vmatprep.subr.bf16.mxu0 %v5771
    %7918 = vmatpush1.bf16.msra.mxu0 %v5770
    %7919 = vmatprep.subr.bf16.mxu0 %v5779
    %7920 = vmatpush1.bf16.msra.mxu0 %v5778
    %7921 = vmatprep.subr.bf16.mxu0 %v5787
    %7922 = vmatpush1.bf16.msra.mxu0 %v5786
    %7923 = vmatprep.subr.bf16.mxu0 %v5795
    %7924 = vmatpush1.bf16.msra.mxu0 %v5794
    %7925 = vmatprep.subr.bf16.mxu0 %v5803
    %7926 = vmatpush1.bf16.msra.mxu0 %v5802
    %7927 = vmatprep.subr.bf16.mxu0 %v5811
    %7928 = vmatpush1.bf16.msra.mxu0 %v5810
    %7929 = vmatprep.subr.bf16.mxu0 %v5819
    %7930 = vmatpush1.bf16.msra.mxu0 %v5818
    %7931 = vmatprep.subr.bf16.mxu0 %v5827
    %7932 = vmatpush1.bf16.msra.mxu0 %v5826
    %7933 = vmatprep.mubr.bf16.mxu0 %v790
    %7934 = vmatmul.mubr.bf16.gmra.mrb[0].mxu0 %v789
    %v7935 = vpop.f32.mrb[0].mxu0
    %v7936 = vadd.f32 %v7895, %v7935
    %v7937 = vpop.f32.mrb[0].mxu0
    %v7938 = vadd.f32 %v7897, %v7937
    %v7939 = vpop.f32.mrb[0].mxu0
    %v7940 = vpop.f32.mrb[0].mxu0
    %7941 = vdwg.mxu0
    %7942 = vmatprep.subr.bf16.mxu0 %v5835
    %7943 = vmatpush1.bf16.msra.mxu0 %v5834
    %7944 = vmatprep.subr.bf16.mxu0 %v5843
    %7945 = vmatpush1.bf16.msra.mxu0 %v5842
    %7946 = vmatprep.subr.bf16.mxu0 %v5851
    %7947 = vmatpush1.bf16.msra.mxu0 %v5850
    %7948 = vmatprep.subr.bf16.mxu0 %v5859
    %7949 = vmatpush1.bf16.msra.mxu0 %v5858
    %7950 = vmatprep.subr.bf16.mxu0 %v5867
    %7951 = vmatpush1.bf16.msra.mxu0 %v5866
    %7952 = vmatprep.subr.bf16.mxu0 %v5875
    %7953 = vmatpush1.bf16.msra.mxu0 %v5874
    %7954 = vmatprep.subr.bf16.mxu0 %v5883
    %7955 = vmatpush1.bf16.msra.mxu0 %v5882
    %7956 = vmatprep.subr.bf16.mxu0 %v5891
    %7957 = vmatpush1.bf16.msra.mxu0 %v5890
    %7958 = vmatprep.subr.bf16.mxu0 %v5899
    %7959 = vmatpush1.bf16.msra.mxu0 %v5898
    %7960 = vmatprep.subr.bf16.mxu0 %v5907
    %7961 = vmatpush1.bf16.msra.mxu0 %v5906
    %7962 = vmatprep.subr.bf16.mxu0 %v5915
    %7963 = vmatpush1.bf16.msra.mxu0 %v5914
    %7964 = vmatprep.subr.bf16.mxu0 %v5923
    %7965 = vmatpush1.bf16.msra.mxu0 %v5922
    %7966 = vmatprep.subr.bf16.mxu0 %v5931
    %7967 = vmatpush1.bf16.msra.mxu0 %v5930
    %7968 = vmatprep.subr.bf16.mxu0 %v5939
    %7969 = vmatpush1.bf16.msra.mxu0 %v5938
    %7970 = vmatprep.subr.bf16.mxu0 %v5947
    %7971 = vmatpush1.bf16.msra.mxu0 %v5946
    %7972 = vmatprep.subr.bf16.mxu0 %v5955
    %7973 = vmatpush1.bf16.msra.mxu0 %v5954
    %7974 = vmatprep.mubr.bf16.mxu0 %v792
    %7975 = vmatmul.mubr.bf16.gmra.mrb[0].mxu0 %v791
    %v7976 = vpop.f32.mrb[0].mxu0
    %v7977 = vadd.f32 %v7936, %v7976
    %v7978 = vpop.f32.mrb[0].mxu0
    %v7979 = vadd.f32 %v7938, %v7978
    %v7980 = vpop.f32.mrb[0].mxu0
    %v7981 = vpop.f32.mrb[0].mxu0
    %7982 = vdwg.mxu0
    %7983 = vmatprep.subr.bf16.mxu0 %v5963
    %7984 = vmatpush1.bf16.msra.mxu0 %v5962
    %7985 = vmatprep.subr.bf16.mxu0 %v5971
    %7986 = vmatpush1.bf16.msra.mxu0 %v5970
    %7987 = vmatprep.subr.bf16.mxu0 %v5979
    %7988 = vmatpush1.bf16.msra.mxu0 %v5978
    %7989 = vmatprep.subr.bf16.mxu0 %v5987
    %7990 = vmatpush1.bf16.msra.mxu0 %v5986
    %7991 = vmatprep.subr.bf16.mxu0 %v5995
    %7992 = vmatpush1.bf16.msra.mxu0 %v5994
    %7993 = vmatprep.subr.bf16.mxu0 %v6003
    %7994 = vmatpush1.bf16.msra.mxu0 %v6002
    %7995 = vmatprep.subr.bf16.mxu0 %v6011
    %7996 = vmatpush1.bf16.msra.mxu0 %v6010
    %7997 = vmatprep.subr.bf16.mxu0 %v6019
    %7998 = vmatpush1.bf16.msra.mxu0 %v6018
    %7999 = vmatprep.subr.bf16.mxu0 %v6027
    %8000 = vmatpush1.bf16.msra.mxu0 %v6026
    %8001 = vmatprep.subr.bf16.mxu0 %v6035
    %8002 = vmatpush1.bf16.msra.mxu0 %v6034
    %8003 = vmatprep.subr.bf16.mxu0 %v6043
    %8004 = vmatpush1.bf16.msra.mxu0 %v6042
    %8005 = vmatprep.subr.bf16.mxu0 %v6051
    %8006 = vmatpush1.bf16.msra.mxu0 %v6050
    %8007 = vmatprep.subr.bf16.mxu0 %v6059
    %8008 = vmatpush1.bf16.msra.mxu0 %v6058
    %8009 = vmatprep.subr.bf16.mxu0 %v6067
    %8010 = vmatpush1.bf16.msra.mxu0 %v6066
    %8011 = vmatprep.subr.bf16.mxu0 %v6075
    %8012 = vmatpush1.bf16.msra.mxu0 %v6074
    %8013 = vmatprep.subr.bf16.mxu0 %v6083
    %8014 = vmatpush1.bf16.msra.mxu0 %v6082
    %8015 = vmatprep.mubr.bf16.mxu0 %v794
    %8016 = vmatmul.mubr.bf16.gmra.mrb[0].mxu0 %v793
    %v8017 = vpop.f32.mrb[0].mxu0
    %v8018 = vadd.f32 %v7977, %v8017
    %v8019 = vpop.f32.mrb[0].mxu0
    %v8020 = vadd.f32 %v7979, %v8019
    %v8021 = vpop.f32.mrb[0].mxu0
    %v8022 = vpop.f32.mrb[0].mxu0
    %8023 = vdwg.mxu0
    %8024 = vmatprep.subr.bf16.mxu0 %v6091
    %8025 = vmatpush1.bf16.msra.mxu0 %v6090
    %8026 = vmatprep.subr.bf16.mxu0 %v6099
    %8027 = vmatpush1.bf16.msra.mxu0 %v6098
    %8028 = vmatprep.subr.bf16.mxu0 %v6107
    %8029 = vmatpush1.bf16.msra.mxu0 %v6106
    %8030 = vmatprep.subr.bf16.mxu0 %v6115
    %8031 = vmatpush1.bf16.msra.mxu0 %v6114
    %8032 = vmatprep.subr.bf16.mxu0 %v6123
    %8033 = vmatpush1.bf16.msra.mxu0 %v6122
    %8034 = vmatprep.subr.bf16.mxu0 %v6131
    %8035 = vmatpush1.bf16.msra.mxu0 %v6130
    %8036 = vmatprep.subr.bf16.mxu0 %v6139
    %8037 = vmatpush1.bf16.msra.mxu0 %v6138
    %8038 = vmatprep.subr.bf16.mxu0 %v6147
    %8039 = vmatpush1.bf16.msra.mxu0 %v6146
    %8040 = vmatprep.subr.bf16.mxu0 %v6155
    %8041 = vmatpush1.bf16.msra.mxu0 %v6154
    %8042 = vmatprep.subr.bf16.mxu0 %v6163
    %8043 = vmatpush1.bf16.msra.mxu0 %v6162
    %8044 = vmatprep.subr.bf16.mxu0 %v6171
    %8045 = vmatpush1.bf16.msra.mxu0 %v6170
    %8046 = vmatprep.subr.bf16.mxu0 %v6179
    %8047 = vmatpush1.bf16.msra.mxu0 %v6178
    %8048 = vmatprep.subr.bf16.mxu0 %v6187
    %8049 = vmatpush1.bf16.msra.mxu0 %v6186
    %8050 = vmatprep.subr.bf16.mxu0 %v6195
    %8051 = vmatpush1.bf16.msra.mxu0 %v6194
    %8052 = vmatprep.subr.bf16.mxu0 %v6203
    %8053 = vmatpush1.bf16.msra.mxu0 %v6202
    %8054 = vmatprep.subr.bf16.mxu0 %v6211
    %8055 = vmatpush1.bf16.msra.mxu0 %v6210
    %8056 = vmatprep.mubr.bf16.mxu0 %v796
    %8057 = vmatmul.mubr.bf16.gmra.mrb[0].mxu0 %v795
    %v8058 = vpop.f32.mrb[0].mxu0
    %v8059 = vadd.f32 %v8018, %v8058
    %v8060 = vpop.f32.mrb[0].mxu0
    %v8061 = vadd.f32 %v8020, %v8060
    %v8062 = vpop.f32.mrb[0].mxu0
    %v8063 = vpop.f32.mrb[0].mxu0
    %8064 = vdwg.mxu0
    %8065 = vmatprep.subr.bf16.mxu0 %v6219
    %8066 = vmatpush1.bf16.msra.mxu0 %v6218
    %8067 = vmatprep.subr.bf16.mxu0 %v6227
    %8068 = vmatpush1.bf16.msra.mxu0 %v6226
    %8069 = vmatprep.subr.bf16.mxu0 %v6235
    %8070 = vmatpush1.bf16.msra.mxu0 %v6234
    %8071 = vmatprep.subr.bf16.mxu0 %v6243
    %8072 = vmatpush1.bf16.msra.mxu0 %v6242
    %8073 = vmatprep.subr.bf16.mxu0 %v6251
    %8074 = vmatpush1.bf16.msra.mxu0 %v6250
    %8075 = vmatprep.subr.bf16.mxu0 %v6259
    %8076 = vmatpush1.bf16.msra.mxu0 %v6258
    %8077 = vmatprep.subr.bf16.mxu0 %v6267
    %8078 = vmatpush1.bf16.msra.mxu0 %v6266
    %8079 = vmatprep.subr.bf16.mxu0 %v6275
    %8080 = vmatpush1.bf16.msra.mxu0 %v6274
    %8081 = vmatprep.subr.bf16.mxu0 0
    %8082 = vmatpush1.bf16.msra.mxu0 0
    %8083 = vmatprep.subr.bf16.mxu0 0
    %8084 = vmatpush1.bf16.msra.mxu0 0
    %8085 = vmatprep.subr.bf16.mxu0 0
    %8086 = vmatpush1.bf16.msra.mxu0 0
    %8087 = vmatprep.subr.bf16.mxu0 0
    %8088 = vmatpush1.bf16.msra.mxu0 0
    %8089 = vmatprep.subr.bf16.mxu0 0
    %8090 = vmatpush1.bf16.msra.mxu0 0
    %8091 = vmatprep.subr.bf16.mxu0 0
    %8092 = vmatpush1.bf16.msra.mxu0 0
    %8093 = vmatprep.subr.bf16.mxu0 0
    %8094 = vmatpush1.bf16.msra.mxu0 0
    %8095 = vmatprep.subr.bf16.mxu0 0
    %8096 = vmatpush1.bf16.msra.mxu0 0
    %8097 = vmatprep.mubr.bf16.mxu0 0
    %8098 = vmatmul.mubr.bf16.gmra.mrb[0].mxu0 %v797
    %v8099 = vpop.f32.mrb[0].mxu0
    %v8100 = vadd.f32 %v8059, %v8099
    %v8101 = vpop.f32.mrb[0].mxu0
    %v8102 = vadd.f32 %v8061, %v8101
    %v8103 = vpop.f32.mrb[0].mxu0
    %v8104 = vpop.f32.mrb[0].mxu0
    %8105 = vdwg.mxu0
    %8106 = vmatprep.subr.bf16.mxu0 %v5197
    %8107 = vmatpush1.bf16.msra.mxu0 %v5196
    %8108 = vmatprep.subr.bf16.mxu0 %v5205
    %8109 = vmatpush1.bf16.msra.mxu0 %v5204
    %8110 = vmatprep.subr.bf16.mxu0 %v5213
    %8111 = vmatpush1.bf16.msra.mxu0 %v5212
    %8112 = vmatprep.subr.bf16.mxu0 %v5221
    %8113 = vmatpush1.bf16.msra.mxu0 %v5220
    %8114 = vmatprep.subr.bf16.mxu0 %v5229
    %8115 = vmatpush1.bf16.msra.mxu0 %v5228
    %8116 = vmatprep.subr.bf16.mxu0 %v5237
    %8117 = vmatpush1.bf16.msra.mxu0 %v5236
    %8118 = vmatprep.subr.bf16.mxu0 %v5245
    %8119 = vmatpush1.bf16.msra.mxu0 %v5244
    %8120 = vmatprep.subr.bf16.mxu0 %v5253
    %8121 = vmatpush1.bf16.msra.mxu0 %v5252
    %8122 = vmatprep.subr.bf16.mxu0 %v5261
    %8123 = vmatpush1.bf16.msra.mxu0 %v5260
    %8124 = vmatprep.subr.bf16.mxu0 %v5269
    %8125 = vmatpush1.bf16.msra.mxu0 %v5268
    %8126 = vmatprep.subr.bf16.mxu0 %v5277
    %8127 = vmatpush1.bf16.msra.mxu0 %v5276
    %8128 = vmatprep.subr.bf16.mxu0 %v5285
    %8129 = vmatpush1.bf16.msra.mxu0 %v5284
    %8130 = vmatprep.subr.bf16.mxu0 %v5293
    %8131 = vmatpush1.bf16.msra.mxu0 %v5292
    %8132 = vmatprep.subr.bf16.mxu0 %v5301
    %8133 = vmatpush1.bf16.msra.mxu0 %v5300
    %8134 = vmatprep.subr.bf16.mxu0 %v5309
    %8135 = vmatpush1.bf16.msra.mxu0 %v5308
    %8136 = vmatprep.subr.bf16.mxu0 %v5317
    %8137 = vmatpush1.bf16.msra.mxu0 %v5316
    %8138 = vmatprep.mubr.bf16.mxu0 %v782
    %8139 = vmatmul.mubr.bf16.gmra.mrb[0].mxu0 %v781
    %v8140 = vpop.f32.mrb[0].mxu0
    %v8141 = vadd.f32 %v1907, %v8140
    %v8142 = vpop.f32.mrb[0].mxu0
    %v8143 = vadd.f32 %v1911, %v8142
    %v8144 = vpop.f32.mrb[0].mxu0
    %v8145 = vpop.f32.mrb[0].mxu0
    %8146 = vdwg.mxu0
    %8147 = vmatprep.subr.bf16.mxu0 %v5325
    %8148 = vmatpush1.bf16.msra.mxu0 %v5324
    %8149 = vmatprep.subr.bf16.mxu0 %v5333
    %8150 = vmatpush1.bf16.msra.mxu0 %v5332
    %8151 = vmatprep.subr.bf16.mxu0 %v5341
    %8152 = vmatpush1.bf16.msra.mxu0 %v5340
    %8153 = vmatprep.subr.bf16.mxu0 %v5349
    %8154 = vmatpush1.bf16.msra.mxu0 %v5348
    %8155 = vmatprep.subr.bf16.mxu0 %v5357
    %8156 = vmatpush1.bf16.msra.mxu0 %v5356
    %8157 = vmatprep.subr.bf16.mxu0 %v5365
    %8158 = vmatpush1.bf16.msra.mxu0 %v5364
    %8159 = vmatprep.subr.bf16.mxu0 %v5373
    %8160 = vmatpush1.bf16.msra.mxu0 %v5372
    %8161 = vmatprep.subr.bf16.mxu0 %v5381
    %8162 = vmatpush1.bf16.msra.mxu0 %v5380
    %8163 = vmatprep.subr.bf16.mxu0 %v5389
    %8164 = vmatpush1.bf16.msra.mxu0 %v5388
    %8165 = vmatprep.subr.bf16.mxu0 %v5397
    %8166 = vmatpush1.bf16.msra.mxu0 %v5396
    %8167 = vmatprep.subr.bf16.mxu0 %v5405
    %8168 = vmatpush1.bf16.msra.mxu0 %v5404
    %8169 = vmatprep.subr.bf16.mxu0 %v5413
    %8170 = vmatpush1.bf16.msra.mxu0 %v5412
    %8171 = vmatprep.subr.bf16.mxu0 %v5421
    %8172 = vmatpush1.bf16.msra.mxu0 %v5420
    %8173 = vmatprep.subr.bf16.mxu0 %v5429
    %8174 = vmatpush1.bf16.msra.mxu0 %v5428
    %8175 = vmatprep.subr.bf16.mxu0 %v5437
    %8176 = vmatpush1.bf16.msra.mxu0 %v5436
    %8177 = vmatprep.subr.bf16.mxu0 %v5445
    %8178 = vmatpush1.bf16.msra.mxu0 %v5444
    %8179 = vmatprep.mubr.bf16.mxu0 %v784
    %8180 = vmatmul.mubr.bf16.gmra.mrb[0].mxu0 %v783
    %v8181 = vpop.f32.mrb[0].mxu0
    %v8182 = vadd.f32 %v8141, %v8181
    %v8183 = vpop.f32.mrb[0].mxu0
    %v8184 = vadd.f32 %v8143, %v8183
    %v8185 = vpop.f32.mrb[0].mxu0
    %v8186 = vpop.f32.mrb[0].mxu0
    %8187 = vdwg.mxu0
    %8188 = vmatprep.subr.bf16.mxu0 %v5453
    %8189 = vmatpush1.bf16.msra.mxu0 %v5452
    %8190 = vmatprep.subr.bf16.mxu0 %v5461
    %8191 = vmatpush1.bf16.msra.mxu0 %v5460
    %8192 = vmatprep.subr.bf16.mxu0 %v5469
    %8193 = vmatpush1.bf16.msra.mxu0 %v5468
    %8194 = vmatprep.subr.bf16.mxu0 %v5477
    %8195 = vmatpush1.bf16.msra.mxu0 %v5476
    %8196 = vmatprep.subr.bf16.mxu0 %v5485
    %8197 = vmatpush1.bf16.msra.mxu0 %v5484
    %8198 = vmatprep.subr.bf16.mxu0 %v5493
    %8199 = vmatpush1.bf16.msra.mxu0 %v5492
    %8200 = vmatprep.subr.bf16.mxu0 %v5501
    %8201 = vmatpush1.bf16.msra.mxu0 %v5500
    %8202 = vmatprep.subr.bf16.mxu0 %v5509
    %8203 = vmatpush1.bf16.msra.mxu0 %v5508
    %8204 = vmatprep.subr.bf16.mxu0 %v5517
    %8205 = vmatpush1.bf16.msra.mxu0 %v5516
    %8206 = vmatprep.subr.bf16.mxu0 %v5525
    %8207 = vmatpush1.bf16.msra.mxu0 %v5524
    %8208 = vmatprep.subr.bf16.mxu0 %v5533
    %8209 = vmatpush1.bf16.msra.mxu0 %v5532
    %8210 = vmatprep.subr.bf16.mxu0 %v5541
    %8211 = vmatpush1.bf16.msra.mxu0 %v5540
    %8212 = vmatprep.subr.bf16.mxu0 %v5549
    %8213 = vmatpush1.bf16.msra.mxu0 %v5548
    %8214 = vmatprep.subr.bf16.mxu0 %v5557
    %8215 = vmatpush1.bf16.msra.mxu0 %v5556
    %8216 = vmatprep.subr.bf16.mxu0 %v5565
    %8217 = vmatpush1.bf16.msra.mxu0 %v5564
    %8218 = vmatprep.subr.bf16.mxu0 %v5573
    %8219 = vmatpush1.bf16.msra.mxu0 %v5572
    %8220 = vmatprep.mubr.bf16.mxu0 %v786
    %8221 = vmatmul.mubr.bf16.gmra.mrb[0].mxu0 %v785
    %v8222 = vpop.f32.mrb[0].mxu0
    %v8223 = vadd.f32 %v8182, %v8222
    %v8224 = vpop.f32.mrb[0].mxu0
    %v8225 = vadd.f32 %v8184, %v8224
    %v8226 = vpop.f32.mrb[0].mxu0
    %v8227 = vpop.f32.mrb[0].mxu0
    %8228 = vdwg.mxu0
    %8229 = vmatprep.subr.bf16.mxu0 %v5581
    %8230 = vmatpush1.bf16.msra.mxu0 %v5580
    %8231 = vmatprep.subr.bf16.mxu0 %v5589
    %8232 = vmatpush1.bf16.msra.mxu0 %v5588
    %8233 = vmatprep.subr.bf16.mxu0 %v5597
    %8234 = vmatpush1.bf16.msra.mxu0 %v5596
    %8235 = vmatprep.subr.bf16.mxu0 %v5605
    %8236 = vmatpush1.bf16.msra.mxu0 %v5604
    %8237 = vmatprep.subr.bf16.mxu0 %v5613
    %8238 = vmatpush1.bf16.msra.mxu0 %v5612
    %8239 = vmatprep.subr.bf16.mxu0 %v5621
    %8240 = vmatpush1.bf16.msra.mxu0 %v5620
    %8241 = vmatprep.subr.bf16.mxu0 %v5629
    %8242 = vmatpush1.bf16.msra.mxu0 %v5628
    %8243 = vmatprep.subr.bf16.mxu0 %v5637
    %8244 = vmatpush1.bf16.msra.mxu0 %v5636
    %8245 = vmatprep.subr.bf16.mxu0 %v5645
    %8246 = vmatpush1.bf16.msra.mxu0 %v5644
    %8247 = vmatprep.subr.bf16.mxu0 %v5653
    %8248 = vmatpush1.bf16.msra.mxu0 %v5652
    %8249 = vmatprep.subr.bf16.mxu0 %v5661
    %8250 = vmatpush1.bf16.msra.mxu0 %v5660
    %8251 = vmatprep.subr.bf16.mxu0 %v5669
    %8252 = vmatpush1.bf16.msra.mxu0 %v5668
    %8253 = vmatprep.subr.bf16.mxu0 %v5677
    %8254 = vmatpush1.bf16.msra.mxu0 %v5676
    %8255 = vmatprep.subr.bf16.mxu0 %v5685
    %8256 = vmatpush1.bf16.msra.mxu0 %v5684
    %8257 = vmatprep.subr.bf16.mxu0 %v5693
    %8258 = vmatpush1.bf16.msra.mxu0 %v5692
    %8259 = vmatprep.subr.bf16.mxu0 %v5701
    %8260 = vmatpush1.bf16.msra.mxu0 %v5700
    %8261 = vmatprep.mubr.bf16.mxu0 %v788
    %8262 = vmatmul.mubr.bf16.gmra.mrb[0].mxu0 %v787
    %v8263 = vpop.f32.mrb[0].mxu0
    %v8264 = vadd.f32 %v8223, %v8263
    %v8265 = vpop.f32.mrb[0].mxu0
    %v8266 = vadd.f32 %v8225, %v8265
    %v8267 = vpop.f32.mrb[0].mxu0
    %v8268 = vpop.f32.mrb[0].mxu0
    %8269 = vdwg.mxu0
    %8270 = vmatprep.subr.bf16.mxu0 %v5709
    %8271 = vmatpush1.bf16.msra.mxu0 %v5708
    %8272 = vmatprep.subr.bf16.mxu0 %v5717
    %8273 = vmatpush1.bf16.msra.mxu0 %v5716
    %8274 = vmatprep.subr.bf16.mxu0 %v5725
    %8275 = vmatpush1.bf16.msra.mxu0 %v5724
    %8276 = vmatprep.subr.bf16.mxu0 %v5733
    %8277 = vmatpush1.bf16.msra.mxu0 %v5732
    %8278 = vmatprep.subr.bf16.mxu0 %v5741
    %8279 = vmatpush1.bf16.msra.mxu0 %v5740
    %8280 = vmatprep.subr.bf16.mxu0 %v5749
    %8281 = vmatpush1.bf16.msra.mxu0 %v5748
    %8282 = vmatprep.subr.bf16.mxu0 %v5757
    %8283 = vmatpush1.bf16.msra.mxu0 %v5756
    %8284 = vmatprep.subr.bf16.mxu0 %v5765
    %8285 = vmatpush1.bf16.msra.mxu0 %v5764
    %8286 = vmatprep.subr.bf16.mxu0 %v5773
    %8287 = vmatpush1.bf16.msra.mxu0 %v5772
    %8288 = vmatprep.subr.bf16.mxu0 %v5781
    %8289 = vmatpush1.bf16.msra.mxu0 %v5780
    %8290 = vmatprep.subr.bf16.mxu0 %v5789
    %8291 = vmatpush1.bf16.msra.mxu0 %v5788
    %8292 = vmatprep.subr.bf16.mxu0 %v5797
    %8293 = vmatpush1.bf16.msra.mxu0 %v5796
    %8294 = vmatprep.subr.bf16.mxu0 %v5805
    %8295 = vmatpush1.bf16.msra.mxu0 %v5804
    %8296 = vmatprep.subr.bf16.mxu0 %v5813
    %8297 = vmatpush1.bf16.msra.mxu0 %v5812
    %8298 = vmatprep.subr.bf16.mxu0 %v5821
    %8299 = vmatpush1.bf16.msra.mxu0 %v5820
    %8300 = vmatprep.subr.bf16.mxu0 %v5829
    %8301 = vmatpush1.bf16.msra.mxu0 %v5828
    %8302 = vmatprep.mubr.bf16.mxu0 %v790
    %8303 = vmatmul.mubr.bf16.gmra.mrb[0].mxu0 %v789
    %v8304 = vpop.f32.mrb[0].mxu0
    %v8305 = vadd.f32 %v8264, %v8304
    %v8306 = vpop.f32.mrb[0].mxu0
    %v8307 = vadd.f32 %v8266, %v8306
    %v8308 = vpop.f32.mrb[0].mxu0
    %v8309 = vpop.f32.mrb[0].mxu0
    %8310 = vdwg.mxu0
    %8311 = vmatprep.subr.bf16.mxu0 %v5837
    %8312 = vmatpush1.bf16.msra.mxu0 %v5836
    %8313 = vmatprep.subr.bf16.mxu0 %v5845
    %8314 = vmatpush1.bf16.msra.mxu0 %v5844
    %8315 = vmatprep.subr.bf16.mxu0 %v5853
    %8316 = vmatpush1.bf16.msra.mxu0 %v5852
    %8317 = vmatprep.subr.bf16.mxu0 %v5861
    %8318 = vmatpush1.bf16.msra.mxu0 %v5860
    %8319 = vmatprep.subr.bf16.mxu0 %v5869
    %8320 = vmatpush1.bf16.msra.mxu0 %v5868
    %8321 = vmatprep.subr.bf16.mxu0 %v5877
    %8322 = vmatpush1.bf16.msra.mxu0 %v5876
    %8323 = vmatprep.subr.bf16.mxu0 %v5885
    %8324 = vmatpush1.bf16.msra.mxu0 %v5884
    %8325 = vmatprep.subr.bf16.mxu0 %v5893
    %8326 = vmatpush1.bf16.msra.mxu0 %v5892
    %8327 = vmatprep.subr.bf16.mxu0 %v5901
    %8328 = vmatpush1.bf16.msra.mxu0 %v5900
    %8329 = vmatprep.subr.bf16.mxu0 %v5909
    %8330 = vmatpush1.bf16.msra.mxu0 %v5908
    %8331 = vmatprep.subr.bf16.mxu0 %v5917
    %8332 = vmatpush1.bf16.msra.mxu0 %v5916
    %8333 = vmatprep.subr.bf16.mxu0 %v5925
    %8334 = vmatpush1.bf16.msra.mxu0 %v5924
    %8335 = vmatprep.subr.bf16.mxu0 %v5933
    %8336 = vmatpush1.bf16.msra.mxu0 %v5932
    %8337 = vmatprep.subr.bf16.mxu0 %v5941
    %8338 = vmatpush1.bf16.msra.mxu0 %v5940
    %8339 = vmatprep.subr.bf16.mxu0 %v5949
    %8340 = vmatpush1.bf16.msra.mxu0 %v5948
    %8341 = vmatprep.subr.bf16.mxu0 %v5957
    %8342 = vmatpush1.bf16.msra.mxu0 %v5956
    %8343 = vmatprep.mubr.bf16.mxu0 %v792
    %8344 = vmatmul.mubr.bf16.gmra.mrb[0].mxu0 %v791
    %v8345 = vpop.f32.mrb[0].mxu0
    %v8346 = vadd.f32 %v8305, %v8345
    %v8347 = vpop.f32.mrb[0].mxu0
    %v8348 = vadd.f32 %v8307, %v8347
    %v8349 = vpop.f32.mrb[0].mxu0
    %v8350 = vpop.f32.mrb[0].mxu0
    %8351 = vdwg.mxu0
    %8352 = vmatprep.subr.bf16.mxu0 %v5965
    %8353 = vmatpush1.bf16.msra.mxu0 %v5964
    %8354 = vmatprep.subr.bf16.mxu0 %v5973
    %8355 = vmatpush1.bf16.msra.mxu0 %v5972
    %8356 = vmatprep.subr.bf16.mxu0 %v5981
    %8357 = vmatpush1.bf16.msra.mxu0 %v5980
    %8358 = vmatprep.subr.bf16.mxu0 %v5989
    %8359 = vmatpush1.bf16.msra.mxu0 %v5988
    %8360 = vmatprep.subr.bf16.mxu0 %v5997
    %8361 = vmatpush1.bf16.msra.mxu0 %v5996
    %8362 = vmatprep.subr.bf16.mxu0 %v6005
    %8363 = vmatpush1.bf16.msra.mxu0 %v6004
    %8364 = vmatprep.subr.bf16.mxu0 %v6013
    %8365 = vmatpush1.bf16.msra.mxu0 %v6012
    %8366 = vmatprep.subr.bf16.mxu0 %v6021
    %8367 = vmatpush1.bf16.msra.mxu0 %v6020
    %8368 = vmatprep.subr.bf16.mxu0 %v6029
    %8369 = vmatpush1.bf16.msra.mxu0 %v6028
    %8370 = vmatprep.subr.bf16.mxu0 %v6037
    %8371 = vmatpush1.bf16.msra.mxu0 %v6036
    %8372 = vmatprep.subr.bf16.mxu0 %v6045
    %8373 = vmatpush1.bf16.msra.mxu0 %v6044
    %8374 = vmatprep.subr.bf16.mxu0 %v6053
    %8375 = vmatpush1.bf16.msra.mxu0 %v6052
    %8376 = vmatprep.subr.bf16.mxu0 %v6061
    %8377 = vmatpush1.bf16.msra.mxu0 %v6060
    %8378 = vmatprep.subr.bf16.mxu0 %v6069
    %8379 = vmatpush1.bf16.msra.mxu0 %v6068
    %8380 = vmatprep.subr.bf16.mxu0 %v6077
    %8381 = vmatpush1.bf16.msra.mxu0 %v6076
    %8382 = vmatprep.subr.bf16.mxu0 %v6085
    %8383 = vmatpush1.bf16.msra.mxu0 %v6084
    %8384 = vmatprep.mubr.bf16.mxu0 %v794
    %8385 = vmatmul.mubr.bf16.gmra.mrb[0].mxu0 %v793
    %v8386 = vpop.f32.mrb[0].mxu0
    %v8387 = vadd.f32 %v8346, %v8386
    %v8388 = vpop.f32.mrb[0].mxu0
    %v8389 = vadd.f32 %v8348, %v8388
    %v8390 = vpop.f32.mrb[0].mxu0
    %v8391 = vpop.f32.mrb[0].mxu0
    %8392 = vdwg.mxu0
    %8393 = vmatprep.subr.bf16.mxu0 %v6093
    %8394 = vmatpush1.bf16.msra.mxu0 %v6092
    %8395 = vmatprep.subr.bf16.mxu0 %v6101
    %8396 = vmatpush1.bf16.msra.mxu0 %v6100
    %8397 = vmatprep.subr.bf16.mxu0 %v6109
    %8398 = vmatpush1.bf16.msra.mxu0 %v6108
    %8399 = vmatprep.subr.bf16.mxu0 %v6117
    %8400 = vmatpush1.bf16.msra.mxu0 %v6116
    %8401 = vmatprep.subr.bf16.mxu0 %v6125
    %8402 = vmatpush1.bf16.msra.mxu0 %v6124
    %8403 = vmatprep.subr.bf16.mxu0 %v6133
    %8404 = vmatpush1.bf16.msra.mxu0 %v6132
    %8405 = vmatprep.subr.bf16.mxu0 %v6141
    %8406 = vmatpush1.bf16.msra.mxu0 %v6140
    %8407 = vmatprep.subr.bf16.mxu0 %v6149
    %8408 = vmatpush1.bf16.msra.mxu0 %v6148
    %8409 = vmatprep.subr.bf16.mxu0 %v6157
    %8410 = vmatpush1.bf16.msra.mxu0 %v6156
    %8411 = vmatprep.subr.bf16.mxu0 %v6165
    %8412 = vmatpush1.bf16.msra.mxu0 %v6164
    %8413 = vmatprep.subr.bf16.mxu0 %v6173
    %8414 = vmatpush1.bf16.msra.mxu0 %v6172
    %8415 = vmatprep.subr.bf16.mxu0 %v6181
    %8416 = vmatpush1.bf16.msra.mxu0 %v6180
    %8417 = vmatprep.subr.bf16.mxu0 %v6189
    %8418 = vmatpush1.bf16.msra.mxu0 %v6188
    %8419 = vmatprep.subr.bf16.mxu0 %v6197
    %8420 = vmatpush1.bf16.msra.mxu0 %v6196
    %8421 = vmatprep.subr.bf16.mxu0 %v6205
    %8422 = vmatpush1.bf16.msra.mxu0 %v6204
    %8423 = vmatprep.subr.bf16.mxu0 %v6213
    %8424 = vmatpush1.bf16.msra.mxu0 %v6212
    %8425 = vmatprep.mubr.bf16.mxu0 %v796
    %8426 = vmatmul.mubr.bf16.gmra.mrb[0].mxu0 %v795
    %v8427 = vpop.f32.mrb[0].mxu0
    %v8428 = vadd.f32 %v8387, %v8427
    %v8429 = vpop.f32.mrb[0].mxu0
    %v8430 = vadd.f32 %v8389, %v8429
    %v8431 = vpop.f32.mrb[0].mxu0
    %v8432 = vpop.f32.mrb[0].mxu0
    %8433 = vdwg.mxu0
    %8434 = vmatprep.subr.bf16.mxu0 %v6221
    %8435 = vmatpush1.bf16.msra.mxu0 %v6220
    %8436 = vmatprep.subr.bf16.mxu0 %v6229
    %8437 = vmatpush1.bf16.msra.mxu0 %v6228
    %8438 = vmatprep.subr.bf16.mxu0 %v6237
    %8439 = vmatpush1.bf16.msra.mxu0 %v6236
    %8440 = vmatprep.subr.bf16.mxu0 %v6245
    %8441 = vmatpush1.bf16.msra.mxu0 %v6244
    %8442 = vmatprep.subr.bf16.mxu0 %v6253
    %8443 = vmatpush1.bf16.msra.mxu0 %v6252
    %8444 = vmatprep.subr.bf16.mxu0 %v6261
    %8445 = vmatpush1.bf16.msra.mxu0 %v6260
    %8446 = vmatprep.subr.bf16.mxu0 %v6269
    %8447 = vmatpush1.bf16.msra.mxu0 %v6268
    %8448 = vmatprep.subr.bf16.mxu0 %v6277
    %8449 = vmatpush1.bf16.msra.mxu0 %v6276
    %8450 = vmatprep.subr.bf16.mxu0 0
    %8451 = vmatpush1.bf16.msra.mxu0 0
    %8452 = vmatprep.subr.bf16.mxu0 0
    %8453 = vmatpush1.bf16.msra.mxu0 0
    %8454 = vmatprep.subr.bf16.mxu0 0
    %8455 = vmatpush1.bf16.msra.mxu0 0
    %8456 = vmatprep.subr.bf16.mxu0 0
    %8457 = vmatpush1.bf16.msra.mxu0 0
    %8458 = vmatprep.subr.bf16.mxu0 0
    %8459 = vmatpush1.bf16.msra.mxu0 0
    %8460 = vmatprep.subr.bf16.mxu0 0
    %8461 = vmatpush1.bf16.msra.mxu0 0
    %8462 = vmatprep.subr.bf16.mxu0 0
    %8463 = vmatpush1.bf16.msra.mxu0 0
    %8464 = vmatprep.subr.bf16.mxu0 0
    %8465 = vmatpush1.bf16.msra.mxu0 0
    %8466 = vmatprep.mubr.bf16.mxu0 0
    %8467 = vmatmul.mubr.bf16.gmra.mrb[0].mxu0 %v797
    %v8468 = vpop.f32.mrb[0].mxu0
    %v8469 = vadd.f32 %v8428, %v8468
    %v8470 = vpop.f32.mrb[0].mxu0
    %v8471 = vadd.f32 %v8430, %v8470
    %v8472 = vpop.f32.mrb[0].mxu0
    %v8473 = vpop.f32.mrb[0].mxu0
    %8474 = vdwg.mxu0
    %8475 = vmatprep.subr.bf16.mxu0 %v5199
    %8476 = vmatpush1.bf16.msra.mxu0 %v5198
    %8477 = vmatprep.subr.bf16.mxu0 %v5207
    %8478 = vmatpush1.bf16.msra.mxu0 %v5206
    %8479 = vmatprep.subr.bf16.mxu0 %v5215
    %8480 = vmatpush1.bf16.msra.mxu0 %v5214
    %8481 = vmatprep.subr.bf16.mxu0 %v5223
    %8482 = vmatpush1.bf16.msra.mxu0 %v5222
    %8483 = vmatprep.subr.bf16.mxu0 %v5231
    %8484 = vmatpush1.bf16.msra.mxu0 %v5230
    %8485 = vmatprep.subr.bf16.mxu0 %v5239
    %8486 = vmatpush1.bf16.msra.mxu0 %v5238
    %8487 = vmatprep.subr.bf16.mxu0 %v5247
    %8488 = vmatpush1.bf16.msra.mxu0 %v5246
    %8489 = vmatprep.subr.bf16.mxu0 %v5255
    %8490 = vmatpush1.bf16.msra.mxu0 %v5254
    %8491 = vmatprep.subr.bf16.mxu0 %v5263
    %8492 = vmatpush1.bf16.msra.mxu0 %v5262
    %8493 = vmatprep.subr.bf16.mxu0 %v5271
    %8494 = vmatpush1.bf16.msra.mxu0 %v5270
    %8495 = vmatprep.subr.bf16.mxu0 %v5279
    %8496 = vmatpush1.bf16.msra.mxu0 %v5278
    %8497 = vmatprep.subr.bf16.mxu0 %v5287
    %8498 = vmatpush1.bf16.msra.mxu0 %v5286
    %8499 = vmatprep.subr.bf16.mxu0 %v5295
    %8500 = vmatpush1.bf16.msra.mxu0 %v5294
    %8501 = vmatprep.subr.bf16.mxu0 %v5303
    %8502 = vmatpush1.bf16.msra.mxu0 %v5302
    %8503 = vmatprep.subr.bf16.mxu0 %v5311
    %8504 = vmatpush1.bf16.msra.mxu0 %v5310
    %8505 = vmatprep.subr.bf16.mxu0 %v5319
    %8506 = vmatpush1.bf16.msra.mxu0 %v5318
    %8507 = vmatprep.mubr.bf16.mxu0 %v782
    %8508 = vmatmul.mubr.bf16.gmra.mrb[0].mxu0 %v781
    %v8509 = vpop.f32.mrb[0].mxu0
    %v8510 = vadd.f32 %v1915, %v8509
    %v8511 = vpop.f32.mrb[0].mxu0
    %v8512 = vadd.f32 %v1919, %v8511
    %v8513 = vpop.f32.mrb[0].mxu0
    %v8514 = vpop.f32.mrb[0].mxu0
    %8515 = vdwg.mxu0
    %8516 = vmatprep.subr.bf16.mxu0 %v5327
    %8517 = vmatpush1.bf16.msra.mxu0 %v5326
    %8518 = vmatprep.subr.bf16.mxu0 %v5335
    %8519 = vmatpush1.bf16.msra.mxu0 %v5334
    %8520 = vmatprep.subr.bf16.mxu0 %v5343
    %8521 = vmatpush1.bf16.msra.mxu0 %v5342
    %8522 = vmatprep.subr.bf16.mxu0 %v5351
    %8523 = vmatpush1.bf16.msra.mxu0 %v5350
    %8524 = vmatprep.subr.bf16.mxu0 %v5359
    %8525 = vmatpush1.bf16.msra.mxu0 %v5358
    %8526 = vmatprep.subr.bf16.mxu0 %v5367
    %8527 = vmatpush1.bf16.msra.mxu0 %v5366
    %8528 = vmatprep.subr.bf16.mxu0 %v5375
    %8529 = vmatpush1.bf16.msra.mxu0 %v5374
    %8530 = vmatprep.subr.bf16.mxu0 %v5383
    %8531 = vmatpush1.bf16.msra.mxu0 %v5382
    %8532 = vmatprep.subr.bf16.mxu0 %v5391
    %8533 = vmatpush1.bf16.msra.mxu0 %v5390
    %8534 = vmatprep.subr.bf16.mxu0 %v5399
    %8535 = vmatpush1.bf16.msra.mxu0 %v5398
    %8536 = vmatprep.subr.bf16.mxu0 %v5407
    %8537 = vmatpush1.bf16.msra.mxu0 %v5406
    %8538 = vmatprep.subr.bf16.mxu0 %v5415
    %8539 = vmatpush1.bf16.msra.mxu0 %v5414
    %8540 = vmatprep.subr.bf16.mxu0 %v5423
    %8541 = vmatpush1.bf16.msra.mxu0 %v5422
    %8542 = vmatprep.subr.bf16.mxu0 %v5431
    %8543 = vmatpush1.bf16.msra.mxu0 %v5430
    %8544 = vmatprep.subr.bf16.mxu0 %v5439
    %8545 = vmatpush1.bf16.msra.mxu0 %v5438
    %8546 = vmatprep.subr.bf16.mxu0 %v5447
    %8547 = vmatpush1.bf16.msra.mxu0 %v5446
    %8548 = vmatprep.mubr.bf16.mxu0 %v784
    %8549 = vmatmul.mubr.bf16.gmra.mrb[0].mxu0 %v783
    %v8550 = vpop.f32.mrb[0].mxu0
    %v8551 = vadd.f32 %v8510, %v8550
    %v8552 = vpop.f32.mrb[0].mxu0
    %v8553 = vadd.f32 %v8512, %v8552
    %v8554 = vpop.f32.mrb[0].mxu0
    %v8555 = vpop.f32.mrb[0].mxu0
    %8556 = vdwg.mxu0
    %8557 = vmatprep.subr.bf16.mxu0 %v5455
    %8558 = vmatpush1.bf16.msra.mxu0 %v5454
    %8559 = vmatprep.subr.bf16.mxu0 %v5463
    %8560 = vmatpush1.bf16.msra.mxu0 %v5462
    %8561 = vmatprep.subr.bf16.mxu0 %v5471
    %8562 = vmatpush1.bf16.msra.mxu0 %v5470
    %8563 = vmatprep.subr.bf16.mxu0 %v5479
    %8564 = vmatpush1.bf16.msra.mxu0 %v5478
    %8565 = vmatprep.subr.bf16.mxu0 %v5487
    %8566 = vmatpush1.bf16.msra.mxu0 %v5486
    %8567 = vmatprep.subr.bf16.mxu0 %v5495
    %8568 = vmatpush1.bf16.msra.mxu0 %v5494
    %8569 = vmatprep.subr.bf16.mxu0 %v5503
    %8570 = vmatpush1.bf16.msra.mxu0 %v5502
    %8571 = vmatprep.subr.bf16.mxu0 %v5511
    %8572 = vmatpush1.bf16.msra.mxu0 %v5510
    %8573 = vmatprep.subr.bf16.mxu0 %v5519
    %8574 = vmatpush1.bf16.msra.mxu0 %v5518
    %8575 = vmatprep.subr.bf16.mxu0 %v5527
    %8576 = vmatpush1.bf16.msra.mxu0 %v5526
    %8577 = vmatprep.subr.bf16.mxu0 %v5535
    %8578 = vmatpush1.bf16.msra.mxu0 %v5534
    %8579 = vmatprep.subr.bf16.mxu0 %v5543
    %8580 = vmatpush1.bf16.msra.mxu0 %v5542
    %8581 = vmatprep.subr.bf16.mxu0 %v5551
    %8582 = vmatpush1.bf16.msra.mxu0 %v5550
    %8583 = vmatprep.subr.bf16.mxu0 %v5559
    %8584 = vmatpush1.bf16.msra.mxu0 %v5558
    %8585 = vmatprep.subr.bf16.mxu0 %v5567
    %8586 = vmatpush1.bf16.msra.mxu0 %v5566
    %8587 = vmatprep.subr.bf16.mxu0 %v5575
    %8588 = vmatpush1.bf16.msra.mxu0 %v5574
    %8589 = vmatprep.mubr.bf16.mxu0 %v786
    %8590 = vmatmul.mubr.bf16.gmra.mrb[0].mxu0 %v785
    %v8591 = vpop.f32.mrb[0].mxu0
    %v8592 = vadd.f32 %v8551, %v8591
    %v8593 = vpop.f32.mrb[0].mxu0
    %v8594 = vadd.f32 %v8553, %v8593
    %v8595 = vpop.f32.mrb[0].mxu0
    %v8596 = vpop.f32.mrb[0].mxu0
    %8597 = vdwg.mxu0
    %8598 = vmatprep.subr.bf16.mxu0 %v5583
    %8599 = vmatpush1.bf16.msra.mxu0 %v5582
    %8600 = vmatprep.subr.bf16.mxu0 %v5591
    %8601 = vmatpush1.bf16.msra.mxu0 %v5590
    %8602 = vmatprep.subr.bf16.mxu0 %v5599
    %8603 = vmatpush1.bf16.msra.mxu0 %v5598
    %8604 = vmatprep.subr.bf16.mxu0 %v5607
    %8605 = vmatpush1.bf16.msra.mxu0 %v5606
    %8606 = vmatprep.subr.bf16.mxu0 %v5615
    %8607 = vmatpush1.bf16.msra.mxu0 %v5614
    %8608 = vmatprep.subr.bf16.mxu0 %v5623
    %8609 = vmatpush1.bf16.msra.mxu0 %v5622
    %8610 = vmatprep.subr.bf16.mxu0 %v5631
    %8611 = vmatpush1.bf16.msra.mxu0 %v5630
    %8612 = vmatprep.subr.bf16.mxu0 %v5639
    %8613 = vmatpush1.bf16.msra.mxu0 %v5638
    %8614 = vmatprep.subr.bf16.mxu0 %v5647
    %8615 = vmatpush1.bf16.msra.mxu0 %v5646
    %8616 = vmatprep.subr.bf16.mxu0 %v5655
    %8617 = vmatpush1.bf16.msra.mxu0 %v5654
    %8618 = vmatprep.subr.bf16.mxu0 %v5663
    %8619 = vmatpush1.bf16.msra.mxu0 %v5662
    %8620 = vmatprep.subr.bf16.mxu0 %v5671
    %8621 = vmatpush1.bf16.msra.mxu0 %v5670
    %8622 = vmatprep.subr.bf16.mxu0 %v5679
    %8623 = vmatpush1.bf16.msra.mxu0 %v5678
    %8624 = vmatprep.subr.bf16.mxu0 %v5687
    %8625 = vmatpush1.bf16.msra.mxu0 %v5686
    %8626 = vmatprep.subr.bf16.mxu0 %v5695
    %8627 = vmatpush1.bf16.msra.mxu0 %v5694
    %8628 = vmatprep.subr.bf16.mxu0 %v5703
    %8629 = vmatpush1.bf16.msra.mxu0 %v5702
    %8630 = vmatprep.mubr.bf16.mxu0 %v788
    %8631 = vmatmul.mubr.bf16.gmra.mrb[0].mxu0 %v787
    %v8632 = vpop.f32.mrb[0].mxu0
    %v8633 = vadd.f32 %v8592, %v8632
    %v8634 = vpop.f32.mrb[0].mxu0
    %v8635 = vadd.f32 %v8594, %v8634
    %v8636 = vpop.f32.mrb[0].mxu0
    %v8637 = vpop.f32.mrb[0].mxu0
    %8638 = vdwg.mxu0
    %8639 = vmatprep.subr.bf16.mxu0 %v5711
    %8640 = vmatpush1.bf16.msra.mxu0 %v5710
    %8641 = vmatprep.subr.bf16.mxu0 %v5719
    %8642 = vmatpush1.bf16.msra.mxu0 %v5718
    %8643 = vmatprep.subr.bf16.mxu0 %v5727
    %8644 = vmatpush1.bf16.msra.mxu0 %v5726
    %8645 = vmatprep.subr.bf16.mxu0 %v5735
    %8646 = vmatpush1.bf16.msra.mxu0 %v5734
    %8647 = vmatprep.subr.bf16.mxu0 %v5743
    %8648 = vmatpush1.bf16.msra.mxu0 %v5742
    %8649 = vmatprep.subr.bf16.mxu0 %v5751
    %8650 = vmatpush1.bf16.msra.mxu0 %v5750
    %8651 = vmatprep.subr.bf16.mxu0 %v5759
    %8652 = vmatpush1.bf16.msra.mxu0 %v5758
    %8653 = vmatprep.subr.bf16.mxu0 %v5767
    %8654 = vmatpush1.bf16.msra.mxu0 %v5766
    %8655 = vmatprep.subr.bf16.mxu0 %v5775
    %8656 = vmatpush1.bf16.msra.mxu0 %v5774
    %8657 = vmatprep.subr.bf16.mxu0 %v5783
    %8658 = vmatpush1.bf16.msra.mxu0 %v5782
    %8659 = vmatprep.subr.bf16.mxu0 %v5791
    %8660 = vmatpush1.bf16.msra.mxu0 %v5790
    %8661 = vmatprep.subr.bf16.mxu0 %v5799
    %8662 = vmatpush1.bf16.msra.mxu0 %v5798
    %8663 = vmatprep.subr.bf16.mxu0 %v5807
    %8664 = vmatpush1.bf16.msra.mxu0 %v5806
    %8665 = vmatprep.subr.bf16.mxu0 %v5815
    %8666 = vmatpush1.bf16.msra.mxu0 %v5814
    %8667 = vmatprep.subr.bf16.mxu0 %v5823
    %8668 = vmatpush1.bf16.msra.mxu0 %v5822
    %8669 = vmatprep.subr.bf16.mxu0 %v5831
    %8670 = vmatpush1.bf16.msra.mxu0 %v5830
    %8671 = vmatprep.mubr.bf16.mxu0 %v790
    %8672 = vmatmul.mubr.bf16.gmra.mrb[0].mxu0 %v789
    %v8673 = vpop.f32.mrb[0].mxu0
    %v8674 = vadd.f32 %v8633, %v8673
    %v8675 = vpop.f32.mrb[0].mxu0
    %v8676 = vadd.f32 %v8635, %v8675
    %v8677 = vpop.f32.mrb[0].mxu0
    %v8678 = vpop.f32.mrb[0].mxu0
    %8679 = vdwg.mxu0
    %8680 = vmatprep.subr.bf16.mxu0 %v5839
    %8681 = vmatpush1.bf16.msra.mxu0 %v5838
    %8682 = vmatprep.subr.bf16.mxu0 %v5847
    %8683 = vmatpush1.bf16.msra.mxu0 %v5846
    %8684 = vmatprep.subr.bf16.mxu0 %v5855
    %8685 = vmatpush1.bf16.msra.mxu0 %v5854
    %8686 = vmatprep.subr.bf16.mxu0 %v5863
    %8687 = vmatpush1.bf16.msra.mxu0 %v5862
    %8688 = vmatprep.subr.bf16.mxu0 %v5871
    %8689 = vmatpush1.bf16.msra.mxu0 %v5870
    %8690 = vmatprep.subr.bf16.mxu0 %v5879
    %8691 = vmatpush1.bf16.msra.mxu0 %v5878
    %8692 = vmatprep.subr.bf16.mxu0 %v5887
    %8693 = vmatpush1.bf16.msra.mxu0 %v5886
    %8694 = vmatprep.subr.bf16.mxu0 %v5895
    %8695 = vmatpush1.bf16.msra.mxu0 %v5894
    %8696 = vmatprep.subr.bf16.mxu0 %v5903
    %8697 = vmatpush1.bf16.msra.mxu0 %v5902
    %8698 = vmatprep.subr.bf16.mxu0 %v5911
    %8699 = vmatpush1.bf16.msra.mxu0 %v5910
    %8700 = vmatprep.subr.bf16.mxu0 %v5919
    %8701 = vmatpush1.bf16.msra.mxu0 %v5918
    %8702 = vmatprep.subr.bf16.mxu0 %v5927
    %8703 = vmatpush1.bf16.msra.mxu0 %v5926
    %8704 = vmatprep.subr.bf16.mxu0 %v5935
    %8705 = vmatpush1.bf16.msra.mxu0 %v5934
    %8706 = vmatprep.subr.bf16.mxu0 %v5943
    %8707 = vmatpush1.bf16.msra.mxu0 %v5942
    %8708 = vmatprep.subr.bf16.mxu0 %v5951
    %8709 = vmatpush1.bf16.msra.mxu0 %v5950
    %8710 = vmatprep.subr.bf16.mxu0 %v5959
    %8711 = vmatpush1.bf16.msra.mxu0 %v5958
    %8712 = vmatprep.mubr.bf16.mxu0 %v792
    %8713 = vmatmul.mubr.bf16.gmra.mrb[0].mxu0 %v791
    %v8714 = vpop.f32.mrb[0].mxu0
    %v8715 = vadd.f32 %v8674, %v8714
    %v8716 = vpop.f32.mrb[0].mxu0
    %v8717 = vadd.f32 %v8676, %v8716
    %v8718 = vpop.f32.mrb[0].mxu0
    %v8719 = vpop.f32.mrb[0].mxu0
    %8720 = vdwg.mxu0
    %8721 = vmatprep.subr.bf16.mxu0 %v5967
    %8722 = vmatpush1.bf16.msra.mxu0 %v5966
    %8723 = vmatprep.subr.bf16.mxu0 %v5975
    %8724 = vmatpush1.bf16.msra.mxu0 %v5974
    %8725 = vmatprep.subr.bf16.mxu0 %v5983
    %8726 = vmatpush1.bf16.msra.mxu0 %v5982
    %8727 = vmatprep.subr.bf16.mxu0 %v5991
    %8728 = vmatpush1.bf16.msra.mxu0 %v5990
    %8729 = vmatprep.subr.bf16.mxu0 %v5999
    %8730 = vmatpush1.bf16.msra.mxu0 %v5998
    %8731 = vmatprep.subr.bf16.mxu0 %v6007
    %8732 = vmatpush1.bf16.msra.mxu0 %v6006
    %8733 = vmatprep.subr.bf16.mxu0 %v6015
    %8734 = vmatpush1.bf16.msra.mxu0 %v6014
    %8735 = vmatprep.subr.bf16.mxu0 %v6023
    %8736 = vmatpush1.bf16.msra.mxu0 %v6022
    %8737 = vmatprep.subr.bf16.mxu0 %v6031
    %8738 = vmatpush1.bf16.msra.mxu0 %v6030
    %8739 = vmatprep.subr.bf16.mxu0 %v6039
    %8740 = vmatpush1.bf16.msra.mxu0 %v6038
    %8741 = vmatprep.subr.bf16.mxu0 %v6047
    %8742 = vmatpush1.bf16.msra.mxu0 %v6046
    %8743 = vmatprep.subr.bf16.mxu0 %v6055
    %8744 = vmatpush1.bf16.msra.mxu0 %v6054
    %8745 = vmatprep.subr.bf16.mxu0 %v6063
    %8746 = vmatpush1.bf16.msra.mxu0 %v6062
    %8747 = vmatprep.subr.bf16.mxu0 %v6071
    %8748 = vmatpush1.bf16.msra.mxu0 %v6070
    %8749 = vmatprep.subr.bf16.mxu0 %v6079
    %8750 = vmatpush1.bf16.msra.mxu0 %v6078
    %8751 = vmatprep.subr.bf16.mxu0 %v6087
    %8752 = vmatpush1.bf16.msra.mxu0 %v6086
    %8753 = vmatprep.mubr.bf16.mxu0 %v794
    %8754 = vmatmul.mubr.bf16.gmra.mrb[0].mxu0 %v793
    %v8755 = vpop.f32.mrb[0].mxu0
    %v8756 = vadd.f32 %v8715, %v8755
    %v8757 = vpop.f32.mrb[0].mxu0
    %v8758 = vadd.f32 %v8717, %v8757
    %v8759 = vpop.f32.mrb[0].mxu0
    %v8760 = vpop.f32.mrb[0].mxu0
    %8761 = vdwg.mxu0
    %8762 = vmatprep.subr.bf16.mxu0 %v6095
    %8763 = vmatpush1.bf16.msra.mxu0 %v6094
    %8764 = vmatprep.subr.bf16.mxu0 %v6103
    %8765 = vmatpush1.bf16.msra.mxu0 %v6102
    %8766 = vmatprep.subr.bf16.mxu0 %v6111
    %8767 = vmatpush1.bf16.msra.mxu0 %v6110
    %8768 = vmatprep.subr.bf16.mxu0 %v6119
    %8769 = vmatpush1.bf16.msra.mxu0 %v6118
    %8770 = vmatprep.subr.bf16.mxu0 %v6127
    %8771 = vmatpush1.bf16.msra.mxu0 %v6126
    %8772 = vmatprep.subr.bf16.mxu0 %v6135
    %8773 = vmatpush1.bf16.msra.mxu0 %v6134
    %8774 = vmatprep.subr.bf16.mxu0 %v6143
    %8775 = vmatpush1.bf16.msra.mxu0 %v6142
    %8776 = vmatprep.subr.bf16.mxu0 %v6151
    %8777 = vmatpush1.bf16.msra.mxu0 %v6150
    %8778 = vmatprep.subr.bf16.mxu0 %v6159
    %8779 = vmatpush1.bf16.msra.mxu0 %v6158
    %8780 = vmatprep.subr.bf16.mxu0 %v6167
    %8781 = vmatpush1.bf16.msra.mxu0 %v6166
    %8782 = vmatprep.subr.bf16.mxu0 %v6175
    %8783 = vmatpush1.bf16.msra.mxu0 %v6174
    %8784 = vmatprep.subr.bf16.mxu0 %v6183
    %8785 = vmatpush1.bf16.msra.mxu0 %v6182
    %8786 = vmatprep.subr.bf16.mxu0 %v6191
    %8787 = vmatpush1.bf16.msra.mxu0 %v6190
    %8788 = vmatprep.subr.bf16.mxu0 %v6199
    %8789 = vmatpush1.bf16.msra.mxu0 %v6198
    %8790 = vmatprep.subr.bf16.mxu0 %v6207
    %8791 = vmatpush1.bf16.msra.mxu0 %v6206
    %8792 = vmatprep.subr.bf16.mxu0 %v6215
    %8793 = vmatpush1.bf16.msra.mxu0 %v6214
    %8794 = vmatprep.mubr.bf16.mxu0 %v796
    %8795 = vmatmul.mubr.bf16.gmra.mrb[0].mxu0 %v795
    %v8796 = vpop.f32.mrb[0].mxu0
    %v8797 = vadd.f32 %v8756, %v8796
    %v8798 = vpop.f32.mrb[0].mxu0
    %v8799 = vadd.f32 %v8758, %v8798
    %v8800 = vpop.f32.mrb[0].mxu0
    %v8801 = vpop.f32.mrb[0].mxu0
    %8802 = vdwg.mxu0
    %8803 = vmatprep.subr.bf16.mxu0 %v6223
    %8804 = vmatpush1.bf16.msra.mxu0 %v6222
    %8805 = vmatprep.subr.bf16.mxu0 %v6231
    %8806 = vmatpush1.bf16.msra.mxu0 %v6230
    %8807 = vmatprep.subr.bf16.mxu0 %v6239
    %8808 = vmatpush1.bf16.msra.mxu0 %v6238
    %8809 = vmatprep.subr.bf16.mxu0 %v6247
    %8810 = vmatpush1.bf16.msra.mxu0 %v6246
    %8811 = vmatprep.subr.bf16.mxu0 %v6255
    %8812 = vmatpush1.bf16.msra.mxu0 %v6254
    %8813 = vmatprep.subr.bf16.mxu0 %v6263
    %8814 = vmatpush1.bf16.msra.mxu0 %v6262
    %8815 = vmatprep.subr.bf16.mxu0 %v6271
    %8816 = vmatpush1.bf16.msra.mxu0 %v6270
    %8817 = vmatprep.subr.bf16.mxu0 %v6279
    %8818 = vmatpush1.bf16.msra.mxu0 %v6278
    %8819 = vmatprep.subr.bf16.mxu0 0
    %8820 = vmatpush1.bf16.msra.mxu0 0
    %8821 = vmatprep.subr.bf16.mxu0 0
    %8822 = vmatpush1.bf16.msra.mxu0 0
    %8823 = vmatprep.subr.bf16.mxu0 0
    %8824 = vmatpush1.bf16.msra.mxu0 0
    %8825 = vmatprep.subr.bf16.mxu0 0
    %8826 = vmatpush1.bf16.msra.mxu0 0
    %8827 = vmatprep.subr.bf16.mxu0 0
    %8828 = vmatpush1.bf16.msra.mxu0 0
    %8829 = vmatprep.subr.bf16.mxu0 0
    %8830 = vmatpush1.bf16.msra.mxu0 0
    %8831 = vmatprep.subr.bf16.mxu0 0
    %8832 = vmatpush1.bf16.msra.mxu0 0
    %8833 = vmatprep.subr.bf16.mxu0 0
    %8834 = vmatpush1.bf16.msra.mxu0 0
    %8835 = vmatprep.mubr.bf16.mxu0 0
    %8836 = vmatmul.mubr.bf16.gmra.mrb[0].mxu0 %v797
    %v8837 = vpop.f32.mrb[0].mxu0
    %v8838 = vadd.f32 %v8797, %v8837
    %v8839 = vpop.f32.mrb[0].mxu0
    %v8840 = vadd.f32 %v8799, %v8839
    %v8841 = vpop.f32.mrb[0].mxu0
    %v8842 = vpop.f32.mrb[0].mxu0
    %8843 = vdwg.mxu0
    %v8844 = vmax.f32 %v7731, 0.0
    %v8845 = vmax.f32 %v7733, 0.0
    %v8846 = vmax.f32 %v8100, 0.0
    %v8847 = vmax.f32 %v8102, 0.0
    %v8848 = vmax.f32 %v8469, 0.0
    %v8849 = vmax.f32 %v8471, 0.0
    %v8850 = vmax.f32 %v8838, 0.0
    %v8851 = vmax.f32 %v8840, 0.0
    %v8852 = vld [vmem:[#allocation10] sm:$0xff]
    %v8854 = vlaneseq
    %v8855 = vshrl.u32 %v8854, 7
    %v8856 = vsub.s32 0, %v8855
    %v8857 = vrot.slane %v8852, %v8856
    %v8858 = vlaneseq
    %v8859 = vshrl.u32 %v8858, 7
    %v8860 = vsub.s32 1, %v8859
    %v8861 = vrot.slane %v8852, %v8860
    %v8862 = vlaneseq
    %v8863 = vshrl.u32 %v8862, 7
    %v8864 = vsub.s32 2, %v8863
    %v8865 = vrot.slane %v8852, %v8864
    %v8866 = vlaneseq
    %v8867 = vshrl.u32 %v8866, 7
    %v8868 = vsub.s32 3, %v8867
    %v8869 = vrot.slane %v8852, %v8868
    %v8870 = vlaneseq
    %v8871 = vshrl.u32 %v8870, 7
    %v8872 = vsub.s32 4, %v8871
    %v8873 = vrot.slane %v8852, %v8872
    %v8874 = vlaneseq
    %v8875 = vshrl.u32 %v8874, 7
    %v8876 = vsub.s32 5, %v8875
    %v8877 = vrot.slane %v8852, %v8876
    %v8878 = vlaneseq
    %v8879 = vshrl.u32 %v8878, 7
    %v8880 = vsub.s32 6, %v8879
    %v8881 = vrot.slane %v8852, %v8880
    %v8882 = vlaneseq
    %v8883 = vshrl.u32 %v8882, 7
    %v8884 = vsub.s32 7, %v8883
    %v8885 = vrot.slane %v8852, %v8884
    %v8894 = vmul.f32 %v8844, %v8857
    %v8895 = vmul.f32 %v8845, %v8861
    %v8896 = vmul.f32 %v8846, %v8865
    %v8897 = vmul.f32 %v8847, %v8869
    %v8898 = vmul.f32 %v8848, %v8873
    %v8899 = vmul.f32 %v8849, %v8877
    %v8900 = vmul.f32 %v8850, %v8881
    %v8901 = vmul.f32 %v8851, %v8885
    %v8902 = vadd.f32 %v8894, %v8895
    %v8903 = vadd.f32 %v8902, %v8896
    %v8904 = vadd.f32 %v8903, %v8897
    %v8905 = vadd.f32 %v8904, %v8898
    %v8906 = vadd.f32 %v8905, %v8899
    %v8907 = vadd.f32 %v8906, %v8900
    %v8908 = vadd.f32 %v8907, %v8901
    %8909 = vadd.xlane.f32.xlu0 %v8908
    %v8910 = vpop.xlane.xlu0 %8909
    %v8911 = vld [vmem:[#allocation2] sm:$0x1]
    %v8913 = vlaneseq
    %v8914 = vshrl.u32 %v8913, 7
    %v8915 = vsub.s32 0, %v8914
    %v8916 = vrot.slane %v8911, %v8915
    %v8918 = vadd.f32 %v8910, %v8916
    %vm8919 = vcmask 7168
    %8920 = vst.msk [vmem:[%s7] sm:$0xff] %vm8919, %v8918
    // Predicated region
    $region50: #{critic_forward.1} parent=1 // pred_check
      _
    $region51: #{critic_forward.1} parent=1 // pred_check_branch
      %8922 = sbr.rel (0) target = $region53
    $region52: #{critic_forward.1} parent=1 // pred_region
      _
    $region53: #{critic_forward.1} parent=1 // pred_fallthru
      _
    // Predicated region
    $region54: #{critic_forward.1} parent=1 // pred_check
      _
    $region55: #{critic_forward.1} parent=1 // pred_check_branch
      %8924 = sbr.rel (0) target = $region57
    $region56: #{critic_forward.1} parent=1 // pred_region
      _
    $region57: #{critic_forward.1} parent=1 // pred_fallthru
      _
    %8925 = vsyncpa [#allocation4], 1
    %8926 = vsyncpa [#allocation6], 1
    %8927 = vsyncpa [#allocation9], 1

</llo_original>
